<compile_context>
chip_gen: v7x
topology: tpu7x:2x2x1
jax: 0.10.0
libtpu: 0.0.40
codegen_flags: <defaults>
</compile_context>

<pallas_src>
import jax
import jax.numpy as jnp
from jax import lax
from jax.experimental import pallas as pl
from jax.experimental.pallas import tpu as pltpu

LRN_SIZE = 5
LRN_ALPHA = 0.001
LRN_BETA = 0.75
LRN_K = 2.0


# ------------------------------ fused kernel --------------------------------

def fused_forward_kernel(p_ref, wc_ref, bc_ref, band_ref,
                         w1_hbm, b1_ref, w2_ref, b2_ref, w3_ref, b3_ref,
                         o_ref, w1_vmem, w1_sem):
    # p_ref: (M, 32) bf16 im2col patches, row index r = (oh*10 + ow)*B2 + b.
    M = p_ref.shape[0]
    B2 = M // 100

    # Kick off the dominant HBM transfer (fc1 weight, 2 MB bf16) immediately so
    # it overlaps with conv + LRN + pool compute instead of gating the FC stack
    # on a cold fetch (and instead of gating kernel start via BlockSpec DMA).
    w1_cp = pltpu.make_async_copy(w1_hbm, w1_vmem, w1_sem)
    w1_cp.start()

    # ---- Conv2d(1,128,k5,s3,p2) as matmul + bias + ReLU --------------------
    y = jnp.dot(p_ref[...], wc_ref[...], preferred_element_type=jnp.float32)
    y = jnp.maximum(y + bc_ref[...], 0.0)                       # (M, 128) f32

    # ---- LocalResponseNorm(5, alpha=1e-3, beta=0.75, k=2) ------------------
    # cross-channel window sum via banded matmul (MXU, correct edge clamping).
    sq = (y * y).astype(jnp.bfloat16)
    ssum = jnp.dot(sq, band_ref[...], preferred_element_type=jnp.float32)
    base = LRN_K + (LRN_ALPHA / LRN_SIZE) * ssum                # base >= 2
    inv = lax.rsqrt(base)                                       # base**-0.5
    y = y * (inv * jnp.sqrt(inv))                               # * base**-0.25

    # ---- MaxPool2d(kernel_size=3, stride=2): 10x10 -> 4x4 ------------------
    # Rows are spatial-major / batch-minor (r = (h*10+w)*B2 + b), so the h/w
    # window maxima are plain shifted elementwise maxima and every pool-window
    # anchor's batch block is contiguous (8-row aligned for B2=4).
    sh, sw = 10 * B2, B2
    m3 = jnp.maximum(jnp.maximum(y[:M - 2 * sh], y[sh:M - sh]), y[2 * sh:])
    L = m3.shape[0]
    m3w = jnp.maximum(jnp.maximum(m3[:L - 2 * sw], m3[sw:L - sw]), m3[2 * sw:])

    # ---- flatten (NHWC order; fc1 rows were pre-permuted to match torch) ---
    blocks = []
    for ph in range(4):
        for pw in range(4):
            j = (20 * ph + 2 * pw) * B2              # window anchor (2ph, 2pw)
            blocks.append(m3w[j:j + B2])             # contiguous (B2, 128)
    flat = jnp.concatenate(blocks, axis=1).astype(jnp.bfloat16)   # (B2, 2048)

    # ---- FC stack (Dropout2d layers are eval-mode identity) ----------------
    w1_cp.wait()
    h = jnp.dot(flat, w1_vmem[...], preferred_element_type=jnp.float32) + b1_ref[...]
    h = jnp.maximum(h, 0.0).astype(jnp.bfloat16)
    h = jnp.dot(h, w2_ref[...], preferred_element_type=jnp.float32) + b2_ref[...]
    h = jnp.maximum(h, 0.0).astype(jnp.bfloat16)
    # lane-dense output: (B2, 128); real logits are columns 0..1.
    o_ref[...] = jnp.dot(h, w3_ref[...], preferred_element_type=jnp.float32) + b3_ref[...]


# ------------------------------ wrapper --------------------------------------

def fused_forward(patches, params):
    M = patches.shape[0]
    B2 = M // 100
    return pl.pallas_call(
        fused_forward_kernel,
        out_shape=jax.ShapeDtypeStruct((B2, 128), jnp.float32),
        grid=(1,),
        in_specs=[
            pl.BlockSpec((M, 32), lambda i: (0, 0)),       # patches
            pl.BlockSpec((32, 128), lambda i: (0, 0)),     # conv weight
            pl.BlockSpec((1, 128), lambda i: (0, 0)),      # conv bias
            pl.BlockSpec((128, 128), lambda i: (0, 0)),    # LRN band
            pl.BlockSpec(memory_space=pl.ANY),             # fc1 w (manual DMA)
            pl.BlockSpec((1, 512), lambda i: (0, 0)),      # fc1 b
            pl.BlockSpec((512, 128), lambda i: (0, 0)),    # fc2 w
            pl.BlockSpec((1, 128), lambda i: (0, 0)),      # fc2 b
            pl.BlockSpec((128, 128), lambda i: (0, 0)),    # fc3 w (padded)
            pl.BlockSpec((1, 128), lambda i: (0, 0)),      # fc3 b (padded)
        ],
        out_specs=pl.BlockSpec((B2, 128), lambda i: (0, 0)),
        scratch_shapes=[
            pltpu.VMEM((2048, 512), jnp.bfloat16),         # fc1 w landing buffer
            pltpu.SemaphoreType.DMA,
        ],
        compiler_params=pltpu.CompilerParams(
            dimension_semantics=("arbitrary",),
            vmem_limit_bytes=32 * 1024 * 1024,
        ),
    )(patches, params["wc"], params["bc"], params["band"],
      params["w1"], params["b1"], params["w2"], params["b2"],
      params["w3"], params["b3"])


def im2col(x_nchw):
    # (B2, 1, 28, 28) -> (B2*100, 32) bf16; row = (oh*10 + ow)*B2 + b,
    # columns (kh*5+kw) matching conv weight.reshape(128,25), padded 25 -> 32.
    B2 = x_nchw.shape[0]
    xp = jnp.pad(x_nchw, ((0, 0), (0, 0), (2, 2), (2, 2)))      # padding=2
    cols = []
    for kh in range(5):
        for kw in range(5):
            cols.append(xp[:, 0, kh:kh + 28:3, kw:kw + 28:3])   # stride 3 -> (B2,10,10)
    patches = jnp.stack(cols, axis=-1)                          # (B2,10,10,25)
    patches = patches.transpose(1, 2, 0, 3).reshape(100 * B2, 25)  # spatial-major
    patches = jnp.pad(patches, ((0, 0), (0, 7)))                # K: 25 -> 32
    return patches.astype(jnp.bfloat16)


def siamese_forward(x1, x2, params):
    # Batch both branches: weights are shared, so one fused forward suffices.
    B = x1.shape[0]
    x = jnp.concatenate([x1, x2], axis=0)           # (2B, 1, 28, 28)
    patches = im2col(x)
    out = fused_forward(patches, params)            # (2B, 128)
    logits = out[:, :2]                             # drop lane padding
    return logits[:B], logits[B:]


def init_params(key):
    ks = jax.random.split(key, 8)
    wc = jax.random.normal(ks[0], (128, 1, 5, 5), jnp.float32) * 0.1
    bc = jax.random.normal(ks[1], (128,), jnp.float32) * 0.1
    w1 = jax.random.normal(ks[2], (512, 2048), jnp.float32) * 0.02
    b1 = jax.random.normal(ks[3], (512,), jnp.float32) * 0.02
    w2 = jax.random.normal(ks[4], (128, 512), jnp.float32) * 0.02
    b2 = jax.random.normal(ks[5], (128,), jnp.float32) * 0.02
    w3 = jax.random.normal(ks[6], (2, 128), jnp.float32) * 0.02
    b3 = jax.random.normal(ks[7], (2,), jnp.float32) * 0.02

    # conv weight for im2col matmul, K padded 25 -> 32.
    wc_k = jnp.pad(wc.reshape(128, 25).T, ((0, 7), (0, 0)))     # (32, 128)

    # LRN band: band[c', c] = 1 iff |c'-c| <= 2.
    idx = jnp.arange(128)
    band = (jnp.abs(idx[:, None] - idx[None, :]) <= 2).astype(jnp.float32)

    # fc1 weight: transpose, then permute rows from torch NCHW-flatten order
    # (idx = c*16 + s) to the kernel's NHWC-flatten order (jdx = s*128 + c),
    # where s = ph*4 + pw.  One-time cost; removes the runtime transpose.
    w1_k = w1.T.reshape(128, 16, 512).transpose(1, 0, 2).reshape(2048, 512)

    # fc3: pad 2 -> 128 output columns so the final store is lane-dense.
    w3_k = jnp.pad(w3.T, ((0, 0), (0, 126)))                    # (128, 128)
    b3_k = jnp.pad(b3.reshape(1, 2), ((0, 0), (0, 126)))        # (1, 128)

    return dict(
        wc=wc_k.astype(jnp.bfloat16),
        bc=bc.reshape(1, 128),
        band=band.astype(jnp.bfloat16),
        w1=w1_k.astype(jnp.bfloat16), b1=b1.reshape(1, 512),
        w2=w2.T.astype(jnp.bfloat16), b2=b2.reshape(1, 128),
        w3=w3_k.astype(jnp.bfloat16), b3=b3_k,
    )


if __name__ == "__main__":
    key = jax.random.PRNGKey(0)
    k1, k2, kp = jax.random.split(key, 3)
    x1 = jax.random.normal(k1, (2, 1, 28, 28), jnp.float32)
    x2 = jax.random.normal(k2, (2, 1, 28, 28), jnp.float32)
    params = init_params(kp)

    fwd = jax.jit(lambda a, b: siamese_forward(a, b, params))
    o1, o2 = fwd(x1, x2)
    jax.block_until_ready((o1, o2))
    assert o1.shape == (2, 2) and o2.shape == (2, 2)
    assert o1.dtype == jnp.float32 and o2.dtype == jnp.float32
    print("KERNEL_OK")
</pallas_src>

<mosaic_0001>
module attributes {stable_mosaic.version = 11 : i64} {
  func.func @fused_forward_kernel(%arg0: i32, %arg1: memref<400x32xbf16, #tpu.memory_space<vmem>>, %arg2: memref<32x128xbf16, #tpu.memory_space<vmem>>, %arg3: memref<1x128xf32, #tpu.memory_space<vmem>>, %arg4: memref<128x128xbf16, #tpu.memory_space<vmem>>, %arg5: memref<2048x512xbf16, #tpu.memory_space<any>>, %arg6: memref<1x512xf32, #tpu.memory_space<vmem>>, %arg7: memref<512x128xbf16, #tpu.memory_space<vmem>>, %arg8: memref<1x128xf32, #tpu.memory_space<vmem>>, %arg9: memref<128x128xbf16, #tpu.memory_space<vmem>>, %arg10: memref<1x128xf32, #tpu.memory_space<vmem>>, %arg11: memref<4x128xf32, #tpu.memory_space<vmem>>, %arg12: memref<2048x512xbf16, #tpu.memory_space<vmem>>, %arg13: memref<!tpu.dma_semaphore, #tpu.memory_space<semaphore_mem>>) attributes {dimension_semantics = [#tpu.dimension_semantics<arbitrary>], iteration_bounds = array<i64: 1>, scalar_prefetch = 0 : i64, scratch_operands = 2 : i64, tpu.core_type = #tpu.core_type<tc>, window_params = [{pipeline_mode = #tpu.pipeline_mode<synchronous>, transform_indices = @transform_0, window_bounds = array<i64: 400, 32>}, {pipeline_mode = #tpu.pipeline_mode<synchronous>, transform_indices = @transform_1, window_bounds = array<i64: 32, 128>}, {pipeline_mode = #tpu.pipeline_mode<synchronous>, transform_indices = @transform_2, window_bounds = array<i64: 1, 128>}, {pipeline_mode = #tpu.pipeline_mode<synchronous>, transform_indices = @transform_3, window_bounds = array<i64: 128, 128>}, {}, {pipeline_mode = #tpu.pipeline_mode<synchronous>, transform_indices = @transform_5, window_bounds = array<i64: 1, 512>}, {pipeline_mode = #tpu.pipeline_mode<synchronous>, transform_indices = @transform_6, window_bounds = array<i64: 512, 128>}, {pipeline_mode = #tpu.pipeline_mode<synchronous>, transform_indices = @transform_7, window_bounds = array<i64: 1, 128>}, {pipeline_mode = #tpu.pipeline_mode<synchronous>, transform_indices = @transform_8, window_bounds = array<i64: 128, 128>}, {pipeline_mode = #tpu.pipeline_mode<synchronous>, transform_indices = @transform_9, window_bounds = array<i64: 1, 128>}, {pipeline_mode = #tpu.pipeline_mode<synchronous>, transform_indices = @transform_10, window_bounds = array<i64: 4, 128>}]} {
    tpu.enqueue_dma source(%arg5 : memref<2048x512xbf16, #tpu.memory_space<any>>) target(%arg12 : memref<2048x512xbf16, #tpu.memory_space<vmem>>) target_semaphore(%arg13 : memref<!tpu.dma_semaphore, #tpu.memory_space<semaphore_mem>>)
    %c0 = arith.constant 0 : index
    %c0_0 = arith.constant 0 : index
    %0 = vector.load %arg1[%c0, %c0_0] : memref<400x32xbf16, #tpu.memory_space<vmem>>, vector<400x32xbf16>
    %c0_1 = arith.constant 0 : index
    %c0_2 = arith.constant 0 : index
    %1 = vector.load %arg2[%c0_1, %c0_2] : memref<32x128xbf16, #tpu.memory_space<vmem>>, vector<32x128xbf16>
    %cst = arith.constant dense<0.000000e+00> : vector<400x128xf32>
    %2 = tpu.matmul %0, %1, %cst {dimension_numbers = #tpu.dot_dimension_numbers<[1], [0], [0], [1], [0, 0, 1, 1], [], []>} : vector<400x32xbf16>, vector<32x128xbf16>, vector<400x128xf32> -> vector<400x128xf32>
    %c0_3 = arith.constant 0 : index
    %c0_4 = arith.constant 0 : index
    %3 = vector.load %arg3[%c0_3, %c0_4] : memref<1x128xf32, #tpu.memory_space<vmem>>, vector<1x128xf32>
    %4 = vector.broadcast %3 : vector<1x128xf32> to vector<400x128xf32>
    %5 = arith.addf %2, %4 : vector<400x128xf32>
    %cst_5 = arith.constant 0.000000e+00 : f32
    %6 = vector.broadcast %cst_5 : f32 to vector<400x128xf32>
    %7 = arith.maximumf %5, %6 : vector<400x128xf32>
    %8 = arith.mulf %7, %7 : vector<400x128xf32>
    %9 = arith.truncf %8 : vector<400x128xf32> to vector<400x128xbf16>
    %c0_6 = arith.constant 0 : index
    %c0_7 = arith.constant 0 : index
    %10 = vector.load %arg4[%c0_6, %c0_7] : memref<128x128xbf16, #tpu.memory_space<vmem>>, vector<128x128xbf16>
    %cst_8 = arith.constant dense<0.000000e+00> : vector<400x128xf32>
    %11 = tpu.matmul %9, %10, %cst_8 {dimension_numbers = #tpu.dot_dimension_numbers<[1], [0], [0], [1], [0, 0, 1, 1], [], []>} : vector<400x128xbf16>, vector<128x128xbf16>, vector<400x128xf32> -> vector<400x128xf32>
    %cst_9 = arith.constant 2.000000e-04 : f32
    %12 = vector.broadcast %cst_9 : f32 to vector<400x128xf32>
    %13 = arith.mulf %12, %11 : vector<400x128xf32>
    %cst_10 = arith.constant 2.000000e+00 : f32
    %14 = vector.broadcast %cst_10 : f32 to vector<400x128xf32>
    %15 = arith.addf %14, %13 : vector<400x128xf32>
    %16 = math.rsqrt %15 : vector<400x128xf32>
    %17 = math.sqrt %16 : vector<400x128xf32>
    %18 = arith.mulf %16, %17 : vector<400x128xf32>
    %19 = arith.mulf %7, %18 : vector<400x128xf32>
    %20 = vector.extract_strided_slice %19 {offsets = [0, 0], sizes = [320, 128], strides = [1, 1]} : vector<400x128xf32> to vector<320x128xf32>
    %21 = vector.extract_strided_slice %19 {offsets = [40, 0], sizes = [320, 128], strides = [1, 1]} : vector<400x128xf32> to vector<320x128xf32>
    %22 = arith.maximumf %20, %21 : vector<320x128xf32>
    %23 = vector.extract_strided_slice %19 {offsets = [80, 0], sizes = [320, 128], strides = [1, 1]} : vector<400x128xf32> to vector<320x128xf32>
    %24 = arith.maximumf %22, %23 : vector<320x128xf32>
    %25 = vector.extract_strided_slice %24 {offsets = [0, 0], sizes = [312, 128], strides = [1, 1]} : vector<320x128xf32> to vector<312x128xf32>
    %26 = vector.extract_strided_slice %24 {offsets = [4, 0], sizes = [312, 128], strides = [1, 1]} : vector<320x128xf32> to vector<312x128xf32>
    %27 = arith.maximumf %25, %26 : vector<312x128xf32>
    %28 = vector.extract_strided_slice %24 {offsets = [8, 0], sizes = [312, 128], strides = [1, 1]} : vector<320x128xf32> to vector<312x128xf32>
    %29 = arith.maximumf %27, %28 : vector<312x128xf32>
    %30 = vector.extract_strided_slice %29 {offsets = [0, 0], sizes = [4, 128], strides = [1, 1]} : vector<312x128xf32> to vector<4x128xf32>
    %31 = vector.extract_strided_slice %29 {offsets = [8, 0], sizes = [4, 128], strides = [1, 1]} : vector<312x128xf32> to vector<4x128xf32>
    %32 = vector.extract_strided_slice %29 {offsets = [16, 0], sizes = [4, 128], strides = [1, 1]} : vector<312x128xf32> to vector<4x128xf32>
    %33 = vector.extract_strided_slice %29 {offsets = [24, 0], sizes = [4, 128], strides = [1, 1]} : vector<312x128xf32> to vector<4x128xf32>
    %34 = vector.extract_strided_slice %29 {offsets = [80, 0], sizes = [4, 128], strides = [1, 1]} : vector<312x128xf32> to vector<4x128xf32>
    %35 = vector.extract_strided_slice %29 {offsets = [88, 0], sizes = [4, 128], strides = [1, 1]} : vector<312x128xf32> to vector<4x128xf32>
    %36 = vector.extract_strided_slice %29 {offsets = [96, 0], sizes = [4, 128], strides = [1, 1]} : vector<312x128xf32> to vector<4x128xf32>
    %37 = vector.extract_strided_slice %29 {offsets = [104, 0], sizes = [4, 128], strides = [1, 1]} : vector<312x128xf32> to vector<4x128xf32>
    %38 = vector.extract_strided_slice %29 {offsets = [160, 0], sizes = [4, 128], strides = [1, 1]} : vector<312x128xf32> to vector<4x128xf32>
    %39 = vector.extract_strided_slice %29 {offsets = [168, 0], sizes = [4, 128], strides = [1, 1]} : vector<312x128xf32> to vector<4x128xf32>
    %40 = vector.extract_strided_slice %29 {offsets = [176, 0], sizes = [4, 128], strides = [1, 1]} : vector<312x128xf32> to vector<4x128xf32>
    %41 = vector.extract_strided_slice %29 {offsets = [184, 0], sizes = [4, 128], strides = [1, 1]} : vector<312x128xf32> to vector<4x128xf32>
    %42 = vector.extract_strided_slice %29 {offsets = [240, 0], sizes = [4, 128], strides = [1, 1]} : vector<312x128xf32> to vector<4x128xf32>
    %43 = vector.extract_strided_slice %29 {offsets = [248, 0], sizes = [4, 128], strides = [1, 1]} : vector<312x128xf32> to vector<4x128xf32>
    %44 = vector.extract_strided_slice %29 {offsets = [256, 0], sizes = [4, 128], strides = [1, 1]} : vector<312x128xf32> to vector<4x128xf32>
    %45 = vector.extract_strided_slice %29 {offsets = [264, 0], sizes = [4, 128], strides = [1, 1]} : vector<312x128xf32> to vector<4x128xf32>
    %46 = tpu.concatenate %30, %31, %32, %33, %34, %35, %36, %37, %38, %39, %40, %41, %42, %43, %44, %45 in 1 : vector<4x128xf32>, vector<4x128xf32>, vector<4x128xf32>, vector<4x128xf32>, vector<4x128xf32>, vector<4x128xf32>, vector<4x128xf32>, vector<4x128xf32>, vector<4x128xf32>, vector<4x128xf32>, vector<4x128xf32>, vector<4x128xf32>, vector<4x128xf32>, vector<4x128xf32>, vector<4x128xf32>, vector<4x128xf32> -> vector<4x2048xf32>
    %47 = arith.truncf %46 : vector<4x2048xf32> to vector<4x2048xbf16>
    tpu.wait_dma2 semaphore(%arg13 : memref<!tpu.dma_semaphore, #tpu.memory_space<semaphore_mem>>) src(%arg5 : memref<2048x512xbf16, #tpu.memory_space<any>>) dst(%arg12 : memref<2048x512xbf16, #tpu.memory_space<vmem>>)
    %c0_11 = arith.constant 0 : index
    %c0_12 = arith.constant 0 : index
    %48 = vector.load %arg12[%c0_11, %c0_12] : memref<2048x512xbf16, #tpu.memory_space<vmem>>, vector<2048x512xbf16>
    %cst_13 = arith.constant dense<0.000000e+00> : vector<4x512xf32>
    %49 = tpu.matmul %47, %48, %cst_13 {dimension_numbers = #tpu.dot_dimension_numbers<[1], [0], [0], [1], [0, 0, 1, 1], [], []>} : vector<4x2048xbf16>, vector<2048x512xbf16>, vector<4x512xf32> -> vector<4x512xf32>
    %c0_14 = arith.constant 0 : index
    %c0_15 = arith.constant 0 : index
    %50 = vector.load %arg6[%c0_14, %c0_15] : memref<1x512xf32, #tpu.memory_space<vmem>>, vector<1x512xf32>
    %51 = vector.broadcast %50 : vector<1x512xf32> to vector<4x512xf32>
    %52 = arith.addf %49, %51 : vector<4x512xf32>
    %cst_16 = arith.constant 0.000000e+00 : f32
    %53 = vector.broadcast %cst_16 : f32 to vector<4x512xf32>
    %54 = arith.maximumf %52, %53 : vector<4x512xf32>
    %55 = arith.truncf %54 : vector<4x512xf32> to vector<4x512xbf16>
    %c0_17 = arith.constant 0 : index
    %c0_18 = arith.constant 0 : index
    %56 = vector.load %arg7[%c0_17, %c0_18] : memref<512x128xbf16, #tpu.memory_space<vmem>>, vector<512x128xbf16>
    %cst_19 = arith.constant dense<0.000000e+00> : vector<4x128xf32>
    %57 = tpu.matmul %55, %56, %cst_19 {dimension_numbers = #tpu.dot_dimension_numbers<[1], [0], [0], [1], [0, 0, 1, 1], [], []>} : vector<4x512xbf16>, vector<512x128xbf16>, vector<4x128xf32> -> vector<4x128xf32>
    %c0_20 = arith.constant 0 : index
    %c0_21 = arith.constant 0 : index
    %58 = vector.load %arg8[%c0_20, %c0_21] : memref<1x128xf32, #tpu.memory_space<vmem>>, vector<1x128xf32>
    %59 = vector.broadcast %58 : vector<1x128xf32> to vector<4x128xf32>
    %60 = arith.addf %57, %59 : vector<4x128xf32>
    %cst_22 = arith.constant 0.000000e+00 : f32
    %61 = vector.broadcast %cst_22 : f32 to vector<4x128xf32>
    %62 = arith.maximumf %60, %61 : vector<4x128xf32>
    %63 = arith.truncf %62 : vector<4x128xf32> to vector<4x128xbf16>
    %c0_23 = arith.constant 0 : index
    %c0_24 = arith.constant 0 : index
    %64 = vector.load %arg9[%c0_23, %c0_24] : memref<128x128xbf16, #tpu.memory_space<vmem>>, vector<128x128xbf16>
    %cst_25 = arith.constant dense<0.000000e+00> : vector<4x128xf32>
    %65 = tpu.matmul %63, %64, %cst_25 {dimension_numbers = #tpu.dot_dimension_numbers<[1], [0], [0], [1], [0, 0, 1, 1], [], []>} : vector<4x128xbf16>, vector<128x128xbf16>, vector<4x128xf32> -> vector<4x128xf32>
    %c0_26 = arith.constant 0 : index
    %c0_27 = arith.constant 0 : index
    %66 = vector.load %arg10[%c0_26, %c0_27] : memref<1x128xf32, #tpu.memory_space<vmem>>, vector<1x128xf32>
    %67 = vector.broadcast %66 : vector<1x128xf32> to vector<4x128xf32>
    %68 = arith.addf %65, %67 : vector<4x128xf32>
    %c0_28 = arith.constant 0 : index
    %c0_29 = arith.constant 0 : index
    %69 = vector.load %arg11[%c0_28, %c0_29] : memref<4x128xf32, #tpu.memory_space<vmem>>, vector<4x128xf32>
    tpu.vector_store %arg11[%c0_28, %c0_29], %68 {strides = array<i32>} : memref<4x128xf32, #tpu.memory_space<vmem>>, vector<4x128xf32>,
    return
  }
  func.func @transform_0(%arg0: i32) -> (i32, i32) {
    %c0_i32 = arith.constant 0 : i32
    %c0_i32_0 = arith.constant 0 : i32
    %c0_i32_1 = arith.constant 0 : i32
    return %c0_i32, %c0_i32_0 : i32, i32
  }
  func.func @transform_1(%arg0: i32) -> (i32, i32) {
    %c0_i32 = arith.constant 0 : i32
    %c0_i32_0 = arith.constant 0 : i32
    %c0_i32_1 = arith.constant 0 : i32
    return %c0_i32, %c0_i32_0 : i32, i32
  }
  func.func @transform_2(%arg0: i32) -> (i32, i32) {
    %c0_i32 = arith.constant 0 : i32
    %c0_i32_0 = arith.constant 0 : i32
    %c0_i32_1 = arith.constant 0 : i32
    return %c0_i32, %c0_i32_0 : i32, i32
  }
  func.func @transform_3(%arg0: i32) -> (i32, i32) {
    %c0_i32 = arith.constant 0 : i32
    %c0_i32_0 = arith.constant 0 : i32
    %c0_i32_1 = arith.constant 0 : i32
    return %c0_i32, %c0_i32_0 : i32, i32
  }
  func.func @transform_5(%arg0: i32) -> (i32, i32) {
    %c0_i32 = arith.constant 0 : i32
    %c0_i32_0 = arith.constant 0 : i32
    %c0_i32_1 = arith.constant 0 : i32
    return %c0_i32, %c0_i32_0 : i32, i32
  }
  func.func @transform_6(%arg0: i32) -> (i32, i32) {
    %c0_i32 = arith.constant 0 : i32
    %c0_i32_0 = arith.constant 0 : i32
    %c0_i32_1 = arith.constant 0 : i32
    return %c0_i32, %c0_i32_0 : i32, i32
  }
  func.func @transform_7(%arg0: i32) -> (i32, i32) {
    %c0_i32 = arith.constant 0 : i32
    %c0_i32_0 = arith.constant 0 : i32
    %c0_i32_1 = arith.constant 0 : i32
    return %c0_i32, %c0_i32_0 : i32, i32
  }
  func.func @transform_8(%arg0: i32) -> (i32, i32) {
    %c0_i32 = arith.constant 0 : i32
    %c0_i32_0 = arith.constant 0 : i32
    %c0_i32_1 = arith.constant 0 : i32
    return %c0_i32, %c0_i32_0 : i32, i32
  }
  func.func @transform_9(%arg0: i32) -> (i32, i32) {
    %c0_i32 = arith.constant 0 : i32
    %c0_i32_0 = arith.constant 0 : i32
    %c0_i32_1 = arith.constant 0 : i32
    return %c0_i32, %c0_i32_0 : i32, i32
  }
  func.func @transform_10(%arg0: i32) -> (i32, i32) {
    %c0_i32 = arith.constant 0 : i32
    %c0_i32_0 = arith.constant 0 : i32
    %c0_i32_1 = arith.constant 0 : i32
    return %c0_i32, %c0_i32_0 : i32, i32
  }
}

</mosaic_0001>

<llo_original>
// kernel: _lambda_.1
$region0: #{_lambda_.1}
  #allocation0 [shape = 'u32[]', space=smem, size = 0x4, offset = 0x4, fixed_abs, tag = 'smem constant byte address 0x4 - core index']
  #allocation1 [shape = 'u32[144,128]{1,0:T(1,128)}', space=vmem, size = 0x12000, scoped, tag = 'internal scratch']
  #allocation2 [shape = 'bf16[2048,512]{1,0:T(16,128)(2,1)}', space=vmem, size = 0x200000, scoped, tag = 'scratch operand']
  #allocation3 [shape = 's32[1]{0}', space=sflag, size = 0x4, scoped, tag = 'scratch operand']
  #allocation4 [shape = 's32[]', space=sflag, size = 0x4, offset = 0, fixed_abs, tag = 'sflag constant byte address 0x0 - dummy sync flag']
  %s0 = inlined_call_operand.vmem [shape: bf16[400,32], index: 0, kind: input, shape index: {}]
  %s1 = inlined_call_operand.vmem [shape: bf16[32,128], index: 1, kind: input, shape index: {}]
  %s2 = inlined_call_operand.vmem [shape: f32[1,128], index: 2, kind: input, shape index: {}]
  %s3 = inlined_call_operand.vmem [shape: bf16[128,128], index: 3, kind: input, shape index: {}]
  %s4 = inlined_call_operand.vmem [shape: bf16[2048,512], index: 4, kind: input, shape index: {}]
  %s5 = inlined_call_operand.vmem [shape: f32[1,512], index: 5, kind: input, shape index: {}]
  %s6 = inlined_call_operand.vmem [shape: bf16[512,128], index: 6, kind: input, shape index: {}]
  %s7 = inlined_call_operand.vmem [shape: f32[1,128], index: 7, kind: input, shape index: {}]
  %s8 = inlined_call_operand.vmem [shape: bf16[128,128], index: 8, kind: input, shape index: {}]
  %s9 = inlined_call_operand.vmem [shape: f32[1,128], index: 9, kind: input, shape index: {}]
  %s10 = inlined_call_operand.vmem [shape: f32[4,128], index: 10, kind: output, shape index: {}]
  %s11 = sld [smem:[#allocation0]]
  $region94: #{_lambda_.1} parent=0
    _
  %s13 = ssub.s32 1, %s11
  %s14 = scalar_select 0, %s13, %s11
  // Predicated region
  $region2: #{_lambda_.1} parent=0 // pred_check
    _
  $region3: #{_lambda_.1} parent=0 // pred_check_branch
    %16 = sbr.rel (0) target = $region5
  $region4: #{_lambda_.1} parent=0 // pred_region
    _
  $region5: #{_lambda_.1} parent=0 // pred_fallthru
    _
  // Predicated region
  $region6: #{_lambda_.1} parent=0 // pred_check
    _
  $region7: #{_lambda_.1} parent=0 // pred_check_branch
    %18 = sbr.rel (0) target = $region9
  $region8: #{_lambda_.1} parent=0 // pred_region
    _
  $region9: #{_lambda_.1} parent=0 // pred_fallthru
    _
  // Predicated region
  $region10: #{_lambda_.1} parent=0 // pred_check
    _
  $region11: #{_lambda_.1} parent=0 // pred_check_branch
    %20 = sbr.rel (0) target = $region13
  $region12: #{_lambda_.1} parent=0 // pred_region
    _
  $region13: #{_lambda_.1} parent=0 // pred_fallthru
    _
  // Predicated region
  $region14: #{_lambda_.1} parent=0 // pred_check
    _
  $region15: #{_lambda_.1} parent=0 // pred_check_branch
    %22 = sbr.rel (0) target = $region17
  $region16: #{_lambda_.1} parent=0 // pred_region
    _
  $region17: #{_lambda_.1} parent=0 // pred_fallthru
    _
  // Predicated region
  $region18: #{_lambda_.1} parent=0 // pred_check
    _
  $region19: #{_lambda_.1} parent=0 // pred_check_branch
    %24 = sbr.rel (0) target = $region21
  $region20: #{_lambda_.1} parent=0 // pred_region
    _
  $region21: #{_lambda_.1} parent=0 // pred_fallthru
    _
  // Predicated region
  $region22: #{_lambda_.1} parent=0 // pred_check
    _
  $region23: #{_lambda_.1} parent=0 // pred_check_branch
    %26 = sbr.rel (0) target = $region25
  $region24: #{_lambda_.1} parent=0 // pred_region
    _
  $region25: #{_lambda_.1} parent=0 // pred_fallthru
    _
  // Predicated region
  $region26: #{_lambda_.1} parent=0 // pred_check
    _
  $region27: #{_lambda_.1} parent=0 // pred_check_branch
    %28 = sbr.rel (0) target = $region29
  $region28: #{_lambda_.1} parent=0 // pred_region
    _
  $region29: #{_lambda_.1} parent=0 // pred_fallthru
    _
  // Predicated region
  $region30: #{_lambda_.1} parent=0 // pred_check
    _
  $region31: #{_lambda_.1} parent=0 // pred_check_branch
    %30 = sbr.rel (0) target = $region33
  $region32: #{_lambda_.1} parent=0 // pred_region
    _
  $region33: #{_lambda_.1} parent=0 // pred_fallthru
    _
  // Predicated region
  $region34: #{_lambda_.1} parent=0 // pred_check
    _
  $region35: #{_lambda_.1} parent=0 // pred_check_branch
    %32 = sbr.rel (0) target = $region37
  $region36: #{_lambda_.1} parent=0 // pred_region
    _
  $region37: #{_lambda_.1} parent=0 // pred_fallthru
    _
  %p35 = scmp.lt.u32.totalorder 4, 8
  %p36 = pneg %p35
  // Predicated region
  $region38: #{_lambda_.1} parent=0 // pred_check
    _
  $region39: #{_lambda_.1} parent=0 // pred_check_branch
    %38 = sbr.rel (%p35) target = $region41
  $region40: #{_lambda_.1} parent=0 // pred_region
    %s1085 = sand.u32 4, 7
    %p1086 = scmp.eq.s32.totalorder %s1085, 0
    // Predicated region
    $region53: #{_lambda_.1} parent=40 // pred_check
      %p1087 = pneg %p1086
    $region54: #{_lambda_.1} parent=40 // pred_check_branch
      %1089 = sbr.rel (%p1087) target = $region56
    $region55: #{_lambda_.1} parent=40 // pred_region
      %s1090 = sshrl.u32 4, 3
      %s1091 = smul.u32 2, %s1090
      // While loop
      $region57: #{_lambda_.1} parent=55 // loop_pre_header
        _
      $region58: #{_lambda_.1} parent=55 // loop_header
        %s1097 = sphi 0, %s1099
        %p1098 = scmp.ge.s32.totalorder %s1097, %s1091
        %s1102 = sphi 0, %s2136
        %s1103 = sphi 0, %s2132
        %s1104 = sphi %s4, %s2143
        %s1105 = sphi [#allocation2], %s2144
      $region59: #{_lambda_.1} parent=55 // loop_header_branch
        %1101 = sbr.rel (%p1098) target = $region63
      $region60: #{_lambda_.1} parent=55 // loop_body
        %v1106 = vld [vmem:[%s1104] sm:$0xff]
        %1107 = vst [vmem:[%s1105] sm:$0xff] %v1106
        %v1108 = vld [vmem:[%s1104 + $0x4] sm:$0xff]
        %1109 = vst [vmem:[%s1105 + $0x8] sm:$0xff] %v1108
        %v1110 = vld [vmem:[%s1104 + $0x8] sm:$0xff]
        %1111 = vst [vmem:[%s1105 + $0x10] sm:$0xff] %v1110
        %v1112 = vld [vmem:[%s1104 + $0xc] sm:$0xff]
        %1113 = vst [vmem:[%s1105 + $0x18] sm:$0xff] %v1112
        %v1114 = vld [vmem:[%s1104 + $0x20] sm:$0xff]
        %1115 = vst [vmem:[%s1105 + $0x20] sm:$0xff] %v1114
        %v1116 = vld [vmem:[%s1104 + $0x24] sm:$0xff]
        %1117 = vst [vmem:[%s1105 + $0x28] sm:$0xff] %v1116
        %v1118 = vld [vmem:[%s1104 + $0x28] sm:$0xff]
        %1119 = vst [vmem:[%s1105 + $0x30] sm:$0xff] %v1118
        %v1120 = vld [vmem:[%s1104 + $0x2c] sm:$0xff]
        %1121 = vst [vmem:[%s1105 + $0x38] sm:$0xff] %v1120
        %v1122 = vld [vmem:[%s1104 + $0x40] sm:$0xff]
        %1123 = vst [vmem:[%s1105 + $0x40] sm:$0xff] %v1122
        %v1124 = vld [vmem:[%s1104 + $0x44] sm:$0xff]
        %1125 = vst [vmem:[%s1105 + $0x48] sm:$0xff] %v1124
        %v1126 = vld [vmem:[%s1104 + $0x48] sm:$0xff]
        %1127 = vst [vmem:[%s1105 + $0x50] sm:$0xff] %v1126
        %v1128 = vld [vmem:[%s1104 + $0x4c] sm:$0xff]
        %1129 = vst [vmem:[%s1105 + $0x58] sm:$0xff] %v1128
        %v1130 = vld [vmem:[%s1104 + $0x60] sm:$0xff]
        %1131 = vst [vmem:[%s1105 + $0x60] sm:$0xff] %v1130
        %v1132 = vld [vmem:[%s1104 + $0x64] sm:$0xff]
        %1133 = vst [vmem:[%s1105 + $0x68] sm:$0xff] %v1132
        %v1134 = vld [vmem:[%s1104 + $0x68] sm:$0xff]
        %1135 = vst [vmem:[%s1105 + $0x70] sm:$0xff] %v1134
        %v1136 = vld [vmem:[%s1104 + $0x6c] sm:$0xff]
        %1137 = vst [vmem:[%s1105 + $0x78] sm:$0xff] %v1136
        %v1138 = vld [vmem:[%s1104 + $0x80] sm:$0xff]
        %1139 = vst [vmem:[%s1105 + $0x80] sm:$0xff] %v1138
        %v1140 = vld [vmem:[%s1104 + $0x84] sm:$0xff]
        %1141 = vst [vmem:[%s1105 + $0x88] sm:$0xff] %v1140
        %v1142 = vld [vmem:[%s1104 + $0x88] sm:$0xff]
        %1143 = vst [vmem:[%s1105 + $0x90] sm:$0xff] %v1142
        %v1144 = vld [vmem:[%s1104 + $0x8c] sm:$0xff]
        %1145 = vst [vmem:[%s1105 + $0x98] sm:$0xff] %v1144
        %v1146 = vld [vmem:[%s1104 + $0xa0] sm:$0xff]
        %1147 = vst [vmem:[%s1105 + $0xa0] sm:$0xff] %v1146
        %v1148 = vld [vmem:[%s1104 + $0xa4] sm:$0xff]
        %1149 = vst [vmem:[%s1105 + $0xa8] sm:$0xff] %v1148
        %v1150 = vld [vmem:[%s1104 + $0xa8] sm:$0xff]
        %1151 = vst [vmem:[%s1105 + $0xb0] sm:$0xff] %v1150
        %v1152 = vld [vmem:[%s1104 + $0xac] sm:$0xff]
        %1153 = vst [vmem:[%s1105 + $0xb8] sm:$0xff] %v1152
        %v1154 = vld [vmem:[%s1104 + $0xc0] sm:$0xff]
        %1155 = vst [vmem:[%s1105 + $0xc0] sm:$0xff] %v1154
        %v1156 = vld [vmem:[%s1104 + $0xc4] sm:$0xff]
        %1157 = vst [vmem:[%s1105 + $0xc8] sm:$0xff] %v1156
        %v1158 = vld [vmem:[%s1104 + $0xc8] sm:$0xff]
        %1159 = vst [vmem:[%s1105 + $0xd0] sm:$0xff] %v1158
        %v1160 = vld [vmem:[%s1104 + $0xcc] sm:$0xff]
        %1161 = vst [vmem:[%s1105 + $0xd8] sm:$0xff] %v1160
        %v1162 = vld [vmem:[%s1104 + $0xe0] sm:$0xff]
        %1163 = vst [vmem:[%s1105 + $0xe0] sm:$0xff] %v1162
        %v1164 = vld [vmem:[%s1104 + $0xe4] sm:$0xff]
        %1165 = vst [vmem:[%s1105 + $0xe8] sm:$0xff] %v1164
        %v1166 = vld [vmem:[%s1104 + $0xe8] sm:$0xff]
        %1167 = vst [vmem:[%s1105 + $0xf0] sm:$0xff] %v1166
        %v1168 = vld [vmem:[%s1104 + $0xec] sm:$0xff]
        %1169 = vst [vmem:[%s1105 + $0xf8] sm:$0xff] %v1168
        %v1170 = vld [vmem:[%s1104 + $0x100] sm:$0xff]
        %1171 = vst [vmem:[%s1105 + $0x100] sm:$0xff] %v1170
        %v1172 = vld [vmem:[%s1104 + $0x104] sm:$0xff]
        %1173 = vst [vmem:[%s1105 + $0x108] sm:$0xff] %v1172
        %v1174 = vld [vmem:[%s1104 + $0x108] sm:$0xff]
        %1175 = vst [vmem:[%s1105 + $0x110] sm:$0xff] %v1174
        %v1176 = vld [vmem:[%s1104 + $0x10c] sm:$0xff]
        %1177 = vst [vmem:[%s1105 + $0x118] sm:$0xff] %v1176
        %v1178 = vld [vmem:[%s1104 + $0x120] sm:$0xff]
        %1179 = vst [vmem:[%s1105 + $0x120] sm:$0xff] %v1178
        %v1180 = vld [vmem:[%s1104 + $0x124] sm:$0xff]
        %1181 = vst [vmem:[%s1105 + $0x128] sm:$0xff] %v1180
        %v1182 = vld [vmem:[%s1104 + $0x128] sm:$0xff]
        %1183 = vst [vmem:[%s1105 + $0x130] sm:$0xff] %v1182
        %v1184 = vld [vmem:[%s1104 + $0x12c] sm:$0xff]
        %1185 = vst [vmem:[%s1105 + $0x138] sm:$0xff] %v1184
        %v1186 = vld [vmem:[%s1104 + $0x140] sm:$0xff]
        %1187 = vst [vmem:[%s1105 + $0x140] sm:$0xff] %v1186
        %v1188 = vld [vmem:[%s1104 + $0x144] sm:$0xff]
        %1189 = vst [vmem:[%s1105 + $0x148] sm:$0xff] %v1188
        %v1190 = vld [vmem:[%s1104 + $0x148] sm:$0xff]
        %1191 = vst [vmem:[%s1105 + $0x150] sm:$0xff] %v1190
        %v1192 = vld [vmem:[%s1104 + $0x14c] sm:$0xff]
        %1193 = vst [vmem:[%s1105 + $0x158] sm:$0xff] %v1192
        %v1194 = vld [vmem:[%s1104 + $0x160] sm:$0xff]
        %1195 = vst [vmem:[%s1105 + $0x160] sm:$0xff] %v1194
        %v1196 = vld [vmem:[%s1104 + $0x164] sm:$0xff]
        %1197 = vst [vmem:[%s1105 + $0x168] sm:$0xff] %v1196
        %v1198 = vld [vmem:[%s1104 + $0x168] sm:$0xff]
        %1199 = vst [vmem:[%s1105 + $0x170] sm:$0xff] %v1198
        %v1200 = vld [vmem:[%s1104 + $0x16c] sm:$0xff]
        %1201 = vst [vmem:[%s1105 + $0x178] sm:$0xff] %v1200
        %v1202 = vld [vmem:[%s1104 + $0x180] sm:$0xff]
        %1203 = vst [vmem:[%s1105 + $0x180] sm:$0xff] %v1202
        %v1204 = vld [vmem:[%s1104 + $0x184] sm:$0xff]
        %1205 = vst [vmem:[%s1105 + $0x188] sm:$0xff] %v1204
        %v1206 = vld [vmem:[%s1104 + $0x188] sm:$0xff]
        %1207 = vst [vmem:[%s1105 + $0x190] sm:$0xff] %v1206
        %v1208 = vld [vmem:[%s1104 + $0x18c] sm:$0xff]
        %1209 = vst [vmem:[%s1105 + $0x198] sm:$0xff] %v1208
        %v1210 = vld [vmem:[%s1104 + $0x1a0] sm:$0xff]
        %1211 = vst [vmem:[%s1105 + $0x1a0] sm:$0xff] %v1210
        %v1212 = vld [vmem:[%s1104 + $0x1a4] sm:$0xff]
        %1213 = vst [vmem:[%s1105 + $0x1a8] sm:$0xff] %v1212
        %v1214 = vld [vmem:[%s1104 + $0x1a8] sm:$0xff]
        %1215 = vst [vmem:[%s1105 + $0x1b0] sm:$0xff] %v1214
        %v1216 = vld [vmem:[%s1104 + $0x1ac] sm:$0xff]
        %1217 = vst [vmem:[%s1105 + $0x1b8] sm:$0xff] %v1216
        %v1218 = vld [vmem:[%s1104 + $0x1c0] sm:$0xff]
        %1219 = vst [vmem:[%s1105 + $0x1c0] sm:$0xff] %v1218
        %v1220 = vld [vmem:[%s1104 + $0x1c4] sm:$0xff]
        %1221 = vst [vmem:[%s1105 + $0x1c8] sm:$0xff] %v1220
        %v1222 = vld [vmem:[%s1104 + $0x1c8] sm:$0xff]
        %1223 = vst [vmem:[%s1105 + $0x1d0] sm:$0xff] %v1222
        %v1224 = vld [vmem:[%s1104 + $0x1cc] sm:$0xff]
        %1225 = vst [vmem:[%s1105 + $0x1d8] sm:$0xff] %v1224
        %v1226 = vld [vmem:[%s1104 + $0x1e0] sm:$0xff]
        %1227 = vst [vmem:[%s1105 + $0x1e0] sm:$0xff] %v1226
        %v1228 = vld [vmem:[%s1104 + $0x1e4] sm:$0xff]
        %1229 = vst [vmem:[%s1105 + $0x1e8] sm:$0xff] %v1228
        %v1230 = vld [vmem:[%s1104 + $0x1e8] sm:$0xff]
        %1231 = vst [vmem:[%s1105 + $0x1f0] sm:$0xff] %v1230
        %v1232 = vld [vmem:[%s1104 + $0x1ec] sm:$0xff]
        %1233 = vst [vmem:[%s1105 + $0x1f8] sm:$0xff] %v1232
        %v1234 = vld [vmem:[%s1104 + $0x200] sm:$0xff]
        %1235 = vst [vmem:[%s1105 + $0x200] sm:$0xff] %v1234
        %v1236 = vld [vmem:[%s1104 + $0x204] sm:$0xff]
        %1237 = vst [vmem:[%s1105 + $0x208] sm:$0xff] %v1236
        %v1238 = vld [vmem:[%s1104 + $0x208] sm:$0xff]
        %1239 = vst [vmem:[%s1105 + $0x210] sm:$0xff] %v1238
        %v1240 = vld [vmem:[%s1104 + $0x20c] sm:$0xff]
        %1241 = vst [vmem:[%s1105 + $0x218] sm:$0xff] %v1240
        %v1242 = vld [vmem:[%s1104 + $0x220] sm:$0xff]
        %1243 = vst [vmem:[%s1105 + $0x220] sm:$0xff] %v1242
        %v1244 = vld [vmem:[%s1104 + $0x224] sm:$0xff]
        %1245 = vst [vmem:[%s1105 + $0x228] sm:$0xff] %v1244
        %v1246 = vld [vmem:[%s1104 + $0x228] sm:$0xff]
        %1247 = vst [vmem:[%s1105 + $0x230] sm:$0xff] %v1246
        %v1248 = vld [vmem:[%s1104 + $0x22c] sm:$0xff]
        %1249 = vst [vmem:[%s1105 + $0x238] sm:$0xff] %v1248
        %v1250 = vld [vmem:[%s1104 + $0x240] sm:$0xff]
        %1251 = vst [vmem:[%s1105 + $0x240] sm:$0xff] %v1250
        %v1252 = vld [vmem:[%s1104 + $0x244] sm:$0xff]
        %1253 = vst [vmem:[%s1105 + $0x248] sm:$0xff] %v1252
        %v1254 = vld [vmem:[%s1104 + $0x248] sm:$0xff]
        %1255 = vst [vmem:[%s1105 + $0x250] sm:$0xff] %v1254
        %v1256 = vld [vmem:[%s1104 + $0x24c] sm:$0xff]
        %1257 = vst [vmem:[%s1105 + $0x258] sm:$0xff] %v1256
        %v1258 = vld [vmem:[%s1104 + $0x260] sm:$0xff]
        %1259 = vst [vmem:[%s1105 + $0x260] sm:$0xff] %v1258
        %v1260 = vld [vmem:[%s1104 + $0x264] sm:$0xff]
        %1261 = vst [vmem:[%s1105 + $0x268] sm:$0xff] %v1260
        %v1262 = vld [vmem:[%s1104 + $0x268] sm:$0xff]
        %1263 = vst [vmem:[%s1105 + $0x270] sm:$0xff] %v1262
        %v1264 = vld [vmem:[%s1104 + $0x26c] sm:$0xff]
        %1265 = vst [vmem:[%s1105 + $0x278] sm:$0xff] %v1264
        %v1266 = vld [vmem:[%s1104 + $0x280] sm:$0xff]
        %1267 = vst [vmem:[%s1105 + $0x280] sm:$0xff] %v1266
        %v1268 = vld [vmem:[%s1104 + $0x284] sm:$0xff]
        %1269 = vst [vmem:[%s1105 + $0x288] sm:$0xff] %v1268
        %v1270 = vld [vmem:[%s1104 + $0x288] sm:$0xff]
        %1271 = vst [vmem:[%s1105 + $0x290] sm:$0xff] %v1270
        %v1272 = vld [vmem:[%s1104 + $0x28c] sm:$0xff]
        %1273 = vst [vmem:[%s1105 + $0x298] sm:$0xff] %v1272
        %v1274 = vld [vmem:[%s1104 + $0x2a0] sm:$0xff]
        %1275 = vst [vmem:[%s1105 + $0x2a0] sm:$0xff] %v1274
        %v1276 = vld [vmem:[%s1104 + $0x2a4] sm:$0xff]
        %1277 = vst [vmem:[%s1105 + $0x2a8] sm:$0xff] %v1276
        %v1278 = vld [vmem:[%s1104 + $0x2a8] sm:$0xff]
        %1279 = vst [vmem:[%s1105 + $0x2b0] sm:$0xff] %v1278
        %v1280 = vld [vmem:[%s1104 + $0x2ac] sm:$0xff]
        %1281 = vst [vmem:[%s1105 + $0x2b8] sm:$0xff] %v1280
        %v1282 = vld [vmem:[%s1104 + $0x2c0] sm:$0xff]
        %1283 = vst [vmem:[%s1105 + $0x2c0] sm:$0xff] %v1282
        %v1284 = vld [vmem:[%s1104 + $0x2c4] sm:$0xff]
        %1285 = vst [vmem:[%s1105 + $0x2c8] sm:$0xff] %v1284
        %v1286 = vld [vmem:[%s1104 + $0x2c8] sm:$0xff]
        %1287 = vst [vmem:[%s1105 + $0x2d0] sm:$0xff] %v1286
        %v1288 = vld [vmem:[%s1104 + $0x2cc] sm:$0xff]
        %1289 = vst [vmem:[%s1105 + $0x2d8] sm:$0xff] %v1288
        %v1290 = vld [vmem:[%s1104 + $0x2e0] sm:$0xff]
        %1291 = vst [vmem:[%s1105 + $0x2e0] sm:$0xff] %v1290
        %v1292 = vld [vmem:[%s1104 + $0x2e4] sm:$0xff]
        %1293 = vst [vmem:[%s1105 + $0x2e8] sm:$0xff] %v1292
        %v1294 = vld [vmem:[%s1104 + $0x2e8] sm:$0xff]
        %1295 = vst [vmem:[%s1105 + $0x2f0] sm:$0xff] %v1294
        %v1296 = vld [vmem:[%s1104 + $0x2ec] sm:$0xff]
        %1297 = vst [vmem:[%s1105 + $0x2f8] sm:$0xff] %v1296
        %v1298 = vld [vmem:[%s1104 + $0x300] sm:$0xff]
        %1299 = vst [vmem:[%s1105 + $0x300] sm:$0xff] %v1298
        %v1300 = vld [vmem:[%s1104 + $0x304] sm:$0xff]
        %1301 = vst [vmem:[%s1105 + $0x308] sm:$0xff] %v1300
        %v1302 = vld [vmem:[%s1104 + $0x308] sm:$0xff]
        %1303 = vst [vmem:[%s1105 + $0x310] sm:$0xff] %v1302
        %v1304 = vld [vmem:[%s1104 + $0x30c] sm:$0xff]
        %1305 = vst [vmem:[%s1105 + $0x318] sm:$0xff] %v1304
        %v1306 = vld [vmem:[%s1104 + $0x320] sm:$0xff]
        %1307 = vst [vmem:[%s1105 + $0x320] sm:$0xff] %v1306
        %v1308 = vld [vmem:[%s1104 + $0x324] sm:$0xff]
        %1309 = vst [vmem:[%s1105 + $0x328] sm:$0xff] %v1308
        %v1310 = vld [vmem:[%s1104 + $0x328] sm:$0xff]
        %1311 = vst [vmem:[%s1105 + $0x330] sm:$0xff] %v1310
        %v1312 = vld [vmem:[%s1104 + $0x32c] sm:$0xff]
        %1313 = vst [vmem:[%s1105 + $0x338] sm:$0xff] %v1312
        %v1314 = vld [vmem:[%s1104 + $0x340] sm:$0xff]
        %1315 = vst [vmem:[%s1105 + $0x340] sm:$0xff] %v1314
        %v1316 = vld [vmem:[%s1104 + $0x344] sm:$0xff]
        %1317 = vst [vmem:[%s1105 + $0x348] sm:$0xff] %v1316
        %v1318 = vld [vmem:[%s1104 + $0x348] sm:$0xff]
        %1319 = vst [vmem:[%s1105 + $0x350] sm:$0xff] %v1318
        %v1320 = vld [vmem:[%s1104 + $0x34c] sm:$0xff]
        %1321 = vst [vmem:[%s1105 + $0x358] sm:$0xff] %v1320
        %v1322 = vld [vmem:[%s1104 + $0x360] sm:$0xff]
        %1323 = vst [vmem:[%s1105 + $0x360] sm:$0xff] %v1322
        %v1324 = vld [vmem:[%s1104 + $0x364] sm:$0xff]
        %1325 = vst [vmem:[%s1105 + $0x368] sm:$0xff] %v1324
        %v1326 = vld [vmem:[%s1104 + $0x368] sm:$0xff]
        %1327 = vst [vmem:[%s1105 + $0x370] sm:$0xff] %v1326
        %v1328 = vld [vmem:[%s1104 + $0x36c] sm:$0xff]
        %1329 = vst [vmem:[%s1105 + $0x378] sm:$0xff] %v1328
        %v1330 = vld [vmem:[%s1104 + $0x380] sm:$0xff]
        %1331 = vst [vmem:[%s1105 + $0x380] sm:$0xff] %v1330
        %v1332 = vld [vmem:[%s1104 + $0x384] sm:$0xff]
        %1333 = vst [vmem:[%s1105 + $0x388] sm:$0xff] %v1332
        %v1334 = vld [vmem:[%s1104 + $0x388] sm:$0xff]
        %1335 = vst [vmem:[%s1105 + $0x390] sm:$0xff] %v1334
        %v1336 = vld [vmem:[%s1104 + $0x38c] sm:$0xff]
        %1337 = vst [vmem:[%s1105 + $0x398] sm:$0xff] %v1336
        %v1338 = vld [vmem:[%s1104 + $0x3a0] sm:$0xff]
        %1339 = vst [vmem:[%s1105 + $0x3a0] sm:$0xff] %v1338
        %v1340 = vld [vmem:[%s1104 + $0x3a4] sm:$0xff]
        %1341 = vst [vmem:[%s1105 + $0x3a8] sm:$0xff] %v1340
        %v1342 = vld [vmem:[%s1104 + $0x3a8] sm:$0xff]
        %1343 = vst [vmem:[%s1105 + $0x3b0] sm:$0xff] %v1342
        %v1344 = vld [vmem:[%s1104 + $0x3ac] sm:$0xff]
        %1345 = vst [vmem:[%s1105 + $0x3b8] sm:$0xff] %v1344
        %v1346 = vld [vmem:[%s1104 + $0x3c0] sm:$0xff]
        %1347 = vst [vmem:[%s1105 + $0x3c0] sm:$0xff] %v1346
        %v1348 = vld [vmem:[%s1104 + $0x3c4] sm:$0xff]
        %1349 = vst [vmem:[%s1105 + $0x3c8] sm:$0xff] %v1348
        %v1350 = vld [vmem:[%s1104 + $0x3c8] sm:$0xff]
        %1351 = vst [vmem:[%s1105 + $0x3d0] sm:$0xff] %v1350
        %v1352 = vld [vmem:[%s1104 + $0x3cc] sm:$0xff]
        %1353 = vst [vmem:[%s1105 + $0x3d8] sm:$0xff] %v1352
        %v1354 = vld [vmem:[%s1104 + $0x3e0] sm:$0xff]
        %1355 = vst [vmem:[%s1105 + $0x3e0] sm:$0xff] %v1354
        %v1356 = vld [vmem:[%s1104 + $0x3e4] sm:$0xff]
        %1357 = vst [vmem:[%s1105 + $0x3e8] sm:$0xff] %v1356
        %v1358 = vld [vmem:[%s1104 + $0x3e8] sm:$0xff]
        %1359 = vst [vmem:[%s1105 + $0x3f0] sm:$0xff] %v1358
        %v1360 = vld [vmem:[%s1104 + $0x3ec] sm:$0xff]
        %1361 = vst [vmem:[%s1105 + $0x3f8] sm:$0xff] %v1360
        %v1362 = vld [vmem:[%s1104 + $0x400] sm:$0xff]
        %1363 = vst [vmem:[%s1105 + $0x400] sm:$0xff] %v1362
        %v1364 = vld [vmem:[%s1104 + $0x404] sm:$0xff]
        %1365 = vst [vmem:[%s1105 + $0x408] sm:$0xff] %v1364
        %v1366 = vld [vmem:[%s1104 + $0x408] sm:$0xff]
        %1367 = vst [vmem:[%s1105 + $0x410] sm:$0xff] %v1366
        %v1368 = vld [vmem:[%s1104 + $0x40c] sm:$0xff]
        %1369 = vst [vmem:[%s1105 + $0x418] sm:$0xff] %v1368
        %v1370 = vld [vmem:[%s1104 + $0x420] sm:$0xff]
        %1371 = vst [vmem:[%s1105 + $0x420] sm:$0xff] %v1370
        %v1372 = vld [vmem:[%s1104 + $0x424] sm:$0xff]
        %1373 = vst [vmem:[%s1105 + $0x428] sm:$0xff] %v1372
        %v1374 = vld [vmem:[%s1104 + $0x428] sm:$0xff]
        %1375 = vst [vmem:[%s1105 + $0x430] sm:$0xff] %v1374
        %v1376 = vld [vmem:[%s1104 + $0x42c] sm:$0xff]
        %1377 = vst [vmem:[%s1105 + $0x438] sm:$0xff] %v1376
        %v1378 = vld [vmem:[%s1104 + $0x440] sm:$0xff]
        %1379 = vst [vmem:[%s1105 + $0x440] sm:$0xff] %v1378
        %v1380 = vld [vmem:[%s1104 + $0x444] sm:$0xff]
        %1381 = vst [vmem:[%s1105 + $0x448] sm:$0xff] %v1380
        %v1382 = vld [vmem:[%s1104 + $0x448] sm:$0xff]
        %1383 = vst [vmem:[%s1105 + $0x450] sm:$0xff] %v1382
        %v1384 = vld [vmem:[%s1104 + $0x44c] sm:$0xff]
        %1385 = vst [vmem:[%s1105 + $0x458] sm:$0xff] %v1384
        %v1386 = vld [vmem:[%s1104 + $0x460] sm:$0xff]
        %1387 = vst [vmem:[%s1105 + $0x460] sm:$0xff] %v1386
        %v1388 = vld [vmem:[%s1104 + $0x464] sm:$0xff]
        %1389 = vst [vmem:[%s1105 + $0x468] sm:$0xff] %v1388
        %v1390 = vld [vmem:[%s1104 + $0x468] sm:$0xff]
        %1391 = vst [vmem:[%s1105 + $0x470] sm:$0xff] %v1390
        %v1392 = vld [vmem:[%s1104 + $0x46c] sm:$0xff]
        %1393 = vst [vmem:[%s1105 + $0x478] sm:$0xff] %v1392
        %v1394 = vld [vmem:[%s1104 + $0x480] sm:$0xff]
        %1395 = vst [vmem:[%s1105 + $0x480] sm:$0xff] %v1394
        %v1396 = vld [vmem:[%s1104 + $0x484] sm:$0xff]
        %1397 = vst [vmem:[%s1105 + $0x488] sm:$0xff] %v1396
        %v1398 = vld [vmem:[%s1104 + $0x488] sm:$0xff]
        %1399 = vst [vmem:[%s1105 + $0x490] sm:$0xff] %v1398
        %v1400 = vld [vmem:[%s1104 + $0x48c] sm:$0xff]
        %1401 = vst [vmem:[%s1105 + $0x498] sm:$0xff] %v1400
        %v1402 = vld [vmem:[%s1104 + $0x4a0] sm:$0xff]
        %1403 = vst [vmem:[%s1105 + $0x4a0] sm:$0xff] %v1402
        %v1404 = vld [vmem:[%s1104 + $0x4a4] sm:$0xff]
        %1405 = vst [vmem:[%s1105 + $0x4a8] sm:$0xff] %v1404
        %v1406 = vld [vmem:[%s1104 + $0x4a8] sm:$0xff]
        %1407 = vst [vmem:[%s1105 + $0x4b0] sm:$0xff] %v1406
        %v1408 = vld [vmem:[%s1104 + $0x4ac] sm:$0xff]
        %1409 = vst [vmem:[%s1105 + $0x4b8] sm:$0xff] %v1408
        %v1410 = vld [vmem:[%s1104 + $0x4c0] sm:$0xff]
        %1411 = vst [vmem:[%s1105 + $0x4c0] sm:$0xff] %v1410
        %v1412 = vld [vmem:[%s1104 + $0x4c4] sm:$0xff]
        %1413 = vst [vmem:[%s1105 + $0x4c8] sm:$0xff] %v1412
        %v1414 = vld [vmem:[%s1104 + $0x4c8] sm:$0xff]
        %1415 = vst [vmem:[%s1105 + $0x4d0] sm:$0xff] %v1414
        %v1416 = vld [vmem:[%s1104 + $0x4cc] sm:$0xff]
        %1417 = vst [vmem:[%s1105 + $0x4d8] sm:$0xff] %v1416
        %v1418 = vld [vmem:[%s1104 + $0x4e0] sm:$0xff]
        %1419 = vst [vmem:[%s1105 + $0x4e0] sm:$0xff] %v1418
        %v1420 = vld [vmem:[%s1104 + $0x4e4] sm:$0xff]
        %1421 = vst [vmem:[%s1105 + $0x4e8] sm:$0xff] %v1420
        %v1422 = vld [vmem:[%s1104 + $0x4e8] sm:$0xff]
        %1423 = vst [vmem:[%s1105 + $0x4f0] sm:$0xff] %v1422
        %v1424 = vld [vmem:[%s1104 + $0x4ec] sm:$0xff]
        %1425 = vst [vmem:[%s1105 + $0x4f8] sm:$0xff] %v1424
        %v1426 = vld [vmem:[%s1104 + $0x500] sm:$0xff]
        %1427 = vst [vmem:[%s1105 + $0x500] sm:$0xff] %v1426
        %v1428 = vld [vmem:[%s1104 + $0x504] sm:$0xff]
        %1429 = vst [vmem:[%s1105 + $0x508] sm:$0xff] %v1428
        %v1430 = vld [vmem:[%s1104 + $0x508] sm:$0xff]
        %1431 = vst [vmem:[%s1105 + $0x510] sm:$0xff] %v1430
        %v1432 = vld [vmem:[%s1104 + $0x50c] sm:$0xff]
        %1433 = vst [vmem:[%s1105 + $0x518] sm:$0xff] %v1432
        %v1434 = vld [vmem:[%s1104 + $0x520] sm:$0xff]
        %1435 = vst [vmem:[%s1105 + $0x520] sm:$0xff] %v1434
        %v1436 = vld [vmem:[%s1104 + $0x524] sm:$0xff]
        %1437 = vst [vmem:[%s1105 + $0x528] sm:$0xff] %v1436
        %v1438 = vld [vmem:[%s1104 + $0x528] sm:$0xff]
        %1439 = vst [vmem:[%s1105 + $0x530] sm:$0xff] %v1438
        %v1440 = vld [vmem:[%s1104 + $0x52c] sm:$0xff]
        %1441 = vst [vmem:[%s1105 + $0x538] sm:$0xff] %v1440
        %v1442 = vld [vmem:[%s1104 + $0x540] sm:$0xff]
        %1443 = vst [vmem:[%s1105 + $0x540] sm:$0xff] %v1442
        %v1444 = vld [vmem:[%s1104 + $0x544] sm:$0xff]
        %1445 = vst [vmem:[%s1105 + $0x548] sm:$0xff] %v1444
        %v1446 = vld [vmem:[%s1104 + $0x548] sm:$0xff]
        %1447 = vst [vmem:[%s1105 + $0x550] sm:$0xff] %v1446
        %v1448 = vld [vmem:[%s1104 + $0x54c] sm:$0xff]
        %1449 = vst [vmem:[%s1105 + $0x558] sm:$0xff] %v1448
        %v1450 = vld [vmem:[%s1104 + $0x560] sm:$0xff]
        %1451 = vst [vmem:[%s1105 + $0x560] sm:$0xff] %v1450
        %v1452 = vld [vmem:[%s1104 + $0x564] sm:$0xff]
        %1453 = vst [vmem:[%s1105 + $0x568] sm:$0xff] %v1452
        %v1454 = vld [vmem:[%s1104 + $0x568] sm:$0xff]
        %1455 = vst [vmem:[%s1105 + $0x570] sm:$0xff] %v1454
        %v1456 = vld [vmem:[%s1104 + $0x56c] sm:$0xff]
        %1457 = vst [vmem:[%s1105 + $0x578] sm:$0xff] %v1456
        %v1458 = vld [vmem:[%s1104 + $0x580] sm:$0xff]
        %1459 = vst [vmem:[%s1105 + $0x580] sm:$0xff] %v1458
        %v1460 = vld [vmem:[%s1104 + $0x584] sm:$0xff]
        %1461 = vst [vmem:[%s1105 + $0x588] sm:$0xff] %v1460
        %v1462 = vld [vmem:[%s1104 + $0x588] sm:$0xff]
        %1463 = vst [vmem:[%s1105 + $0x590] sm:$0xff] %v1462
        %v1464 = vld [vmem:[%s1104 + $0x58c] sm:$0xff]
        %1465 = vst [vmem:[%s1105 + $0x598] sm:$0xff] %v1464
        %v1466 = vld [vmem:[%s1104 + $0x5a0] sm:$0xff]
        %1467 = vst [vmem:[%s1105 + $0x5a0] sm:$0xff] %v1466
        %v1468 = vld [vmem:[%s1104 + $0x5a4] sm:$0xff]
        %1469 = vst [vmem:[%s1105 + $0x5a8] sm:$0xff] %v1468
        %v1470 = vld [vmem:[%s1104 + $0x5a8] sm:$0xff]
        %1471 = vst [vmem:[%s1105 + $0x5b0] sm:$0xff] %v1470
        %v1472 = vld [vmem:[%s1104 + $0x5ac] sm:$0xff]
        %1473 = vst [vmem:[%s1105 + $0x5b8] sm:$0xff] %v1472
        %v1474 = vld [vmem:[%s1104 + $0x5c0] sm:$0xff]
        %1475 = vst [vmem:[%s1105 + $0x5c0] sm:$0xff] %v1474
        %v1476 = vld [vmem:[%s1104 + $0x5c4] sm:$0xff]
        %1477 = vst [vmem:[%s1105 + $0x5c8] sm:$0xff] %v1476
        %v1478 = vld [vmem:[%s1104 + $0x5c8] sm:$0xff]
        %1479 = vst [vmem:[%s1105 + $0x5d0] sm:$0xff] %v1478
        %v1480 = vld [vmem:[%s1104 + $0x5cc] sm:$0xff]
        %1481 = vst [vmem:[%s1105 + $0x5d8] sm:$0xff] %v1480
        %v1482 = vld [vmem:[%s1104 + $0x5e0] sm:$0xff]
        %1483 = vst [vmem:[%s1105 + $0x5e0] sm:$0xff] %v1482
        %v1484 = vld [vmem:[%s1104 + $0x5e4] sm:$0xff]
        %1485 = vst [vmem:[%s1105 + $0x5e8] sm:$0xff] %v1484
        %v1486 = vld [vmem:[%s1104 + $0x5e8] sm:$0xff]
        %1487 = vst [vmem:[%s1105 + $0x5f0] sm:$0xff] %v1486
        %v1488 = vld [vmem:[%s1104 + $0x5ec] sm:$0xff]
        %1489 = vst [vmem:[%s1105 + $0x5f8] sm:$0xff] %v1488
        %v1490 = vld [vmem:[%s1104 + $0x600] sm:$0xff]
        %1491 = vst [vmem:[%s1105 + $0x600] sm:$0xff] %v1490
        %v1492 = vld [vmem:[%s1104 + $0x604] sm:$0xff]
        %1493 = vst [vmem:[%s1105 + $0x608] sm:$0xff] %v1492
        %v1494 = vld [vmem:[%s1104 + $0x608] sm:$0xff]
        %1495 = vst [vmem:[%s1105 + $0x610] sm:$0xff] %v1494
        %v1496 = vld [vmem:[%s1104 + $0x60c] sm:$0xff]
        %1497 = vst [vmem:[%s1105 + $0x618] sm:$0xff] %v1496
        %v1498 = vld [vmem:[%s1104 + $0x620] sm:$0xff]
        %1499 = vst [vmem:[%s1105 + $0x620] sm:$0xff] %v1498
        %v1500 = vld [vmem:[%s1104 + $0x624] sm:$0xff]
        %1501 = vst [vmem:[%s1105 + $0x628] sm:$0xff] %v1500
        %v1502 = vld [vmem:[%s1104 + $0x628] sm:$0xff]
        %1503 = vst [vmem:[%s1105 + $0x630] sm:$0xff] %v1502
        %v1504 = vld [vmem:[%s1104 + $0x62c] sm:$0xff]
        %1505 = vst [vmem:[%s1105 + $0x638] sm:$0xff] %v1504
        %v1506 = vld [vmem:[%s1104 + $0x640] sm:$0xff]
        %1507 = vst [vmem:[%s1105 + $0x640] sm:$0xff] %v1506
        %v1508 = vld [vmem:[%s1104 + $0x644] sm:$0xff]
        %1509 = vst [vmem:[%s1105 + $0x648] sm:$0xff] %v1508
        %v1510 = vld [vmem:[%s1104 + $0x648] sm:$0xff]
        %1511 = vst [vmem:[%s1105 + $0x650] sm:$0xff] %v1510
        %v1512 = vld [vmem:[%s1104 + $0x64c] sm:$0xff]
        %1513 = vst [vmem:[%s1105 + $0x658] sm:$0xff] %v1512
        %v1514 = vld [vmem:[%s1104 + $0x660] sm:$0xff]
        %1515 = vst [vmem:[%s1105 + $0x660] sm:$0xff] %v1514
        %v1516 = vld [vmem:[%s1104 + $0x664] sm:$0xff]
        %1517 = vst [vmem:[%s1105 + $0x668] sm:$0xff] %v1516
        %v1518 = vld [vmem:[%s1104 + $0x668] sm:$0xff]
        %1519 = vst [vmem:[%s1105 + $0x670] sm:$0xff] %v1518
        %v1520 = vld [vmem:[%s1104 + $0x66c] sm:$0xff]
        %1521 = vst [vmem:[%s1105 + $0x678] sm:$0xff] %v1520
        %v1522 = vld [vmem:[%s1104 + $0x680] sm:$0xff]
        %1523 = vst [vmem:[%s1105 + $0x680] sm:$0xff] %v1522
        %v1524 = vld [vmem:[%s1104 + $0x684] sm:$0xff]
        %1525 = vst [vmem:[%s1105 + $0x688] sm:$0xff] %v1524
        %v1526 = vld [vmem:[%s1104 + $0x688] sm:$0xff]
        %1527 = vst [vmem:[%s1105 + $0x690] sm:$0xff] %v1526
        %v1528 = vld [vmem:[%s1104 + $0x68c] sm:$0xff]
        %1529 = vst [vmem:[%s1105 + $0x698] sm:$0xff] %v1528
        %v1530 = vld [vmem:[%s1104 + $0x6a0] sm:$0xff]
        %1531 = vst [vmem:[%s1105 + $0x6a0] sm:$0xff] %v1530
        %v1532 = vld [vmem:[%s1104 + $0x6a4] sm:$0xff]
        %1533 = vst [vmem:[%s1105 + $0x6a8] sm:$0xff] %v1532
        %v1534 = vld [vmem:[%s1104 + $0x6a8] sm:$0xff]
        %1535 = vst [vmem:[%s1105 + $0x6b0] sm:$0xff] %v1534
        %v1536 = vld [vmem:[%s1104 + $0x6ac] sm:$0xff]
        %1537 = vst [vmem:[%s1105 + $0x6b8] sm:$0xff] %v1536
        %v1538 = vld [vmem:[%s1104 + $0x6c0] sm:$0xff]
        %1539 = vst [vmem:[%s1105 + $0x6c0] sm:$0xff] %v1538
        %v1540 = vld [vmem:[%s1104 + $0x6c4] sm:$0xff]
        %1541 = vst [vmem:[%s1105 + $0x6c8] sm:$0xff] %v1540
        %v1542 = vld [vmem:[%s1104 + $0x6c8] sm:$0xff]
        %1543 = vst [vmem:[%s1105 + $0x6d0] sm:$0xff] %v1542
        %v1544 = vld [vmem:[%s1104 + $0x6cc] sm:$0xff]
        %1545 = vst [vmem:[%s1105 + $0x6d8] sm:$0xff] %v1544
        %v1546 = vld [vmem:[%s1104 + $0x6e0] sm:$0xff]
        %1547 = vst [vmem:[%s1105 + $0x6e0] sm:$0xff] %v1546
        %v1548 = vld [vmem:[%s1104 + $0x6e4] sm:$0xff]
        %1549 = vst [vmem:[%s1105 + $0x6e8] sm:$0xff] %v1548
        %v1550 = vld [vmem:[%s1104 + $0x6e8] sm:$0xff]
        %1551 = vst [vmem:[%s1105 + $0x6f0] sm:$0xff] %v1550
        %v1552 = vld [vmem:[%s1104 + $0x6ec] sm:$0xff]
        %1553 = vst [vmem:[%s1105 + $0x6f8] sm:$0xff] %v1552
        %v1554 = vld [vmem:[%s1104 + $0x700] sm:$0xff]
        %1555 = vst [vmem:[%s1105 + $0x700] sm:$0xff] %v1554
        %v1556 = vld [vmem:[%s1104 + $0x704] sm:$0xff]
        %1557 = vst [vmem:[%s1105 + $0x708] sm:$0xff] %v1556
        %v1558 = vld [vmem:[%s1104 + $0x708] sm:$0xff]
        %1559 = vst [vmem:[%s1105 + $0x710] sm:$0xff] %v1558
        %v1560 = vld [vmem:[%s1104 + $0x70c] sm:$0xff]
        %1561 = vst [vmem:[%s1105 + $0x718] sm:$0xff] %v1560
        %v1562 = vld [vmem:[%s1104 + $0x720] sm:$0xff]
        %1563 = vst [vmem:[%s1105 + $0x720] sm:$0xff] %v1562
        %v1564 = vld [vmem:[%s1104 + $0x724] sm:$0xff]
        %1565 = vst [vmem:[%s1105 + $0x728] sm:$0xff] %v1564
        %v1566 = vld [vmem:[%s1104 + $0x728] sm:$0xff]
        %1567 = vst [vmem:[%s1105 + $0x730] sm:$0xff] %v1566
        %v1568 = vld [vmem:[%s1104 + $0x72c] sm:$0xff]
        %1569 = vst [vmem:[%s1105 + $0x738] sm:$0xff] %v1568
        %v1570 = vld [vmem:[%s1104 + $0x740] sm:$0xff]
        %1571 = vst [vmem:[%s1105 + $0x740] sm:$0xff] %v1570
        %v1572 = vld [vmem:[%s1104 + $0x744] sm:$0xff]
        %1573 = vst [vmem:[%s1105 + $0x748] sm:$0xff] %v1572
        %v1574 = vld [vmem:[%s1104 + $0x748] sm:$0xff]
        %1575 = vst [vmem:[%s1105 + $0x750] sm:$0xff] %v1574
        %v1576 = vld [vmem:[%s1104 + $0x74c] sm:$0xff]
        %1577 = vst [vmem:[%s1105 + $0x758] sm:$0xff] %v1576
        %v1578 = vld [vmem:[%s1104 + $0x760] sm:$0xff]
        %1579 = vst [vmem:[%s1105 + $0x760] sm:$0xff] %v1578
        %v1580 = vld [vmem:[%s1104 + $0x764] sm:$0xff]
        %1581 = vst [vmem:[%s1105 + $0x768] sm:$0xff] %v1580
        %v1582 = vld [vmem:[%s1104 + $0x768] sm:$0xff]
        %1583 = vst [vmem:[%s1105 + $0x770] sm:$0xff] %v1582
        %v1584 = vld [vmem:[%s1104 + $0x76c] sm:$0xff]
        %1585 = vst [vmem:[%s1105 + $0x778] sm:$0xff] %v1584
        %v1586 = vld [vmem:[%s1104 + $0x780] sm:$0xff]
        %1587 = vst [vmem:[%s1105 + $0x780] sm:$0xff] %v1586
        %v1588 = vld [vmem:[%s1104 + $0x784] sm:$0xff]
        %1589 = vst [vmem:[%s1105 + $0x788] sm:$0xff] %v1588
        %v1590 = vld [vmem:[%s1104 + $0x788] sm:$0xff]
        %1591 = vst [vmem:[%s1105 + $0x790] sm:$0xff] %v1590
        %v1592 = vld [vmem:[%s1104 + $0x78c] sm:$0xff]
        %1593 = vst [vmem:[%s1105 + $0x798] sm:$0xff] %v1592
        %v1594 = vld [vmem:[%s1104 + $0x7a0] sm:$0xff]
        %1595 = vst [vmem:[%s1105 + $0x7a0] sm:$0xff] %v1594
        %v1596 = vld [vmem:[%s1104 + $0x7a4] sm:$0xff]
        %1597 = vst [vmem:[%s1105 + $0x7a8] sm:$0xff] %v1596
        %v1598 = vld [vmem:[%s1104 + $0x7a8] sm:$0xff]
        %1599 = vst [vmem:[%s1105 + $0x7b0] sm:$0xff] %v1598
        %v1600 = vld [vmem:[%s1104 + $0x7ac] sm:$0xff]
        %1601 = vst [vmem:[%s1105 + $0x7b8] sm:$0xff] %v1600
        %v1602 = vld [vmem:[%s1104 + $0x7c0] sm:$0xff]
        %1603 = vst [vmem:[%s1105 + $0x7c0] sm:$0xff] %v1602
        %v1604 = vld [vmem:[%s1104 + $0x7c4] sm:$0xff]
        %1605 = vst [vmem:[%s1105 + $0x7c8] sm:$0xff] %v1604
        %v1606 = vld [vmem:[%s1104 + $0x7c8] sm:$0xff]
        %1607 = vst [vmem:[%s1105 + $0x7d0] sm:$0xff] %v1606
        %v1608 = vld [vmem:[%s1104 + $0x7cc] sm:$0xff]
        %1609 = vst [vmem:[%s1105 + $0x7d8] sm:$0xff] %v1608
        %v1610 = vld [vmem:[%s1104 + $0x7e0] sm:$0xff]
        %1611 = vst [vmem:[%s1105 + $0x7e0] sm:$0xff] %v1610
        %v1612 = vld [vmem:[%s1104 + $0x7e4] sm:$0xff]
        %1613 = vst [vmem:[%s1105 + $0x7e8] sm:$0xff] %v1612
        %v1614 = vld [vmem:[%s1104 + $0x7e8] sm:$0xff]
        %1615 = vst [vmem:[%s1105 + $0x7f0] sm:$0xff] %v1614
        %v1616 = vld [vmem:[%s1104 + $0x7ec] sm:$0xff]
        %1617 = vst [vmem:[%s1105 + $0x7f8] sm:$0xff] %v1616
        %v1618 = vld [vmem:[%s1104 + $0x800] sm:$0xff]
        %1619 = vst [vmem:[%s1105 + $0x800] sm:$0xff] %v1618
        %v1620 = vld [vmem:[%s1104 + $0x804] sm:$0xff]
        %1621 = vst [vmem:[%s1105 + $0x808] sm:$0xff] %v1620
        %v1622 = vld [vmem:[%s1104 + $0x808] sm:$0xff]
        %1623 = vst [vmem:[%s1105 + $0x810] sm:$0xff] %v1622
        %v1624 = vld [vmem:[%s1104 + $0x80c] sm:$0xff]
        %1625 = vst [vmem:[%s1105 + $0x818] sm:$0xff] %v1624
        %v1626 = vld [vmem:[%s1104 + $0x820] sm:$0xff]
        %1627 = vst [vmem:[%s1105 + $0x820] sm:$0xff] %v1626
        %v1628 = vld [vmem:[%s1104 + $0x824] sm:$0xff]
        %1629 = vst [vmem:[%s1105 + $0x828] sm:$0xff] %v1628
        %v1630 = vld [vmem:[%s1104 + $0x828] sm:$0xff]
        %1631 = vst [vmem:[%s1105 + $0x830] sm:$0xff] %v1630
        %v1632 = vld [vmem:[%s1104 + $0x82c] sm:$0xff]
        %1633 = vst [vmem:[%s1105 + $0x838] sm:$0xff] %v1632
        %v1634 = vld [vmem:[%s1104 + $0x840] sm:$0xff]
        %1635 = vst [vmem:[%s1105 + $0x840] sm:$0xff] %v1634
        %v1636 = vld [vmem:[%s1104 + $0x844] sm:$0xff]
        %1637 = vst [vmem:[%s1105 + $0x848] sm:$0xff] %v1636
        %v1638 = vld [vmem:[%s1104 + $0x848] sm:$0xff]
        %1639 = vst [vmem:[%s1105 + $0x850] sm:$0xff] %v1638
        %v1640 = vld [vmem:[%s1104 + $0x84c] sm:$0xff]
        %1641 = vst [vmem:[%s1105 + $0x858] sm:$0xff] %v1640
        %v1642 = vld [vmem:[%s1104 + $0x860] sm:$0xff]
        %1643 = vst [vmem:[%s1105 + $0x860] sm:$0xff] %v1642
        %v1644 = vld [vmem:[%s1104 + $0x864] sm:$0xff]
        %1645 = vst [vmem:[%s1105 + $0x868] sm:$0xff] %v1644
        %v1646 = vld [vmem:[%s1104 + $0x868] sm:$0xff]
        %1647 = vst [vmem:[%s1105 + $0x870] sm:$0xff] %v1646
        %v1648 = vld [vmem:[%s1104 + $0x86c] sm:$0xff]
        %1649 = vst [vmem:[%s1105 + $0x878] sm:$0xff] %v1648
        %v1650 = vld [vmem:[%s1104 + $0x880] sm:$0xff]
        %1651 = vst [vmem:[%s1105 + $0x880] sm:$0xff] %v1650
        %v1652 = vld [vmem:[%s1104 + $0x884] sm:$0xff]
        %1653 = vst [vmem:[%s1105 + $0x888] sm:$0xff] %v1652
        %v1654 = vld [vmem:[%s1104 + $0x888] sm:$0xff]
        %1655 = vst [vmem:[%s1105 + $0x890] sm:$0xff] %v1654
        %v1656 = vld [vmem:[%s1104 + $0x88c] sm:$0xff]
        %1657 = vst [vmem:[%s1105 + $0x898] sm:$0xff] %v1656
        %v1658 = vld [vmem:[%s1104 + $0x8a0] sm:$0xff]
        %1659 = vst [vmem:[%s1105 + $0x8a0] sm:$0xff] %v1658
        %v1660 = vld [vmem:[%s1104 + $0x8a4] sm:$0xff]
        %1661 = vst [vmem:[%s1105 + $0x8a8] sm:$0xff] %v1660
        %v1662 = vld [vmem:[%s1104 + $0x8a8] sm:$0xff]
        %1663 = vst [vmem:[%s1105 + $0x8b0] sm:$0xff] %v1662
        %v1664 = vld [vmem:[%s1104 + $0x8ac] sm:$0xff]
        %1665 = vst [vmem:[%s1105 + $0x8b8] sm:$0xff] %v1664
        %v1666 = vld [vmem:[%s1104 + $0x8c0] sm:$0xff]
        %1667 = vst [vmem:[%s1105 + $0x8c0] sm:$0xff] %v1666
        %v1668 = vld [vmem:[%s1104 + $0x8c4] sm:$0xff]
        %1669 = vst [vmem:[%s1105 + $0x8c8] sm:$0xff] %v1668
        %v1670 = vld [vmem:[%s1104 + $0x8c8] sm:$0xff]
        %1671 = vst [vmem:[%s1105 + $0x8d0] sm:$0xff] %v1670
        %v1672 = vld [vmem:[%s1104 + $0x8cc] sm:$0xff]
        %1673 = vst [vmem:[%s1105 + $0x8d8] sm:$0xff] %v1672
        %v1674 = vld [vmem:[%s1104 + $0x8e0] sm:$0xff]
        %1675 = vst [vmem:[%s1105 + $0x8e0] sm:$0xff] %v1674
        %v1676 = vld [vmem:[%s1104 + $0x8e4] sm:$0xff]
        %1677 = vst [vmem:[%s1105 + $0x8e8] sm:$0xff] %v1676
        %v1678 = vld [vmem:[%s1104 + $0x8e8] sm:$0xff]
        %1679 = vst [vmem:[%s1105 + $0x8f0] sm:$0xff] %v1678
        %v1680 = vld [vmem:[%s1104 + $0x8ec] sm:$0xff]
        %1681 = vst [vmem:[%s1105 + $0x8f8] sm:$0xff] %v1680
        %v1682 = vld [vmem:[%s1104 + $0x900] sm:$0xff]
        %1683 = vst [vmem:[%s1105 + $0x900] sm:$0xff] %v1682
        %v1684 = vld [vmem:[%s1104 + $0x904] sm:$0xff]
        %1685 = vst [vmem:[%s1105 + $0x908] sm:$0xff] %v1684
        %v1686 = vld [vmem:[%s1104 + $0x908] sm:$0xff]
        %1687 = vst [vmem:[%s1105 + $0x910] sm:$0xff] %v1686
        %v1688 = vld [vmem:[%s1104 + $0x90c] sm:$0xff]
        %1689 = vst [vmem:[%s1105 + $0x918] sm:$0xff] %v1688
        %v1690 = vld [vmem:[%s1104 + $0x920] sm:$0xff]
        %1691 = vst [vmem:[%s1105 + $0x920] sm:$0xff] %v1690
        %v1692 = vld [vmem:[%s1104 + $0x924] sm:$0xff]
        %1693 = vst [vmem:[%s1105 + $0x928] sm:$0xff] %v1692
        %v1694 = vld [vmem:[%s1104 + $0x928] sm:$0xff]
        %1695 = vst [vmem:[%s1105 + $0x930] sm:$0xff] %v1694
        %v1696 = vld [vmem:[%s1104 + $0x92c] sm:$0xff]
        %1697 = vst [vmem:[%s1105 + $0x938] sm:$0xff] %v1696
        %v1698 = vld [vmem:[%s1104 + $0x940] sm:$0xff]
        %1699 = vst [vmem:[%s1105 + $0x940] sm:$0xff] %v1698
        %v1700 = vld [vmem:[%s1104 + $0x944] sm:$0xff]
        %1701 = vst [vmem:[%s1105 + $0x948] sm:$0xff] %v1700
        %v1702 = vld [vmem:[%s1104 + $0x948] sm:$0xff]
        %1703 = vst [vmem:[%s1105 + $0x950] sm:$0xff] %v1702
        %v1704 = vld [vmem:[%s1104 + $0x94c] sm:$0xff]
        %1705 = vst [vmem:[%s1105 + $0x958] sm:$0xff] %v1704
        %v1706 = vld [vmem:[%s1104 + $0x960] sm:$0xff]
        %1707 = vst [vmem:[%s1105 + $0x960] sm:$0xff] %v1706
        %v1708 = vld [vmem:[%s1104 + $0x964] sm:$0xff]
        %1709 = vst [vmem:[%s1105 + $0x968] sm:$0xff] %v1708
        %v1710 = vld [vmem:[%s1104 + $0x968] sm:$0xff]
        %1711 = vst [vmem:[%s1105 + $0x970] sm:$0xff] %v1710
        %v1712 = vld [vmem:[%s1104 + $0x96c] sm:$0xff]
        %1713 = vst [vmem:[%s1105 + $0x978] sm:$0xff] %v1712
        %v1714 = vld [vmem:[%s1104 + $0x980] sm:$0xff]
        %1715 = vst [vmem:[%s1105 + $0x980] sm:$0xff] %v1714
        %v1716 = vld [vmem:[%s1104 + $0x984] sm:$0xff]
        %1717 = vst [vmem:[%s1105 + $0x988] sm:$0xff] %v1716
        %v1718 = vld [vmem:[%s1104 + $0x988] sm:$0xff]
        %1719 = vst [vmem:[%s1105 + $0x990] sm:$0xff] %v1718
        %v1720 = vld [vmem:[%s1104 + $0x98c] sm:$0xff]
        %1721 = vst [vmem:[%s1105 + $0x998] sm:$0xff] %v1720
        %v1722 = vld [vmem:[%s1104 + $0x9a0] sm:$0xff]
        %1723 = vst [vmem:[%s1105 + $0x9a0] sm:$0xff] %v1722
        %v1724 = vld [vmem:[%s1104 + $0x9a4] sm:$0xff]
        %1725 = vst [vmem:[%s1105 + $0x9a8] sm:$0xff] %v1724
        %v1726 = vld [vmem:[%s1104 + $0x9a8] sm:$0xff]
        %1727 = vst [vmem:[%s1105 + $0x9b0] sm:$0xff] %v1726
        %v1728 = vld [vmem:[%s1104 + $0x9ac] sm:$0xff]
        %1729 = vst [vmem:[%s1105 + $0x9b8] sm:$0xff] %v1728
        %v1730 = vld [vmem:[%s1104 + $0x9c0] sm:$0xff]
        %1731 = vst [vmem:[%s1105 + $0x9c0] sm:$0xff] %v1730
        %v1732 = vld [vmem:[%s1104 + $0x9c4] sm:$0xff]
        %1733 = vst [vmem:[%s1105 + $0x9c8] sm:$0xff] %v1732
        %v1734 = vld [vmem:[%s1104 + $0x9c8] sm:$0xff]
        %1735 = vst [vmem:[%s1105 + $0x9d0] sm:$0xff] %v1734
        %v1736 = vld [vmem:[%s1104 + $0x9cc] sm:$0xff]
        %1737 = vst [vmem:[%s1105 + $0x9d8] sm:$0xff] %v1736
        %v1738 = vld [vmem:[%s1104 + $0x9e0] sm:$0xff]
        %1739 = vst [vmem:[%s1105 + $0x9e0] sm:$0xff] %v1738
        %v1740 = vld [vmem:[%s1104 + $0x9e4] sm:$0xff]
        %1741 = vst [vmem:[%s1105 + $0x9e8] sm:$0xff] %v1740
        %v1742 = vld [vmem:[%s1104 + $0x9e8] sm:$0xff]
        %1743 = vst [vmem:[%s1105 + $0x9f0] sm:$0xff] %v1742
        %v1744 = vld [vmem:[%s1104 + $0x9ec] sm:$0xff]
        %1745 = vst [vmem:[%s1105 + $0x9f8] sm:$0xff] %v1744
        %v1746 = vld [vmem:[%s1104 + $0xa00] sm:$0xff]
        %1747 = vst [vmem:[%s1105 + $0xa00] sm:$0xff] %v1746
        %v1748 = vld [vmem:[%s1104 + $0xa04] sm:$0xff]
        %1749 = vst [vmem:[%s1105 + $0xa08] sm:$0xff] %v1748
        %v1750 = vld [vmem:[%s1104 + $0xa08] sm:$0xff]
        %1751 = vst [vmem:[%s1105 + $0xa10] sm:$0xff] %v1750
        %v1752 = vld [vmem:[%s1104 + $0xa0c] sm:$0xff]
        %1753 = vst [vmem:[%s1105 + $0xa18] sm:$0xff] %v1752
        %v1754 = vld [vmem:[%s1104 + $0xa20] sm:$0xff]
        %1755 = vst [vmem:[%s1105 + $0xa20] sm:$0xff] %v1754
        %v1756 = vld [vmem:[%s1104 + $0xa24] sm:$0xff]
        %1757 = vst [vmem:[%s1105 + $0xa28] sm:$0xff] %v1756
        %v1758 = vld [vmem:[%s1104 + $0xa28] sm:$0xff]
        %1759 = vst [vmem:[%s1105 + $0xa30] sm:$0xff] %v1758
        %v1760 = vld [vmem:[%s1104 + $0xa2c] sm:$0xff]
        %1761 = vst [vmem:[%s1105 + $0xa38] sm:$0xff] %v1760
        %v1762 = vld [vmem:[%s1104 + $0xa40] sm:$0xff]
        %1763 = vst [vmem:[%s1105 + $0xa40] sm:$0xff] %v1762
        %v1764 = vld [vmem:[%s1104 + $0xa44] sm:$0xff]
        %1765 = vst [vmem:[%s1105 + $0xa48] sm:$0xff] %v1764
        %v1766 = vld [vmem:[%s1104 + $0xa48] sm:$0xff]
        %1767 = vst [vmem:[%s1105 + $0xa50] sm:$0xff] %v1766
        %v1768 = vld [vmem:[%s1104 + $0xa4c] sm:$0xff]
        %1769 = vst [vmem:[%s1105 + $0xa58] sm:$0xff] %v1768
        %v1770 = vld [vmem:[%s1104 + $0xa60] sm:$0xff]
        %1771 = vst [vmem:[%s1105 + $0xa60] sm:$0xff] %v1770
        %v1772 = vld [vmem:[%s1104 + $0xa64] sm:$0xff]
        %1773 = vst [vmem:[%s1105 + $0xa68] sm:$0xff] %v1772
        %v1774 = vld [vmem:[%s1104 + $0xa68] sm:$0xff]
        %1775 = vst [vmem:[%s1105 + $0xa70] sm:$0xff] %v1774
        %v1776 = vld [vmem:[%s1104 + $0xa6c] sm:$0xff]
        %1777 = vst [vmem:[%s1105 + $0xa78] sm:$0xff] %v1776
        %v1778 = vld [vmem:[%s1104 + $0xa80] sm:$0xff]
        %1779 = vst [vmem:[%s1105 + $0xa80] sm:$0xff] %v1778
        %v1780 = vld [vmem:[%s1104 + $0xa84] sm:$0xff]
        %1781 = vst [vmem:[%s1105 + $0xa88] sm:$0xff] %v1780
        %v1782 = vld [vmem:[%s1104 + $0xa88] sm:$0xff]
        %1783 = vst [vmem:[%s1105 + $0xa90] sm:$0xff] %v1782
        %v1784 = vld [vmem:[%s1104 + $0xa8c] sm:$0xff]
        %1785 = vst [vmem:[%s1105 + $0xa98] sm:$0xff] %v1784
        %v1786 = vld [vmem:[%s1104 + $0xaa0] sm:$0xff]
        %1787 = vst [vmem:[%s1105 + $0xaa0] sm:$0xff] %v1786
        %v1788 = vld [vmem:[%s1104 + $0xaa4] sm:$0xff]
        %1789 = vst [vmem:[%s1105 + $0xaa8] sm:$0xff] %v1788
        %v1790 = vld [vmem:[%s1104 + $0xaa8] sm:$0xff]
        %1791 = vst [vmem:[%s1105 + $0xab0] sm:$0xff] %v1790
        %v1792 = vld [vmem:[%s1104 + $0xaac] sm:$0xff]
        %1793 = vst [vmem:[%s1105 + $0xab8] sm:$0xff] %v1792
        %v1794 = vld [vmem:[%s1104 + $0xac0] sm:$0xff]
        %1795 = vst [vmem:[%s1105 + $0xac0] sm:$0xff] %v1794
        %v1796 = vld [vmem:[%s1104 + $0xac4] sm:$0xff]
        %1797 = vst [vmem:[%s1105 + $0xac8] sm:$0xff] %v1796
        %v1798 = vld [vmem:[%s1104 + $0xac8] sm:$0xff]
        %1799 = vst [vmem:[%s1105 + $0xad0] sm:$0xff] %v1798
        %v1800 = vld [vmem:[%s1104 + $0xacc] sm:$0xff]
        %1801 = vst [vmem:[%s1105 + $0xad8] sm:$0xff] %v1800
        %v1802 = vld [vmem:[%s1104 + $0xae0] sm:$0xff]
        %1803 = vst [vmem:[%s1105 + $0xae0] sm:$0xff] %v1802
        %v1804 = vld [vmem:[%s1104 + $0xae4] sm:$0xff]
        %1805 = vst [vmem:[%s1105 + $0xae8] sm:$0xff] %v1804
        %v1806 = vld [vmem:[%s1104 + $0xae8] sm:$0xff]
        %1807 = vst [vmem:[%s1105 + $0xaf0] sm:$0xff] %v1806
        %v1808 = vld [vmem:[%s1104 + $0xaec] sm:$0xff]
        %1809 = vst [vmem:[%s1105 + $0xaf8] sm:$0xff] %v1808
        %v1810 = vld [vmem:[%s1104 + $0xb00] sm:$0xff]
        %1811 = vst [vmem:[%s1105 + $0xb00] sm:$0xff] %v1810
        %v1812 = vld [vmem:[%s1104 + $0xb04] sm:$0xff]
        %1813 = vst [vmem:[%s1105 + $0xb08] sm:$0xff] %v1812
        %v1814 = vld [vmem:[%s1104 + $0xb08] sm:$0xff]
        %1815 = vst [vmem:[%s1105 + $0xb10] sm:$0xff] %v1814
        %v1816 = vld [vmem:[%s1104 + $0xb0c] sm:$0xff]
        %1817 = vst [vmem:[%s1105 + $0xb18] sm:$0xff] %v1816
        %v1818 = vld [vmem:[%s1104 + $0xb20] sm:$0xff]
        %1819 = vst [vmem:[%s1105 + $0xb20] sm:$0xff] %v1818
        %v1820 = vld [vmem:[%s1104 + $0xb24] sm:$0xff]
        %1821 = vst [vmem:[%s1105 + $0xb28] sm:$0xff] %v1820
        %v1822 = vld [vmem:[%s1104 + $0xb28] sm:$0xff]
        %1823 = vst [vmem:[%s1105 + $0xb30] sm:$0xff] %v1822
        %v1824 = vld [vmem:[%s1104 + $0xb2c] sm:$0xff]
        %1825 = vst [vmem:[%s1105 + $0xb38] sm:$0xff] %v1824
        %v1826 = vld [vmem:[%s1104 + $0xb40] sm:$0xff]
        %1827 = vst [vmem:[%s1105 + $0xb40] sm:$0xff] %v1826
        %v1828 = vld [vmem:[%s1104 + $0xb44] sm:$0xff]
        %1829 = vst [vmem:[%s1105 + $0xb48] sm:$0xff] %v1828
        %v1830 = vld [vmem:[%s1104 + $0xb48] sm:$0xff]
        %1831 = vst [vmem:[%s1105 + $0xb50] sm:$0xff] %v1830
        %v1832 = vld [vmem:[%s1104 + $0xb4c] sm:$0xff]
        %1833 = vst [vmem:[%s1105 + $0xb58] sm:$0xff] %v1832
        %v1834 = vld [vmem:[%s1104 + $0xb60] sm:$0xff]
        %1835 = vst [vmem:[%s1105 + $0xb60] sm:$0xff] %v1834
        %v1836 = vld [vmem:[%s1104 + $0xb64] sm:$0xff]
        %1837 = vst [vmem:[%s1105 + $0xb68] sm:$0xff] %v1836
        %v1838 = vld [vmem:[%s1104 + $0xb68] sm:$0xff]
        %1839 = vst [vmem:[%s1105 + $0xb70] sm:$0xff] %v1838
        %v1840 = vld [vmem:[%s1104 + $0xb6c] sm:$0xff]
        %1841 = vst [vmem:[%s1105 + $0xb78] sm:$0xff] %v1840
        %v1842 = vld [vmem:[%s1104 + $0xb80] sm:$0xff]
        %1843 = vst [vmem:[%s1105 + $0xb80] sm:$0xff] %v1842
        %v1844 = vld [vmem:[%s1104 + $0xb84] sm:$0xff]
        %1845 = vst [vmem:[%s1105 + $0xb88] sm:$0xff] %v1844
        %v1846 = vld [vmem:[%s1104 + $0xb88] sm:$0xff]
        %1847 = vst [vmem:[%s1105 + $0xb90] sm:$0xff] %v1846
        %v1848 = vld [vmem:[%s1104 + $0xb8c] sm:$0xff]
        %1849 = vst [vmem:[%s1105 + $0xb98] sm:$0xff] %v1848
        %v1850 = vld [vmem:[%s1104 + $0xba0] sm:$0xff]
        %1851 = vst [vmem:[%s1105 + $0xba0] sm:$0xff] %v1850
        %v1852 = vld [vmem:[%s1104 + $0xba4] sm:$0xff]
        %1853 = vst [vmem:[%s1105 + $0xba8] sm:$0xff] %v1852
        %v1854 = vld [vmem:[%s1104 + $0xba8] sm:$0xff]
        %1855 = vst [vmem:[%s1105 + $0xbb0] sm:$0xff] %v1854
        %v1856 = vld [vmem:[%s1104 + $0xbac] sm:$0xff]
        %1857 = vst [vmem:[%s1105 + $0xbb8] sm:$0xff] %v1856
        %v1858 = vld [vmem:[%s1104 + $0xbc0] sm:$0xff]
        %1859 = vst [vmem:[%s1105 + $0xbc0] sm:$0xff] %v1858
        %v1860 = vld [vmem:[%s1104 + $0xbc4] sm:$0xff]
        %1861 = vst [vmem:[%s1105 + $0xbc8] sm:$0xff] %v1860
        %v1862 = vld [vmem:[%s1104 + $0xbc8] sm:$0xff]
        %1863 = vst [vmem:[%s1105 + $0xbd0] sm:$0xff] %v1862
        %v1864 = vld [vmem:[%s1104 + $0xbcc] sm:$0xff]
        %1865 = vst [vmem:[%s1105 + $0xbd8] sm:$0xff] %v1864
        %v1866 = vld [vmem:[%s1104 + $0xbe0] sm:$0xff]
        %1867 = vst [vmem:[%s1105 + $0xbe0] sm:$0xff] %v1866
        %v1868 = vld [vmem:[%s1104 + $0xbe4] sm:$0xff]
        %1869 = vst [vmem:[%s1105 + $0xbe8] sm:$0xff] %v1868
        %v1870 = vld [vmem:[%s1104 + $0xbe8] sm:$0xff]
        %1871 = vst [vmem:[%s1105 + $0xbf0] sm:$0xff] %v1870
        %v1872 = vld [vmem:[%s1104 + $0xbec] sm:$0xff]
        %1873 = vst [vmem:[%s1105 + $0xbf8] sm:$0xff] %v1872
        %v1874 = vld [vmem:[%s1104 + $0xc00] sm:$0xff]
        %1875 = vst [vmem:[%s1105 + $0xc00] sm:$0xff] %v1874
        %v1876 = vld [vmem:[%s1104 + $0xc04] sm:$0xff]
        %1877 = vst [vmem:[%s1105 + $0xc08] sm:$0xff] %v1876
        %v1878 = vld [vmem:[%s1104 + $0xc08] sm:$0xff]
        %1879 = vst [vmem:[%s1105 + $0xc10] sm:$0xff] %v1878
        %v1880 = vld [vmem:[%s1104 + $0xc0c] sm:$0xff]
        %1881 = vst [vmem:[%s1105 + $0xc18] sm:$0xff] %v1880
        %v1882 = vld [vmem:[%s1104 + $0xc20] sm:$0xff]
        %1883 = vst [vmem:[%s1105 + $0xc20] sm:$0xff] %v1882
        %v1884 = vld [vmem:[%s1104 + $0xc24] sm:$0xff]
        %1885 = vst [vmem:[%s1105 + $0xc28] sm:$0xff] %v1884
        %v1886 = vld [vmem:[%s1104 + $0xc28] sm:$0xff]
        %1887 = vst [vmem:[%s1105 + $0xc30] sm:$0xff] %v1886
        %v1888 = vld [vmem:[%s1104 + $0xc2c] sm:$0xff]
        %1889 = vst [vmem:[%s1105 + $0xc38] sm:$0xff] %v1888
        %v1890 = vld [vmem:[%s1104 + $0xc40] sm:$0xff]
        %1891 = vst [vmem:[%s1105 + $0xc40] sm:$0xff] %v1890
        %v1892 = vld [vmem:[%s1104 + $0xc44] sm:$0xff]
        %1893 = vst [vmem:[%s1105 + $0xc48] sm:$0xff] %v1892
        %v1894 = vld [vmem:[%s1104 + $0xc48] sm:$0xff]
        %1895 = vst [vmem:[%s1105 + $0xc50] sm:$0xff] %v1894
        %v1896 = vld [vmem:[%s1104 + $0xc4c] sm:$0xff]
        %1897 = vst [vmem:[%s1105 + $0xc58] sm:$0xff] %v1896
        %v1898 = vld [vmem:[%s1104 + $0xc60] sm:$0xff]
        %1899 = vst [vmem:[%s1105 + $0xc60] sm:$0xff] %v1898
        %v1900 = vld [vmem:[%s1104 + $0xc64] sm:$0xff]
        %1901 = vst [vmem:[%s1105 + $0xc68] sm:$0xff] %v1900
        %v1902 = vld [vmem:[%s1104 + $0xc68] sm:$0xff]
        %1903 = vst [vmem:[%s1105 + $0xc70] sm:$0xff] %v1902
        %v1904 = vld [vmem:[%s1104 + $0xc6c] sm:$0xff]
        %1905 = vst [vmem:[%s1105 + $0xc78] sm:$0xff] %v1904
        %v1906 = vld [vmem:[%s1104 + $0xc80] sm:$0xff]
        %1907 = vst [vmem:[%s1105 + $0xc80] sm:$0xff] %v1906
        %v1908 = vld [vmem:[%s1104 + $0xc84] sm:$0xff]
        %1909 = vst [vmem:[%s1105 + $0xc88] sm:$0xff] %v1908
        %v1910 = vld [vmem:[%s1104 + $0xc88] sm:$0xff]
        %1911 = vst [vmem:[%s1105 + $0xc90] sm:$0xff] %v1910
        %v1912 = vld [vmem:[%s1104 + $0xc8c] sm:$0xff]
        %1913 = vst [vmem:[%s1105 + $0xc98] sm:$0xff] %v1912
        %v1914 = vld [vmem:[%s1104 + $0xca0] sm:$0xff]
        %1915 = vst [vmem:[%s1105 + $0xca0] sm:$0xff] %v1914
        %v1916 = vld [vmem:[%s1104 + $0xca4] sm:$0xff]
        %1917 = vst [vmem:[%s1105 + $0xca8] sm:$0xff] %v1916
        %v1918 = vld [vmem:[%s1104 + $0xca8] sm:$0xff]
        %1919 = vst [vmem:[%s1105 + $0xcb0] sm:$0xff] %v1918
        %v1920 = vld [vmem:[%s1104 + $0xcac] sm:$0xff]
        %1921 = vst [vmem:[%s1105 + $0xcb8] sm:$0xff] %v1920
        %v1922 = vld [vmem:[%s1104 + $0xcc0] sm:$0xff]
        %1923 = vst [vmem:[%s1105 + $0xcc0] sm:$0xff] %v1922
        %v1924 = vld [vmem:[%s1104 + $0xcc4] sm:$0xff]
        %1925 = vst [vmem:[%s1105 + $0xcc8] sm:$0xff] %v1924
        %v1926 = vld [vmem:[%s1104 + $0xcc8] sm:$0xff]
        %1927 = vst [vmem:[%s1105 + $0xcd0] sm:$0xff] %v1926
        %v1928 = vld [vmem:[%s1104 + $0xccc] sm:$0xff]
        %1929 = vst [vmem:[%s1105 + $0xcd8] sm:$0xff] %v1928
        %v1930 = vld [vmem:[%s1104 + $0xce0] sm:$0xff]
        %1931 = vst [vmem:[%s1105 + $0xce0] sm:$0xff] %v1930
        %v1932 = vld [vmem:[%s1104 + $0xce4] sm:$0xff]
        %1933 = vst [vmem:[%s1105 + $0xce8] sm:$0xff] %v1932
        %v1934 = vld [vmem:[%s1104 + $0xce8] sm:$0xff]
        %1935 = vst [vmem:[%s1105 + $0xcf0] sm:$0xff] %v1934
        %v1936 = vld [vmem:[%s1104 + $0xcec] sm:$0xff]
        %1937 = vst [vmem:[%s1105 + $0xcf8] sm:$0xff] %v1936
        %v1938 = vld [vmem:[%s1104 + $0xd00] sm:$0xff]
        %1939 = vst [vmem:[%s1105 + $0xd00] sm:$0xff] %v1938
        %v1940 = vld [vmem:[%s1104 + $0xd04] sm:$0xff]
        %1941 = vst [vmem:[%s1105 + $0xd08] sm:$0xff] %v1940
        %v1942 = vld [vmem:[%s1104 + $0xd08] sm:$0xff]
        %1943 = vst [vmem:[%s1105 + $0xd10] sm:$0xff] %v1942
        %v1944 = vld [vmem:[%s1104 + $0xd0c] sm:$0xff]
        %1945 = vst [vmem:[%s1105 + $0xd18] sm:$0xff] %v1944
        %v1946 = vld [vmem:[%s1104 + $0xd20] sm:$0xff]
        %1947 = vst [vmem:[%s1105 + $0xd20] sm:$0xff] %v1946
        %v1948 = vld [vmem:[%s1104 + $0xd24] sm:$0xff]
        %1949 = vst [vmem:[%s1105 + $0xd28] sm:$0xff] %v1948
        %v1950 = vld [vmem:[%s1104 + $0xd28] sm:$0xff]
        %1951 = vst [vmem:[%s1105 + $0xd30] sm:$0xff] %v1950
        %v1952 = vld [vmem:[%s1104 + $0xd2c] sm:$0xff]
        %1953 = vst [vmem:[%s1105 + $0xd38] sm:$0xff] %v1952
        %v1954 = vld [vmem:[%s1104 + $0xd40] sm:$0xff]
        %1955 = vst [vmem:[%s1105 + $0xd40] sm:$0xff] %v1954
        %v1956 = vld [vmem:[%s1104 + $0xd44] sm:$0xff]
        %1957 = vst [vmem:[%s1105 + $0xd48] sm:$0xff] %v1956
        %v1958 = vld [vmem:[%s1104 + $0xd48] sm:$0xff]
        %1959 = vst [vmem:[%s1105 + $0xd50] sm:$0xff] %v1958
        %v1960 = vld [vmem:[%s1104 + $0xd4c] sm:$0xff]
        %1961 = vst [vmem:[%s1105 + $0xd58] sm:$0xff] %v1960
        %v1962 = vld [vmem:[%s1104 + $0xd60] sm:$0xff]
        %1963 = vst [vmem:[%s1105 + $0xd60] sm:$0xff] %v1962
        %v1964 = vld [vmem:[%s1104 + $0xd64] sm:$0xff]
        %1965 = vst [vmem:[%s1105 + $0xd68] sm:$0xff] %v1964
        %v1966 = vld [vmem:[%s1104 + $0xd68] sm:$0xff]
        %1967 = vst [vmem:[%s1105 + $0xd70] sm:$0xff] %v1966
        %v1968 = vld [vmem:[%s1104 + $0xd6c] sm:$0xff]
        %1969 = vst [vmem:[%s1105 + $0xd78] sm:$0xff] %v1968
        %v1970 = vld [vmem:[%s1104 + $0xd80] sm:$0xff]
        %1971 = vst [vmem:[%s1105 + $0xd80] sm:$0xff] %v1970
        %v1972 = vld [vmem:[%s1104 + $0xd84] sm:$0xff]
        %1973 = vst [vmem:[%s1105 + $0xd88] sm:$0xff] %v1972
        %v1974 = vld [vmem:[%s1104 + $0xd88] sm:$0xff]
        %1975 = vst [vmem:[%s1105 + $0xd90] sm:$0xff] %v1974
        %v1976 = vld [vmem:[%s1104 + $0xd8c] sm:$0xff]
        %1977 = vst [vmem:[%s1105 + $0xd98] sm:$0xff] %v1976
        %v1978 = vld [vmem:[%s1104 + $0xda0] sm:$0xff]
        %1979 = vst [vmem:[%s1105 + $0xda0] sm:$0xff] %v1978
        %v1980 = vld [vmem:[%s1104 + $0xda4] sm:$0xff]
        %1981 = vst [vmem:[%s1105 + $0xda8] sm:$0xff] %v1980
        %v1982 = vld [vmem:[%s1104 + $0xda8] sm:$0xff]
        %1983 = vst [vmem:[%s1105 + $0xdb0] sm:$0xff] %v1982
        %v1984 = vld [vmem:[%s1104 + $0xdac] sm:$0xff]
        %1985 = vst [vmem:[%s1105 + $0xdb8] sm:$0xff] %v1984
        %v1986 = vld [vmem:[%s1104 + $0xdc0] sm:$0xff]
        %1987 = vst [vmem:[%s1105 + $0xdc0] sm:$0xff] %v1986
        %v1988 = vld [vmem:[%s1104 + $0xdc4] sm:$0xff]
        %1989 = vst [vmem:[%s1105 + $0xdc8] sm:$0xff] %v1988
        %v1990 = vld [vmem:[%s1104 + $0xdc8] sm:$0xff]
        %1991 = vst [vmem:[%s1105 + $0xdd0] sm:$0xff] %v1990
        %v1992 = vld [vmem:[%s1104 + $0xdcc] sm:$0xff]
        %1993 = vst [vmem:[%s1105 + $0xdd8] sm:$0xff] %v1992
        %v1994 = vld [vmem:[%s1104 + $0xde0] sm:$0xff]
        %1995 = vst [vmem:[%s1105 + $0xde0] sm:$0xff] %v1994
        %v1996 = vld [vmem:[%s1104 + $0xde4] sm:$0xff]
        %1997 = vst [vmem:[%s1105 + $0xde8] sm:$0xff] %v1996
        %v1998 = vld [vmem:[%s1104 + $0xde8] sm:$0xff]
        %1999 = vst [vmem:[%s1105 + $0xdf0] sm:$0xff] %v1998
        %v2000 = vld [vmem:[%s1104 + $0xdec] sm:$0xff]
        %2001 = vst [vmem:[%s1105 + $0xdf8] sm:$0xff] %v2000
        %v2002 = vld [vmem:[%s1104 + $0xe00] sm:$0xff]
        %2003 = vst [vmem:[%s1105 + $0xe00] sm:$0xff] %v2002
        %v2004 = vld [vmem:[%s1104 + $0xe04] sm:$0xff]
        %2005 = vst [vmem:[%s1105 + $0xe08] sm:$0xff] %v2004
        %v2006 = vld [vmem:[%s1104 + $0xe08] sm:$0xff]
        %2007 = vst [vmem:[%s1105 + $0xe10] sm:$0xff] %v2006
        %v2008 = vld [vmem:[%s1104 + $0xe0c] sm:$0xff]
        %2009 = vst [vmem:[%s1105 + $0xe18] sm:$0xff] %v2008
        %v2010 = vld [vmem:[%s1104 + $0xe20] sm:$0xff]
        %2011 = vst [vmem:[%s1105 + $0xe20] sm:$0xff] %v2010
        %v2012 = vld [vmem:[%s1104 + $0xe24] sm:$0xff]
        %2013 = vst [vmem:[%s1105 + $0xe28] sm:$0xff] %v2012
        %v2014 = vld [vmem:[%s1104 + $0xe28] sm:$0xff]
        %2015 = vst [vmem:[%s1105 + $0xe30] sm:$0xff] %v2014
        %v2016 = vld [vmem:[%s1104 + $0xe2c] sm:$0xff]
        %2017 = vst [vmem:[%s1105 + $0xe38] sm:$0xff] %v2016
        %v2018 = vld [vmem:[%s1104 + $0xe40] sm:$0xff]
        %2019 = vst [vmem:[%s1105 + $0xe40] sm:$0xff] %v2018
        %v2020 = vld [vmem:[%s1104 + $0xe44] sm:$0xff]
        %2021 = vst [vmem:[%s1105 + $0xe48] sm:$0xff] %v2020
        %v2022 = vld [vmem:[%s1104 + $0xe48] sm:$0xff]
        %2023 = vst [vmem:[%s1105 + $0xe50] sm:$0xff] %v2022
        %v2024 = vld [vmem:[%s1104 + $0xe4c] sm:$0xff]
        %2025 = vst [vmem:[%s1105 + $0xe58] sm:$0xff] %v2024
        %v2026 = vld [vmem:[%s1104 + $0xe60] sm:$0xff]
        %2027 = vst [vmem:[%s1105 + $0xe60] sm:$0xff] %v2026
        %v2028 = vld [vmem:[%s1104 + $0xe64] sm:$0xff]
        %2029 = vst [vmem:[%s1105 + $0xe68] sm:$0xff] %v2028
        %v2030 = vld [vmem:[%s1104 + $0xe68] sm:$0xff]
        %2031 = vst [vmem:[%s1105 + $0xe70] sm:$0xff] %v2030
        %v2032 = vld [vmem:[%s1104 + $0xe6c] sm:$0xff]
        %2033 = vst [vmem:[%s1105 + $0xe78] sm:$0xff] %v2032
        %v2034 = vld [vmem:[%s1104 + $0xe80] sm:$0xff]
        %2035 = vst [vmem:[%s1105 + $0xe80] sm:$0xff] %v2034
        %v2036 = vld [vmem:[%s1104 + $0xe84] sm:$0xff]
        %2037 = vst [vmem:[%s1105 + $0xe88] sm:$0xff] %v2036
        %v2038 = vld [vmem:[%s1104 + $0xe88] sm:$0xff]
        %2039 = vst [vmem:[%s1105 + $0xe90] sm:$0xff] %v2038
        %v2040 = vld [vmem:[%s1104 + $0xe8c] sm:$0xff]
        %2041 = vst [vmem:[%s1105 + $0xe98] sm:$0xff] %v2040
        %v2042 = vld [vmem:[%s1104 + $0xea0] sm:$0xff]
        %2043 = vst [vmem:[%s1105 + $0xea0] sm:$0xff] %v2042
        %v2044 = vld [vmem:[%s1104 + $0xea4] sm:$0xff]
        %2045 = vst [vmem:[%s1105 + $0xea8] sm:$0xff] %v2044
        %v2046 = vld [vmem:[%s1104 + $0xea8] sm:$0xff]
        %2047 = vst [vmem:[%s1105 + $0xeb0] sm:$0xff] %v2046
        %v2048 = vld [vmem:[%s1104 + $0xeac] sm:$0xff]
        %2049 = vst [vmem:[%s1105 + $0xeb8] sm:$0xff] %v2048
        %v2050 = vld [vmem:[%s1104 + $0xec0] sm:$0xff]
        %2051 = vst [vmem:[%s1105 + $0xec0] sm:$0xff] %v2050
        %v2052 = vld [vmem:[%s1104 + $0xec4] sm:$0xff]
        %2053 = vst [vmem:[%s1105 + $0xec8] sm:$0xff] %v2052
        %v2054 = vld [vmem:[%s1104 + $0xec8] sm:$0xff]
        %2055 = vst [vmem:[%s1105 + $0xed0] sm:$0xff] %v2054
        %v2056 = vld [vmem:[%s1104 + $0xecc] sm:$0xff]
        %2057 = vst [vmem:[%s1105 + $0xed8] sm:$0xff] %v2056
        %v2058 = vld [vmem:[%s1104 + $0xee0] sm:$0xff]
        %2059 = vst [vmem:[%s1105 + $0xee0] sm:$0xff] %v2058
        %v2060 = vld [vmem:[%s1104 + $0xee4] sm:$0xff]
        %2061 = vst [vmem:[%s1105 + $0xee8] sm:$0xff] %v2060
        %v2062 = vld [vmem:[%s1104 + $0xee8] sm:$0xff]
        %2063 = vst [vmem:[%s1105 + $0xef0] sm:$0xff] %v2062
        %v2064 = vld [vmem:[%s1104 + $0xeec] sm:$0xff]
        %2065 = vst [vmem:[%s1105 + $0xef8] sm:$0xff] %v2064
        %v2066 = vld [vmem:[%s1104 + $0xf00] sm:$0xff]
        %2067 = vst [vmem:[%s1105 + $0xf00] sm:$0xff] %v2066
        %v2068 = vld [vmem:[%s1104 + $0xf04] sm:$0xff]
        %2069 = vst [vmem:[%s1105 + $0xf08] sm:$0xff] %v2068
        %v2070 = vld [vmem:[%s1104 + $0xf08] sm:$0xff]
        %2071 = vst [vmem:[%s1105 + $0xf10] sm:$0xff] %v2070
        %v2072 = vld [vmem:[%s1104 + $0xf0c] sm:$0xff]
        %2073 = vst [vmem:[%s1105 + $0xf18] sm:$0xff] %v2072
        %v2074 = vld [vmem:[%s1104 + $0xf20] sm:$0xff]
        %2075 = vst [vmem:[%s1105 + $0xf20] sm:$0xff] %v2074
        %v2076 = vld [vmem:[%s1104 + $0xf24] sm:$0xff]
        %2077 = vst [vmem:[%s1105 + $0xf28] sm:$0xff] %v2076
        %v2078 = vld [vmem:[%s1104 + $0xf28] sm:$0xff]
        %2079 = vst [vmem:[%s1105 + $0xf30] sm:$0xff] %v2078
        %v2080 = vld [vmem:[%s1104 + $0xf2c] sm:$0xff]
        %2081 = vst [vmem:[%s1105 + $0xf38] sm:$0xff] %v2080
        %v2082 = vld [vmem:[%s1104 + $0xf40] sm:$0xff]
        %2083 = vst [vmem:[%s1105 + $0xf40] sm:$0xff] %v2082
        %v2084 = vld [vmem:[%s1104 + $0xf44] sm:$0xff]
        %2085 = vst [vmem:[%s1105 + $0xf48] sm:$0xff] %v2084
        %v2086 = vld [vmem:[%s1104 + $0xf48] sm:$0xff]
        %2087 = vst [vmem:[%s1105 + $0xf50] sm:$0xff] %v2086
        %v2088 = vld [vmem:[%s1104 + $0xf4c] sm:$0xff]
        %2089 = vst [vmem:[%s1105 + $0xf58] sm:$0xff] %v2088
        %v2090 = vld [vmem:[%s1104 + $0xf60] sm:$0xff]
        %2091 = vst [vmem:[%s1105 + $0xf60] sm:$0xff] %v2090
        %v2092 = vld [vmem:[%s1104 + $0xf64] sm:$0xff]
        %2093 = vst [vmem:[%s1105 + $0xf68] sm:$0xff] %v2092
        %v2094 = vld [vmem:[%s1104 + $0xf68] sm:$0xff]
        %2095 = vst [vmem:[%s1105 + $0xf70] sm:$0xff] %v2094
        %v2096 = vld [vmem:[%s1104 + $0xf6c] sm:$0xff]
        %2097 = vst [vmem:[%s1105 + $0xf78] sm:$0xff] %v2096
        %v2098 = vld [vmem:[%s1104 + $0xf80] sm:$0xff]
        %2099 = vst [vmem:[%s1105 + $0xf80] sm:$0xff] %v2098
        %v2100 = vld [vmem:[%s1104 + $0xf84] sm:$0xff]
        %2101 = vst [vmem:[%s1105 + $0xf88] sm:$0xff] %v2100
        %v2102 = vld [vmem:[%s1104 + $0xf88] sm:$0xff]
        %2103 = vst [vmem:[%s1105 + $0xf90] sm:$0xff] %v2102
        %v2104 = vld [vmem:[%s1104 + $0xf8c] sm:$0xff]
        %2105 = vst [vmem:[%s1105 + $0xf98] sm:$0xff] %v2104
        %v2106 = vld [vmem:[%s1104 + $0xfa0] sm:$0xff]
        %2107 = vst [vmem:[%s1105 + $0xfa0] sm:$0xff] %v2106
        %v2108 = vld [vmem:[%s1104 + $0xfa4] sm:$0xff]
        %2109 = vst [vmem:[%s1105 + $0xfa8] sm:$0xff] %v2108
        %v2110 = vld [vmem:[%s1104 + $0xfa8] sm:$0xff]
        %2111 = vst [vmem:[%s1105 + $0xfb0] sm:$0xff] %v2110
        %v2112 = vld [vmem:[%s1104 + $0xfac] sm:$0xff]
        %2113 = vst [vmem:[%s1105 + $0xfb8] sm:$0xff] %v2112
        %v2114 = vld [vmem:[%s1104 + $0xfc0] sm:$0xff]
        %2115 = vst [vmem:[%s1105 + $0xfc0] sm:$0xff] %v2114
        %v2116 = vld [vmem:[%s1104 + $0xfc4] sm:$0xff]
        %2117 = vst [vmem:[%s1105 + $0xfc8] sm:$0xff] %v2116
        %v2118 = vld [vmem:[%s1104 + $0xfc8] sm:$0xff]
        %2119 = vst [vmem:[%s1105 + $0xfd0] sm:$0xff] %v2118
        %v2120 = vld [vmem:[%s1104 + $0xfcc] sm:$0xff]
        %2121 = vst [vmem:[%s1105 + $0xfd8] sm:$0xff] %v2120
        %v2122 = vld [vmem:[%s1104 + $0xfe0] sm:$0xff]
        %2123 = vst [vmem:[%s1105 + $0xfe0] sm:$0xff] %v2122
        %v2124 = vld [vmem:[%s1104 + $0xfe4] sm:$0xff]
        %2125 = vst [vmem:[%s1105 + $0xfe8] sm:$0xff] %v2124
        %v2126 = vld [vmem:[%s1104 + $0xfe8] sm:$0xff]
        %2127 = vst [vmem:[%s1105 + $0xff0] sm:$0xff] %v2126
        %v2128 = vld [vmem:[%s1104 + $0xfec] sm:$0xff]
        %2129 = vst [vmem:[%s1105 + $0xff8] sm:$0xff] %v2128
        %s2130 = sadd.s32 1, %s1103
        %p2131 = scmp.ge.s32.totalorder %s2130, %s1090
        %s2132 = scalar_select %p2131, 0, %s2130
        %s2133 = sadd.s32 1, %s1102
        %s2134 = scalar_select %p2131, %s2133, %s1102
        %p2135 = scmp.ge.s32.totalorder %s2134, 2
        %s2136 = scalar_select %p2135, 0, %s2134
        %s2137 = smul.u32 %s2136, 16
        %s2138 = smul.u32 %s2132, 8
        %s2139 = sadd.s32 %s2137, %s2138
        %s2140 = smul.u32 %s2136, 4
        %s2141 = smul.u32 %s2132, 8
        %s2142 = sadd.s32 %s2140, %s2141
        %s2143 = scalar_lea.vmem %s4, %s2139
        %s2144 = scalar_lea.vmem [#allocation2], %s2142
      $region61: #{_lambda_.1} parent=55 // loop_footer
        %s1099 = sadd.s32 %s1097, 1
      $region62: #{_lambda_.1} parent=55 // loop_footer_branch
        %1096 = sbr.rel target = $region58
      $region63: #{_lambda_.1} parent=55 // loop_exit
        _
    $region56: #{_lambda_.1} parent=40 // pred_fallthru
      _
    %p2145 = pneg %p1086
    // Predicated region
    $region64: #{_lambda_.1} parent=40 // pred_check
      _
    $region65: #{_lambda_.1} parent=40 // pred_check_branch
      %2147 = sbr.rel (%p1086) target = $region67
    $region66: #{_lambda_.1} parent=40 // pred_region
      %s2148 = sand.u32 4, 7
      %s2149 = ssub.s32 4, %s2148
      %s2150 = scalar_lea.vmem %s4, %s2149
      %s2151 = ssub.s32 4, %s2148
      %s2152 = scalar_lea.vmem [#allocation2], %s2151
      %s2153 = sshrl.u32 4, 3
      %s2154 = smul.u32 2, %s2153
      // While loop
      $region68: #{_lambda_.1} parent=66 // loop_pre_header
        _
      $region69: #{_lambda_.1} parent=66 // loop_header
        %s2160 = sphi 0, %s2162
        %p2161 = scmp.ge.s32.totalorder %s2160, %s2154
        %s2165 = sphi 0, %s3199
        %s2166 = sphi 0, %s3195
        %s2167 = sphi %s4, %s3206
        %s2168 = sphi [#allocation2], %s3207
      $region70: #{_lambda_.1} parent=66 // loop_header_branch
        %2164 = sbr.rel (%p2161) target = $region74
      $region71: #{_lambda_.1} parent=66 // loop_body
        %v2169 = vld [vmem:[%s2167] sm:$0xff]
        %2170 = vst [vmem:[%s2168] sm:$0xff] %v2169
        %v2171 = vld [vmem:[%s2167 + $0x4] sm:$0xff]
        %2172 = vst [vmem:[%s2168 + $0x8] sm:$0xff] %v2171
        %v2173 = vld [vmem:[%s2167 + $0x8] sm:$0xff]
        %2174 = vst [vmem:[%s2168 + $0x10] sm:$0xff] %v2173
        %v2175 = vld [vmem:[%s2167 + $0xc] sm:$0xff]
        %2176 = vst [vmem:[%s2168 + $0x18] sm:$0xff] %v2175
        %v2177 = vld [vmem:[%s2167 + $0x20] sm:$0xff]
        %2178 = vst [vmem:[%s2168 + $0x20] sm:$0xff] %v2177
        %v2179 = vld [vmem:[%s2167 + $0x24] sm:$0xff]
        %2180 = vst [vmem:[%s2168 + $0x28] sm:$0xff] %v2179
        %v2181 = vld [vmem:[%s2167 + $0x28] sm:$0xff]
        %2182 = vst [vmem:[%s2168 + $0x30] sm:$0xff] %v2181
        %v2183 = vld [vmem:[%s2167 + $0x2c] sm:$0xff]
        %2184 = vst [vmem:[%s2168 + $0x38] sm:$0xff] %v2183
        %v2185 = vld [vmem:[%s2167 + $0x40] sm:$0xff]
        %2186 = vst [vmem:[%s2168 + $0x40] sm:$0xff] %v2185
        %v2187 = vld [vmem:[%s2167 + $0x44] sm:$0xff]
        %2188 = vst [vmem:[%s2168 + $0x48] sm:$0xff] %v2187
        %v2189 = vld [vmem:[%s2167 + $0x48] sm:$0xff]
        %2190 = vst [vmem:[%s2168 + $0x50] sm:$0xff] %v2189
        %v2191 = vld [vmem:[%s2167 + $0x4c] sm:$0xff]
        %2192 = vst [vmem:[%s2168 + $0x58] sm:$0xff] %v2191
        %v2193 = vld [vmem:[%s2167 + $0x60] sm:$0xff]
        %2194 = vst [vmem:[%s2168 + $0x60] sm:$0xff] %v2193
        %v2195 = vld [vmem:[%s2167 + $0x64] sm:$0xff]
        %2196 = vst [vmem:[%s2168 + $0x68] sm:$0xff] %v2195
        %v2197 = vld [vmem:[%s2167 + $0x68] sm:$0xff]
        %2198 = vst [vmem:[%s2168 + $0x70] sm:$0xff] %v2197
        %v2199 = vld [vmem:[%s2167 + $0x6c] sm:$0xff]
        %2200 = vst [vmem:[%s2168 + $0x78] sm:$0xff] %v2199
        %v2201 = vld [vmem:[%s2167 + $0x80] sm:$0xff]
        %2202 = vst [vmem:[%s2168 + $0x80] sm:$0xff] %v2201
        %v2203 = vld [vmem:[%s2167 + $0x84] sm:$0xff]
        %2204 = vst [vmem:[%s2168 + $0x88] sm:$0xff] %v2203
        %v2205 = vld [vmem:[%s2167 + $0x88] sm:$0xff]
        %2206 = vst [vmem:[%s2168 + $0x90] sm:$0xff] %v2205
        %v2207 = vld [vmem:[%s2167 + $0x8c] sm:$0xff]
        %2208 = vst [vmem:[%s2168 + $0x98] sm:$0xff] %v2207
        %v2209 = vld [vmem:[%s2167 + $0xa0] sm:$0xff]
        %2210 = vst [vmem:[%s2168 + $0xa0] sm:$0xff] %v2209
        %v2211 = vld [vmem:[%s2167 + $0xa4] sm:$0xff]
        %2212 = vst [vmem:[%s2168 + $0xa8] sm:$0xff] %v2211
        %v2213 = vld [vmem:[%s2167 + $0xa8] sm:$0xff]
        %2214 = vst [vmem:[%s2168 + $0xb0] sm:$0xff] %v2213
        %v2215 = vld [vmem:[%s2167 + $0xac] sm:$0xff]
        %2216 = vst [vmem:[%s2168 + $0xb8] sm:$0xff] %v2215
        %v2217 = vld [vmem:[%s2167 + $0xc0] sm:$0xff]
        %2218 = vst [vmem:[%s2168 + $0xc0] sm:$0xff] %v2217
        %v2219 = vld [vmem:[%s2167 + $0xc4] sm:$0xff]
        %2220 = vst [vmem:[%s2168 + $0xc8] sm:$0xff] %v2219
        %v2221 = vld [vmem:[%s2167 + $0xc8] sm:$0xff]
        %2222 = vst [vmem:[%s2168 + $0xd0] sm:$0xff] %v2221
        %v2223 = vld [vmem:[%s2167 + $0xcc] sm:$0xff]
        %2224 = vst [vmem:[%s2168 + $0xd8] sm:$0xff] %v2223
        %v2225 = vld [vmem:[%s2167 + $0xe0] sm:$0xff]
        %2226 = vst [vmem:[%s2168 + $0xe0] sm:$0xff] %v2225
        %v2227 = vld [vmem:[%s2167 + $0xe4] sm:$0xff]
        %2228 = vst [vmem:[%s2168 + $0xe8] sm:$0xff] %v2227
        %v2229 = vld [vmem:[%s2167 + $0xe8] sm:$0xff]
        %2230 = vst [vmem:[%s2168 + $0xf0] sm:$0xff] %v2229
        %v2231 = vld [vmem:[%s2167 + $0xec] sm:$0xff]
        %2232 = vst [vmem:[%s2168 + $0xf8] sm:$0xff] %v2231
        %v2233 = vld [vmem:[%s2167 + $0x100] sm:$0xff]
        %2234 = vst [vmem:[%s2168 + $0x100] sm:$0xff] %v2233
        %v2235 = vld [vmem:[%s2167 + $0x104] sm:$0xff]
        %2236 = vst [vmem:[%s2168 + $0x108] sm:$0xff] %v2235
        %v2237 = vld [vmem:[%s2167 + $0x108] sm:$0xff]
        %2238 = vst [vmem:[%s2168 + $0x110] sm:$0xff] %v2237
        %v2239 = vld [vmem:[%s2167 + $0x10c] sm:$0xff]
        %2240 = vst [vmem:[%s2168 + $0x118] sm:$0xff] %v2239
        %v2241 = vld [vmem:[%s2167 + $0x120] sm:$0xff]
        %2242 = vst [vmem:[%s2168 + $0x120] sm:$0xff] %v2241
        %v2243 = vld [vmem:[%s2167 + $0x124] sm:$0xff]
        %2244 = vst [vmem:[%s2168 + $0x128] sm:$0xff] %v2243
        %v2245 = vld [vmem:[%s2167 + $0x128] sm:$0xff]
        %2246 = vst [vmem:[%s2168 + $0x130] sm:$0xff] %v2245
        %v2247 = vld [vmem:[%s2167 + $0x12c] sm:$0xff]
        %2248 = vst [vmem:[%s2168 + $0x138] sm:$0xff] %v2247
        %v2249 = vld [vmem:[%s2167 + $0x140] sm:$0xff]
        %2250 = vst [vmem:[%s2168 + $0x140] sm:$0xff] %v2249
        %v2251 = vld [vmem:[%s2167 + $0x144] sm:$0xff]
        %2252 = vst [vmem:[%s2168 + $0x148] sm:$0xff] %v2251
        %v2253 = vld [vmem:[%s2167 + $0x148] sm:$0xff]
        %2254 = vst [vmem:[%s2168 + $0x150] sm:$0xff] %v2253
        %v2255 = vld [vmem:[%s2167 + $0x14c] sm:$0xff]
        %2256 = vst [vmem:[%s2168 + $0x158] sm:$0xff] %v2255
        %v2257 = vld [vmem:[%s2167 + $0x160] sm:$0xff]
        %2258 = vst [vmem:[%s2168 + $0x160] sm:$0xff] %v2257
        %v2259 = vld [vmem:[%s2167 + $0x164] sm:$0xff]
        %2260 = vst [vmem:[%s2168 + $0x168] sm:$0xff] %v2259
        %v2261 = vld [vmem:[%s2167 + $0x168] sm:$0xff]
        %2262 = vst [vmem:[%s2168 + $0x170] sm:$0xff] %v2261
        %v2263 = vld [vmem:[%s2167 + $0x16c] sm:$0xff]
        %2264 = vst [vmem:[%s2168 + $0x178] sm:$0xff] %v2263
        %v2265 = vld [vmem:[%s2167 + $0x180] sm:$0xff]
        %2266 = vst [vmem:[%s2168 + $0x180] sm:$0xff] %v2265
        %v2267 = vld [vmem:[%s2167 + $0x184] sm:$0xff]
        %2268 = vst [vmem:[%s2168 + $0x188] sm:$0xff] %v2267
        %v2269 = vld [vmem:[%s2167 + $0x188] sm:$0xff]
        %2270 = vst [vmem:[%s2168 + $0x190] sm:$0xff] %v2269
        %v2271 = vld [vmem:[%s2167 + $0x18c] sm:$0xff]
        %2272 = vst [vmem:[%s2168 + $0x198] sm:$0xff] %v2271
        %v2273 = vld [vmem:[%s2167 + $0x1a0] sm:$0xff]
        %2274 = vst [vmem:[%s2168 + $0x1a0] sm:$0xff] %v2273
        %v2275 = vld [vmem:[%s2167 + $0x1a4] sm:$0xff]
        %2276 = vst [vmem:[%s2168 + $0x1a8] sm:$0xff] %v2275
        %v2277 = vld [vmem:[%s2167 + $0x1a8] sm:$0xff]
        %2278 = vst [vmem:[%s2168 + $0x1b0] sm:$0xff] %v2277
        %v2279 = vld [vmem:[%s2167 + $0x1ac] sm:$0xff]
        %2280 = vst [vmem:[%s2168 + $0x1b8] sm:$0xff] %v2279
        %v2281 = vld [vmem:[%s2167 + $0x1c0] sm:$0xff]
        %2282 = vst [vmem:[%s2168 + $0x1c0] sm:$0xff] %v2281
        %v2283 = vld [vmem:[%s2167 + $0x1c4] sm:$0xff]
        %2284 = vst [vmem:[%s2168 + $0x1c8] sm:$0xff] %v2283
        %v2285 = vld [vmem:[%s2167 + $0x1c8] sm:$0xff]
        %2286 = vst [vmem:[%s2168 + $0x1d0] sm:$0xff] %v2285
        %v2287 = vld [vmem:[%s2167 + $0x1cc] sm:$0xff]
        %2288 = vst [vmem:[%s2168 + $0x1d8] sm:$0xff] %v2287
        %v2289 = vld [vmem:[%s2167 + $0x1e0] sm:$0xff]
        %2290 = vst [vmem:[%s2168 + $0x1e0] sm:$0xff] %v2289
        %v2291 = vld [vmem:[%s2167 + $0x1e4] sm:$0xff]
        %2292 = vst [vmem:[%s2168 + $0x1e8] sm:$0xff] %v2291
        %v2293 = vld [vmem:[%s2167 + $0x1e8] sm:$0xff]
        %2294 = vst [vmem:[%s2168 + $0x1f0] sm:$0xff] %v2293
        %v2295 = vld [vmem:[%s2167 + $0x1ec] sm:$0xff]
        %2296 = vst [vmem:[%s2168 + $0x1f8] sm:$0xff] %v2295
        %v2297 = vld [vmem:[%s2167 + $0x200] sm:$0xff]
        %2298 = vst [vmem:[%s2168 + $0x200] sm:$0xff] %v2297
        %v2299 = vld [vmem:[%s2167 + $0x204] sm:$0xff]
        %2300 = vst [vmem:[%s2168 + $0x208] sm:$0xff] %v2299
        %v2301 = vld [vmem:[%s2167 + $0x208] sm:$0xff]
        %2302 = vst [vmem:[%s2168 + $0x210] sm:$0xff] %v2301
        %v2303 = vld [vmem:[%s2167 + $0x20c] sm:$0xff]
        %2304 = vst [vmem:[%s2168 + $0x218] sm:$0xff] %v2303
        %v2305 = vld [vmem:[%s2167 + $0x220] sm:$0xff]
        %2306 = vst [vmem:[%s2168 + $0x220] sm:$0xff] %v2305
        %v2307 = vld [vmem:[%s2167 + $0x224] sm:$0xff]
        %2308 = vst [vmem:[%s2168 + $0x228] sm:$0xff] %v2307
        %v2309 = vld [vmem:[%s2167 + $0x228] sm:$0xff]
        %2310 = vst [vmem:[%s2168 + $0x230] sm:$0xff] %v2309
        %v2311 = vld [vmem:[%s2167 + $0x22c] sm:$0xff]
        %2312 = vst [vmem:[%s2168 + $0x238] sm:$0xff] %v2311
        %v2313 = vld [vmem:[%s2167 + $0x240] sm:$0xff]
        %2314 = vst [vmem:[%s2168 + $0x240] sm:$0xff] %v2313
        %v2315 = vld [vmem:[%s2167 + $0x244] sm:$0xff]
        %2316 = vst [vmem:[%s2168 + $0x248] sm:$0xff] %v2315
        %v2317 = vld [vmem:[%s2167 + $0x248] sm:$0xff]
        %2318 = vst [vmem:[%s2168 + $0x250] sm:$0xff] %v2317
        %v2319 = vld [vmem:[%s2167 + $0x24c] sm:$0xff]
        %2320 = vst [vmem:[%s2168 + $0x258] sm:$0xff] %v2319
        %v2321 = vld [vmem:[%s2167 + $0x260] sm:$0xff]
        %2322 = vst [vmem:[%s2168 + $0x260] sm:$0xff] %v2321
        %v2323 = vld [vmem:[%s2167 + $0x264] sm:$0xff]
        %2324 = vst [vmem:[%s2168 + $0x268] sm:$0xff] %v2323
        %v2325 = vld [vmem:[%s2167 + $0x268] sm:$0xff]
        %2326 = vst [vmem:[%s2168 + $0x270] sm:$0xff] %v2325
        %v2327 = vld [vmem:[%s2167 + $0x26c] sm:$0xff]
        %2328 = vst [vmem:[%s2168 + $0x278] sm:$0xff] %v2327
        %v2329 = vld [vmem:[%s2167 + $0x280] sm:$0xff]
        %2330 = vst [vmem:[%s2168 + $0x280] sm:$0xff] %v2329
        %v2331 = vld [vmem:[%s2167 + $0x284] sm:$0xff]
        %2332 = vst [vmem:[%s2168 + $0x288] sm:$0xff] %v2331
        %v2333 = vld [vmem:[%s2167 + $0x288] sm:$0xff]
        %2334 = vst [vmem:[%s2168 + $0x290] sm:$0xff] %v2333
        %v2335 = vld [vmem:[%s2167 + $0x28c] sm:$0xff]
        %2336 = vst [vmem:[%s2168 + $0x298] sm:$0xff] %v2335
        %v2337 = vld [vmem:[%s2167 + $0x2a0] sm:$0xff]
        %2338 = vst [vmem:[%s2168 + $0x2a0] sm:$0xff] %v2337
        %v2339 = vld [vmem:[%s2167 + $0x2a4] sm:$0xff]
        %2340 = vst [vmem:[%s2168 + $0x2a8] sm:$0xff] %v2339
        %v2341 = vld [vmem:[%s2167 + $0x2a8] sm:$0xff]
        %2342 = vst [vmem:[%s2168 + $0x2b0] sm:$0xff] %v2341
        %v2343 = vld [vmem:[%s2167 + $0x2ac] sm:$0xff]
        %2344 = vst [vmem:[%s2168 + $0x2b8] sm:$0xff] %v2343
        %v2345 = vld [vmem:[%s2167 + $0x2c0] sm:$0xff]
        %2346 = vst [vmem:[%s2168 + $0x2c0] sm:$0xff] %v2345
        %v2347 = vld [vmem:[%s2167 + $0x2c4] sm:$0xff]
        %2348 = vst [vmem:[%s2168 + $0x2c8] sm:$0xff] %v2347
        %v2349 = vld [vmem:[%s2167 + $0x2c8] sm:$0xff]
        %2350 = vst [vmem:[%s2168 + $0x2d0] sm:$0xff] %v2349
        %v2351 = vld [vmem:[%s2167 + $0x2cc] sm:$0xff]
        %2352 = vst [vmem:[%s2168 + $0x2d8] sm:$0xff] %v2351
        %v2353 = vld [vmem:[%s2167 + $0x2e0] sm:$0xff]
        %2354 = vst [vmem:[%s2168 + $0x2e0] sm:$0xff] %v2353
        %v2355 = vld [vmem:[%s2167 + $0x2e4] sm:$0xff]
        %2356 = vst [vmem:[%s2168 + $0x2e8] sm:$0xff] %v2355
        %v2357 = vld [vmem:[%s2167 + $0x2e8] sm:$0xff]
        %2358 = vst [vmem:[%s2168 + $0x2f0] sm:$0xff] %v2357
        %v2359 = vld [vmem:[%s2167 + $0x2ec] sm:$0xff]
        %2360 = vst [vmem:[%s2168 + $0x2f8] sm:$0xff] %v2359
        %v2361 = vld [vmem:[%s2167 + $0x300] sm:$0xff]
        %2362 = vst [vmem:[%s2168 + $0x300] sm:$0xff] %v2361
        %v2363 = vld [vmem:[%s2167 + $0x304] sm:$0xff]
        %2364 = vst [vmem:[%s2168 + $0x308] sm:$0xff] %v2363
        %v2365 = vld [vmem:[%s2167 + $0x308] sm:$0xff]
        %2366 = vst [vmem:[%s2168 + $0x310] sm:$0xff] %v2365
        %v2367 = vld [vmem:[%s2167 + $0x30c] sm:$0xff]
        %2368 = vst [vmem:[%s2168 + $0x318] sm:$0xff] %v2367
        %v2369 = vld [vmem:[%s2167 + $0x320] sm:$0xff]
        %2370 = vst [vmem:[%s2168 + $0x320] sm:$0xff] %v2369
        %v2371 = vld [vmem:[%s2167 + $0x324] sm:$0xff]
        %2372 = vst [vmem:[%s2168 + $0x328] sm:$0xff] %v2371
        %v2373 = vld [vmem:[%s2167 + $0x328] sm:$0xff]
        %2374 = vst [vmem:[%s2168 + $0x330] sm:$0xff] %v2373
        %v2375 = vld [vmem:[%s2167 + $0x32c] sm:$0xff]
        %2376 = vst [vmem:[%s2168 + $0x338] sm:$0xff] %v2375
        %v2377 = vld [vmem:[%s2167 + $0x340] sm:$0xff]
        %2378 = vst [vmem:[%s2168 + $0x340] sm:$0xff] %v2377
        %v2379 = vld [vmem:[%s2167 + $0x344] sm:$0xff]
        %2380 = vst [vmem:[%s2168 + $0x348] sm:$0xff] %v2379
        %v2381 = vld [vmem:[%s2167 + $0x348] sm:$0xff]
        %2382 = vst [vmem:[%s2168 + $0x350] sm:$0xff] %v2381
        %v2383 = vld [vmem:[%s2167 + $0x34c] sm:$0xff]
        %2384 = vst [vmem:[%s2168 + $0x358] sm:$0xff] %v2383
        %v2385 = vld [vmem:[%s2167 + $0x360] sm:$0xff]
        %2386 = vst [vmem:[%s2168 + $0x360] sm:$0xff] %v2385
        %v2387 = vld [vmem:[%s2167 + $0x364] sm:$0xff]
        %2388 = vst [vmem:[%s2168 + $0x368] sm:$0xff] %v2387
        %v2389 = vld [vmem:[%s2167 + $0x368] sm:$0xff]
        %2390 = vst [vmem:[%s2168 + $0x370] sm:$0xff] %v2389
        %v2391 = vld [vmem:[%s2167 + $0x36c] sm:$0xff]
        %2392 = vst [vmem:[%s2168 + $0x378] sm:$0xff] %v2391
        %v2393 = vld [vmem:[%s2167 + $0x380] sm:$0xff]
        %2394 = vst [vmem:[%s2168 + $0x380] sm:$0xff] %v2393
        %v2395 = vld [vmem:[%s2167 + $0x384] sm:$0xff]
        %2396 = vst [vmem:[%s2168 + $0x388] sm:$0xff] %v2395
        %v2397 = vld [vmem:[%s2167 + $0x388] sm:$0xff]
        %2398 = vst [vmem:[%s2168 + $0x390] sm:$0xff] %v2397
        %v2399 = vld [vmem:[%s2167 + $0x38c] sm:$0xff]
        %2400 = vst [vmem:[%s2168 + $0x398] sm:$0xff] %v2399
        %v2401 = vld [vmem:[%s2167 + $0x3a0] sm:$0xff]
        %2402 = vst [vmem:[%s2168 + $0x3a0] sm:$0xff] %v2401
        %v2403 = vld [vmem:[%s2167 + $0x3a4] sm:$0xff]
        %2404 = vst [vmem:[%s2168 + $0x3a8] sm:$0xff] %v2403
        %v2405 = vld [vmem:[%s2167 + $0x3a8] sm:$0xff]
        %2406 = vst [vmem:[%s2168 + $0x3b0] sm:$0xff] %v2405
        %v2407 = vld [vmem:[%s2167 + $0x3ac] sm:$0xff]
        %2408 = vst [vmem:[%s2168 + $0x3b8] sm:$0xff] %v2407
        %v2409 = vld [vmem:[%s2167 + $0x3c0] sm:$0xff]
        %2410 = vst [vmem:[%s2168 + $0x3c0] sm:$0xff] %v2409
        %v2411 = vld [vmem:[%s2167 + $0x3c4] sm:$0xff]
        %2412 = vst [vmem:[%s2168 + $0x3c8] sm:$0xff] %v2411
        %v2413 = vld [vmem:[%s2167 + $0x3c8] sm:$0xff]
        %2414 = vst [vmem:[%s2168 + $0x3d0] sm:$0xff] %v2413
        %v2415 = vld [vmem:[%s2167 + $0x3cc] sm:$0xff]
        %2416 = vst [vmem:[%s2168 + $0x3d8] sm:$0xff] %v2415
        %v2417 = vld [vmem:[%s2167 + $0x3e0] sm:$0xff]
        %2418 = vst [vmem:[%s2168 + $0x3e0] sm:$0xff] %v2417
        %v2419 = vld [vmem:[%s2167 + $0x3e4] sm:$0xff]
        %2420 = vst [vmem:[%s2168 + $0x3e8] sm:$0xff] %v2419
        %v2421 = vld [vmem:[%s2167 + $0x3e8] sm:$0xff]
        %2422 = vst [vmem:[%s2168 + $0x3f0] sm:$0xff] %v2421
        %v2423 = vld [vmem:[%s2167 + $0x3ec] sm:$0xff]
        %2424 = vst [vmem:[%s2168 + $0x3f8] sm:$0xff] %v2423
        %v2425 = vld [vmem:[%s2167 + $0x400] sm:$0xff]
        %2426 = vst [vmem:[%s2168 + $0x400] sm:$0xff] %v2425
        %v2427 = vld [vmem:[%s2167 + $0x404] sm:$0xff]
        %2428 = vst [vmem:[%s2168 + $0x408] sm:$0xff] %v2427
        %v2429 = vld [vmem:[%s2167 + $0x408] sm:$0xff]
        %2430 = vst [vmem:[%s2168 + $0x410] sm:$0xff] %v2429
        %v2431 = vld [vmem:[%s2167 + $0x40c] sm:$0xff]
        %2432 = vst [vmem:[%s2168 + $0x418] sm:$0xff] %v2431
        %v2433 = vld [vmem:[%s2167 + $0x420] sm:$0xff]
        %2434 = vst [vmem:[%s2168 + $0x420] sm:$0xff] %v2433
        %v2435 = vld [vmem:[%s2167 + $0x424] sm:$0xff]
        %2436 = vst [vmem:[%s2168 + $0x428] sm:$0xff] %v2435
        %v2437 = vld [vmem:[%s2167 + $0x428] sm:$0xff]
        %2438 = vst [vmem:[%s2168 + $0x430] sm:$0xff] %v2437
        %v2439 = vld [vmem:[%s2167 + $0x42c] sm:$0xff]
        %2440 = vst [vmem:[%s2168 + $0x438] sm:$0xff] %v2439
        %v2441 = vld [vmem:[%s2167 + $0x440] sm:$0xff]
        %2442 = vst [vmem:[%s2168 + $0x440] sm:$0xff] %v2441
        %v2443 = vld [vmem:[%s2167 + $0x444] sm:$0xff]
        %2444 = vst [vmem:[%s2168 + $0x448] sm:$0xff] %v2443
        %v2445 = vld [vmem:[%s2167 + $0x448] sm:$0xff]
        %2446 = vst [vmem:[%s2168 + $0x450] sm:$0xff] %v2445
        %v2447 = vld [vmem:[%s2167 + $0x44c] sm:$0xff]
        %2448 = vst [vmem:[%s2168 + $0x458] sm:$0xff] %v2447
        %v2449 = vld [vmem:[%s2167 + $0x460] sm:$0xff]
        %2450 = vst [vmem:[%s2168 + $0x460] sm:$0xff] %v2449
        %v2451 = vld [vmem:[%s2167 + $0x464] sm:$0xff]
        %2452 = vst [vmem:[%s2168 + $0x468] sm:$0xff] %v2451
        %v2453 = vld [vmem:[%s2167 + $0x468] sm:$0xff]
        %2454 = vst [vmem:[%s2168 + $0x470] sm:$0xff] %v2453
        %v2455 = vld [vmem:[%s2167 + $0x46c] sm:$0xff]
        %2456 = vst [vmem:[%s2168 + $0x478] sm:$0xff] %v2455
        %v2457 = vld [vmem:[%s2167 + $0x480] sm:$0xff]
        %2458 = vst [vmem:[%s2168 + $0x480] sm:$0xff] %v2457
        %v2459 = vld [vmem:[%s2167 + $0x484] sm:$0xff]
        %2460 = vst [vmem:[%s2168 + $0x488] sm:$0xff] %v2459
        %v2461 = vld [vmem:[%s2167 + $0x488] sm:$0xff]
        %2462 = vst [vmem:[%s2168 + $0x490] sm:$0xff] %v2461
        %v2463 = vld [vmem:[%s2167 + $0x48c] sm:$0xff]
        %2464 = vst [vmem:[%s2168 + $0x498] sm:$0xff] %v2463
        %v2465 = vld [vmem:[%s2167 + $0x4a0] sm:$0xff]
        %2466 = vst [vmem:[%s2168 + $0x4a0] sm:$0xff] %v2465
        %v2467 = vld [vmem:[%s2167 + $0x4a4] sm:$0xff]
        %2468 = vst [vmem:[%s2168 + $0x4a8] sm:$0xff] %v2467
        %v2469 = vld [vmem:[%s2167 + $0x4a8] sm:$0xff]
        %2470 = vst [vmem:[%s2168 + $0x4b0] sm:$0xff] %v2469
        %v2471 = vld [vmem:[%s2167 + $0x4ac] sm:$0xff]
        %2472 = vst [vmem:[%s2168 + $0x4b8] sm:$0xff] %v2471
        %v2473 = vld [vmem:[%s2167 + $0x4c0] sm:$0xff]
        %2474 = vst [vmem:[%s2168 + $0x4c0] sm:$0xff] %v2473
        %v2475 = vld [vmem:[%s2167 + $0x4c4] sm:$0xff]
        %2476 = vst [vmem:[%s2168 + $0x4c8] sm:$0xff] %v2475
        %v2477 = vld [vmem:[%s2167 + $0x4c8] sm:$0xff]
        %2478 = vst [vmem:[%s2168 + $0x4d0] sm:$0xff] %v2477
        %v2479 = vld [vmem:[%s2167 + $0x4cc] sm:$0xff]
        %2480 = vst [vmem:[%s2168 + $0x4d8] sm:$0xff] %v2479
        %v2481 = vld [vmem:[%s2167 + $0x4e0] sm:$0xff]
        %2482 = vst [vmem:[%s2168 + $0x4e0] sm:$0xff] %v2481
        %v2483 = vld [vmem:[%s2167 + $0x4e4] sm:$0xff]
        %2484 = vst [vmem:[%s2168 + $0x4e8] sm:$0xff] %v2483
        %v2485 = vld [vmem:[%s2167 + $0x4e8] sm:$0xff]
        %2486 = vst [vmem:[%s2168 + $0x4f0] sm:$0xff] %v2485
        %v2487 = vld [vmem:[%s2167 + $0x4ec] sm:$0xff]
        %2488 = vst [vmem:[%s2168 + $0x4f8] sm:$0xff] %v2487
        %v2489 = vld [vmem:[%s2167 + $0x500] sm:$0xff]
        %2490 = vst [vmem:[%s2168 + $0x500] sm:$0xff] %v2489
        %v2491 = vld [vmem:[%s2167 + $0x504] sm:$0xff]
        %2492 = vst [vmem:[%s2168 + $0x508] sm:$0xff] %v2491
        %v2493 = vld [vmem:[%s2167 + $0x508] sm:$0xff]
        %2494 = vst [vmem:[%s2168 + $0x510] sm:$0xff] %v2493
        %v2495 = vld [vmem:[%s2167 + $0x50c] sm:$0xff]
        %2496 = vst [vmem:[%s2168 + $0x518] sm:$0xff] %v2495
        %v2497 = vld [vmem:[%s2167 + $0x520] sm:$0xff]
        %2498 = vst [vmem:[%s2168 + $0x520] sm:$0xff] %v2497
        %v2499 = vld [vmem:[%s2167 + $0x524] sm:$0xff]
        %2500 = vst [vmem:[%s2168 + $0x528] sm:$0xff] %v2499
        %v2501 = vld [vmem:[%s2167 + $0x528] sm:$0xff]
        %2502 = vst [vmem:[%s2168 + $0x530] sm:$0xff] %v2501
        %v2503 = vld [vmem:[%s2167 + $0x52c] sm:$0xff]
        %2504 = vst [vmem:[%s2168 + $0x538] sm:$0xff] %v2503
        %v2505 = vld [vmem:[%s2167 + $0x540] sm:$0xff]
        %2506 = vst [vmem:[%s2168 + $0x540] sm:$0xff] %v2505
        %v2507 = vld [vmem:[%s2167 + $0x544] sm:$0xff]
        %2508 = vst [vmem:[%s2168 + $0x548] sm:$0xff] %v2507
        %v2509 = vld [vmem:[%s2167 + $0x548] sm:$0xff]
        %2510 = vst [vmem:[%s2168 + $0x550] sm:$0xff] %v2509
        %v2511 = vld [vmem:[%s2167 + $0x54c] sm:$0xff]
        %2512 = vst [vmem:[%s2168 + $0x558] sm:$0xff] %v2511
        %v2513 = vld [vmem:[%s2167 + $0x560] sm:$0xff]
        %2514 = vst [vmem:[%s2168 + $0x560] sm:$0xff] %v2513
        %v2515 = vld [vmem:[%s2167 + $0x564] sm:$0xff]
        %2516 = vst [vmem:[%s2168 + $0x568] sm:$0xff] %v2515
        %v2517 = vld [vmem:[%s2167 + $0x568] sm:$0xff]
        %2518 = vst [vmem:[%s2168 + $0x570] sm:$0xff] %v2517
        %v2519 = vld [vmem:[%s2167 + $0x56c] sm:$0xff]
        %2520 = vst [vmem:[%s2168 + $0x578] sm:$0xff] %v2519
        %v2521 = vld [vmem:[%s2167 + $0x580] sm:$0xff]
        %2522 = vst [vmem:[%s2168 + $0x580] sm:$0xff] %v2521
        %v2523 = vld [vmem:[%s2167 + $0x584] sm:$0xff]
        %2524 = vst [vmem:[%s2168 + $0x588] sm:$0xff] %v2523
        %v2525 = vld [vmem:[%s2167 + $0x588] sm:$0xff]
        %2526 = vst [vmem:[%s2168 + $0x590] sm:$0xff] %v2525
        %v2527 = vld [vmem:[%s2167 + $0x58c] sm:$0xff]
        %2528 = vst [vmem:[%s2168 + $0x598] sm:$0xff] %v2527
        %v2529 = vld [vmem:[%s2167 + $0x5a0] sm:$0xff]
        %2530 = vst [vmem:[%s2168 + $0x5a0] sm:$0xff] %v2529
        %v2531 = vld [vmem:[%s2167 + $0x5a4] sm:$0xff]
        %2532 = vst [vmem:[%s2168 + $0x5a8] sm:$0xff] %v2531
        %v2533 = vld [vmem:[%s2167 + $0x5a8] sm:$0xff]
        %2534 = vst [vmem:[%s2168 + $0x5b0] sm:$0xff] %v2533
        %v2535 = vld [vmem:[%s2167 + $0x5ac] sm:$0xff]
        %2536 = vst [vmem:[%s2168 + $0x5b8] sm:$0xff] %v2535
        %v2537 = vld [vmem:[%s2167 + $0x5c0] sm:$0xff]
        %2538 = vst [vmem:[%s2168 + $0x5c0] sm:$0xff] %v2537
        %v2539 = vld [vmem:[%s2167 + $0x5c4] sm:$0xff]
        %2540 = vst [vmem:[%s2168 + $0x5c8] sm:$0xff] %v2539
        %v2541 = vld [vmem:[%s2167 + $0x5c8] sm:$0xff]
        %2542 = vst [vmem:[%s2168 + $0x5d0] sm:$0xff] %v2541
        %v2543 = vld [vmem:[%s2167 + $0x5cc] sm:$0xff]
        %2544 = vst [vmem:[%s2168 + $0x5d8] sm:$0xff] %v2543
        %v2545 = vld [vmem:[%s2167 + $0x5e0] sm:$0xff]
        %2546 = vst [vmem:[%s2168 + $0x5e0] sm:$0xff] %v2545
        %v2547 = vld [vmem:[%s2167 + $0x5e4] sm:$0xff]
        %2548 = vst [vmem:[%s2168 + $0x5e8] sm:$0xff] %v2547
        %v2549 = vld [vmem:[%s2167 + $0x5e8] sm:$0xff]
        %2550 = vst [vmem:[%s2168 + $0x5f0] sm:$0xff] %v2549
        %v2551 = vld [vmem:[%s2167 + $0x5ec] sm:$0xff]
        %2552 = vst [vmem:[%s2168 + $0x5f8] sm:$0xff] %v2551
        %v2553 = vld [vmem:[%s2167 + $0x600] sm:$0xff]
        %2554 = vst [vmem:[%s2168 + $0x600] sm:$0xff] %v2553
        %v2555 = vld [vmem:[%s2167 + $0x604] sm:$0xff]
        %2556 = vst [vmem:[%s2168 + $0x608] sm:$0xff] %v2555
        %v2557 = vld [vmem:[%s2167 + $0x608] sm:$0xff]
        %2558 = vst [vmem:[%s2168 + $0x610] sm:$0xff] %v2557
        %v2559 = vld [vmem:[%s2167 + $0x60c] sm:$0xff]
        %2560 = vst [vmem:[%s2168 + $0x618] sm:$0xff] %v2559
        %v2561 = vld [vmem:[%s2167 + $0x620] sm:$0xff]
        %2562 = vst [vmem:[%s2168 + $0x620] sm:$0xff] %v2561
        %v2563 = vld [vmem:[%s2167 + $0x624] sm:$0xff]
        %2564 = vst [vmem:[%s2168 + $0x628] sm:$0xff] %v2563
        %v2565 = vld [vmem:[%s2167 + $0x628] sm:$0xff]
        %2566 = vst [vmem:[%s2168 + $0x630] sm:$0xff] %v2565
        %v2567 = vld [vmem:[%s2167 + $0x62c] sm:$0xff]
        %2568 = vst [vmem:[%s2168 + $0x638] sm:$0xff] %v2567
        %v2569 = vld [vmem:[%s2167 + $0x640] sm:$0xff]
        %2570 = vst [vmem:[%s2168 + $0x640] sm:$0xff] %v2569
        %v2571 = vld [vmem:[%s2167 + $0x644] sm:$0xff]
        %2572 = vst [vmem:[%s2168 + $0x648] sm:$0xff] %v2571
        %v2573 = vld [vmem:[%s2167 + $0x648] sm:$0xff]
        %2574 = vst [vmem:[%s2168 + $0x650] sm:$0xff] %v2573
        %v2575 = vld [vmem:[%s2167 + $0x64c] sm:$0xff]
        %2576 = vst [vmem:[%s2168 + $0x658] sm:$0xff] %v2575
        %v2577 = vld [vmem:[%s2167 + $0x660] sm:$0xff]
        %2578 = vst [vmem:[%s2168 + $0x660] sm:$0xff] %v2577
        %v2579 = vld [vmem:[%s2167 + $0x664] sm:$0xff]
        %2580 = vst [vmem:[%s2168 + $0x668] sm:$0xff] %v2579
        %v2581 = vld [vmem:[%s2167 + $0x668] sm:$0xff]
        %2582 = vst [vmem:[%s2168 + $0x670] sm:$0xff] %v2581
        %v2583 = vld [vmem:[%s2167 + $0x66c] sm:$0xff]
        %2584 = vst [vmem:[%s2168 + $0x678] sm:$0xff] %v2583
        %v2585 = vld [vmem:[%s2167 + $0x680] sm:$0xff]
        %2586 = vst [vmem:[%s2168 + $0x680] sm:$0xff] %v2585
        %v2587 = vld [vmem:[%s2167 + $0x684] sm:$0xff]
        %2588 = vst [vmem:[%s2168 + $0x688] sm:$0xff] %v2587
        %v2589 = vld [vmem:[%s2167 + $0x688] sm:$0xff]
        %2590 = vst [vmem:[%s2168 + $0x690] sm:$0xff] %v2589
        %v2591 = vld [vmem:[%s2167 + $0x68c] sm:$0xff]
        %2592 = vst [vmem:[%s2168 + $0x698] sm:$0xff] %v2591
        %v2593 = vld [vmem:[%s2167 + $0x6a0] sm:$0xff]
        %2594 = vst [vmem:[%s2168 + $0x6a0] sm:$0xff] %v2593
        %v2595 = vld [vmem:[%s2167 + $0x6a4] sm:$0xff]
        %2596 = vst [vmem:[%s2168 + $0x6a8] sm:$0xff] %v2595
        %v2597 = vld [vmem:[%s2167 + $0x6a8] sm:$0xff]
        %2598 = vst [vmem:[%s2168 + $0x6b0] sm:$0xff] %v2597
        %v2599 = vld [vmem:[%s2167 + $0x6ac] sm:$0xff]
        %2600 = vst [vmem:[%s2168 + $0x6b8] sm:$0xff] %v2599
        %v2601 = vld [vmem:[%s2167 + $0x6c0] sm:$0xff]
        %2602 = vst [vmem:[%s2168 + $0x6c0] sm:$0xff] %v2601
        %v2603 = vld [vmem:[%s2167 + $0x6c4] sm:$0xff]
        %2604 = vst [vmem:[%s2168 + $0x6c8] sm:$0xff] %v2603
        %v2605 = vld [vmem:[%s2167 + $0x6c8] sm:$0xff]
        %2606 = vst [vmem:[%s2168 + $0x6d0] sm:$0xff] %v2605
        %v2607 = vld [vmem:[%s2167 + $0x6cc] sm:$0xff]
        %2608 = vst [vmem:[%s2168 + $0x6d8] sm:$0xff] %v2607
        %v2609 = vld [vmem:[%s2167 + $0x6e0] sm:$0xff]
        %2610 = vst [vmem:[%s2168 + $0x6e0] sm:$0xff] %v2609
        %v2611 = vld [vmem:[%s2167 + $0x6e4] sm:$0xff]
        %2612 = vst [vmem:[%s2168 + $0x6e8] sm:$0xff] %v2611
        %v2613 = vld [vmem:[%s2167 + $0x6e8] sm:$0xff]
        %2614 = vst [vmem:[%s2168 + $0x6f0] sm:$0xff] %v2613
        %v2615 = vld [vmem:[%s2167 + $0x6ec] sm:$0xff]
        %2616 = vst [vmem:[%s2168 + $0x6f8] sm:$0xff] %v2615
        %v2617 = vld [vmem:[%s2167 + $0x700] sm:$0xff]
        %2618 = vst [vmem:[%s2168 + $0x700] sm:$0xff] %v2617
        %v2619 = vld [vmem:[%s2167 + $0x704] sm:$0xff]
        %2620 = vst [vmem:[%s2168 + $0x708] sm:$0xff] %v2619
        %v2621 = vld [vmem:[%s2167 + $0x708] sm:$0xff]
        %2622 = vst [vmem:[%s2168 + $0x710] sm:$0xff] %v2621
        %v2623 = vld [vmem:[%s2167 + $0x70c] sm:$0xff]
        %2624 = vst [vmem:[%s2168 + $0x718] sm:$0xff] %v2623
        %v2625 = vld [vmem:[%s2167 + $0x720] sm:$0xff]
        %2626 = vst [vmem:[%s2168 + $0x720] sm:$0xff] %v2625
        %v2627 = vld [vmem:[%s2167 + $0x724] sm:$0xff]
        %2628 = vst [vmem:[%s2168 + $0x728] sm:$0xff] %v2627
        %v2629 = vld [vmem:[%s2167 + $0x728] sm:$0xff]
        %2630 = vst [vmem:[%s2168 + $0x730] sm:$0xff] %v2629
        %v2631 = vld [vmem:[%s2167 + $0x72c] sm:$0xff]
        %2632 = vst [vmem:[%s2168 + $0x738] sm:$0xff] %v2631
        %v2633 = vld [vmem:[%s2167 + $0x740] sm:$0xff]
        %2634 = vst [vmem:[%s2168 + $0x740] sm:$0xff] %v2633
        %v2635 = vld [vmem:[%s2167 + $0x744] sm:$0xff]
        %2636 = vst [vmem:[%s2168 + $0x748] sm:$0xff] %v2635
        %v2637 = vld [vmem:[%s2167 + $0x748] sm:$0xff]
        %2638 = vst [vmem:[%s2168 + $0x750] sm:$0xff] %v2637
        %v2639 = vld [vmem:[%s2167 + $0x74c] sm:$0xff]
        %2640 = vst [vmem:[%s2168 + $0x758] sm:$0xff] %v2639
        %v2641 = vld [vmem:[%s2167 + $0x760] sm:$0xff]
        %2642 = vst [vmem:[%s2168 + $0x760] sm:$0xff] %v2641
        %v2643 = vld [vmem:[%s2167 + $0x764] sm:$0xff]
        %2644 = vst [vmem:[%s2168 + $0x768] sm:$0xff] %v2643
        %v2645 = vld [vmem:[%s2167 + $0x768] sm:$0xff]
        %2646 = vst [vmem:[%s2168 + $0x770] sm:$0xff] %v2645
        %v2647 = vld [vmem:[%s2167 + $0x76c] sm:$0xff]
        %2648 = vst [vmem:[%s2168 + $0x778] sm:$0xff] %v2647
        %v2649 = vld [vmem:[%s2167 + $0x780] sm:$0xff]
        %2650 = vst [vmem:[%s2168 + $0x780] sm:$0xff] %v2649
        %v2651 = vld [vmem:[%s2167 + $0x784] sm:$0xff]
        %2652 = vst [vmem:[%s2168 + $0x788] sm:$0xff] %v2651
        %v2653 = vld [vmem:[%s2167 + $0x788] sm:$0xff]
        %2654 = vst [vmem:[%s2168 + $0x790] sm:$0xff] %v2653
        %v2655 = vld [vmem:[%s2167 + $0x78c] sm:$0xff]
        %2656 = vst [vmem:[%s2168 + $0x798] sm:$0xff] %v2655
        %v2657 = vld [vmem:[%s2167 + $0x7a0] sm:$0xff]
        %2658 = vst [vmem:[%s2168 + $0x7a0] sm:$0xff] %v2657
        %v2659 = vld [vmem:[%s2167 + $0x7a4] sm:$0xff]
        %2660 = vst [vmem:[%s2168 + $0x7a8] sm:$0xff] %v2659
        %v2661 = vld [vmem:[%s2167 + $0x7a8] sm:$0xff]
        %2662 = vst [vmem:[%s2168 + $0x7b0] sm:$0xff] %v2661
        %v2663 = vld [vmem:[%s2167 + $0x7ac] sm:$0xff]
        %2664 = vst [vmem:[%s2168 + $0x7b8] sm:$0xff] %v2663
        %v2665 = vld [vmem:[%s2167 + $0x7c0] sm:$0xff]
        %2666 = vst [vmem:[%s2168 + $0x7c0] sm:$0xff] %v2665
        %v2667 = vld [vmem:[%s2167 + $0x7c4] sm:$0xff]
        %2668 = vst [vmem:[%s2168 + $0x7c8] sm:$0xff] %v2667
        %v2669 = vld [vmem:[%s2167 + $0x7c8] sm:$0xff]
        %2670 = vst [vmem:[%s2168 + $0x7d0] sm:$0xff] %v2669
        %v2671 = vld [vmem:[%s2167 + $0x7cc] sm:$0xff]
        %2672 = vst [vmem:[%s2168 + $0x7d8] sm:$0xff] %v2671
        %v2673 = vld [vmem:[%s2167 + $0x7e0] sm:$0xff]
        %2674 = vst [vmem:[%s2168 + $0x7e0] sm:$0xff] %v2673
        %v2675 = vld [vmem:[%s2167 + $0x7e4] sm:$0xff]
        %2676 = vst [vmem:[%s2168 + $0x7e8] sm:$0xff] %v2675
        %v2677 = vld [vmem:[%s2167 + $0x7e8] sm:$0xff]
        %2678 = vst [vmem:[%s2168 + $0x7f0] sm:$0xff] %v2677
        %v2679 = vld [vmem:[%s2167 + $0x7ec] sm:$0xff]
        %2680 = vst [vmem:[%s2168 + $0x7f8] sm:$0xff] %v2679
        %v2681 = vld [vmem:[%s2167 + $0x800] sm:$0xff]
        %2682 = vst [vmem:[%s2168 + $0x800] sm:$0xff] %v2681
        %v2683 = vld [vmem:[%s2167 + $0x804] sm:$0xff]
        %2684 = vst [vmem:[%s2168 + $0x808] sm:$0xff] %v2683
        %v2685 = vld [vmem:[%s2167 + $0x808] sm:$0xff]
        %2686 = vst [vmem:[%s2168 + $0x810] sm:$0xff] %v2685
        %v2687 = vld [vmem:[%s2167 + $0x80c] sm:$0xff]
        %2688 = vst [vmem:[%s2168 + $0x818] sm:$0xff] %v2687
        %v2689 = vld [vmem:[%s2167 + $0x820] sm:$0xff]
        %2690 = vst [vmem:[%s2168 + $0x820] sm:$0xff] %v2689
        %v2691 = vld [vmem:[%s2167 + $0x824] sm:$0xff]
        %2692 = vst [vmem:[%s2168 + $0x828] sm:$0xff] %v2691
        %v2693 = vld [vmem:[%s2167 + $0x828] sm:$0xff]
        %2694 = vst [vmem:[%s2168 + $0x830] sm:$0xff] %v2693
        %v2695 = vld [vmem:[%s2167 + $0x82c] sm:$0xff]
        %2696 = vst [vmem:[%s2168 + $0x838] sm:$0xff] %v2695
        %v2697 = vld [vmem:[%s2167 + $0x840] sm:$0xff]
        %2698 = vst [vmem:[%s2168 + $0x840] sm:$0xff] %v2697
        %v2699 = vld [vmem:[%s2167 + $0x844] sm:$0xff]
        %2700 = vst [vmem:[%s2168 + $0x848] sm:$0xff] %v2699
        %v2701 = vld [vmem:[%s2167 + $0x848] sm:$0xff]
        %2702 = vst [vmem:[%s2168 + $0x850] sm:$0xff] %v2701
        %v2703 = vld [vmem:[%s2167 + $0x84c] sm:$0xff]
        %2704 = vst [vmem:[%s2168 + $0x858] sm:$0xff] %v2703
        %v2705 = vld [vmem:[%s2167 + $0x860] sm:$0xff]
        %2706 = vst [vmem:[%s2168 + $0x860] sm:$0xff] %v2705
        %v2707 = vld [vmem:[%s2167 + $0x864] sm:$0xff]
        %2708 = vst [vmem:[%s2168 + $0x868] sm:$0xff] %v2707
        %v2709 = vld [vmem:[%s2167 + $0x868] sm:$0xff]
        %2710 = vst [vmem:[%s2168 + $0x870] sm:$0xff] %v2709
        %v2711 = vld [vmem:[%s2167 + $0x86c] sm:$0xff]
        %2712 = vst [vmem:[%s2168 + $0x878] sm:$0xff] %v2711
        %v2713 = vld [vmem:[%s2167 + $0x880] sm:$0xff]
        %2714 = vst [vmem:[%s2168 + $0x880] sm:$0xff] %v2713
        %v2715 = vld [vmem:[%s2167 + $0x884] sm:$0xff]
        %2716 = vst [vmem:[%s2168 + $0x888] sm:$0xff] %v2715
        %v2717 = vld [vmem:[%s2167 + $0x888] sm:$0xff]
        %2718 = vst [vmem:[%s2168 + $0x890] sm:$0xff] %v2717
        %v2719 = vld [vmem:[%s2167 + $0x88c] sm:$0xff]
        %2720 = vst [vmem:[%s2168 + $0x898] sm:$0xff] %v2719
        %v2721 = vld [vmem:[%s2167 + $0x8a0] sm:$0xff]
        %2722 = vst [vmem:[%s2168 + $0x8a0] sm:$0xff] %v2721
        %v2723 = vld [vmem:[%s2167 + $0x8a4] sm:$0xff]
        %2724 = vst [vmem:[%s2168 + $0x8a8] sm:$0xff] %v2723
        %v2725 = vld [vmem:[%s2167 + $0x8a8] sm:$0xff]
        %2726 = vst [vmem:[%s2168 + $0x8b0] sm:$0xff] %v2725
        %v2727 = vld [vmem:[%s2167 + $0x8ac] sm:$0xff]
        %2728 = vst [vmem:[%s2168 + $0x8b8] sm:$0xff] %v2727
        %v2729 = vld [vmem:[%s2167 + $0x8c0] sm:$0xff]
        %2730 = vst [vmem:[%s2168 + $0x8c0] sm:$0xff] %v2729
        %v2731 = vld [vmem:[%s2167 + $0x8c4] sm:$0xff]
        %2732 = vst [vmem:[%s2168 + $0x8c8] sm:$0xff] %v2731
        %v2733 = vld [vmem:[%s2167 + $0x8c8] sm:$0xff]
        %2734 = vst [vmem:[%s2168 + $0x8d0] sm:$0xff] %v2733
        %v2735 = vld [vmem:[%s2167 + $0x8cc] sm:$0xff]
        %2736 = vst [vmem:[%s2168 + $0x8d8] sm:$0xff] %v2735
        %v2737 = vld [vmem:[%s2167 + $0x8e0] sm:$0xff]
        %2738 = vst [vmem:[%s2168 + $0x8e0] sm:$0xff] %v2737
        %v2739 = vld [vmem:[%s2167 + $0x8e4] sm:$0xff]
        %2740 = vst [vmem:[%s2168 + $0x8e8] sm:$0xff] %v2739
        %v2741 = vld [vmem:[%s2167 + $0x8e8] sm:$0xff]
        %2742 = vst [vmem:[%s2168 + $0x8f0] sm:$0xff] %v2741
        %v2743 = vld [vmem:[%s2167 + $0x8ec] sm:$0xff]
        %2744 = vst [vmem:[%s2168 + $0x8f8] sm:$0xff] %v2743
        %v2745 = vld [vmem:[%s2167 + $0x900] sm:$0xff]
        %2746 = vst [vmem:[%s2168 + $0x900] sm:$0xff] %v2745
        %v2747 = vld [vmem:[%s2167 + $0x904] sm:$0xff]
        %2748 = vst [vmem:[%s2168 + $0x908] sm:$0xff] %v2747
        %v2749 = vld [vmem:[%s2167 + $0x908] sm:$0xff]
        %2750 = vst [vmem:[%s2168 + $0x910] sm:$0xff] %v2749
        %v2751 = vld [vmem:[%s2167 + $0x90c] sm:$0xff]
        %2752 = vst [vmem:[%s2168 + $0x918] sm:$0xff] %v2751
        %v2753 = vld [vmem:[%s2167 + $0x920] sm:$0xff]
        %2754 = vst [vmem:[%s2168 + $0x920] sm:$0xff] %v2753
        %v2755 = vld [vmem:[%s2167 + $0x924] sm:$0xff]
        %2756 = vst [vmem:[%s2168 + $0x928] sm:$0xff] %v2755
        %v2757 = vld [vmem:[%s2167 + $0x928] sm:$0xff]
        %2758 = vst [vmem:[%s2168 + $0x930] sm:$0xff] %v2757
        %v2759 = vld [vmem:[%s2167 + $0x92c] sm:$0xff]
        %2760 = vst [vmem:[%s2168 + $0x938] sm:$0xff] %v2759
        %v2761 = vld [vmem:[%s2167 + $0x940] sm:$0xff]
        %2762 = vst [vmem:[%s2168 + $0x940] sm:$0xff] %v2761
        %v2763 = vld [vmem:[%s2167 + $0x944] sm:$0xff]
        %2764 = vst [vmem:[%s2168 + $0x948] sm:$0xff] %v2763
        %v2765 = vld [vmem:[%s2167 + $0x948] sm:$0xff]
        %2766 = vst [vmem:[%s2168 + $0x950] sm:$0xff] %v2765
        %v2767 = vld [vmem:[%s2167 + $0x94c] sm:$0xff]
        %2768 = vst [vmem:[%s2168 + $0x958] sm:$0xff] %v2767
        %v2769 = vld [vmem:[%s2167 + $0x960] sm:$0xff]
        %2770 = vst [vmem:[%s2168 + $0x960] sm:$0xff] %v2769
        %v2771 = vld [vmem:[%s2167 + $0x964] sm:$0xff]
        %2772 = vst [vmem:[%s2168 + $0x968] sm:$0xff] %v2771
        %v2773 = vld [vmem:[%s2167 + $0x968] sm:$0xff]
        %2774 = vst [vmem:[%s2168 + $0x970] sm:$0xff] %v2773
        %v2775 = vld [vmem:[%s2167 + $0x96c] sm:$0xff]
        %2776 = vst [vmem:[%s2168 + $0x978] sm:$0xff] %v2775
        %v2777 = vld [vmem:[%s2167 + $0x980] sm:$0xff]
        %2778 = vst [vmem:[%s2168 + $0x980] sm:$0xff] %v2777
        %v2779 = vld [vmem:[%s2167 + $0x984] sm:$0xff]
        %2780 = vst [vmem:[%s2168 + $0x988] sm:$0xff] %v2779
        %v2781 = vld [vmem:[%s2167 + $0x988] sm:$0xff]
        %2782 = vst [vmem:[%s2168 + $0x990] sm:$0xff] %v2781
        %v2783 = vld [vmem:[%s2167 + $0x98c] sm:$0xff]
        %2784 = vst [vmem:[%s2168 + $0x998] sm:$0xff] %v2783
        %v2785 = vld [vmem:[%s2167 + $0x9a0] sm:$0xff]
        %2786 = vst [vmem:[%s2168 + $0x9a0] sm:$0xff] %v2785
        %v2787 = vld [vmem:[%s2167 + $0x9a4] sm:$0xff]
        %2788 = vst [vmem:[%s2168 + $0x9a8] sm:$0xff] %v2787
        %v2789 = vld [vmem:[%s2167 + $0x9a8] sm:$0xff]
        %2790 = vst [vmem:[%s2168 + $0x9b0] sm:$0xff] %v2789
        %v2791 = vld [vmem:[%s2167 + $0x9ac] sm:$0xff]
        %2792 = vst [vmem:[%s2168 + $0x9b8] sm:$0xff] %v2791
        %v2793 = vld [vmem:[%s2167 + $0x9c0] sm:$0xff]
        %2794 = vst [vmem:[%s2168 + $0x9c0] sm:$0xff] %v2793
        %v2795 = vld [vmem:[%s2167 + $0x9c4] sm:$0xff]
        %2796 = vst [vmem:[%s2168 + $0x9c8] sm:$0xff] %v2795
        %v2797 = vld [vmem:[%s2167 + $0x9c8] sm:$0xff]
        %2798 = vst [vmem:[%s2168 + $0x9d0] sm:$0xff] %v2797
        %v2799 = vld [vmem:[%s2167 + $0x9cc] sm:$0xff]
        %2800 = vst [vmem:[%s2168 + $0x9d8] sm:$0xff] %v2799
        %v2801 = vld [vmem:[%s2167 + $0x9e0] sm:$0xff]
        %2802 = vst [vmem:[%s2168 + $0x9e0] sm:$0xff] %v2801
        %v2803 = vld [vmem:[%s2167 + $0x9e4] sm:$0xff]
        %2804 = vst [vmem:[%s2168 + $0x9e8] sm:$0xff] %v2803
        %v2805 = vld [vmem:[%s2167 + $0x9e8] sm:$0xff]
        %2806 = vst [vmem:[%s2168 + $0x9f0] sm:$0xff] %v2805
        %v2807 = vld [vmem:[%s2167 + $0x9ec] sm:$0xff]
        %2808 = vst [vmem:[%s2168 + $0x9f8] sm:$0xff] %v2807
        %v2809 = vld [vmem:[%s2167 + $0xa00] sm:$0xff]
        %2810 = vst [vmem:[%s2168 + $0xa00] sm:$0xff] %v2809
        %v2811 = vld [vmem:[%s2167 + $0xa04] sm:$0xff]
        %2812 = vst [vmem:[%s2168 + $0xa08] sm:$0xff] %v2811
        %v2813 = vld [vmem:[%s2167 + $0xa08] sm:$0xff]
        %2814 = vst [vmem:[%s2168 + $0xa10] sm:$0xff] %v2813
        %v2815 = vld [vmem:[%s2167 + $0xa0c] sm:$0xff]
        %2816 = vst [vmem:[%s2168 + $0xa18] sm:$0xff] %v2815
        %v2817 = vld [vmem:[%s2167 + $0xa20] sm:$0xff]
        %2818 = vst [vmem:[%s2168 + $0xa20] sm:$0xff] %v2817
        %v2819 = vld [vmem:[%s2167 + $0xa24] sm:$0xff]
        %2820 = vst [vmem:[%s2168 + $0xa28] sm:$0xff] %v2819
        %v2821 = vld [vmem:[%s2167 + $0xa28] sm:$0xff]
        %2822 = vst [vmem:[%s2168 + $0xa30] sm:$0xff] %v2821
        %v2823 = vld [vmem:[%s2167 + $0xa2c] sm:$0xff]
        %2824 = vst [vmem:[%s2168 + $0xa38] sm:$0xff] %v2823
        %v2825 = vld [vmem:[%s2167 + $0xa40] sm:$0xff]
        %2826 = vst [vmem:[%s2168 + $0xa40] sm:$0xff] %v2825
        %v2827 = vld [vmem:[%s2167 + $0xa44] sm:$0xff]
        %2828 = vst [vmem:[%s2168 + $0xa48] sm:$0xff] %v2827
        %v2829 = vld [vmem:[%s2167 + $0xa48] sm:$0xff]
        %2830 = vst [vmem:[%s2168 + $0xa50] sm:$0xff] %v2829
        %v2831 = vld [vmem:[%s2167 + $0xa4c] sm:$0xff]
        %2832 = vst [vmem:[%s2168 + $0xa58] sm:$0xff] %v2831
        %v2833 = vld [vmem:[%s2167 + $0xa60] sm:$0xff]
        %2834 = vst [vmem:[%s2168 + $0xa60] sm:$0xff] %v2833
        %v2835 = vld [vmem:[%s2167 + $0xa64] sm:$0xff]
        %2836 = vst [vmem:[%s2168 + $0xa68] sm:$0xff] %v2835
        %v2837 = vld [vmem:[%s2167 + $0xa68] sm:$0xff]
        %2838 = vst [vmem:[%s2168 + $0xa70] sm:$0xff] %v2837
        %v2839 = vld [vmem:[%s2167 + $0xa6c] sm:$0xff]
        %2840 = vst [vmem:[%s2168 + $0xa78] sm:$0xff] %v2839
        %v2841 = vld [vmem:[%s2167 + $0xa80] sm:$0xff]
        %2842 = vst [vmem:[%s2168 + $0xa80] sm:$0xff] %v2841
        %v2843 = vld [vmem:[%s2167 + $0xa84] sm:$0xff]
        %2844 = vst [vmem:[%s2168 + $0xa88] sm:$0xff] %v2843
        %v2845 = vld [vmem:[%s2167 + $0xa88] sm:$0xff]
        %2846 = vst [vmem:[%s2168 + $0xa90] sm:$0xff] %v2845
        %v2847 = vld [vmem:[%s2167 + $0xa8c] sm:$0xff]
        %2848 = vst [vmem:[%s2168 + $0xa98] sm:$0xff] %v2847
        %v2849 = vld [vmem:[%s2167 + $0xaa0] sm:$0xff]
        %2850 = vst [vmem:[%s2168 + $0xaa0] sm:$0xff] %v2849
        %v2851 = vld [vmem:[%s2167 + $0xaa4] sm:$0xff]
        %2852 = vst [vmem:[%s2168 + $0xaa8] sm:$0xff] %v2851
        %v2853 = vld [vmem:[%s2167 + $0xaa8] sm:$0xff]
        %2854 = vst [vmem:[%s2168 + $0xab0] sm:$0xff] %v2853
        %v2855 = vld [vmem:[%s2167 + $0xaac] sm:$0xff]
        %2856 = vst [vmem:[%s2168 + $0xab8] sm:$0xff] %v2855
        %v2857 = vld [vmem:[%s2167 + $0xac0] sm:$0xff]
        %2858 = vst [vmem:[%s2168 + $0xac0] sm:$0xff] %v2857
        %v2859 = vld [vmem:[%s2167 + $0xac4] sm:$0xff]
        %2860 = vst [vmem:[%s2168 + $0xac8] sm:$0xff] %v2859
        %v2861 = vld [vmem:[%s2167 + $0xac8] sm:$0xff]
        %2862 = vst [vmem:[%s2168 + $0xad0] sm:$0xff] %v2861
        %v2863 = vld [vmem:[%s2167 + $0xacc] sm:$0xff]
        %2864 = vst [vmem:[%s2168 + $0xad8] sm:$0xff] %v2863
        %v2865 = vld [vmem:[%s2167 + $0xae0] sm:$0xff]
        %2866 = vst [vmem:[%s2168 + $0xae0] sm:$0xff] %v2865
        %v2867 = vld [vmem:[%s2167 + $0xae4] sm:$0xff]
        %2868 = vst [vmem:[%s2168 + $0xae8] sm:$0xff] %v2867
        %v2869 = vld [vmem:[%s2167 + $0xae8] sm:$0xff]
        %2870 = vst [vmem:[%s2168 + $0xaf0] sm:$0xff] %v2869
        %v2871 = vld [vmem:[%s2167 + $0xaec] sm:$0xff]
        %2872 = vst [vmem:[%s2168 + $0xaf8] sm:$0xff] %v2871
        %v2873 = vld [vmem:[%s2167 + $0xb00] sm:$0xff]
        %2874 = vst [vmem:[%s2168 + $0xb00] sm:$0xff] %v2873
        %v2875 = vld [vmem:[%s2167 + $0xb04] sm:$0xff]
        %2876 = vst [vmem:[%s2168 + $0xb08] sm:$0xff] %v2875
        %v2877 = vld [vmem:[%s2167 + $0xb08] sm:$0xff]
        %2878 = vst [vmem:[%s2168 + $0xb10] sm:$0xff] %v2877
        %v2879 = vld [vmem:[%s2167 + $0xb0c] sm:$0xff]
        %2880 = vst [vmem:[%s2168 + $0xb18] sm:$0xff] %v2879
        %v2881 = vld [vmem:[%s2167 + $0xb20] sm:$0xff]
        %2882 = vst [vmem:[%s2168 + $0xb20] sm:$0xff] %v2881
        %v2883 = vld [vmem:[%s2167 + $0xb24] sm:$0xff]
        %2884 = vst [vmem:[%s2168 + $0xb28] sm:$0xff] %v2883
        %v2885 = vld [vmem:[%s2167 + $0xb28] sm:$0xff]
        %2886 = vst [vmem:[%s2168 + $0xb30] sm:$0xff] %v2885
        %v2887 = vld [vmem:[%s2167 + $0xb2c] sm:$0xff]
        %2888 = vst [vmem:[%s2168 + $0xb38] sm:$0xff] %v2887
        %v2889 = vld [vmem:[%s2167 + $0xb40] sm:$0xff]
        %2890 = vst [vmem:[%s2168 + $0xb40] sm:$0xff] %v2889
        %v2891 = vld [vmem:[%s2167 + $0xb44] sm:$0xff]
        %2892 = vst [vmem:[%s2168 + $0xb48] sm:$0xff] %v2891
        %v2893 = vld [vmem:[%s2167 + $0xb48] sm:$0xff]
        %2894 = vst [vmem:[%s2168 + $0xb50] sm:$0xff] %v2893
        %v2895 = vld [vmem:[%s2167 + $0xb4c] sm:$0xff]
        %2896 = vst [vmem:[%s2168 + $0xb58] sm:$0xff] %v2895
        %v2897 = vld [vmem:[%s2167 + $0xb60] sm:$0xff]
        %2898 = vst [vmem:[%s2168 + $0xb60] sm:$0xff] %v2897
        %v2899 = vld [vmem:[%s2167 + $0xb64] sm:$0xff]
        %2900 = vst [vmem:[%s2168 + $0xb68] sm:$0xff] %v2899
        %v2901 = vld [vmem:[%s2167 + $0xb68] sm:$0xff]
        %2902 = vst [vmem:[%s2168 + $0xb70] sm:$0xff] %v2901
        %v2903 = vld [vmem:[%s2167 + $0xb6c] sm:$0xff]
        %2904 = vst [vmem:[%s2168 + $0xb78] sm:$0xff] %v2903
        %v2905 = vld [vmem:[%s2167 + $0xb80] sm:$0xff]
        %2906 = vst [vmem:[%s2168 + $0xb80] sm:$0xff] %v2905
        %v2907 = vld [vmem:[%s2167 + $0xb84] sm:$0xff]
        %2908 = vst [vmem:[%s2168 + $0xb88] sm:$0xff] %v2907
        %v2909 = vld [vmem:[%s2167 + $0xb88] sm:$0xff]
        %2910 = vst [vmem:[%s2168 + $0xb90] sm:$0xff] %v2909
        %v2911 = vld [vmem:[%s2167 + $0xb8c] sm:$0xff]
        %2912 = vst [vmem:[%s2168 + $0xb98] sm:$0xff] %v2911
        %v2913 = vld [vmem:[%s2167 + $0xba0] sm:$0xff]
        %2914 = vst [vmem:[%s2168 + $0xba0] sm:$0xff] %v2913
        %v2915 = vld [vmem:[%s2167 + $0xba4] sm:$0xff]
        %2916 = vst [vmem:[%s2168 + $0xba8] sm:$0xff] %v2915
        %v2917 = vld [vmem:[%s2167 + $0xba8] sm:$0xff]
        %2918 = vst [vmem:[%s2168 + $0xbb0] sm:$0xff] %v2917
        %v2919 = vld [vmem:[%s2167 + $0xbac] sm:$0xff]
        %2920 = vst [vmem:[%s2168 + $0xbb8] sm:$0xff] %v2919
        %v2921 = vld [vmem:[%s2167 + $0xbc0] sm:$0xff]
        %2922 = vst [vmem:[%s2168 + $0xbc0] sm:$0xff] %v2921
        %v2923 = vld [vmem:[%s2167 + $0xbc4] sm:$0xff]
        %2924 = vst [vmem:[%s2168 + $0xbc8] sm:$0xff] %v2923
        %v2925 = vld [vmem:[%s2167 + $0xbc8] sm:$0xff]
        %2926 = vst [vmem:[%s2168 + $0xbd0] sm:$0xff] %v2925
        %v2927 = vld [vmem:[%s2167 + $0xbcc] sm:$0xff]
        %2928 = vst [vmem:[%s2168 + $0xbd8] sm:$0xff] %v2927
        %v2929 = vld [vmem:[%s2167 + $0xbe0] sm:$0xff]
        %2930 = vst [vmem:[%s2168 + $0xbe0] sm:$0xff] %v2929
        %v2931 = vld [vmem:[%s2167 + $0xbe4] sm:$0xff]
        %2932 = vst [vmem:[%s2168 + $0xbe8] sm:$0xff] %v2931
        %v2933 = vld [vmem:[%s2167 + $0xbe8] sm:$0xff]
        %2934 = vst [vmem:[%s2168 + $0xbf0] sm:$0xff] %v2933
        %v2935 = vld [vmem:[%s2167 + $0xbec] sm:$0xff]
        %2936 = vst [vmem:[%s2168 + $0xbf8] sm:$0xff] %v2935
        %v2937 = vld [vmem:[%s2167 + $0xc00] sm:$0xff]
        %2938 = vst [vmem:[%s2168 + $0xc00] sm:$0xff] %v2937
        %v2939 = vld [vmem:[%s2167 + $0xc04] sm:$0xff]
        %2940 = vst [vmem:[%s2168 + $0xc08] sm:$0xff] %v2939
        %v2941 = vld [vmem:[%s2167 + $0xc08] sm:$0xff]
        %2942 = vst [vmem:[%s2168 + $0xc10] sm:$0xff] %v2941
        %v2943 = vld [vmem:[%s2167 + $0xc0c] sm:$0xff]
        %2944 = vst [vmem:[%s2168 + $0xc18] sm:$0xff] %v2943
        %v2945 = vld [vmem:[%s2167 + $0xc20] sm:$0xff]
        %2946 = vst [vmem:[%s2168 + $0xc20] sm:$0xff] %v2945
        %v2947 = vld [vmem:[%s2167 + $0xc24] sm:$0xff]
        %2948 = vst [vmem:[%s2168 + $0xc28] sm:$0xff] %v2947
        %v2949 = vld [vmem:[%s2167 + $0xc28] sm:$0xff]
        %2950 = vst [vmem:[%s2168 + $0xc30] sm:$0xff] %v2949
        %v2951 = vld [vmem:[%s2167 + $0xc2c] sm:$0xff]
        %2952 = vst [vmem:[%s2168 + $0xc38] sm:$0xff] %v2951
        %v2953 = vld [vmem:[%s2167 + $0xc40] sm:$0xff]
        %2954 = vst [vmem:[%s2168 + $0xc40] sm:$0xff] %v2953
        %v2955 = vld [vmem:[%s2167 + $0xc44] sm:$0xff]
        %2956 = vst [vmem:[%s2168 + $0xc48] sm:$0xff] %v2955
        %v2957 = vld [vmem:[%s2167 + $0xc48] sm:$0xff]
        %2958 = vst [vmem:[%s2168 + $0xc50] sm:$0xff] %v2957
        %v2959 = vld [vmem:[%s2167 + $0xc4c] sm:$0xff]
        %2960 = vst [vmem:[%s2168 + $0xc58] sm:$0xff] %v2959
        %v2961 = vld [vmem:[%s2167 + $0xc60] sm:$0xff]
        %2962 = vst [vmem:[%s2168 + $0xc60] sm:$0xff] %v2961
        %v2963 = vld [vmem:[%s2167 + $0xc64] sm:$0xff]
        %2964 = vst [vmem:[%s2168 + $0xc68] sm:$0xff] %v2963
        %v2965 = vld [vmem:[%s2167 + $0xc68] sm:$0xff]
        %2966 = vst [vmem:[%s2168 + $0xc70] sm:$0xff] %v2965
        %v2967 = vld [vmem:[%s2167 + $0xc6c] sm:$0xff]
        %2968 = vst [vmem:[%s2168 + $0xc78] sm:$0xff] %v2967
        %v2969 = vld [vmem:[%s2167 + $0xc80] sm:$0xff]
        %2970 = vst [vmem:[%s2168 + $0xc80] sm:$0xff] %v2969
        %v2971 = vld [vmem:[%s2167 + $0xc84] sm:$0xff]
        %2972 = vst [vmem:[%s2168 + $0xc88] sm:$0xff] %v2971
        %v2973 = vld [vmem:[%s2167 + $0xc88] sm:$0xff]
        %2974 = vst [vmem:[%s2168 + $0xc90] sm:$0xff] %v2973
        %v2975 = vld [vmem:[%s2167 + $0xc8c] sm:$0xff]
        %2976 = vst [vmem:[%s2168 + $0xc98] sm:$0xff] %v2975
        %v2977 = vld [vmem:[%s2167 + $0xca0] sm:$0xff]
        %2978 = vst [vmem:[%s2168 + $0xca0] sm:$0xff] %v2977
        %v2979 = vld [vmem:[%s2167 + $0xca4] sm:$0xff]
        %2980 = vst [vmem:[%s2168 + $0xca8] sm:$0xff] %v2979
        %v2981 = vld [vmem:[%s2167 + $0xca8] sm:$0xff]
        %2982 = vst [vmem:[%s2168 + $0xcb0] sm:$0xff] %v2981
        %v2983 = vld [vmem:[%s2167 + $0xcac] sm:$0xff]
        %2984 = vst [vmem:[%s2168 + $0xcb8] sm:$0xff] %v2983
        %v2985 = vld [vmem:[%s2167 + $0xcc0] sm:$0xff]
        %2986 = vst [vmem:[%s2168 + $0xcc0] sm:$0xff] %v2985
        %v2987 = vld [vmem:[%s2167 + $0xcc4] sm:$0xff]
        %2988 = vst [vmem:[%s2168 + $0xcc8] sm:$0xff] %v2987
        %v2989 = vld [vmem:[%s2167 + $0xcc8] sm:$0xff]
        %2990 = vst [vmem:[%s2168 + $0xcd0] sm:$0xff] %v2989
        %v2991 = vld [vmem:[%s2167 + $0xccc] sm:$0xff]
        %2992 = vst [vmem:[%s2168 + $0xcd8] sm:$0xff] %v2991
        %v2993 = vld [vmem:[%s2167 + $0xce0] sm:$0xff]
        %2994 = vst [vmem:[%s2168 + $0xce0] sm:$0xff] %v2993
        %v2995 = vld [vmem:[%s2167 + $0xce4] sm:$0xff]
        %2996 = vst [vmem:[%s2168 + $0xce8] sm:$0xff] %v2995
        %v2997 = vld [vmem:[%s2167 + $0xce8] sm:$0xff]
        %2998 = vst [vmem:[%s2168 + $0xcf0] sm:$0xff] %v2997
        %v2999 = vld [vmem:[%s2167 + $0xcec] sm:$0xff]
        %3000 = vst [vmem:[%s2168 + $0xcf8] sm:$0xff] %v2999
        %v3001 = vld [vmem:[%s2167 + $0xd00] sm:$0xff]
        %3002 = vst [vmem:[%s2168 + $0xd00] sm:$0xff] %v3001
        %v3003 = vld [vmem:[%s2167 + $0xd04] sm:$0xff]
        %3004 = vst [vmem:[%s2168 + $0xd08] sm:$0xff] %v3003
        %v3005 = vld [vmem:[%s2167 + $0xd08] sm:$0xff]
        %3006 = vst [vmem:[%s2168 + $0xd10] sm:$0xff] %v3005
        %v3007 = vld [vmem:[%s2167 + $0xd0c] sm:$0xff]
        %3008 = vst [vmem:[%s2168 + $0xd18] sm:$0xff] %v3007
        %v3009 = vld [vmem:[%s2167 + $0xd20] sm:$0xff]
        %3010 = vst [vmem:[%s2168 + $0xd20] sm:$0xff] %v3009
        %v3011 = vld [vmem:[%s2167 + $0xd24] sm:$0xff]
        %3012 = vst [vmem:[%s2168 + $0xd28] sm:$0xff] %v3011
        %v3013 = vld [vmem:[%s2167 + $0xd28] sm:$0xff]
        %3014 = vst [vmem:[%s2168 + $0xd30] sm:$0xff] %v3013
        %v3015 = vld [vmem:[%s2167 + $0xd2c] sm:$0xff]
        %3016 = vst [vmem:[%s2168 + $0xd38] sm:$0xff] %v3015
        %v3017 = vld [vmem:[%s2167 + $0xd40] sm:$0xff]
        %3018 = vst [vmem:[%s2168 + $0xd40] sm:$0xff] %v3017
        %v3019 = vld [vmem:[%s2167 + $0xd44] sm:$0xff]
        %3020 = vst [vmem:[%s2168 + $0xd48] sm:$0xff] %v3019
        %v3021 = vld [vmem:[%s2167 + $0xd48] sm:$0xff]
        %3022 = vst [vmem:[%s2168 + $0xd50] sm:$0xff] %v3021
        %v3023 = vld [vmem:[%s2167 + $0xd4c] sm:$0xff]
        %3024 = vst [vmem:[%s2168 + $0xd58] sm:$0xff] %v3023
        %v3025 = vld [vmem:[%s2167 + $0xd60] sm:$0xff]
        %3026 = vst [vmem:[%s2168 + $0xd60] sm:$0xff] %v3025
        %v3027 = vld [vmem:[%s2167 + $0xd64] sm:$0xff]
        %3028 = vst [vmem:[%s2168 + $0xd68] sm:$0xff] %v3027
        %v3029 = vld [vmem:[%s2167 + $0xd68] sm:$0xff]
        %3030 = vst [vmem:[%s2168 + $0xd70] sm:$0xff] %v3029
        %v3031 = vld [vmem:[%s2167 + $0xd6c] sm:$0xff]
        %3032 = vst [vmem:[%s2168 + $0xd78] sm:$0xff] %v3031
        %v3033 = vld [vmem:[%s2167 + $0xd80] sm:$0xff]
        %3034 = vst [vmem:[%s2168 + $0xd80] sm:$0xff] %v3033
        %v3035 = vld [vmem:[%s2167 + $0xd84] sm:$0xff]
        %3036 = vst [vmem:[%s2168 + $0xd88] sm:$0xff] %v3035
        %v3037 = vld [vmem:[%s2167 + $0xd88] sm:$0xff]
        %3038 = vst [vmem:[%s2168 + $0xd90] sm:$0xff] %v3037
        %v3039 = vld [vmem:[%s2167 + $0xd8c] sm:$0xff]
        %3040 = vst [vmem:[%s2168 + $0xd98] sm:$0xff] %v3039
        %v3041 = vld [vmem:[%s2167 + $0xda0] sm:$0xff]
        %3042 = vst [vmem:[%s2168 + $0xda0] sm:$0xff] %v3041
        %v3043 = vld [vmem:[%s2167 + $0xda4] sm:$0xff]
        %3044 = vst [vmem:[%s2168 + $0xda8] sm:$0xff] %v3043
        %v3045 = vld [vmem:[%s2167 + $0xda8] sm:$0xff]
        %3046 = vst [vmem:[%s2168 + $0xdb0] sm:$0xff] %v3045
        %v3047 = vld [vmem:[%s2167 + $0xdac] sm:$0xff]
        %3048 = vst [vmem:[%s2168 + $0xdb8] sm:$0xff] %v3047
        %v3049 = vld [vmem:[%s2167 + $0xdc0] sm:$0xff]
        %3050 = vst [vmem:[%s2168 + $0xdc0] sm:$0xff] %v3049
        %v3051 = vld [vmem:[%s2167 + $0xdc4] sm:$0xff]
        %3052 = vst [vmem:[%s2168 + $0xdc8] sm:$0xff] %v3051
        %v3053 = vld [vmem:[%s2167 + $0xdc8] sm:$0xff]
        %3054 = vst [vmem:[%s2168 + $0xdd0] sm:$0xff] %v3053
        %v3055 = vld [vmem:[%s2167 + $0xdcc] sm:$0xff]
        %3056 = vst [vmem:[%s2168 + $0xdd8] sm:$0xff] %v3055
        %v3057 = vld [vmem:[%s2167 + $0xde0] sm:$0xff]
        %3058 = vst [vmem:[%s2168 + $0xde0] sm:$0xff] %v3057
        %v3059 = vld [vmem:[%s2167 + $0xde4] sm:$0xff]
        %3060 = vst [vmem:[%s2168 + $0xde8] sm:$0xff] %v3059
        %v3061 = vld [vmem:[%s2167 + $0xde8] sm:$0xff]
        %3062 = vst [vmem:[%s2168 + $0xdf0] sm:$0xff] %v3061
        %v3063 = vld [vmem:[%s2167 + $0xdec] sm:$0xff]
        %3064 = vst [vmem:[%s2168 + $0xdf8] sm:$0xff] %v3063
        %v3065 = vld [vmem:[%s2167 + $0xe00] sm:$0xff]
        %3066 = vst [vmem:[%s2168 + $0xe00] sm:$0xff] %v3065
        %v3067 = vld [vmem:[%s2167 + $0xe04] sm:$0xff]
        %3068 = vst [vmem:[%s2168 + $0xe08] sm:$0xff] %v3067
        %v3069 = vld [vmem:[%s2167 + $0xe08] sm:$0xff]
        %3070 = vst [vmem:[%s2168 + $0xe10] sm:$0xff] %v3069
        %v3071 = vld [vmem:[%s2167 + $0xe0c] sm:$0xff]
        %3072 = vst [vmem:[%s2168 + $0xe18] sm:$0xff] %v3071
        %v3073 = vld [vmem:[%s2167 + $0xe20] sm:$0xff]
        %3074 = vst [vmem:[%s2168 + $0xe20] sm:$0xff] %v3073
        %v3075 = vld [vmem:[%s2167 + $0xe24] sm:$0xff]
        %3076 = vst [vmem:[%s2168 + $0xe28] sm:$0xff] %v3075
        %v3077 = vld [vmem:[%s2167 + $0xe28] sm:$0xff]
        %3078 = vst [vmem:[%s2168 + $0xe30] sm:$0xff] %v3077
        %v3079 = vld [vmem:[%s2167 + $0xe2c] sm:$0xff]
        %3080 = vst [vmem:[%s2168 + $0xe38] sm:$0xff] %v3079
        %v3081 = vld [vmem:[%s2167 + $0xe40] sm:$0xff]
        %3082 = vst [vmem:[%s2168 + $0xe40] sm:$0xff] %v3081
        %v3083 = vld [vmem:[%s2167 + $0xe44] sm:$0xff]
        %3084 = vst [vmem:[%s2168 + $0xe48] sm:$0xff] %v3083
        %v3085 = vld [vmem:[%s2167 + $0xe48] sm:$0xff]
        %3086 = vst [vmem:[%s2168 + $0xe50] sm:$0xff] %v3085
        %v3087 = vld [vmem:[%s2167 + $0xe4c] sm:$0xff]
        %3088 = vst [vmem:[%s2168 + $0xe58] sm:$0xff] %v3087
        %v3089 = vld [vmem:[%s2167 + $0xe60] sm:$0xff]
        %3090 = vst [vmem:[%s2168 + $0xe60] sm:$0xff] %v3089
        %v3091 = vld [vmem:[%s2167 + $0xe64] sm:$0xff]
        %3092 = vst [vmem:[%s2168 + $0xe68] sm:$0xff] %v3091
        %v3093 = vld [vmem:[%s2167 + $0xe68] sm:$0xff]
        %3094 = vst [vmem:[%s2168 + $0xe70] sm:$0xff] %v3093
        %v3095 = vld [vmem:[%s2167 + $0xe6c] sm:$0xff]
        %3096 = vst [vmem:[%s2168 + $0xe78] sm:$0xff] %v3095
        %v3097 = vld [vmem:[%s2167 + $0xe80] sm:$0xff]
        %3098 = vst [vmem:[%s2168 + $0xe80] sm:$0xff] %v3097
        %v3099 = vld [vmem:[%s2167 + $0xe84] sm:$0xff]
        %3100 = vst [vmem:[%s2168 + $0xe88] sm:$0xff] %v3099
        %v3101 = vld [vmem:[%s2167 + $0xe88] sm:$0xff]
        %3102 = vst [vmem:[%s2168 + $0xe90] sm:$0xff] %v3101
        %v3103 = vld [vmem:[%s2167 + $0xe8c] sm:$0xff]
        %3104 = vst [vmem:[%s2168 + $0xe98] sm:$0xff] %v3103
        %v3105 = vld [vmem:[%s2167 + $0xea0] sm:$0xff]
        %3106 = vst [vmem:[%s2168 + $0xea0] sm:$0xff] %v3105
        %v3107 = vld [vmem:[%s2167 + $0xea4] sm:$0xff]
        %3108 = vst [vmem:[%s2168 + $0xea8] sm:$0xff] %v3107
        %v3109 = vld [vmem:[%s2167 + $0xea8] sm:$0xff]
        %3110 = vst [vmem:[%s2168 + $0xeb0] sm:$0xff] %v3109
        %v3111 = vld [vmem:[%s2167 + $0xeac] sm:$0xff]
        %3112 = vst [vmem:[%s2168 + $0xeb8] sm:$0xff] %v3111
        %v3113 = vld [vmem:[%s2167 + $0xec0] sm:$0xff]
        %3114 = vst [vmem:[%s2168 + $0xec0] sm:$0xff] %v3113
        %v3115 = vld [vmem:[%s2167 + $0xec4] sm:$0xff]
        %3116 = vst [vmem:[%s2168 + $0xec8] sm:$0xff] %v3115
        %v3117 = vld [vmem:[%s2167 + $0xec8] sm:$0xff]
        %3118 = vst [vmem:[%s2168 + $0xed0] sm:$0xff] %v3117
        %v3119 = vld [vmem:[%s2167 + $0xecc] sm:$0xff]
        %3120 = vst [vmem:[%s2168 + $0xed8] sm:$0xff] %v3119
        %v3121 = vld [vmem:[%s2167 + $0xee0] sm:$0xff]
        %3122 = vst [vmem:[%s2168 + $0xee0] sm:$0xff] %v3121
        %v3123 = vld [vmem:[%s2167 + $0xee4] sm:$0xff]
        %3124 = vst [vmem:[%s2168 + $0xee8] sm:$0xff] %v3123
        %v3125 = vld [vmem:[%s2167 + $0xee8] sm:$0xff]
        %3126 = vst [vmem:[%s2168 + $0xef0] sm:$0xff] %v3125
        %v3127 = vld [vmem:[%s2167 + $0xeec] sm:$0xff]
        %3128 = vst [vmem:[%s2168 + $0xef8] sm:$0xff] %v3127
        %v3129 = vld [vmem:[%s2167 + $0xf00] sm:$0xff]
        %3130 = vst [vmem:[%s2168 + $0xf00] sm:$0xff] %v3129
        %v3131 = vld [vmem:[%s2167 + $0xf04] sm:$0xff]
        %3132 = vst [vmem:[%s2168 + $0xf08] sm:$0xff] %v3131
        %v3133 = vld [vmem:[%s2167 + $0xf08] sm:$0xff]
        %3134 = vst [vmem:[%s2168 + $0xf10] sm:$0xff] %v3133
        %v3135 = vld [vmem:[%s2167 + $0xf0c] sm:$0xff]
        %3136 = vst [vmem:[%s2168 + $0xf18] sm:$0xff] %v3135
        %v3137 = vld [vmem:[%s2167 + $0xf20] sm:$0xff]
        %3138 = vst [vmem:[%s2168 + $0xf20] sm:$0xff] %v3137
        %v3139 = vld [vmem:[%s2167 + $0xf24] sm:$0xff]
        %3140 = vst [vmem:[%s2168 + $0xf28] sm:$0xff] %v3139
        %v3141 = vld [vmem:[%s2167 + $0xf28] sm:$0xff]
        %3142 = vst [vmem:[%s2168 + $0xf30] sm:$0xff] %v3141
        %v3143 = vld [vmem:[%s2167 + $0xf2c] sm:$0xff]
        %3144 = vst [vmem:[%s2168 + $0xf38] sm:$0xff] %v3143
        %v3145 = vld [vmem:[%s2167 + $0xf40] sm:$0xff]
        %3146 = vst [vmem:[%s2168 + $0xf40] sm:$0xff] %v3145
        %v3147 = vld [vmem:[%s2167 + $0xf44] sm:$0xff]
        %3148 = vst [vmem:[%s2168 + $0xf48] sm:$0xff] %v3147
        %v3149 = vld [vmem:[%s2167 + $0xf48] sm:$0xff]
        %3150 = vst [vmem:[%s2168 + $0xf50] sm:$0xff] %v3149
        %v3151 = vld [vmem:[%s2167 + $0xf4c] sm:$0xff]
        %3152 = vst [vmem:[%s2168 + $0xf58] sm:$0xff] %v3151
        %v3153 = vld [vmem:[%s2167 + $0xf60] sm:$0xff]
        %3154 = vst [vmem:[%s2168 + $0xf60] sm:$0xff] %v3153
        %v3155 = vld [vmem:[%s2167 + $0xf64] sm:$0xff]
        %3156 = vst [vmem:[%s2168 + $0xf68] sm:$0xff] %v3155
        %v3157 = vld [vmem:[%s2167 + $0xf68] sm:$0xff]
        %3158 = vst [vmem:[%s2168 + $0xf70] sm:$0xff] %v3157
        %v3159 = vld [vmem:[%s2167 + $0xf6c] sm:$0xff]
        %3160 = vst [vmem:[%s2168 + $0xf78] sm:$0xff] %v3159
        %v3161 = vld [vmem:[%s2167 + $0xf80] sm:$0xff]
        %3162 = vst [vmem:[%s2168 + $0xf80] sm:$0xff] %v3161
        %v3163 = vld [vmem:[%s2167 + $0xf84] sm:$0xff]
        %3164 = vst [vmem:[%s2168 + $0xf88] sm:$0xff] %v3163
        %v3165 = vld [vmem:[%s2167 + $0xf88] sm:$0xff]
        %3166 = vst [vmem:[%s2168 + $0xf90] sm:$0xff] %v3165
        %v3167 = vld [vmem:[%s2167 + $0xf8c] sm:$0xff]
        %3168 = vst [vmem:[%s2168 + $0xf98] sm:$0xff] %v3167
        %v3169 = vld [vmem:[%s2167 + $0xfa0] sm:$0xff]
        %3170 = vst [vmem:[%s2168 + $0xfa0] sm:$0xff] %v3169
        %v3171 = vld [vmem:[%s2167 + $0xfa4] sm:$0xff]
        %3172 = vst [vmem:[%s2168 + $0xfa8] sm:$0xff] %v3171
        %v3173 = vld [vmem:[%s2167 + $0xfa8] sm:$0xff]
        %3174 = vst [vmem:[%s2168 + $0xfb0] sm:$0xff] %v3173
        %v3175 = vld [vmem:[%s2167 + $0xfac] sm:$0xff]
        %3176 = vst [vmem:[%s2168 + $0xfb8] sm:$0xff] %v3175
        %v3177 = vld [vmem:[%s2167 + $0xfc0] sm:$0xff]
        %3178 = vst [vmem:[%s2168 + $0xfc0] sm:$0xff] %v3177
        %v3179 = vld [vmem:[%s2167 + $0xfc4] sm:$0xff]
        %3180 = vst [vmem:[%s2168 + $0xfc8] sm:$0xff] %v3179
        %v3181 = vld [vmem:[%s2167 + $0xfc8] sm:$0xff]
        %3182 = vst [vmem:[%s2168 + $0xfd0] sm:$0xff] %v3181
        %v3183 = vld [vmem:[%s2167 + $0xfcc] sm:$0xff]
        %3184 = vst [vmem:[%s2168 + $0xfd8] sm:$0xff] %v3183
        %v3185 = vld [vmem:[%s2167 + $0xfe0] sm:$0xff]
        %3186 = vst [vmem:[%s2168 + $0xfe0] sm:$0xff] %v3185
        %v3187 = vld [vmem:[%s2167 + $0xfe4] sm:$0xff]
        %3188 = vst [vmem:[%s2168 + $0xfe8] sm:$0xff] %v3187
        %v3189 = vld [vmem:[%s2167 + $0xfe8] sm:$0xff]
        %3190 = vst [vmem:[%s2168 + $0xff0] sm:$0xff] %v3189
        %v3191 = vld [vmem:[%s2167 + $0xfec] sm:$0xff]
        %3192 = vst [vmem:[%s2168 + $0xff8] sm:$0xff] %v3191
        %s3193 = sadd.s32 1, %s2166
        %p3194 = scmp.ge.s32.totalorder %s3193, %s2153
        %s3195 = scalar_select %p3194, 0, %s3193
        %s3196 = sadd.s32 1, %s2165
        %s3197 = scalar_select %p3194, %s3196, %s2165
        %p3198 = scmp.ge.s32.totalorder %s3197, 2
        %s3199 = scalar_select %p3198, 0, %s3197
        %s3200 = smul.u32 %s3199, 16
        %s3201 = smul.u32 %s3195, 8
        %s3202 = sadd.s32 %s3200, %s3201
        %s3203 = smul.u32 %s3199, 4
        %s3204 = smul.u32 %s3195, 8
        %s3205 = sadd.s32 %s3203, %s3204
        %s3206 = scalar_lea.vmem %s4, %s3202
        %s3207 = scalar_lea.vmem [#allocation2], %s3205
      $region72: #{_lambda_.1} parent=66 // loop_footer
        %s2162 = sadd.s32 %s2160, 1
      $region73: #{_lambda_.1} parent=66 // loop_footer_branch
        %2159 = sbr.rel target = $region69
      $region74: #{_lambda_.1} parent=66 // loop_exit
        _
      %s3208 = sshllo.u32 0, %s2148
      loop: start=0, step=1, limit=2
      $region75: #{_lambda_.1} parent=66 // loop_pre_header
        _
      $region76: #{_lambda_.1} parent=66 // loop_header
        %s3212 = sphi 0, %s3216
        %p3213 = scmp.ge.s32.totalorder %s3212, 2
        %s3217 = sphi 0, %s4246
        %s3218 = sphi %s2150, %s4249
        %s3219 = sphi %s2152, %s4250
      $region77: #{_lambda_.1} parent=66 // loop_header_branch
        %3215 = sbr.rel (%p3213) target = $region81
      $region78: #{_lambda_.1} parent=66 // loop_body
        %v3220 = vld [vmem:[%s3218] sm:%s3208]
        %3221 = vst [vmem:[%s3219] sm:%s3208] %v3220
        %v3222 = vld [vmem:[%s3218 + $0x4] sm:%s3208]
        %3223 = vst [vmem:[%s3219 + $0x8] sm:%s3208] %v3222
        %v3224 = vld [vmem:[%s3218 + $0x8] sm:%s3208]
        %3225 = vst [vmem:[%s3219 + $0x10] sm:%s3208] %v3224
        %v3226 = vld [vmem:[%s3218 + $0xc] sm:%s3208]
        %3227 = vst [vmem:[%s3219 + $0x18] sm:%s3208] %v3226
        %v3228 = vld [vmem:[%s3218 + $0x20] sm:%s3208]
        %3229 = vst [vmem:[%s3219 + $0x20] sm:%s3208] %v3228
        %v3230 = vld [vmem:[%s3218 + $0x24] sm:%s3208]
        %3231 = vst [vmem:[%s3219 + $0x28] sm:%s3208] %v3230
        %v3232 = vld [vmem:[%s3218 + $0x28] sm:%s3208]
        %3233 = vst [vmem:[%s3219 + $0x30] sm:%s3208] %v3232
        %v3234 = vld [vmem:[%s3218 + $0x2c] sm:%s3208]
        %3235 = vst [vmem:[%s3219 + $0x38] sm:%s3208] %v3234
        %v3236 = vld [vmem:[%s3218 + $0x40] sm:%s3208]
        %3237 = vst [vmem:[%s3219 + $0x40] sm:%s3208] %v3236
        %v3238 = vld [vmem:[%s3218 + $0x44] sm:%s3208]
        %3239 = vst [vmem:[%s3219 + $0x48] sm:%s3208] %v3238
        %v3240 = vld [vmem:[%s3218 + $0x48] sm:%s3208]
        %3241 = vst [vmem:[%s3219 + $0x50] sm:%s3208] %v3240
        %v3242 = vld [vmem:[%s3218 + $0x4c] sm:%s3208]
        %3243 = vst [vmem:[%s3219 + $0x58] sm:%s3208] %v3242
        %v3244 = vld [vmem:[%s3218 + $0x60] sm:%s3208]
        %3245 = vst [vmem:[%s3219 + $0x60] sm:%s3208] %v3244
        %v3246 = vld [vmem:[%s3218 + $0x64] sm:%s3208]
        %3247 = vst [vmem:[%s3219 + $0x68] sm:%s3208] %v3246
        %v3248 = vld [vmem:[%s3218 + $0x68] sm:%s3208]
        %3249 = vst [vmem:[%s3219 + $0x70] sm:%s3208] %v3248
        %v3250 = vld [vmem:[%s3218 + $0x6c] sm:%s3208]
        %3251 = vst [vmem:[%s3219 + $0x78] sm:%s3208] %v3250
        %v3252 = vld [vmem:[%s3218 + $0x80] sm:%s3208]
        %3253 = vst [vmem:[%s3219 + $0x80] sm:%s3208] %v3252
        %v3254 = vld [vmem:[%s3218 + $0x84] sm:%s3208]
        %3255 = vst [vmem:[%s3219 + $0x88] sm:%s3208] %v3254
        %v3256 = vld [vmem:[%s3218 + $0x88] sm:%s3208]
        %3257 = vst [vmem:[%s3219 + $0x90] sm:%s3208] %v3256
        %v3258 = vld [vmem:[%s3218 + $0x8c] sm:%s3208]
        %3259 = vst [vmem:[%s3219 + $0x98] sm:%s3208] %v3258
        %v3260 = vld [vmem:[%s3218 + $0xa0] sm:%s3208]
        %3261 = vst [vmem:[%s3219 + $0xa0] sm:%s3208] %v3260
        %v3262 = vld [vmem:[%s3218 + $0xa4] sm:%s3208]
        %3263 = vst [vmem:[%s3219 + $0xa8] sm:%s3208] %v3262
        %v3264 = vld [vmem:[%s3218 + $0xa8] sm:%s3208]
        %3265 = vst [vmem:[%s3219 + $0xb0] sm:%s3208] %v3264
        %v3266 = vld [vmem:[%s3218 + $0xac] sm:%s3208]
        %3267 = vst [vmem:[%s3219 + $0xb8] sm:%s3208] %v3266
        %v3268 = vld [vmem:[%s3218 + $0xc0] sm:%s3208]
        %3269 = vst [vmem:[%s3219 + $0xc0] sm:%s3208] %v3268
        %v3270 = vld [vmem:[%s3218 + $0xc4] sm:%s3208]
        %3271 = vst [vmem:[%s3219 + $0xc8] sm:%s3208] %v3270
        %v3272 = vld [vmem:[%s3218 + $0xc8] sm:%s3208]
        %3273 = vst [vmem:[%s3219 + $0xd0] sm:%s3208] %v3272
        %v3274 = vld [vmem:[%s3218 + $0xcc] sm:%s3208]
        %3275 = vst [vmem:[%s3219 + $0xd8] sm:%s3208] %v3274
        %v3276 = vld [vmem:[%s3218 + $0xe0] sm:%s3208]
        %3277 = vst [vmem:[%s3219 + $0xe0] sm:%s3208] %v3276
        %v3278 = vld [vmem:[%s3218 + $0xe4] sm:%s3208]
        %3279 = vst [vmem:[%s3219 + $0xe8] sm:%s3208] %v3278
        %v3280 = vld [vmem:[%s3218 + $0xe8] sm:%s3208]
        %3281 = vst [vmem:[%s3219 + $0xf0] sm:%s3208] %v3280
        %v3282 = vld [vmem:[%s3218 + $0xec] sm:%s3208]
        %3283 = vst [vmem:[%s3219 + $0xf8] sm:%s3208] %v3282
        %v3284 = vld [vmem:[%s3218 + $0x100] sm:%s3208]
        %3285 = vst [vmem:[%s3219 + $0x100] sm:%s3208] %v3284
        %v3286 = vld [vmem:[%s3218 + $0x104] sm:%s3208]
        %3287 = vst [vmem:[%s3219 + $0x108] sm:%s3208] %v3286
        %v3288 = vld [vmem:[%s3218 + $0x108] sm:%s3208]
        %3289 = vst [vmem:[%s3219 + $0x110] sm:%s3208] %v3288
        %v3290 = vld [vmem:[%s3218 + $0x10c] sm:%s3208]
        %3291 = vst [vmem:[%s3219 + $0x118] sm:%s3208] %v3290
        %v3292 = vld [vmem:[%s3218 + $0x120] sm:%s3208]
        %3293 = vst [vmem:[%s3219 + $0x120] sm:%s3208] %v3292
        %v3294 = vld [vmem:[%s3218 + $0x124] sm:%s3208]
        %3295 = vst [vmem:[%s3219 + $0x128] sm:%s3208] %v3294
        %v3296 = vld [vmem:[%s3218 + $0x128] sm:%s3208]
        %3297 = vst [vmem:[%s3219 + $0x130] sm:%s3208] %v3296
        %v3298 = vld [vmem:[%s3218 + $0x12c] sm:%s3208]
        %3299 = vst [vmem:[%s3219 + $0x138] sm:%s3208] %v3298
        %v3300 = vld [vmem:[%s3218 + $0x140] sm:%s3208]
        %3301 = vst [vmem:[%s3219 + $0x140] sm:%s3208] %v3300
        %v3302 = vld [vmem:[%s3218 + $0x144] sm:%s3208]
        %3303 = vst [vmem:[%s3219 + $0x148] sm:%s3208] %v3302
        %v3304 = vld [vmem:[%s3218 + $0x148] sm:%s3208]
        %3305 = vst [vmem:[%s3219 + $0x150] sm:%s3208] %v3304
        %v3306 = vld [vmem:[%s3218 + $0x14c] sm:%s3208]
        %3307 = vst [vmem:[%s3219 + $0x158] sm:%s3208] %v3306
        %v3308 = vld [vmem:[%s3218 + $0x160] sm:%s3208]
        %3309 = vst [vmem:[%s3219 + $0x160] sm:%s3208] %v3308
        %v3310 = vld [vmem:[%s3218 + $0x164] sm:%s3208]
        %3311 = vst [vmem:[%s3219 + $0x168] sm:%s3208] %v3310
        %v3312 = vld [vmem:[%s3218 + $0x168] sm:%s3208]
        %3313 = vst [vmem:[%s3219 + $0x170] sm:%s3208] %v3312
        %v3314 = vld [vmem:[%s3218 + $0x16c] sm:%s3208]
        %3315 = vst [vmem:[%s3219 + $0x178] sm:%s3208] %v3314
        %v3316 = vld [vmem:[%s3218 + $0x180] sm:%s3208]
        %3317 = vst [vmem:[%s3219 + $0x180] sm:%s3208] %v3316
        %v3318 = vld [vmem:[%s3218 + $0x184] sm:%s3208]
        %3319 = vst [vmem:[%s3219 + $0x188] sm:%s3208] %v3318
        %v3320 = vld [vmem:[%s3218 + $0x188] sm:%s3208]
        %3321 = vst [vmem:[%s3219 + $0x190] sm:%s3208] %v3320
        %v3322 = vld [vmem:[%s3218 + $0x18c] sm:%s3208]
        %3323 = vst [vmem:[%s3219 + $0x198] sm:%s3208] %v3322
        %v3324 = vld [vmem:[%s3218 + $0x1a0] sm:%s3208]
        %3325 = vst [vmem:[%s3219 + $0x1a0] sm:%s3208] %v3324
        %v3326 = vld [vmem:[%s3218 + $0x1a4] sm:%s3208]
        %3327 = vst [vmem:[%s3219 + $0x1a8] sm:%s3208] %v3326
        %v3328 = vld [vmem:[%s3218 + $0x1a8] sm:%s3208]
        %3329 = vst [vmem:[%s3219 + $0x1b0] sm:%s3208] %v3328
        %v3330 = vld [vmem:[%s3218 + $0x1ac] sm:%s3208]
        %3331 = vst [vmem:[%s3219 + $0x1b8] sm:%s3208] %v3330
        %v3332 = vld [vmem:[%s3218 + $0x1c0] sm:%s3208]
        %3333 = vst [vmem:[%s3219 + $0x1c0] sm:%s3208] %v3332
        %v3334 = vld [vmem:[%s3218 + $0x1c4] sm:%s3208]
        %3335 = vst [vmem:[%s3219 + $0x1c8] sm:%s3208] %v3334
        %v3336 = vld [vmem:[%s3218 + $0x1c8] sm:%s3208]
        %3337 = vst [vmem:[%s3219 + $0x1d0] sm:%s3208] %v3336
        %v3338 = vld [vmem:[%s3218 + $0x1cc] sm:%s3208]
        %3339 = vst [vmem:[%s3219 + $0x1d8] sm:%s3208] %v3338
        %v3340 = vld [vmem:[%s3218 + $0x1e0] sm:%s3208]
        %3341 = vst [vmem:[%s3219 + $0x1e0] sm:%s3208] %v3340
        %v3342 = vld [vmem:[%s3218 + $0x1e4] sm:%s3208]
        %3343 = vst [vmem:[%s3219 + $0x1e8] sm:%s3208] %v3342
        %v3344 = vld [vmem:[%s3218 + $0x1e8] sm:%s3208]
        %3345 = vst [vmem:[%s3219 + $0x1f0] sm:%s3208] %v3344
        %v3346 = vld [vmem:[%s3218 + $0x1ec] sm:%s3208]
        %3347 = vst [vmem:[%s3219 + $0x1f8] sm:%s3208] %v3346
        %v3348 = vld [vmem:[%s3218 + $0x200] sm:%s3208]
        %3349 = vst [vmem:[%s3219 + $0x200] sm:%s3208] %v3348
        %v3350 = vld [vmem:[%s3218 + $0x204] sm:%s3208]
        %3351 = vst [vmem:[%s3219 + $0x208] sm:%s3208] %v3350
        %v3352 = vld [vmem:[%s3218 + $0x208] sm:%s3208]
        %3353 = vst [vmem:[%s3219 + $0x210] sm:%s3208] %v3352
        %v3354 = vld [vmem:[%s3218 + $0x20c] sm:%s3208]
        %3355 = vst [vmem:[%s3219 + $0x218] sm:%s3208] %v3354
        %v3356 = vld [vmem:[%s3218 + $0x220] sm:%s3208]
        %3357 = vst [vmem:[%s3219 + $0x220] sm:%s3208] %v3356
        %v3358 = vld [vmem:[%s3218 + $0x224] sm:%s3208]
        %3359 = vst [vmem:[%s3219 + $0x228] sm:%s3208] %v3358
        %v3360 = vld [vmem:[%s3218 + $0x228] sm:%s3208]
        %3361 = vst [vmem:[%s3219 + $0x230] sm:%s3208] %v3360
        %v3362 = vld [vmem:[%s3218 + $0x22c] sm:%s3208]
        %3363 = vst [vmem:[%s3219 + $0x238] sm:%s3208] %v3362
        %v3364 = vld [vmem:[%s3218 + $0x240] sm:%s3208]
        %3365 = vst [vmem:[%s3219 + $0x240] sm:%s3208] %v3364
        %v3366 = vld [vmem:[%s3218 + $0x244] sm:%s3208]
        %3367 = vst [vmem:[%s3219 + $0x248] sm:%s3208] %v3366
        %v3368 = vld [vmem:[%s3218 + $0x248] sm:%s3208]
        %3369 = vst [vmem:[%s3219 + $0x250] sm:%s3208] %v3368
        %v3370 = vld [vmem:[%s3218 + $0x24c] sm:%s3208]
        %3371 = vst [vmem:[%s3219 + $0x258] sm:%s3208] %v3370
        %v3372 = vld [vmem:[%s3218 + $0x260] sm:%s3208]
        %3373 = vst [vmem:[%s3219 + $0x260] sm:%s3208] %v3372
        %v3374 = vld [vmem:[%s3218 + $0x264] sm:%s3208]
        %3375 = vst [vmem:[%s3219 + $0x268] sm:%s3208] %v3374
        %v3376 = vld [vmem:[%s3218 + $0x268] sm:%s3208]
        %3377 = vst [vmem:[%s3219 + $0x270] sm:%s3208] %v3376
        %v3378 = vld [vmem:[%s3218 + $0x26c] sm:%s3208]
        %3379 = vst [vmem:[%s3219 + $0x278] sm:%s3208] %v3378
        %v3380 = vld [vmem:[%s3218 + $0x280] sm:%s3208]
        %3381 = vst [vmem:[%s3219 + $0x280] sm:%s3208] %v3380
        %v3382 = vld [vmem:[%s3218 + $0x284] sm:%s3208]
        %3383 = vst [vmem:[%s3219 + $0x288] sm:%s3208] %v3382
        %v3384 = vld [vmem:[%s3218 + $0x288] sm:%s3208]
        %3385 = vst [vmem:[%s3219 + $0x290] sm:%s3208] %v3384
        %v3386 = vld [vmem:[%s3218 + $0x28c] sm:%s3208]
        %3387 = vst [vmem:[%s3219 + $0x298] sm:%s3208] %v3386
        %v3388 = vld [vmem:[%s3218 + $0x2a0] sm:%s3208]
        %3389 = vst [vmem:[%s3219 + $0x2a0] sm:%s3208] %v3388
        %v3390 = vld [vmem:[%s3218 + $0x2a4] sm:%s3208]
        %3391 = vst [vmem:[%s3219 + $0x2a8] sm:%s3208] %v3390
        %v3392 = vld [vmem:[%s3218 + $0x2a8] sm:%s3208]
        %3393 = vst [vmem:[%s3219 + $0x2b0] sm:%s3208] %v3392
        %v3394 = vld [vmem:[%s3218 + $0x2ac] sm:%s3208]
        %3395 = vst [vmem:[%s3219 + $0x2b8] sm:%s3208] %v3394
        %v3396 = vld [vmem:[%s3218 + $0x2c0] sm:%s3208]
        %3397 = vst [vmem:[%s3219 + $0x2c0] sm:%s3208] %v3396
        %v3398 = vld [vmem:[%s3218 + $0x2c4] sm:%s3208]
        %3399 = vst [vmem:[%s3219 + $0x2c8] sm:%s3208] %v3398
        %v3400 = vld [vmem:[%s3218 + $0x2c8] sm:%s3208]
        %3401 = vst [vmem:[%s3219 + $0x2d0] sm:%s3208] %v3400
        %v3402 = vld [vmem:[%s3218 + $0x2cc] sm:%s3208]
        %3403 = vst [vmem:[%s3219 + $0x2d8] sm:%s3208] %v3402
        %v3404 = vld [vmem:[%s3218 + $0x2e0] sm:%s3208]
        %3405 = vst [vmem:[%s3219 + $0x2e0] sm:%s3208] %v3404
        %v3406 = vld [vmem:[%s3218 + $0x2e4] sm:%s3208]
        %3407 = vst [vmem:[%s3219 + $0x2e8] sm:%s3208] %v3406
        %v3408 = vld [vmem:[%s3218 + $0x2e8] sm:%s3208]
        %3409 = vst [vmem:[%s3219 + $0x2f0] sm:%s3208] %v3408
        %v3410 = vld [vmem:[%s3218 + $0x2ec] sm:%s3208]
        %3411 = vst [vmem:[%s3219 + $0x2f8] sm:%s3208] %v3410
        %v3412 = vld [vmem:[%s3218 + $0x300] sm:%s3208]
        %3413 = vst [vmem:[%s3219 + $0x300] sm:%s3208] %v3412
        %v3414 = vld [vmem:[%s3218 + $0x304] sm:%s3208]
        %3415 = vst [vmem:[%s3219 + $0x308] sm:%s3208] %v3414
        %v3416 = vld [vmem:[%s3218 + $0x308] sm:%s3208]
        %3417 = vst [vmem:[%s3219 + $0x310] sm:%s3208] %v3416
        %v3418 = vld [vmem:[%s3218 + $0x30c] sm:%s3208]
        %3419 = vst [vmem:[%s3219 + $0x318] sm:%s3208] %v3418
        %v3420 = vld [vmem:[%s3218 + $0x320] sm:%s3208]
        %3421 = vst [vmem:[%s3219 + $0x320] sm:%s3208] %v3420
        %v3422 = vld [vmem:[%s3218 + $0x324] sm:%s3208]
        %3423 = vst [vmem:[%s3219 + $0x328] sm:%s3208] %v3422
        %v3424 = vld [vmem:[%s3218 + $0x328] sm:%s3208]
        %3425 = vst [vmem:[%s3219 + $0x330] sm:%s3208] %v3424
        %v3426 = vld [vmem:[%s3218 + $0x32c] sm:%s3208]
        %3427 = vst [vmem:[%s3219 + $0x338] sm:%s3208] %v3426
        %v3428 = vld [vmem:[%s3218 + $0x340] sm:%s3208]
        %3429 = vst [vmem:[%s3219 + $0x340] sm:%s3208] %v3428
        %v3430 = vld [vmem:[%s3218 + $0x344] sm:%s3208]
        %3431 = vst [vmem:[%s3219 + $0x348] sm:%s3208] %v3430
        %v3432 = vld [vmem:[%s3218 + $0x348] sm:%s3208]
        %3433 = vst [vmem:[%s3219 + $0x350] sm:%s3208] %v3432
        %v3434 = vld [vmem:[%s3218 + $0x34c] sm:%s3208]
        %3435 = vst [vmem:[%s3219 + $0x358] sm:%s3208] %v3434
        %v3436 = vld [vmem:[%s3218 + $0x360] sm:%s3208]
        %3437 = vst [vmem:[%s3219 + $0x360] sm:%s3208] %v3436
        %v3438 = vld [vmem:[%s3218 + $0x364] sm:%s3208]
        %3439 = vst [vmem:[%s3219 + $0x368] sm:%s3208] %v3438
        %v3440 = vld [vmem:[%s3218 + $0x368] sm:%s3208]
        %3441 = vst [vmem:[%s3219 + $0x370] sm:%s3208] %v3440
        %v3442 = vld [vmem:[%s3218 + $0x36c] sm:%s3208]
        %3443 = vst [vmem:[%s3219 + $0x378] sm:%s3208] %v3442
        %v3444 = vld [vmem:[%s3218 + $0x380] sm:%s3208]
        %3445 = vst [vmem:[%s3219 + $0x380] sm:%s3208] %v3444
        %v3446 = vld [vmem:[%s3218 + $0x384] sm:%s3208]
        %3447 = vst [vmem:[%s3219 + $0x388] sm:%s3208] %v3446
        %v3448 = vld [vmem:[%s3218 + $0x388] sm:%s3208]
        %3449 = vst [vmem:[%s3219 + $0x390] sm:%s3208] %v3448
        %v3450 = vld [vmem:[%s3218 + $0x38c] sm:%s3208]
        %3451 = vst [vmem:[%s3219 + $0x398] sm:%s3208] %v3450
        %v3452 = vld [vmem:[%s3218 + $0x3a0] sm:%s3208]
        %3453 = vst [vmem:[%s3219 + $0x3a0] sm:%s3208] %v3452
        %v3454 = vld [vmem:[%s3218 + $0x3a4] sm:%s3208]
        %3455 = vst [vmem:[%s3219 + $0x3a8] sm:%s3208] %v3454
        %v3456 = vld [vmem:[%s3218 + $0x3a8] sm:%s3208]
        %3457 = vst [vmem:[%s3219 + $0x3b0] sm:%s3208] %v3456
        %v3458 = vld [vmem:[%s3218 + $0x3ac] sm:%s3208]
        %3459 = vst [vmem:[%s3219 + $0x3b8] sm:%s3208] %v3458
        %v3460 = vld [vmem:[%s3218 + $0x3c0] sm:%s3208]
        %3461 = vst [vmem:[%s3219 + $0x3c0] sm:%s3208] %v3460
        %v3462 = vld [vmem:[%s3218 + $0x3c4] sm:%s3208]
        %3463 = vst [vmem:[%s3219 + $0x3c8] sm:%s3208] %v3462
        %v3464 = vld [vmem:[%s3218 + $0x3c8] sm:%s3208]
        %3465 = vst [vmem:[%s3219 + $0x3d0] sm:%s3208] %v3464
        %v3466 = vld [vmem:[%s3218 + $0x3cc] sm:%s3208]
        %3467 = vst [vmem:[%s3219 + $0x3d8] sm:%s3208] %v3466
        %v3468 = vld [vmem:[%s3218 + $0x3e0] sm:%s3208]
        %3469 = vst [vmem:[%s3219 + $0x3e0] sm:%s3208] %v3468
        %v3470 = vld [vmem:[%s3218 + $0x3e4] sm:%s3208]
        %3471 = vst [vmem:[%s3219 + $0x3e8] sm:%s3208] %v3470
        %v3472 = vld [vmem:[%s3218 + $0x3e8] sm:%s3208]
        %3473 = vst [vmem:[%s3219 + $0x3f0] sm:%s3208] %v3472
        %v3474 = vld [vmem:[%s3218 + $0x3ec] sm:%s3208]
        %3475 = vst [vmem:[%s3219 + $0x3f8] sm:%s3208] %v3474
        %v3476 = vld [vmem:[%s3218 + $0x400] sm:%s3208]
        %3477 = vst [vmem:[%s3219 + $0x400] sm:%s3208] %v3476
        %v3478 = vld [vmem:[%s3218 + $0x404] sm:%s3208]
        %3479 = vst [vmem:[%s3219 + $0x408] sm:%s3208] %v3478
        %v3480 = vld [vmem:[%s3218 + $0x408] sm:%s3208]
        %3481 = vst [vmem:[%s3219 + $0x410] sm:%s3208] %v3480
        %v3482 = vld [vmem:[%s3218 + $0x40c] sm:%s3208]
        %3483 = vst [vmem:[%s3219 + $0x418] sm:%s3208] %v3482
        %v3484 = vld [vmem:[%s3218 + $0x420] sm:%s3208]
        %3485 = vst [vmem:[%s3219 + $0x420] sm:%s3208] %v3484
        %v3486 = vld [vmem:[%s3218 + $0x424] sm:%s3208]
        %3487 = vst [vmem:[%s3219 + $0x428] sm:%s3208] %v3486
        %v3488 = vld [vmem:[%s3218 + $0x428] sm:%s3208]
        %3489 = vst [vmem:[%s3219 + $0x430] sm:%s3208] %v3488
        %v3490 = vld [vmem:[%s3218 + $0x42c] sm:%s3208]
        %3491 = vst [vmem:[%s3219 + $0x438] sm:%s3208] %v3490
        %v3492 = vld [vmem:[%s3218 + $0x440] sm:%s3208]
        %3493 = vst [vmem:[%s3219 + $0x440] sm:%s3208] %v3492
        %v3494 = vld [vmem:[%s3218 + $0x444] sm:%s3208]
        %3495 = vst [vmem:[%s3219 + $0x448] sm:%s3208] %v3494
        %v3496 = vld [vmem:[%s3218 + $0x448] sm:%s3208]
        %3497 = vst [vmem:[%s3219 + $0x450] sm:%s3208] %v3496
        %v3498 = vld [vmem:[%s3218 + $0x44c] sm:%s3208]
        %3499 = vst [vmem:[%s3219 + $0x458] sm:%s3208] %v3498
        %v3500 = vld [vmem:[%s3218 + $0x460] sm:%s3208]
        %3501 = vst [vmem:[%s3219 + $0x460] sm:%s3208] %v3500
        %v3502 = vld [vmem:[%s3218 + $0x464] sm:%s3208]
        %3503 = vst [vmem:[%s3219 + $0x468] sm:%s3208] %v3502
        %v3504 = vld [vmem:[%s3218 + $0x468] sm:%s3208]
        %3505 = vst [vmem:[%s3219 + $0x470] sm:%s3208] %v3504
        %v3506 = vld [vmem:[%s3218 + $0x46c] sm:%s3208]
        %3507 = vst [vmem:[%s3219 + $0x478] sm:%s3208] %v3506
        %v3508 = vld [vmem:[%s3218 + $0x480] sm:%s3208]
        %3509 = vst [vmem:[%s3219 + $0x480] sm:%s3208] %v3508
        %v3510 = vld [vmem:[%s3218 + $0x484] sm:%s3208]
        %3511 = vst [vmem:[%s3219 + $0x488] sm:%s3208] %v3510
        %v3512 = vld [vmem:[%s3218 + $0x488] sm:%s3208]
        %3513 = vst [vmem:[%s3219 + $0x490] sm:%s3208] %v3512
        %v3514 = vld [vmem:[%s3218 + $0x48c] sm:%s3208]
        %3515 = vst [vmem:[%s3219 + $0x498] sm:%s3208] %v3514
        %v3516 = vld [vmem:[%s3218 + $0x4a0] sm:%s3208]
        %3517 = vst [vmem:[%s3219 + $0x4a0] sm:%s3208] %v3516
        %v3518 = vld [vmem:[%s3218 + $0x4a4] sm:%s3208]
        %3519 = vst [vmem:[%s3219 + $0x4a8] sm:%s3208] %v3518
        %v3520 = vld [vmem:[%s3218 + $0x4a8] sm:%s3208]
        %3521 = vst [vmem:[%s3219 + $0x4b0] sm:%s3208] %v3520
        %v3522 = vld [vmem:[%s3218 + $0x4ac] sm:%s3208]
        %3523 = vst [vmem:[%s3219 + $0x4b8] sm:%s3208] %v3522
        %v3524 = vld [vmem:[%s3218 + $0x4c0] sm:%s3208]
        %3525 = vst [vmem:[%s3219 + $0x4c0] sm:%s3208] %v3524
        %v3526 = vld [vmem:[%s3218 + $0x4c4] sm:%s3208]
        %3527 = vst [vmem:[%s3219 + $0x4c8] sm:%s3208] %v3526
        %v3528 = vld [vmem:[%s3218 + $0x4c8] sm:%s3208]
        %3529 = vst [vmem:[%s3219 + $0x4d0] sm:%s3208] %v3528
        %v3530 = vld [vmem:[%s3218 + $0x4cc] sm:%s3208]
        %3531 = vst [vmem:[%s3219 + $0x4d8] sm:%s3208] %v3530
        %v3532 = vld [vmem:[%s3218 + $0x4e0] sm:%s3208]
        %3533 = vst [vmem:[%s3219 + $0x4e0] sm:%s3208] %v3532
        %v3534 = vld [vmem:[%s3218 + $0x4e4] sm:%s3208]
        %3535 = vst [vmem:[%s3219 + $0x4e8] sm:%s3208] %v3534
        %v3536 = vld [vmem:[%s3218 + $0x4e8] sm:%s3208]
        %3537 = vst [vmem:[%s3219 + $0x4f0] sm:%s3208] %v3536
        %v3538 = vld [vmem:[%s3218 + $0x4ec] sm:%s3208]
        %3539 = vst [vmem:[%s3219 + $0x4f8] sm:%s3208] %v3538
        %v3540 = vld [vmem:[%s3218 + $0x500] sm:%s3208]
        %3541 = vst [vmem:[%s3219 + $0x500] sm:%s3208] %v3540
        %v3542 = vld [vmem:[%s3218 + $0x504] sm:%s3208]
        %3543 = vst [vmem:[%s3219 + $0x508] sm:%s3208] %v3542
        %v3544 = vld [vmem:[%s3218 + $0x508] sm:%s3208]
        %3545 = vst [vmem:[%s3219 + $0x510] sm:%s3208] %v3544
        %v3546 = vld [vmem:[%s3218 + $0x50c] sm:%s3208]
        %3547 = vst [vmem:[%s3219 + $0x518] sm:%s3208] %v3546
        %v3548 = vld [vmem:[%s3218 + $0x520] sm:%s3208]
        %3549 = vst [vmem:[%s3219 + $0x520] sm:%s3208] %v3548
        %v3550 = vld [vmem:[%s3218 + $0x524] sm:%s3208]
        %3551 = vst [vmem:[%s3219 + $0x528] sm:%s3208] %v3550
        %v3552 = vld [vmem:[%s3218 + $0x528] sm:%s3208]
        %3553 = vst [vmem:[%s3219 + $0x530] sm:%s3208] %v3552
        %v3554 = vld [vmem:[%s3218 + $0x52c] sm:%s3208]
        %3555 = vst [vmem:[%s3219 + $0x538] sm:%s3208] %v3554
        %v3556 = vld [vmem:[%s3218 + $0x540] sm:%s3208]
        %3557 = vst [vmem:[%s3219 + $0x540] sm:%s3208] %v3556
        %v3558 = vld [vmem:[%s3218 + $0x544] sm:%s3208]
        %3559 = vst [vmem:[%s3219 + $0x548] sm:%s3208] %v3558
        %v3560 = vld [vmem:[%s3218 + $0x548] sm:%s3208]
        %3561 = vst [vmem:[%s3219 + $0x550] sm:%s3208] %v3560
        %v3562 = vld [vmem:[%s3218 + $0x54c] sm:%s3208]
        %3563 = vst [vmem:[%s3219 + $0x558] sm:%s3208] %v3562
        %v3564 = vld [vmem:[%s3218 + $0x560] sm:%s3208]
        %3565 = vst [vmem:[%s3219 + $0x560] sm:%s3208] %v3564
        %v3566 = vld [vmem:[%s3218 + $0x564] sm:%s3208]
        %3567 = vst [vmem:[%s3219 + $0x568] sm:%s3208] %v3566
        %v3568 = vld [vmem:[%s3218 + $0x568] sm:%s3208]
        %3569 = vst [vmem:[%s3219 + $0x570] sm:%s3208] %v3568
        %v3570 = vld [vmem:[%s3218 + $0x56c] sm:%s3208]
        %3571 = vst [vmem:[%s3219 + $0x578] sm:%s3208] %v3570
        %v3572 = vld [vmem:[%s3218 + $0x580] sm:%s3208]
        %3573 = vst [vmem:[%s3219 + $0x580] sm:%s3208] %v3572
        %v3574 = vld [vmem:[%s3218 + $0x584] sm:%s3208]
        %3575 = vst [vmem:[%s3219 + $0x588] sm:%s3208] %v3574
        %v3576 = vld [vmem:[%s3218 + $0x588] sm:%s3208]
        %3577 = vst [vmem:[%s3219 + $0x590] sm:%s3208] %v3576
        %v3578 = vld [vmem:[%s3218 + $0x58c] sm:%s3208]
        %3579 = vst [vmem:[%s3219 + $0x598] sm:%s3208] %v3578
        %v3580 = vld [vmem:[%s3218 + $0x5a0] sm:%s3208]
        %3581 = vst [vmem:[%s3219 + $0x5a0] sm:%s3208] %v3580
        %v3582 = vld [vmem:[%s3218 + $0x5a4] sm:%s3208]
        %3583 = vst [vmem:[%s3219 + $0x5a8] sm:%s3208] %v3582
        %v3584 = vld [vmem:[%s3218 + $0x5a8] sm:%s3208]
        %3585 = vst [vmem:[%s3219 + $0x5b0] sm:%s3208] %v3584
        %v3586 = vld [vmem:[%s3218 + $0x5ac] sm:%s3208]
        %3587 = vst [vmem:[%s3219 + $0x5b8] sm:%s3208] %v3586
        %v3588 = vld [vmem:[%s3218 + $0x5c0] sm:%s3208]
        %3589 = vst [vmem:[%s3219 + $0x5c0] sm:%s3208] %v3588
        %v3590 = vld [vmem:[%s3218 + $0x5c4] sm:%s3208]
        %3591 = vst [vmem:[%s3219 + $0x5c8] sm:%s3208] %v3590
        %v3592 = vld [vmem:[%s3218 + $0x5c8] sm:%s3208]
        %3593 = vst [vmem:[%s3219 + $0x5d0] sm:%s3208] %v3592
        %v3594 = vld [vmem:[%s3218 + $0x5cc] sm:%s3208]
        %3595 = vst [vmem:[%s3219 + $0x5d8] sm:%s3208] %v3594
        %v3596 = vld [vmem:[%s3218 + $0x5e0] sm:%s3208]
        %3597 = vst [vmem:[%s3219 + $0x5e0] sm:%s3208] %v3596
        %v3598 = vld [vmem:[%s3218 + $0x5e4] sm:%s3208]
        %3599 = vst [vmem:[%s3219 + $0x5e8] sm:%s3208] %v3598
        %v3600 = vld [vmem:[%s3218 + $0x5e8] sm:%s3208]
        %3601 = vst [vmem:[%s3219 + $0x5f0] sm:%s3208] %v3600
        %v3602 = vld [vmem:[%s3218 + $0x5ec] sm:%s3208]
        %3603 = vst [vmem:[%s3219 + $0x5f8] sm:%s3208] %v3602
        %v3604 = vld [vmem:[%s3218 + $0x600] sm:%s3208]
        %3605 = vst [vmem:[%s3219 + $0x600] sm:%s3208] %v3604
        %v3606 = vld [vmem:[%s3218 + $0x604] sm:%s3208]
        %3607 = vst [vmem:[%s3219 + $0x608] sm:%s3208] %v3606
        %v3608 = vld [vmem:[%s3218 + $0x608] sm:%s3208]
        %3609 = vst [vmem:[%s3219 + $0x610] sm:%s3208] %v3608
        %v3610 = vld [vmem:[%s3218 + $0x60c] sm:%s3208]
        %3611 = vst [vmem:[%s3219 + $0x618] sm:%s3208] %v3610
        %v3612 = vld [vmem:[%s3218 + $0x620] sm:%s3208]
        %3613 = vst [vmem:[%s3219 + $0x620] sm:%s3208] %v3612
        %v3614 = vld [vmem:[%s3218 + $0x624] sm:%s3208]
        %3615 = vst [vmem:[%s3219 + $0x628] sm:%s3208] %v3614
        %v3616 = vld [vmem:[%s3218 + $0x628] sm:%s3208]
        %3617 = vst [vmem:[%s3219 + $0x630] sm:%s3208] %v3616
        %v3618 = vld [vmem:[%s3218 + $0x62c] sm:%s3208]
        %3619 = vst [vmem:[%s3219 + $0x638] sm:%s3208] %v3618
        %v3620 = vld [vmem:[%s3218 + $0x640] sm:%s3208]
        %3621 = vst [vmem:[%s3219 + $0x640] sm:%s3208] %v3620
        %v3622 = vld [vmem:[%s3218 + $0x644] sm:%s3208]
        %3623 = vst [vmem:[%s3219 + $0x648] sm:%s3208] %v3622
        %v3624 = vld [vmem:[%s3218 + $0x648] sm:%s3208]
        %3625 = vst [vmem:[%s3219 + $0x650] sm:%s3208] %v3624
        %v3626 = vld [vmem:[%s3218 + $0x64c] sm:%s3208]
        %3627 = vst [vmem:[%s3219 + $0x658] sm:%s3208] %v3626
        %v3628 = vld [vmem:[%s3218 + $0x660] sm:%s3208]
        %3629 = vst [vmem:[%s3219 + $0x660] sm:%s3208] %v3628
        %v3630 = vld [vmem:[%s3218 + $0x664] sm:%s3208]
        %3631 = vst [vmem:[%s3219 + $0x668] sm:%s3208] %v3630
        %v3632 = vld [vmem:[%s3218 + $0x668] sm:%s3208]
        %3633 = vst [vmem:[%s3219 + $0x670] sm:%s3208] %v3632
        %v3634 = vld [vmem:[%s3218 + $0x66c] sm:%s3208]
        %3635 = vst [vmem:[%s3219 + $0x678] sm:%s3208] %v3634
        %v3636 = vld [vmem:[%s3218 + $0x680] sm:%s3208]
        %3637 = vst [vmem:[%s3219 + $0x680] sm:%s3208] %v3636
        %v3638 = vld [vmem:[%s3218 + $0x684] sm:%s3208]
        %3639 = vst [vmem:[%s3219 + $0x688] sm:%s3208] %v3638
        %v3640 = vld [vmem:[%s3218 + $0x688] sm:%s3208]
        %3641 = vst [vmem:[%s3219 + $0x690] sm:%s3208] %v3640
        %v3642 = vld [vmem:[%s3218 + $0x68c] sm:%s3208]
        %3643 = vst [vmem:[%s3219 + $0x698] sm:%s3208] %v3642
        %v3644 = vld [vmem:[%s3218 + $0x6a0] sm:%s3208]
        %3645 = vst [vmem:[%s3219 + $0x6a0] sm:%s3208] %v3644
        %v3646 = vld [vmem:[%s3218 + $0x6a4] sm:%s3208]
        %3647 = vst [vmem:[%s3219 + $0x6a8] sm:%s3208] %v3646
        %v3648 = vld [vmem:[%s3218 + $0x6a8] sm:%s3208]
        %3649 = vst [vmem:[%s3219 + $0x6b0] sm:%s3208] %v3648
        %v3650 = vld [vmem:[%s3218 + $0x6ac] sm:%s3208]
        %3651 = vst [vmem:[%s3219 + $0x6b8] sm:%s3208] %v3650
        %v3652 = vld [vmem:[%s3218 + $0x6c0] sm:%s3208]
        %3653 = vst [vmem:[%s3219 + $0x6c0] sm:%s3208] %v3652
        %v3654 = vld [vmem:[%s3218 + $0x6c4] sm:%s3208]
        %3655 = vst [vmem:[%s3219 + $0x6c8] sm:%s3208] %v3654
        %v3656 = vld [vmem:[%s3218 + $0x6c8] sm:%s3208]
        %3657 = vst [vmem:[%s3219 + $0x6d0] sm:%s3208] %v3656
        %v3658 = vld [vmem:[%s3218 + $0x6cc] sm:%s3208]
        %3659 = vst [vmem:[%s3219 + $0x6d8] sm:%s3208] %v3658
        %v3660 = vld [vmem:[%s3218 + $0x6e0] sm:%s3208]
        %3661 = vst [vmem:[%s3219 + $0x6e0] sm:%s3208] %v3660
        %v3662 = vld [vmem:[%s3218 + $0x6e4] sm:%s3208]
        %3663 = vst [vmem:[%s3219 + $0x6e8] sm:%s3208] %v3662
        %v3664 = vld [vmem:[%s3218 + $0x6e8] sm:%s3208]
        %3665 = vst [vmem:[%s3219 + $0x6f0] sm:%s3208] %v3664
        %v3666 = vld [vmem:[%s3218 + $0x6ec] sm:%s3208]
        %3667 = vst [vmem:[%s3219 + $0x6f8] sm:%s3208] %v3666
        %v3668 = vld [vmem:[%s3218 + $0x700] sm:%s3208]
        %3669 = vst [vmem:[%s3219 + $0x700] sm:%s3208] %v3668
        %v3670 = vld [vmem:[%s3218 + $0x704] sm:%s3208]
        %3671 = vst [vmem:[%s3219 + $0x708] sm:%s3208] %v3670
        %v3672 = vld [vmem:[%s3218 + $0x708] sm:%s3208]
        %3673 = vst [vmem:[%s3219 + $0x710] sm:%s3208] %v3672
        %v3674 = vld [vmem:[%s3218 + $0x70c] sm:%s3208]
        %3675 = vst [vmem:[%s3219 + $0x718] sm:%s3208] %v3674
        %v3676 = vld [vmem:[%s3218 + $0x720] sm:%s3208]
        %3677 = vst [vmem:[%s3219 + $0x720] sm:%s3208] %v3676
        %v3678 = vld [vmem:[%s3218 + $0x724] sm:%s3208]
        %3679 = vst [vmem:[%s3219 + $0x728] sm:%s3208] %v3678
        %v3680 = vld [vmem:[%s3218 + $0x728] sm:%s3208]
        %3681 = vst [vmem:[%s3219 + $0x730] sm:%s3208] %v3680
        %v3682 = vld [vmem:[%s3218 + $0x72c] sm:%s3208]
        %3683 = vst [vmem:[%s3219 + $0x738] sm:%s3208] %v3682
        %v3684 = vld [vmem:[%s3218 + $0x740] sm:%s3208]
        %3685 = vst [vmem:[%s3219 + $0x740] sm:%s3208] %v3684
        %v3686 = vld [vmem:[%s3218 + $0x744] sm:%s3208]
        %3687 = vst [vmem:[%s3219 + $0x748] sm:%s3208] %v3686
        %v3688 = vld [vmem:[%s3218 + $0x748] sm:%s3208]
        %3689 = vst [vmem:[%s3219 + $0x750] sm:%s3208] %v3688
        %v3690 = vld [vmem:[%s3218 + $0x74c] sm:%s3208]
        %3691 = vst [vmem:[%s3219 + $0x758] sm:%s3208] %v3690
        %v3692 = vld [vmem:[%s3218 + $0x760] sm:%s3208]
        %3693 = vst [vmem:[%s3219 + $0x760] sm:%s3208] %v3692
        %v3694 = vld [vmem:[%s3218 + $0x764] sm:%s3208]
        %3695 = vst [vmem:[%s3219 + $0x768] sm:%s3208] %v3694
        %v3696 = vld [vmem:[%s3218 + $0x768] sm:%s3208]
        %3697 = vst [vmem:[%s3219 + $0x770] sm:%s3208] %v3696
        %v3698 = vld [vmem:[%s3218 + $0x76c] sm:%s3208]
        %3699 = vst [vmem:[%s3219 + $0x778] sm:%s3208] %v3698
        %v3700 = vld [vmem:[%s3218 + $0x780] sm:%s3208]
        %3701 = vst [vmem:[%s3219 + $0x780] sm:%s3208] %v3700
        %v3702 = vld [vmem:[%s3218 + $0x784] sm:%s3208]
        %3703 = vst [vmem:[%s3219 + $0x788] sm:%s3208] %v3702
        %v3704 = vld [vmem:[%s3218 + $0x788] sm:%s3208]
        %3705 = vst [vmem:[%s3219 + $0x790] sm:%s3208] %v3704
        %v3706 = vld [vmem:[%s3218 + $0x78c] sm:%s3208]
        %3707 = vst [vmem:[%s3219 + $0x798] sm:%s3208] %v3706
        %v3708 = vld [vmem:[%s3218 + $0x7a0] sm:%s3208]
        %3709 = vst [vmem:[%s3219 + $0x7a0] sm:%s3208] %v3708
        %v3710 = vld [vmem:[%s3218 + $0x7a4] sm:%s3208]
        %3711 = vst [vmem:[%s3219 + $0x7a8] sm:%s3208] %v3710
        %v3712 = vld [vmem:[%s3218 + $0x7a8] sm:%s3208]
        %3713 = vst [vmem:[%s3219 + $0x7b0] sm:%s3208] %v3712
        %v3714 = vld [vmem:[%s3218 + $0x7ac] sm:%s3208]
        %3715 = vst [vmem:[%s3219 + $0x7b8] sm:%s3208] %v3714
        %v3716 = vld [vmem:[%s3218 + $0x7c0] sm:%s3208]
        %3717 = vst [vmem:[%s3219 + $0x7c0] sm:%s3208] %v3716
        %v3718 = vld [vmem:[%s3218 + $0x7c4] sm:%s3208]
        %3719 = vst [vmem:[%s3219 + $0x7c8] sm:%s3208] %v3718
        %v3720 = vld [vmem:[%s3218 + $0x7c8] sm:%s3208]
        %3721 = vst [vmem:[%s3219 + $0x7d0] sm:%s3208] %v3720
        %v3722 = vld [vmem:[%s3218 + $0x7cc] sm:%s3208]
        %3723 = vst [vmem:[%s3219 + $0x7d8] sm:%s3208] %v3722
        %v3724 = vld [vmem:[%s3218 + $0x7e0] sm:%s3208]
        %3725 = vst [vmem:[%s3219 + $0x7e0] sm:%s3208] %v3724
        %v3726 = vld [vmem:[%s3218 + $0x7e4] sm:%s3208]
        %3727 = vst [vmem:[%s3219 + $0x7e8] sm:%s3208] %v3726
        %v3728 = vld [vmem:[%s3218 + $0x7e8] sm:%s3208]
        %3729 = vst [vmem:[%s3219 + $0x7f0] sm:%s3208] %v3728
        %v3730 = vld [vmem:[%s3218 + $0x7ec] sm:%s3208]
        %3731 = vst [vmem:[%s3219 + $0x7f8] sm:%s3208] %v3730
        %v3732 = vld [vmem:[%s3218 + $0x800] sm:%s3208]
        %3733 = vst [vmem:[%s3219 + $0x800] sm:%s3208] %v3732
        %v3734 = vld [vmem:[%s3218 + $0x804] sm:%s3208]
        %3735 = vst [vmem:[%s3219 + $0x808] sm:%s3208] %v3734
        %v3736 = vld [vmem:[%s3218 + $0x808] sm:%s3208]
        %3737 = vst [vmem:[%s3219 + $0x810] sm:%s3208] %v3736
        %v3738 = vld [vmem:[%s3218 + $0x80c] sm:%s3208]
        %3739 = vst [vmem:[%s3219 + $0x818] sm:%s3208] %v3738
        %v3740 = vld [vmem:[%s3218 + $0x820] sm:%s3208]
        %3741 = vst [vmem:[%s3219 + $0x820] sm:%s3208] %v3740
        %v3742 = vld [vmem:[%s3218 + $0x824] sm:%s3208]
        %3743 = vst [vmem:[%s3219 + $0x828] sm:%s3208] %v3742
        %v3744 = vld [vmem:[%s3218 + $0x828] sm:%s3208]
        %3745 = vst [vmem:[%s3219 + $0x830] sm:%s3208] %v3744
        %v3746 = vld [vmem:[%s3218 + $0x82c] sm:%s3208]
        %3747 = vst [vmem:[%s3219 + $0x838] sm:%s3208] %v3746
        %v3748 = vld [vmem:[%s3218 + $0x840] sm:%s3208]
        %3749 = vst [vmem:[%s3219 + $0x840] sm:%s3208] %v3748
        %v3750 = vld [vmem:[%s3218 + $0x844] sm:%s3208]
        %3751 = vst [vmem:[%s3219 + $0x848] sm:%s3208] %v3750
        %v3752 = vld [vmem:[%s3218 + $0x848] sm:%s3208]
        %3753 = vst [vmem:[%s3219 + $0x850] sm:%s3208] %v3752
        %v3754 = vld [vmem:[%s3218 + $0x84c] sm:%s3208]
        %3755 = vst [vmem:[%s3219 + $0x858] sm:%s3208] %v3754
        %v3756 = vld [vmem:[%s3218 + $0x860] sm:%s3208]
        %3757 = vst [vmem:[%s3219 + $0x860] sm:%s3208] %v3756
        %v3758 = vld [vmem:[%s3218 + $0x864] sm:%s3208]
        %3759 = vst [vmem:[%s3219 + $0x868] sm:%s3208] %v3758
        %v3760 = vld [vmem:[%s3218 + $0x868] sm:%s3208]
        %3761 = vst [vmem:[%s3219 + $0x870] sm:%s3208] %v3760
        %v3762 = vld [vmem:[%s3218 + $0x86c] sm:%s3208]
        %3763 = vst [vmem:[%s3219 + $0x878] sm:%s3208] %v3762
        %v3764 = vld [vmem:[%s3218 + $0x880] sm:%s3208]
        %3765 = vst [vmem:[%s3219 + $0x880] sm:%s3208] %v3764
        %v3766 = vld [vmem:[%s3218 + $0x884] sm:%s3208]
        %3767 = vst [vmem:[%s3219 + $0x888] sm:%s3208] %v3766
        %v3768 = vld [vmem:[%s3218 + $0x888] sm:%s3208]
        %3769 = vst [vmem:[%s3219 + $0x890] sm:%s3208] %v3768
        %v3770 = vld [vmem:[%s3218 + $0x88c] sm:%s3208]
        %3771 = vst [vmem:[%s3219 + $0x898] sm:%s3208] %v3770
        %v3772 = vld [vmem:[%s3218 + $0x8a0] sm:%s3208]
        %3773 = vst [vmem:[%s3219 + $0x8a0] sm:%s3208] %v3772
        %v3774 = vld [vmem:[%s3218 + $0x8a4] sm:%s3208]
        %3775 = vst [vmem:[%s3219 + $0x8a8] sm:%s3208] %v3774
        %v3776 = vld [vmem:[%s3218 + $0x8a8] sm:%s3208]
        %3777 = vst [vmem:[%s3219 + $0x8b0] sm:%s3208] %v3776
        %v3778 = vld [vmem:[%s3218 + $0x8ac] sm:%s3208]
        %3779 = vst [vmem:[%s3219 + $0x8b8] sm:%s3208] %v3778
        %v3780 = vld [vmem:[%s3218 + $0x8c0] sm:%s3208]
        %3781 = vst [vmem:[%s3219 + $0x8c0] sm:%s3208] %v3780
        %v3782 = vld [vmem:[%s3218 + $0x8c4] sm:%s3208]
        %3783 = vst [vmem:[%s3219 + $0x8c8] sm:%s3208] %v3782
        %v3784 = vld [vmem:[%s3218 + $0x8c8] sm:%s3208]
        %3785 = vst [vmem:[%s3219 + $0x8d0] sm:%s3208] %v3784
        %v3786 = vld [vmem:[%s3218 + $0x8cc] sm:%s3208]
        %3787 = vst [vmem:[%s3219 + $0x8d8] sm:%s3208] %v3786
        %v3788 = vld [vmem:[%s3218 + $0x8e0] sm:%s3208]
        %3789 = vst [vmem:[%s3219 + $0x8e0] sm:%s3208] %v3788
        %v3790 = vld [vmem:[%s3218 + $0x8e4] sm:%s3208]
        %3791 = vst [vmem:[%s3219 + $0x8e8] sm:%s3208] %v3790
        %v3792 = vld [vmem:[%s3218 + $0x8e8] sm:%s3208]
        %3793 = vst [vmem:[%s3219 + $0x8f0] sm:%s3208] %v3792
        %v3794 = vld [vmem:[%s3218 + $0x8ec] sm:%s3208]
        %3795 = vst [vmem:[%s3219 + $0x8f8] sm:%s3208] %v3794
        %v3796 = vld [vmem:[%s3218 + $0x900] sm:%s3208]
        %3797 = vst [vmem:[%s3219 + $0x900] sm:%s3208] %v3796
        %v3798 = vld [vmem:[%s3218 + $0x904] sm:%s3208]
        %3799 = vst [vmem:[%s3219 + $0x908] sm:%s3208] %v3798
        %v3800 = vld [vmem:[%s3218 + $0x908] sm:%s3208]
        %3801 = vst [vmem:[%s3219 + $0x910] sm:%s3208] %v3800
        %v3802 = vld [vmem:[%s3218 + $0x90c] sm:%s3208]
        %3803 = vst [vmem:[%s3219 + $0x918] sm:%s3208] %v3802
        %v3804 = vld [vmem:[%s3218 + $0x920] sm:%s3208]
        %3805 = vst [vmem:[%s3219 + $0x920] sm:%s3208] %v3804
        %v3806 = vld [vmem:[%s3218 + $0x924] sm:%s3208]
        %3807 = vst [vmem:[%s3219 + $0x928] sm:%s3208] %v3806
        %v3808 = vld [vmem:[%s3218 + $0x928] sm:%s3208]
        %3809 = vst [vmem:[%s3219 + $0x930] sm:%s3208] %v3808
        %v3810 = vld [vmem:[%s3218 + $0x92c] sm:%s3208]
        %3811 = vst [vmem:[%s3219 + $0x938] sm:%s3208] %v3810
        %v3812 = vld [vmem:[%s3218 + $0x940] sm:%s3208]
        %3813 = vst [vmem:[%s3219 + $0x940] sm:%s3208] %v3812
        %v3814 = vld [vmem:[%s3218 + $0x944] sm:%s3208]
        %3815 = vst [vmem:[%s3219 + $0x948] sm:%s3208] %v3814
        %v3816 = vld [vmem:[%s3218 + $0x948] sm:%s3208]
        %3817 = vst [vmem:[%s3219 + $0x950] sm:%s3208] %v3816
        %v3818 = vld [vmem:[%s3218 + $0x94c] sm:%s3208]
        %3819 = vst [vmem:[%s3219 + $0x958] sm:%s3208] %v3818
        %v3820 = vld [vmem:[%s3218 + $0x960] sm:%s3208]
        %3821 = vst [vmem:[%s3219 + $0x960] sm:%s3208] %v3820
        %v3822 = vld [vmem:[%s3218 + $0x964] sm:%s3208]
        %3823 = vst [vmem:[%s3219 + $0x968] sm:%s3208] %v3822
        %v3824 = vld [vmem:[%s3218 + $0x968] sm:%s3208]
        %3825 = vst [vmem:[%s3219 + $0x970] sm:%s3208] %v3824
        %v3826 = vld [vmem:[%s3218 + $0x96c] sm:%s3208]
        %3827 = vst [vmem:[%s3219 + $0x978] sm:%s3208] %v3826
        %v3828 = vld [vmem:[%s3218 + $0x980] sm:%s3208]
        %3829 = vst [vmem:[%s3219 + $0x980] sm:%s3208] %v3828
        %v3830 = vld [vmem:[%s3218 + $0x984] sm:%s3208]
        %3831 = vst [vmem:[%s3219 + $0x988] sm:%s3208] %v3830
        %v3832 = vld [vmem:[%s3218 + $0x988] sm:%s3208]
        %3833 = vst [vmem:[%s3219 + $0x990] sm:%s3208] %v3832
        %v3834 = vld [vmem:[%s3218 + $0x98c] sm:%s3208]
        %3835 = vst [vmem:[%s3219 + $0x998] sm:%s3208] %v3834
        %v3836 = vld [vmem:[%s3218 + $0x9a0] sm:%s3208]
        %3837 = vst [vmem:[%s3219 + $0x9a0] sm:%s3208] %v3836
        %v3838 = vld [vmem:[%s3218 + $0x9a4] sm:%s3208]
        %3839 = vst [vmem:[%s3219 + $0x9a8] sm:%s3208] %v3838
        %v3840 = vld [vmem:[%s3218 + $0x9a8] sm:%s3208]
        %3841 = vst [vmem:[%s3219 + $0x9b0] sm:%s3208] %v3840
        %v3842 = vld [vmem:[%s3218 + $0x9ac] sm:%s3208]
        %3843 = vst [vmem:[%s3219 + $0x9b8] sm:%s3208] %v3842
        %v3844 = vld [vmem:[%s3218 + $0x9c0] sm:%s3208]
        %3845 = vst [vmem:[%s3219 + $0x9c0] sm:%s3208] %v3844
        %v3846 = vld [vmem:[%s3218 + $0x9c4] sm:%s3208]
        %3847 = vst [vmem:[%s3219 + $0x9c8] sm:%s3208] %v3846
        %v3848 = vld [vmem:[%s3218 + $0x9c8] sm:%s3208]
        %3849 = vst [vmem:[%s3219 + $0x9d0] sm:%s3208] %v3848
        %v3850 = vld [vmem:[%s3218 + $0x9cc] sm:%s3208]
        %3851 = vst [vmem:[%s3219 + $0x9d8] sm:%s3208] %v3850
        %v3852 = vld [vmem:[%s3218 + $0x9e0] sm:%s3208]
        %3853 = vst [vmem:[%s3219 + $0x9e0] sm:%s3208] %v3852
        %v3854 = vld [vmem:[%s3218 + $0x9e4] sm:%s3208]
        %3855 = vst [vmem:[%s3219 + $0x9e8] sm:%s3208] %v3854
        %v3856 = vld [vmem:[%s3218 + $0x9e8] sm:%s3208]
        %3857 = vst [vmem:[%s3219 + $0x9f0] sm:%s3208] %v3856
        %v3858 = vld [vmem:[%s3218 + $0x9ec] sm:%s3208]
        %3859 = vst [vmem:[%s3219 + $0x9f8] sm:%s3208] %v3858
        %v3860 = vld [vmem:[%s3218 + $0xa00] sm:%s3208]
        %3861 = vst [vmem:[%s3219 + $0xa00] sm:%s3208] %v3860
        %v3862 = vld [vmem:[%s3218 + $0xa04] sm:%s3208]
        %3863 = vst [vmem:[%s3219 + $0xa08] sm:%s3208] %v3862
        %v3864 = vld [vmem:[%s3218 + $0xa08] sm:%s3208]
        %3865 = vst [vmem:[%s3219 + $0xa10] sm:%s3208] %v3864
        %v3866 = vld [vmem:[%s3218 + $0xa0c] sm:%s3208]
        %3867 = vst [vmem:[%s3219 + $0xa18] sm:%s3208] %v3866
        %v3868 = vld [vmem:[%s3218 + $0xa20] sm:%s3208]
        %3869 = vst [vmem:[%s3219 + $0xa20] sm:%s3208] %v3868
        %v3870 = vld [vmem:[%s3218 + $0xa24] sm:%s3208]
        %3871 = vst [vmem:[%s3219 + $0xa28] sm:%s3208] %v3870
        %v3872 = vld [vmem:[%s3218 + $0xa28] sm:%s3208]
        %3873 = vst [vmem:[%s3219 + $0xa30] sm:%s3208] %v3872
        %v3874 = vld [vmem:[%s3218 + $0xa2c] sm:%s3208]
        %3875 = vst [vmem:[%s3219 + $0xa38] sm:%s3208] %v3874
        %v3876 = vld [vmem:[%s3218 + $0xa40] sm:%s3208]
        %3877 = vst [vmem:[%s3219 + $0xa40] sm:%s3208] %v3876
        %v3878 = vld [vmem:[%s3218 + $0xa44] sm:%s3208]
        %3879 = vst [vmem:[%s3219 + $0xa48] sm:%s3208] %v3878
        %v3880 = vld [vmem:[%s3218 + $0xa48] sm:%s3208]
        %3881 = vst [vmem:[%s3219 + $0xa50] sm:%s3208] %v3880
        %v3882 = vld [vmem:[%s3218 + $0xa4c] sm:%s3208]
        %3883 = vst [vmem:[%s3219 + $0xa58] sm:%s3208] %v3882
        %v3884 = vld [vmem:[%s3218 + $0xa60] sm:%s3208]
        %3885 = vst [vmem:[%s3219 + $0xa60] sm:%s3208] %v3884
        %v3886 = vld [vmem:[%s3218 + $0xa64] sm:%s3208]
        %3887 = vst [vmem:[%s3219 + $0xa68] sm:%s3208] %v3886
        %v3888 = vld [vmem:[%s3218 + $0xa68] sm:%s3208]
        %3889 = vst [vmem:[%s3219 + $0xa70] sm:%s3208] %v3888
        %v3890 = vld [vmem:[%s3218 + $0xa6c] sm:%s3208]
        %3891 = vst [vmem:[%s3219 + $0xa78] sm:%s3208] %v3890
        %v3892 = vld [vmem:[%s3218 + $0xa80] sm:%s3208]
        %3893 = vst [vmem:[%s3219 + $0xa80] sm:%s3208] %v3892
        %v3894 = vld [vmem:[%s3218 + $0xa84] sm:%s3208]
        %3895 = vst [vmem:[%s3219 + $0xa88] sm:%s3208] %v3894
        %v3896 = vld [vmem:[%s3218 + $0xa88] sm:%s3208]
        %3897 = vst [vmem:[%s3219 + $0xa90] sm:%s3208] %v3896
        %v3898 = vld [vmem:[%s3218 + $0xa8c] sm:%s3208]
        %3899 = vst [vmem:[%s3219 + $0xa98] sm:%s3208] %v3898
        %v3900 = vld [vmem:[%s3218 + $0xaa0] sm:%s3208]
        %3901 = vst [vmem:[%s3219 + $0xaa0] sm:%s3208] %v3900
        %v3902 = vld [vmem:[%s3218 + $0xaa4] sm:%s3208]
        %3903 = vst [vmem:[%s3219 + $0xaa8] sm:%s3208] %v3902
        %v3904 = vld [vmem:[%s3218 + $0xaa8] sm:%s3208]
        %3905 = vst [vmem:[%s3219 + $0xab0] sm:%s3208] %v3904
        %v3906 = vld [vmem:[%s3218 + $0xaac] sm:%s3208]
        %3907 = vst [vmem:[%s3219 + $0xab8] sm:%s3208] %v3906
        %v3908 = vld [vmem:[%s3218 + $0xac0] sm:%s3208]
        %3909 = vst [vmem:[%s3219 + $0xac0] sm:%s3208] %v3908
        %v3910 = vld [vmem:[%s3218 + $0xac4] sm:%s3208]
        %3911 = vst [vmem:[%s3219 + $0xac8] sm:%s3208] %v3910
        %v3912 = vld [vmem:[%s3218 + $0xac8] sm:%s3208]
        %3913 = vst [vmem:[%s3219 + $0xad0] sm:%s3208] %v3912
        %v3914 = vld [vmem:[%s3218 + $0xacc] sm:%s3208]
        %3915 = vst [vmem:[%s3219 + $0xad8] sm:%s3208] %v3914
        %v3916 = vld [vmem:[%s3218 + $0xae0] sm:%s3208]
        %3917 = vst [vmem:[%s3219 + $0xae0] sm:%s3208] %v3916
        %v3918 = vld [vmem:[%s3218 + $0xae4] sm:%s3208]
        %3919 = vst [vmem:[%s3219 + $0xae8] sm:%s3208] %v3918
        %v3920 = vld [vmem:[%s3218 + $0xae8] sm:%s3208]
        %3921 = vst [vmem:[%s3219 + $0xaf0] sm:%s3208] %v3920
        %v3922 = vld [vmem:[%s3218 + $0xaec] sm:%s3208]
        %3923 = vst [vmem:[%s3219 + $0xaf8] sm:%s3208] %v3922
        %v3924 = vld [vmem:[%s3218 + $0xb00] sm:%s3208]
        %3925 = vst [vmem:[%s3219 + $0xb00] sm:%s3208] %v3924
        %v3926 = vld [vmem:[%s3218 + $0xb04] sm:%s3208]
        %3927 = vst [vmem:[%s3219 + $0xb08] sm:%s3208] %v3926
        %v3928 = vld [vmem:[%s3218 + $0xb08] sm:%s3208]
        %3929 = vst [vmem:[%s3219 + $0xb10] sm:%s3208] %v3928
        %v3930 = vld [vmem:[%s3218 + $0xb0c] sm:%s3208]
        %3931 = vst [vmem:[%s3219 + $0xb18] sm:%s3208] %v3930
        %v3932 = vld [vmem:[%s3218 + $0xb20] sm:%s3208]
        %3933 = vst [vmem:[%s3219 + $0xb20] sm:%s3208] %v3932
        %v3934 = vld [vmem:[%s3218 + $0xb24] sm:%s3208]
        %3935 = vst [vmem:[%s3219 + $0xb28] sm:%s3208] %v3934
        %v3936 = vld [vmem:[%s3218 + $0xb28] sm:%s3208]
        %3937 = vst [vmem:[%s3219 + $0xb30] sm:%s3208] %v3936
        %v3938 = vld [vmem:[%s3218 + $0xb2c] sm:%s3208]
        %3939 = vst [vmem:[%s3219 + $0xb38] sm:%s3208] %v3938
        %v3940 = vld [vmem:[%s3218 + $0xb40] sm:%s3208]
        %3941 = vst [vmem:[%s3219 + $0xb40] sm:%s3208] %v3940
        %v3942 = vld [vmem:[%s3218 + $0xb44] sm:%s3208]
        %3943 = vst [vmem:[%s3219 + $0xb48] sm:%s3208] %v3942
        %v3944 = vld [vmem:[%s3218 + $0xb48] sm:%s3208]
        %3945 = vst [vmem:[%s3219 + $0xb50] sm:%s3208] %v3944
        %v3946 = vld [vmem:[%s3218 + $0xb4c] sm:%s3208]
        %3947 = vst [vmem:[%s3219 + $0xb58] sm:%s3208] %v3946
        %v3948 = vld [vmem:[%s3218 + $0xb60] sm:%s3208]
        %3949 = vst [vmem:[%s3219 + $0xb60] sm:%s3208] %v3948
        %v3950 = vld [vmem:[%s3218 + $0xb64] sm:%s3208]
        %3951 = vst [vmem:[%s3219 + $0xb68] sm:%s3208] %v3950
        %v3952 = vld [vmem:[%s3218 + $0xb68] sm:%s3208]
        %3953 = vst [vmem:[%s3219 + $0xb70] sm:%s3208] %v3952
        %v3954 = vld [vmem:[%s3218 + $0xb6c] sm:%s3208]
        %3955 = vst [vmem:[%s3219 + $0xb78] sm:%s3208] %v3954
        %v3956 = vld [vmem:[%s3218 + $0xb80] sm:%s3208]
        %3957 = vst [vmem:[%s3219 + $0xb80] sm:%s3208] %v3956
        %v3958 = vld [vmem:[%s3218 + $0xb84] sm:%s3208]
        %3959 = vst [vmem:[%s3219 + $0xb88] sm:%s3208] %v3958
        %v3960 = vld [vmem:[%s3218 + $0xb88] sm:%s3208]
        %3961 = vst [vmem:[%s3219 + $0xb90] sm:%s3208] %v3960
        %v3962 = vld [vmem:[%s3218 + $0xb8c] sm:%s3208]
        %3963 = vst [vmem:[%s3219 + $0xb98] sm:%s3208] %v3962
        %v3964 = vld [vmem:[%s3218 + $0xba0] sm:%s3208]
        %3965 = vst [vmem:[%s3219 + $0xba0] sm:%s3208] %v3964
        %v3966 = vld [vmem:[%s3218 + $0xba4] sm:%s3208]
        %3967 = vst [vmem:[%s3219 + $0xba8] sm:%s3208] %v3966
        %v3968 = vld [vmem:[%s3218 + $0xba8] sm:%s3208]
        %3969 = vst [vmem:[%s3219 + $0xbb0] sm:%s3208] %v3968
        %v3970 = vld [vmem:[%s3218 + $0xbac] sm:%s3208]
        %3971 = vst [vmem:[%s3219 + $0xbb8] sm:%s3208] %v3970
        %v3972 = vld [vmem:[%s3218 + $0xbc0] sm:%s3208]
        %3973 = vst [vmem:[%s3219 + $0xbc0] sm:%s3208] %v3972
        %v3974 = vld [vmem:[%s3218 + $0xbc4] sm:%s3208]
        %3975 = vst [vmem:[%s3219 + $0xbc8] sm:%s3208] %v3974
        %v3976 = vld [vmem:[%s3218 + $0xbc8] sm:%s3208]
        %3977 = vst [vmem:[%s3219 + $0xbd0] sm:%s3208] %v3976
        %v3978 = vld [vmem:[%s3218 + $0xbcc] sm:%s3208]
        %3979 = vst [vmem:[%s3219 + $0xbd8] sm:%s3208] %v3978
        %v3980 = vld [vmem:[%s3218 + $0xbe0] sm:%s3208]
        %3981 = vst [vmem:[%s3219 + $0xbe0] sm:%s3208] %v3980
        %v3982 = vld [vmem:[%s3218 + $0xbe4] sm:%s3208]
        %3983 = vst [vmem:[%s3219 + $0xbe8] sm:%s3208] %v3982
        %v3984 = vld [vmem:[%s3218 + $0xbe8] sm:%s3208]
        %3985 = vst [vmem:[%s3219 + $0xbf0] sm:%s3208] %v3984
        %v3986 = vld [vmem:[%s3218 + $0xbec] sm:%s3208]
        %3987 = vst [vmem:[%s3219 + $0xbf8] sm:%s3208] %v3986
        %v3988 = vld [vmem:[%s3218 + $0xc00] sm:%s3208]
        %3989 = vst [vmem:[%s3219 + $0xc00] sm:%s3208] %v3988
        %v3990 = vld [vmem:[%s3218 + $0xc04] sm:%s3208]
        %3991 = vst [vmem:[%s3219 + $0xc08] sm:%s3208] %v3990
        %v3992 = vld [vmem:[%s3218 + $0xc08] sm:%s3208]
        %3993 = vst [vmem:[%s3219 + $0xc10] sm:%s3208] %v3992
        %v3994 = vld [vmem:[%s3218 + $0xc0c] sm:%s3208]
        %3995 = vst [vmem:[%s3219 + $0xc18] sm:%s3208] %v3994
        %v3996 = vld [vmem:[%s3218 + $0xc20] sm:%s3208]
        %3997 = vst [vmem:[%s3219 + $0xc20] sm:%s3208] %v3996
        %v3998 = vld [vmem:[%s3218 + $0xc24] sm:%s3208]
        %3999 = vst [vmem:[%s3219 + $0xc28] sm:%s3208] %v3998
        %v4000 = vld [vmem:[%s3218 + $0xc28] sm:%s3208]
        %4001 = vst [vmem:[%s3219 + $0xc30] sm:%s3208] %v4000
        %v4002 = vld [vmem:[%s3218 + $0xc2c] sm:%s3208]
        %4003 = vst [vmem:[%s3219 + $0xc38] sm:%s3208] %v4002
        %v4004 = vld [vmem:[%s3218 + $0xc40] sm:%s3208]
        %4005 = vst [vmem:[%s3219 + $0xc40] sm:%s3208] %v4004
        %v4006 = vld [vmem:[%s3218 + $0xc44] sm:%s3208]
        %4007 = vst [vmem:[%s3219 + $0xc48] sm:%s3208] %v4006
        %v4008 = vld [vmem:[%s3218 + $0xc48] sm:%s3208]
        %4009 = vst [vmem:[%s3219 + $0xc50] sm:%s3208] %v4008
        %v4010 = vld [vmem:[%s3218 + $0xc4c] sm:%s3208]
        %4011 = vst [vmem:[%s3219 + $0xc58] sm:%s3208] %v4010
        %v4012 = vld [vmem:[%s3218 + $0xc60] sm:%s3208]
        %4013 = vst [vmem:[%s3219 + $0xc60] sm:%s3208] %v4012
        %v4014 = vld [vmem:[%s3218 + $0xc64] sm:%s3208]
        %4015 = vst [vmem:[%s3219 + $0xc68] sm:%s3208] %v4014
        %v4016 = vld [vmem:[%s3218 + $0xc68] sm:%s3208]
        %4017 = vst [vmem:[%s3219 + $0xc70] sm:%s3208] %v4016
        %v4018 = vld [vmem:[%s3218 + $0xc6c] sm:%s3208]
        %4019 = vst [vmem:[%s3219 + $0xc78] sm:%s3208] %v4018
        %v4020 = vld [vmem:[%s3218 + $0xc80] sm:%s3208]
        %4021 = vst [vmem:[%s3219 + $0xc80] sm:%s3208] %v4020
        %v4022 = vld [vmem:[%s3218 + $0xc84] sm:%s3208]
        %4023 = vst [vmem:[%s3219 + $0xc88] sm:%s3208] %v4022
        %v4024 = vld [vmem:[%s3218 + $0xc88] sm:%s3208]
        %4025 = vst [vmem:[%s3219 + $0xc90] sm:%s3208] %v4024
        %v4026 = vld [vmem:[%s3218 + $0xc8c] sm:%s3208]
        %4027 = vst [vmem:[%s3219 + $0xc98] sm:%s3208] %v4026
        %v4028 = vld [vmem:[%s3218 + $0xca0] sm:%s3208]
        %4029 = vst [vmem:[%s3219 + $0xca0] sm:%s3208] %v4028
        %v4030 = vld [vmem:[%s3218 + $0xca4] sm:%s3208]
        %4031 = vst [vmem:[%s3219 + $0xca8] sm:%s3208] %v4030
        %v4032 = vld [vmem:[%s3218 + $0xca8] sm:%s3208]
        %4033 = vst [vmem:[%s3219 + $0xcb0] sm:%s3208] %v4032
        %v4034 = vld [vmem:[%s3218 + $0xcac] sm:%s3208]
        %4035 = vst [vmem:[%s3219 + $0xcb8] sm:%s3208] %v4034
        %v4036 = vld [vmem:[%s3218 + $0xcc0] sm:%s3208]
        %4037 = vst [vmem:[%s3219 + $0xcc0] sm:%s3208] %v4036
        %v4038 = vld [vmem:[%s3218 + $0xcc4] sm:%s3208]
        %4039 = vst [vmem:[%s3219 + $0xcc8] sm:%s3208] %v4038
        %v4040 = vld [vmem:[%s3218 + $0xcc8] sm:%s3208]
        %4041 = vst [vmem:[%s3219 + $0xcd0] sm:%s3208] %v4040
        %v4042 = vld [vmem:[%s3218 + $0xccc] sm:%s3208]
        %4043 = vst [vmem:[%s3219 + $0xcd8] sm:%s3208] %v4042
        %v4044 = vld [vmem:[%s3218 + $0xce0] sm:%s3208]
        %4045 = vst [vmem:[%s3219 + $0xce0] sm:%s3208] %v4044
        %v4046 = vld [vmem:[%s3218 + $0xce4] sm:%s3208]
        %4047 = vst [vmem:[%s3219 + $0xce8] sm:%s3208] %v4046
        %v4048 = vld [vmem:[%s3218 + $0xce8] sm:%s3208]
        %4049 = vst [vmem:[%s3219 + $0xcf0] sm:%s3208] %v4048
        %v4050 = vld [vmem:[%s3218 + $0xcec] sm:%s3208]
        %4051 = vst [vmem:[%s3219 + $0xcf8] sm:%s3208] %v4050
        %v4052 = vld [vmem:[%s3218 + $0xd00] sm:%s3208]
        %4053 = vst [vmem:[%s3219 + $0xd00] sm:%s3208] %v4052
        %v4054 = vld [vmem:[%s3218 + $0xd04] sm:%s3208]
        %4055 = vst [vmem:[%s3219 + $0xd08] sm:%s3208] %v4054
        %v4056 = vld [vmem:[%s3218 + $0xd08] sm:%s3208]
        %4057 = vst [vmem:[%s3219 + $0xd10] sm:%s3208] %v4056
        %v4058 = vld [vmem:[%s3218 + $0xd0c] sm:%s3208]
        %4059 = vst [vmem:[%s3219 + $0xd18] sm:%s3208] %v4058
        %v4060 = vld [vmem:[%s3218 + $0xd20] sm:%s3208]
        %4061 = vst [vmem:[%s3219 + $0xd20] sm:%s3208] %v4060
        %v4062 = vld [vmem:[%s3218 + $0xd24] sm:%s3208]
        %4063 = vst [vmem:[%s3219 + $0xd28] sm:%s3208] %v4062
        %v4064 = vld [vmem:[%s3218 + $0xd28] sm:%s3208]
        %4065 = vst [vmem:[%s3219 + $0xd30] sm:%s3208] %v4064
        %v4066 = vld [vmem:[%s3218 + $0xd2c] sm:%s3208]
        %4067 = vst [vmem:[%s3219 + $0xd38] sm:%s3208] %v4066
        %v4068 = vld [vmem:[%s3218 + $0xd40] sm:%s3208]
        %4069 = vst [vmem:[%s3219 + $0xd40] sm:%s3208] %v4068
        %v4070 = vld [vmem:[%s3218 + $0xd44] sm:%s3208]
        %4071 = vst [vmem:[%s3219 + $0xd48] sm:%s3208] %v4070
        %v4072 = vld [vmem:[%s3218 + $0xd48] sm:%s3208]
        %4073 = vst [vmem:[%s3219 + $0xd50] sm:%s3208] %v4072
        %v4074 = vld [vmem:[%s3218 + $0xd4c] sm:%s3208]
        %4075 = vst [vmem:[%s3219 + $0xd58] sm:%s3208] %v4074
        %v4076 = vld [vmem:[%s3218 + $0xd60] sm:%s3208]
        %4077 = vst [vmem:[%s3219 + $0xd60] sm:%s3208] %v4076
        %v4078 = vld [vmem:[%s3218 + $0xd64] sm:%s3208]
        %4079 = vst [vmem:[%s3219 + $0xd68] sm:%s3208] %v4078
        %v4080 = vld [vmem:[%s3218 + $0xd68] sm:%s3208]
        %4081 = vst [vmem:[%s3219 + $0xd70] sm:%s3208] %v4080
        %v4082 = vld [vmem:[%s3218 + $0xd6c] sm:%s3208]
        %4083 = vst [vmem:[%s3219 + $0xd78] sm:%s3208] %v4082
        %v4084 = vld [vmem:[%s3218 + $0xd80] sm:%s3208]
        %4085 = vst [vmem:[%s3219 + $0xd80] sm:%s3208] %v4084
        %v4086 = vld [vmem:[%s3218 + $0xd84] sm:%s3208]
        %4087 = vst [vmem:[%s3219 + $0xd88] sm:%s3208] %v4086
        %v4088 = vld [vmem:[%s3218 + $0xd88] sm:%s3208]
        %4089 = vst [vmem:[%s3219 + $0xd90] sm:%s3208] %v4088
        %v4090 = vld [vmem:[%s3218 + $0xd8c] sm:%s3208]
        %4091 = vst [vmem:[%s3219 + $0xd98] sm:%s3208] %v4090
        %v4092 = vld [vmem:[%s3218 + $0xda0] sm:%s3208]
        %4093 = vst [vmem:[%s3219 + $0xda0] sm:%s3208] %v4092
        %v4094 = vld [vmem:[%s3218 + $0xda4] sm:%s3208]
        %4095 = vst [vmem:[%s3219 + $0xda8] sm:%s3208] %v4094
        %v4096 = vld [vmem:[%s3218 + $0xda8] sm:%s3208]
        %4097 = vst [vmem:[%s3219 + $0xdb0] sm:%s3208] %v4096
        %v4098 = vld [vmem:[%s3218 + $0xdac] sm:%s3208]
        %4099 = vst [vmem:[%s3219 + $0xdb8] sm:%s3208] %v4098
        %v4100 = vld [vmem:[%s3218 + $0xdc0] sm:%s3208]
        %4101 = vst [vmem:[%s3219 + $0xdc0] sm:%s3208] %v4100
        %v4102 = vld [vmem:[%s3218 + $0xdc4] sm:%s3208]
        %4103 = vst [vmem:[%s3219 + $0xdc8] sm:%s3208] %v4102
        %v4104 = vld [vmem:[%s3218 + $0xdc8] sm:%s3208]
        %4105 = vst [vmem:[%s3219 + $0xdd0] sm:%s3208] %v4104
        %v4106 = vld [vmem:[%s3218 + $0xdcc] sm:%s3208]
        %4107 = vst [vmem:[%s3219 + $0xdd8] sm:%s3208] %v4106
        %v4108 = vld [vmem:[%s3218 + $0xde0] sm:%s3208]
        %4109 = vst [vmem:[%s3219 + $0xde0] sm:%s3208] %v4108
        %v4110 = vld [vmem:[%s3218 + $0xde4] sm:%s3208]
        %4111 = vst [vmem:[%s3219 + $0xde8] sm:%s3208] %v4110
        %v4112 = vld [vmem:[%s3218 + $0xde8] sm:%s3208]
        %4113 = vst [vmem:[%s3219 + $0xdf0] sm:%s3208] %v4112
        %v4114 = vld [vmem:[%s3218 + $0xdec] sm:%s3208]
        %4115 = vst [vmem:[%s3219 + $0xdf8] sm:%s3208] %v4114
        %v4116 = vld [vmem:[%s3218 + $0xe00] sm:%s3208]
        %4117 = vst [vmem:[%s3219 + $0xe00] sm:%s3208] %v4116
        %v4118 = vld [vmem:[%s3218 + $0xe04] sm:%s3208]
        %4119 = vst [vmem:[%s3219 + $0xe08] sm:%s3208] %v4118
        %v4120 = vld [vmem:[%s3218 + $0xe08] sm:%s3208]
        %4121 = vst [vmem:[%s3219 + $0xe10] sm:%s3208] %v4120
        %v4122 = vld [vmem:[%s3218 + $0xe0c] sm:%s3208]
        %4123 = vst [vmem:[%s3219 + $0xe18] sm:%s3208] %v4122
        %v4124 = vld [vmem:[%s3218 + $0xe20] sm:%s3208]
        %4125 = vst [vmem:[%s3219 + $0xe20] sm:%s3208] %v4124
        %v4126 = vld [vmem:[%s3218 + $0xe24] sm:%s3208]
        %4127 = vst [vmem:[%s3219 + $0xe28] sm:%s3208] %v4126
        %v4128 = vld [vmem:[%s3218 + $0xe28] sm:%s3208]
        %4129 = vst [vmem:[%s3219 + $0xe30] sm:%s3208] %v4128
        %v4130 = vld [vmem:[%s3218 + $0xe2c] sm:%s3208]
        %4131 = vst [vmem:[%s3219 + $0xe38] sm:%s3208] %v4130
        %v4132 = vld [vmem:[%s3218 + $0xe40] sm:%s3208]
        %4133 = vst [vmem:[%s3219 + $0xe40] sm:%s3208] %v4132
        %v4134 = vld [vmem:[%s3218 + $0xe44] sm:%s3208]
        %4135 = vst [vmem:[%s3219 + $0xe48] sm:%s3208] %v4134
        %v4136 = vld [vmem:[%s3218 + $0xe48] sm:%s3208]
        %4137 = vst [vmem:[%s3219 + $0xe50] sm:%s3208] %v4136
        %v4138 = vld [vmem:[%s3218 + $0xe4c] sm:%s3208]
        %4139 = vst [vmem:[%s3219 + $0xe58] sm:%s3208] %v4138
        %v4140 = vld [vmem:[%s3218 + $0xe60] sm:%s3208]
        %4141 = vst [vmem:[%s3219 + $0xe60] sm:%s3208] %v4140
        %v4142 = vld [vmem:[%s3218 + $0xe64] sm:%s3208]
        %4143 = vst [vmem:[%s3219 + $0xe68] sm:%s3208] %v4142
        %v4144 = vld [vmem:[%s3218 + $0xe68] sm:%s3208]
        %4145 = vst [vmem:[%s3219 + $0xe70] sm:%s3208] %v4144
        %v4146 = vld [vmem:[%s3218 + $0xe6c] sm:%s3208]
        %4147 = vst [vmem:[%s3219 + $0xe78] sm:%s3208] %v4146
        %v4148 = vld [vmem:[%s3218 + $0xe80] sm:%s3208]
        %4149 = vst [vmem:[%s3219 + $0xe80] sm:%s3208] %v4148
        %v4150 = vld [vmem:[%s3218 + $0xe84] sm:%s3208]
        %4151 = vst [vmem:[%s3219 + $0xe88] sm:%s3208] %v4150
        %v4152 = vld [vmem:[%s3218 + $0xe88] sm:%s3208]
        %4153 = vst [vmem:[%s3219 + $0xe90] sm:%s3208] %v4152
        %v4154 = vld [vmem:[%s3218 + $0xe8c] sm:%s3208]
        %4155 = vst [vmem:[%s3219 + $0xe98] sm:%s3208] %v4154
        %v4156 = vld [vmem:[%s3218 + $0xea0] sm:%s3208]
        %4157 = vst [vmem:[%s3219 + $0xea0] sm:%s3208] %v4156
        %v4158 = vld [vmem:[%s3218 + $0xea4] sm:%s3208]
        %4159 = vst [vmem:[%s3219 + $0xea8] sm:%s3208] %v4158
        %v4160 = vld [vmem:[%s3218 + $0xea8] sm:%s3208]
        %4161 = vst [vmem:[%s3219 + $0xeb0] sm:%s3208] %v4160
        %v4162 = vld [vmem:[%s3218 + $0xeac] sm:%s3208]
        %4163 = vst [vmem:[%s3219 + $0xeb8] sm:%s3208] %v4162
        %v4164 = vld [vmem:[%s3218 + $0xec0] sm:%s3208]
        %4165 = vst [vmem:[%s3219 + $0xec0] sm:%s3208] %v4164
        %v4166 = vld [vmem:[%s3218 + $0xec4] sm:%s3208]
        %4167 = vst [vmem:[%s3219 + $0xec8] sm:%s3208] %v4166
        %v4168 = vld [vmem:[%s3218 + $0xec8] sm:%s3208]
        %4169 = vst [vmem:[%s3219 + $0xed0] sm:%s3208] %v4168
        %v4170 = vld [vmem:[%s3218 + $0xecc] sm:%s3208]
        %4171 = vst [vmem:[%s3219 + $0xed8] sm:%s3208] %v4170
        %v4172 = vld [vmem:[%s3218 + $0xee0] sm:%s3208]
        %4173 = vst [vmem:[%s3219 + $0xee0] sm:%s3208] %v4172
        %v4174 = vld [vmem:[%s3218 + $0xee4] sm:%s3208]
        %4175 = vst [vmem:[%s3219 + $0xee8] sm:%s3208] %v4174
        %v4176 = vld [vmem:[%s3218 + $0xee8] sm:%s3208]
        %4177 = vst [vmem:[%s3219 + $0xef0] sm:%s3208] %v4176
        %v4178 = vld [vmem:[%s3218 + $0xeec] sm:%s3208]
        %4179 = vst [vmem:[%s3219 + $0xef8] sm:%s3208] %v4178
        %v4180 = vld [vmem:[%s3218 + $0xf00] sm:%s3208]
        %4181 = vst [vmem:[%s3219 + $0xf00] sm:%s3208] %v4180
        %v4182 = vld [vmem:[%s3218 + $0xf04] sm:%s3208]
        %4183 = vst [vmem:[%s3219 + $0xf08] sm:%s3208] %v4182
        %v4184 = vld [vmem:[%s3218 + $0xf08] sm:%s3208]
        %4185 = vst [vmem:[%s3219 + $0xf10] sm:%s3208] %v4184
        %v4186 = vld [vmem:[%s3218 + $0xf0c] sm:%s3208]
        %4187 = vst [vmem:[%s3219 + $0xf18] sm:%s3208] %v4186
        %v4188 = vld [vmem:[%s3218 + $0xf20] sm:%s3208]
        %4189 = vst [vmem:[%s3219 + $0xf20] sm:%s3208] %v4188
        %v4190 = vld [vmem:[%s3218 + $0xf24] sm:%s3208]
        %4191 = vst [vmem:[%s3219 + $0xf28] sm:%s3208] %v4190
        %v4192 = vld [vmem:[%s3218 + $0xf28] sm:%s3208]
        %4193 = vst [vmem:[%s3219 + $0xf30] sm:%s3208] %v4192
        %v4194 = vld [vmem:[%s3218 + $0xf2c] sm:%s3208]
        %4195 = vst [vmem:[%s3219 + $0xf38] sm:%s3208] %v4194
        %v4196 = vld [vmem:[%s3218 + $0xf40] sm:%s3208]
        %4197 = vst [vmem:[%s3219 + $0xf40] sm:%s3208] %v4196
        %v4198 = vld [vmem:[%s3218 + $0xf44] sm:%s3208]
        %4199 = vst [vmem:[%s3219 + $0xf48] sm:%s3208] %v4198
        %v4200 = vld [vmem:[%s3218 + $0xf48] sm:%s3208]
        %4201 = vst [vmem:[%s3219 + $0xf50] sm:%s3208] %v4200
        %v4202 = vld [vmem:[%s3218 + $0xf4c] sm:%s3208]
        %4203 = vst [vmem:[%s3219 + $0xf58] sm:%s3208] %v4202
        %v4204 = vld [vmem:[%s3218 + $0xf60] sm:%s3208]
        %4205 = vst [vmem:[%s3219 + $0xf60] sm:%s3208] %v4204
        %v4206 = vld [vmem:[%s3218 + $0xf64] sm:%s3208]
        %4207 = vst [vmem:[%s3219 + $0xf68] sm:%s3208] %v4206
        %v4208 = vld [vmem:[%s3218 + $0xf68] sm:%s3208]
        %4209 = vst [vmem:[%s3219 + $0xf70] sm:%s3208] %v4208
        %v4210 = vld [vmem:[%s3218 + $0xf6c] sm:%s3208]
        %4211 = vst [vmem:[%s3219 + $0xf78] sm:%s3208] %v4210
        %v4212 = vld [vmem:[%s3218 + $0xf80] sm:%s3208]
        %4213 = vst [vmem:[%s3219 + $0xf80] sm:%s3208] %v4212
        %v4214 = vld [vmem:[%s3218 + $0xf84] sm:%s3208]
        %4215 = vst [vmem:[%s3219 + $0xf88] sm:%s3208] %v4214
        %v4216 = vld [vmem:[%s3218 + $0xf88] sm:%s3208]
        %4217 = vst [vmem:[%s3219 + $0xf90] sm:%s3208] %v4216
        %v4218 = vld [vmem:[%s3218 + $0xf8c] sm:%s3208]
        %4219 = vst [vmem:[%s3219 + $0xf98] sm:%s3208] %v4218
        %v4220 = vld [vmem:[%s3218 + $0xfa0] sm:%s3208]
        %4221 = vst [vmem:[%s3219 + $0xfa0] sm:%s3208] %v4220
        %v4222 = vld [vmem:[%s3218 + $0xfa4] sm:%s3208]
        %4223 = vst [vmem:[%s3219 + $0xfa8] sm:%s3208] %v4222
        %v4224 = vld [vmem:[%s3218 + $0xfa8] sm:%s3208]
        %4225 = vst [vmem:[%s3219 + $0xfb0] sm:%s3208] %v4224
        %v4226 = vld [vmem:[%s3218 + $0xfac] sm:%s3208]
        %4227 = vst [vmem:[%s3219 + $0xfb8] sm:%s3208] %v4226
        %v4228 = vld [vmem:[%s3218 + $0xfc0] sm:%s3208]
        %4229 = vst [vmem:[%s3219 + $0xfc0] sm:%s3208] %v4228
        %v4230 = vld [vmem:[%s3218 + $0xfc4] sm:%s3208]
        %4231 = vst [vmem:[%s3219 + $0xfc8] sm:%s3208] %v4230
        %v4232 = vld [vmem:[%s3218 + $0xfc8] sm:%s3208]
        %4233 = vst [vmem:[%s3219 + $0xfd0] sm:%s3208] %v4232
        %v4234 = vld [vmem:[%s3218 + $0xfcc] sm:%s3208]
        %4235 = vst [vmem:[%s3219 + $0xfd8] sm:%s3208] %v4234
        %v4236 = vld [vmem:[%s3218 + $0xfe0] sm:%s3208]
        %4237 = vst [vmem:[%s3219 + $0xfe0] sm:%s3208] %v4236
        %v4238 = vld [vmem:[%s3218 + $0xfe4] sm:%s3208]
        %4239 = vst [vmem:[%s3219 + $0xfe8] sm:%s3208] %v4238
        %v4240 = vld [vmem:[%s3218 + $0xfe8] sm:%s3208]
        %4241 = vst [vmem:[%s3219 + $0xff0] sm:%s3208] %v4240
        %v4242 = vld [vmem:[%s3218 + $0xfec] sm:%s3208]
        %4243 = vst [vmem:[%s3219 + $0xff8] sm:%s3208] %v4242
        %s4244 = sadd.s32 1, %s3217
        %p4245 = scmp.ge.s32.totalorder %s4244, 2
        %s4246 = scalar_select %p4245, 0, %s4244
        %s4247 = smul.u32 %s4246, 16
        %s4248 = smul.u32 %s4246, 4
        %s4249 = scalar_lea.vmem %s2150, %s4247
        %s4250 = scalar_lea.vmem %s2152, %s4248 [#allocation2]
      $region79: #{_lambda_.1} parent=66 // loop_footer
        %s3216 = sadd.s32 1, %s3212
      $region80: #{_lambda_.1} parent=66 // loop_footer_branch
        %3211 = sbr.rel target = $region76
      $region81: #{_lambda_.1} parent=66 // loop_exit
        _
    $region67: #{_lambda_.1} parent=40 // pred_fallthru
      _
  $region41: #{_lambda_.1} parent=0 // pred_fallthru
    _
  // Predicated region
  $region42: #{_lambda_.1} parent=0 // pred_check
    %p39 = pneg %p35
  $region43: #{_lambda_.1} parent=0 // pred_check_branch
    %41 = sbr.rel (%p39) target = $region45
  $region44: #{_lambda_.1} parent=0 // pred_region
    %s42 = sshllo.u32 0, 4
    loop: start=0, step=1, limit=2
    $region46: #{_lambda_.1} parent=44 // loop_pre_header
      _
    $region47: #{_lambda_.1} parent=44 // loop_header
      %s46 = sphi 0, %s50
      %p47 = scmp.ge.s32.totalorder %s46, 2
      %s51 = sphi 0, %s1080
      %s52 = sphi %s4, %s1083
      %s53 = sphi [#allocation2], %s1084
    $region48: #{_lambda_.1} parent=44 // loop_header_branch
      %49 = sbr.rel (%p47) target = $region52
    $region49: #{_lambda_.1} parent=44 // loop_body
      %v54 = vld [vmem:[%s52] sm:%s42]
      %55 = vst [vmem:[%s53] sm:%s42] %v54
      %v56 = vld [vmem:[%s52 + $0x4] sm:%s42]
      %57 = vst [vmem:[%s53 + $0x8] sm:%s42] %v56
      %v58 = vld [vmem:[%s52 + $0x8] sm:%s42]
      %59 = vst [vmem:[%s53 + $0x10] sm:%s42] %v58
      %v60 = vld [vmem:[%s52 + $0xc] sm:%s42]
      %61 = vst [vmem:[%s53 + $0x18] sm:%s42] %v60
      %v62 = vld [vmem:[%s52 + $0x20] sm:%s42]
      %63 = vst [vmem:[%s53 + $0x20] sm:%s42] %v62
      %v64 = vld [vmem:[%s52 + $0x24] sm:%s42]
      %65 = vst [vmem:[%s53 + $0x28] sm:%s42] %v64
      %v66 = vld [vmem:[%s52 + $0x28] sm:%s42]
      %67 = vst [vmem:[%s53 + $0x30] sm:%s42] %v66
      %v68 = vld [vmem:[%s52 + $0x2c] sm:%s42]
      %69 = vst [vmem:[%s53 + $0x38] sm:%s42] %v68
      %v70 = vld [vmem:[%s52 + $0x40] sm:%s42]
      %71 = vst [vmem:[%s53 + $0x40] sm:%s42] %v70
      %v72 = vld [vmem:[%s52 + $0x44] sm:%s42]
      %73 = vst [vmem:[%s53 + $0x48] sm:%s42] %v72
      %v74 = vld [vmem:[%s52 + $0x48] sm:%s42]
      %75 = vst [vmem:[%s53 + $0x50] sm:%s42] %v74
      %v76 = vld [vmem:[%s52 + $0x4c] sm:%s42]
      %77 = vst [vmem:[%s53 + $0x58] sm:%s42] %v76
      %v78 = vld [vmem:[%s52 + $0x60] sm:%s42]
      %79 = vst [vmem:[%s53 + $0x60] sm:%s42] %v78
      %v80 = vld [vmem:[%s52 + $0x64] sm:%s42]
      %81 = vst [vmem:[%s53 + $0x68] sm:%s42] %v80
      %v82 = vld [vmem:[%s52 + $0x68] sm:%s42]
      %83 = vst [vmem:[%s53 + $0x70] sm:%s42] %v82
      %v84 = vld [vmem:[%s52 + $0x6c] sm:%s42]
      %85 = vst [vmem:[%s53 + $0x78] sm:%s42] %v84
      %v86 = vld [vmem:[%s52 + $0x80] sm:%s42]
      %87 = vst [vmem:[%s53 + $0x80] sm:%s42] %v86
      %v88 = vld [vmem:[%s52 + $0x84] sm:%s42]
      %89 = vst [vmem:[%s53 + $0x88] sm:%s42] %v88
      %v90 = vld [vmem:[%s52 + $0x88] sm:%s42]
      %91 = vst [vmem:[%s53 + $0x90] sm:%s42] %v90
      %v92 = vld [vmem:[%s52 + $0x8c] sm:%s42]
      %93 = vst [vmem:[%s53 + $0x98] sm:%s42] %v92
      %v94 = vld [vmem:[%s52 + $0xa0] sm:%s42]
      %95 = vst [vmem:[%s53 + $0xa0] sm:%s42] %v94
      %v96 = vld [vmem:[%s52 + $0xa4] sm:%s42]
      %97 = vst [vmem:[%s53 + $0xa8] sm:%s42] %v96
      %v98 = vld [vmem:[%s52 + $0xa8] sm:%s42]
      %99 = vst [vmem:[%s53 + $0xb0] sm:%s42] %v98
      %v100 = vld [vmem:[%s52 + $0xac] sm:%s42]
      %101 = vst [vmem:[%s53 + $0xb8] sm:%s42] %v100
      %v102 = vld [vmem:[%s52 + $0xc0] sm:%s42]
      %103 = vst [vmem:[%s53 + $0xc0] sm:%s42] %v102
      %v104 = vld [vmem:[%s52 + $0xc4] sm:%s42]
      %105 = vst [vmem:[%s53 + $0xc8] sm:%s42] %v104
      %v106 = vld [vmem:[%s52 + $0xc8] sm:%s42]
      %107 = vst [vmem:[%s53 + $0xd0] sm:%s42] %v106
      %v108 = vld [vmem:[%s52 + $0xcc] sm:%s42]
      %109 = vst [vmem:[%s53 + $0xd8] sm:%s42] %v108
      %v110 = vld [vmem:[%s52 + $0xe0] sm:%s42]
      %111 = vst [vmem:[%s53 + $0xe0] sm:%s42] %v110
      %v112 = vld [vmem:[%s52 + $0xe4] sm:%s42]
      %113 = vst [vmem:[%s53 + $0xe8] sm:%s42] %v112
      %v114 = vld [vmem:[%s52 + $0xe8] sm:%s42]
      %115 = vst [vmem:[%s53 + $0xf0] sm:%s42] %v114
      %v116 = vld [vmem:[%s52 + $0xec] sm:%s42]
      %117 = vst [vmem:[%s53 + $0xf8] sm:%s42] %v116
      %v118 = vld [vmem:[%s52 + $0x100] sm:%s42]
      %119 = vst [vmem:[%s53 + $0x100] sm:%s42] %v118
      %v120 = vld [vmem:[%s52 + $0x104] sm:%s42]
      %121 = vst [vmem:[%s53 + $0x108] sm:%s42] %v120
      %v122 = vld [vmem:[%s52 + $0x108] sm:%s42]
      %123 = vst [vmem:[%s53 + $0x110] sm:%s42] %v122
      %v124 = vld [vmem:[%s52 + $0x10c] sm:%s42]
      %125 = vst [vmem:[%s53 + $0x118] sm:%s42] %v124
      %v126 = vld [vmem:[%s52 + $0x120] sm:%s42]
      %127 = vst [vmem:[%s53 + $0x120] sm:%s42] %v126
      %v128 = vld [vmem:[%s52 + $0x124] sm:%s42]
      %129 = vst [vmem:[%s53 + $0x128] sm:%s42] %v128
      %v130 = vld [vmem:[%s52 + $0x128] sm:%s42]
      %131 = vst [vmem:[%s53 + $0x130] sm:%s42] %v130
      %v132 = vld [vmem:[%s52 + $0x12c] sm:%s42]
      %133 = vst [vmem:[%s53 + $0x138] sm:%s42] %v132
      %v134 = vld [vmem:[%s52 + $0x140] sm:%s42]
      %135 = vst [vmem:[%s53 + $0x140] sm:%s42] %v134
      %v136 = vld [vmem:[%s52 + $0x144] sm:%s42]
      %137 = vst [vmem:[%s53 + $0x148] sm:%s42] %v136
      %v138 = vld [vmem:[%s52 + $0x148] sm:%s42]
      %139 = vst [vmem:[%s53 + $0x150] sm:%s42] %v138
      %v140 = vld [vmem:[%s52 + $0x14c] sm:%s42]
      %141 = vst [vmem:[%s53 + $0x158] sm:%s42] %v140
      %v142 = vld [vmem:[%s52 + $0x160] sm:%s42]
      %143 = vst [vmem:[%s53 + $0x160] sm:%s42] %v142
      %v144 = vld [vmem:[%s52 + $0x164] sm:%s42]
      %145 = vst [vmem:[%s53 + $0x168] sm:%s42] %v144
      %v146 = vld [vmem:[%s52 + $0x168] sm:%s42]
      %147 = vst [vmem:[%s53 + $0x170] sm:%s42] %v146
      %v148 = vld [vmem:[%s52 + $0x16c] sm:%s42]
      %149 = vst [vmem:[%s53 + $0x178] sm:%s42] %v148
      %v150 = vld [vmem:[%s52 + $0x180] sm:%s42]
      %151 = vst [vmem:[%s53 + $0x180] sm:%s42] %v150
      %v152 = vld [vmem:[%s52 + $0x184] sm:%s42]
      %153 = vst [vmem:[%s53 + $0x188] sm:%s42] %v152
      %v154 = vld [vmem:[%s52 + $0x188] sm:%s42]
      %155 = vst [vmem:[%s53 + $0x190] sm:%s42] %v154
      %v156 = vld [vmem:[%s52 + $0x18c] sm:%s42]
      %157 = vst [vmem:[%s53 + $0x198] sm:%s42] %v156
      %v158 = vld [vmem:[%s52 + $0x1a0] sm:%s42]
      %159 = vst [vmem:[%s53 + $0x1a0] sm:%s42] %v158
      %v160 = vld [vmem:[%s52 + $0x1a4] sm:%s42]
      %161 = vst [vmem:[%s53 + $0x1a8] sm:%s42] %v160
      %v162 = vld [vmem:[%s52 + $0x1a8] sm:%s42]
      %163 = vst [vmem:[%s53 + $0x1b0] sm:%s42] %v162
      %v164 = vld [vmem:[%s52 + $0x1ac] sm:%s42]
      %165 = vst [vmem:[%s53 + $0x1b8] sm:%s42] %v164
      %v166 = vld [vmem:[%s52 + $0x1c0] sm:%s42]
      %167 = vst [vmem:[%s53 + $0x1c0] sm:%s42] %v166
      %v168 = vld [vmem:[%s52 + $0x1c4] sm:%s42]
      %169 = vst [vmem:[%s53 + $0x1c8] sm:%s42] %v168
      %v170 = vld [vmem:[%s52 + $0x1c8] sm:%s42]
      %171 = vst [vmem:[%s53 + $0x1d0] sm:%s42] %v170
      %v172 = vld [vmem:[%s52 + $0x1cc] sm:%s42]
      %173 = vst [vmem:[%s53 + $0x1d8] sm:%s42] %v172
      %v174 = vld [vmem:[%s52 + $0x1e0] sm:%s42]
      %175 = vst [vmem:[%s53 + $0x1e0] sm:%s42] %v174
      %v176 = vld [vmem:[%s52 + $0x1e4] sm:%s42]
      %177 = vst [vmem:[%s53 + $0x1e8] sm:%s42] %v176
      %v178 = vld [vmem:[%s52 + $0x1e8] sm:%s42]
      %179 = vst [vmem:[%s53 + $0x1f0] sm:%s42] %v178
      %v180 = vld [vmem:[%s52 + $0x1ec] sm:%s42]
      %181 = vst [vmem:[%s53 + $0x1f8] sm:%s42] %v180
      %v182 = vld [vmem:[%s52 + $0x200] sm:%s42]
      %183 = vst [vmem:[%s53 + $0x200] sm:%s42] %v182
      %v184 = vld [vmem:[%s52 + $0x204] sm:%s42]
      %185 = vst [vmem:[%s53 + $0x208] sm:%s42] %v184
      %v186 = vld [vmem:[%s52 + $0x208] sm:%s42]
      %187 = vst [vmem:[%s53 + $0x210] sm:%s42] %v186
      %v188 = vld [vmem:[%s52 + $0x20c] sm:%s42]
      %189 = vst [vmem:[%s53 + $0x218] sm:%s42] %v188
      %v190 = vld [vmem:[%s52 + $0x220] sm:%s42]
      %191 = vst [vmem:[%s53 + $0x220] sm:%s42] %v190
      %v192 = vld [vmem:[%s52 + $0x224] sm:%s42]
      %193 = vst [vmem:[%s53 + $0x228] sm:%s42] %v192
      %v194 = vld [vmem:[%s52 + $0x228] sm:%s42]
      %195 = vst [vmem:[%s53 + $0x230] sm:%s42] %v194
      %v196 = vld [vmem:[%s52 + $0x22c] sm:%s42]
      %197 = vst [vmem:[%s53 + $0x238] sm:%s42] %v196
      %v198 = vld [vmem:[%s52 + $0x240] sm:%s42]
      %199 = vst [vmem:[%s53 + $0x240] sm:%s42] %v198
      %v200 = vld [vmem:[%s52 + $0x244] sm:%s42]
      %201 = vst [vmem:[%s53 + $0x248] sm:%s42] %v200
      %v202 = vld [vmem:[%s52 + $0x248] sm:%s42]
      %203 = vst [vmem:[%s53 + $0x250] sm:%s42] %v202
      %v204 = vld [vmem:[%s52 + $0x24c] sm:%s42]
      %205 = vst [vmem:[%s53 + $0x258] sm:%s42] %v204
      %v206 = vld [vmem:[%s52 + $0x260] sm:%s42]
      %207 = vst [vmem:[%s53 + $0x260] sm:%s42] %v206
      %v208 = vld [vmem:[%s52 + $0x264] sm:%s42]
      %209 = vst [vmem:[%s53 + $0x268] sm:%s42] %v208
      %v210 = vld [vmem:[%s52 + $0x268] sm:%s42]
      %211 = vst [vmem:[%s53 + $0x270] sm:%s42] %v210
      %v212 = vld [vmem:[%s52 + $0x26c] sm:%s42]
      %213 = vst [vmem:[%s53 + $0x278] sm:%s42] %v212
      %v214 = vld [vmem:[%s52 + $0x280] sm:%s42]
      %215 = vst [vmem:[%s53 + $0x280] sm:%s42] %v214
      %v216 = vld [vmem:[%s52 + $0x284] sm:%s42]
      %217 = vst [vmem:[%s53 + $0x288] sm:%s42] %v216
      %v218 = vld [vmem:[%s52 + $0x288] sm:%s42]
      %219 = vst [vmem:[%s53 + $0x290] sm:%s42] %v218
      %v220 = vld [vmem:[%s52 + $0x28c] sm:%s42]
      %221 = vst [vmem:[%s53 + $0x298] sm:%s42] %v220
      %v222 = vld [vmem:[%s52 + $0x2a0] sm:%s42]
      %223 = vst [vmem:[%s53 + $0x2a0] sm:%s42] %v222
      %v224 = vld [vmem:[%s52 + $0x2a4] sm:%s42]
      %225 = vst [vmem:[%s53 + $0x2a8] sm:%s42] %v224
      %v226 = vld [vmem:[%s52 + $0x2a8] sm:%s42]
      %227 = vst [vmem:[%s53 + $0x2b0] sm:%s42] %v226
      %v228 = vld [vmem:[%s52 + $0x2ac] sm:%s42]
      %229 = vst [vmem:[%s53 + $0x2b8] sm:%s42] %v228
      %v230 = vld [vmem:[%s52 + $0x2c0] sm:%s42]
      %231 = vst [vmem:[%s53 + $0x2c0] sm:%s42] %v230
      %v232 = vld [vmem:[%s52 + $0x2c4] sm:%s42]
      %233 = vst [vmem:[%s53 + $0x2c8] sm:%s42] %v232
      %v234 = vld [vmem:[%s52 + $0x2c8] sm:%s42]
      %235 = vst [vmem:[%s53 + $0x2d0] sm:%s42] %v234
      %v236 = vld [vmem:[%s52 + $0x2cc] sm:%s42]
      %237 = vst [vmem:[%s53 + $0x2d8] sm:%s42] %v236
      %v238 = vld [vmem:[%s52 + $0x2e0] sm:%s42]
      %239 = vst [vmem:[%s53 + $0x2e0] sm:%s42] %v238
      %v240 = vld [vmem:[%s52 + $0x2e4] sm:%s42]
      %241 = vst [vmem:[%s53 + $0x2e8] sm:%s42] %v240
      %v242 = vld [vmem:[%s52 + $0x2e8] sm:%s42]
      %243 = vst [vmem:[%s53 + $0x2f0] sm:%s42] %v242
      %v244 = vld [vmem:[%s52 + $0x2ec] sm:%s42]
      %245 = vst [vmem:[%s53 + $0x2f8] sm:%s42] %v244
      %v246 = vld [vmem:[%s52 + $0x300] sm:%s42]
      %247 = vst [vmem:[%s53 + $0x300] sm:%s42] %v246
      %v248 = vld [vmem:[%s52 + $0x304] sm:%s42]
      %249 = vst [vmem:[%s53 + $0x308] sm:%s42] %v248
      %v250 = vld [vmem:[%s52 + $0x308] sm:%s42]
      %251 = vst [vmem:[%s53 + $0x310] sm:%s42] %v250
      %v252 = vld [vmem:[%s52 + $0x30c] sm:%s42]
      %253 = vst [vmem:[%s53 + $0x318] sm:%s42] %v252
      %v254 = vld [vmem:[%s52 + $0x320] sm:%s42]
      %255 = vst [vmem:[%s53 + $0x320] sm:%s42] %v254
      %v256 = vld [vmem:[%s52 + $0x324] sm:%s42]
      %257 = vst [vmem:[%s53 + $0x328] sm:%s42] %v256
      %v258 = vld [vmem:[%s52 + $0x328] sm:%s42]
      %259 = vst [vmem:[%s53 + $0x330] sm:%s42] %v258
      %v260 = vld [vmem:[%s52 + $0x32c] sm:%s42]
      %261 = vst [vmem:[%s53 + $0x338] sm:%s42] %v260
      %v262 = vld [vmem:[%s52 + $0x340] sm:%s42]
      %263 = vst [vmem:[%s53 + $0x340] sm:%s42] %v262
      %v264 = vld [vmem:[%s52 + $0x344] sm:%s42]
      %265 = vst [vmem:[%s53 + $0x348] sm:%s42] %v264
      %v266 = vld [vmem:[%s52 + $0x348] sm:%s42]
      %267 = vst [vmem:[%s53 + $0x350] sm:%s42] %v266
      %v268 = vld [vmem:[%s52 + $0x34c] sm:%s42]
      %269 = vst [vmem:[%s53 + $0x358] sm:%s42] %v268
      %v270 = vld [vmem:[%s52 + $0x360] sm:%s42]
      %271 = vst [vmem:[%s53 + $0x360] sm:%s42] %v270
      %v272 = vld [vmem:[%s52 + $0x364] sm:%s42]
      %273 = vst [vmem:[%s53 + $0x368] sm:%s42] %v272
      %v274 = vld [vmem:[%s52 + $0x368] sm:%s42]
      %275 = vst [vmem:[%s53 + $0x370] sm:%s42] %v274
      %v276 = vld [vmem:[%s52 + $0x36c] sm:%s42]
      %277 = vst [vmem:[%s53 + $0x378] sm:%s42] %v276
      %v278 = vld [vmem:[%s52 + $0x380] sm:%s42]
      %279 = vst [vmem:[%s53 + $0x380] sm:%s42] %v278
      %v280 = vld [vmem:[%s52 + $0x384] sm:%s42]
      %281 = vst [vmem:[%s53 + $0x388] sm:%s42] %v280
      %v282 = vld [vmem:[%s52 + $0x388] sm:%s42]
      %283 = vst [vmem:[%s53 + $0x390] sm:%s42] %v282
      %v284 = vld [vmem:[%s52 + $0x38c] sm:%s42]
      %285 = vst [vmem:[%s53 + $0x398] sm:%s42] %v284
      %v286 = vld [vmem:[%s52 + $0x3a0] sm:%s42]
      %287 = vst [vmem:[%s53 + $0x3a0] sm:%s42] %v286
      %v288 = vld [vmem:[%s52 + $0x3a4] sm:%s42]
      %289 = vst [vmem:[%s53 + $0x3a8] sm:%s42] %v288
      %v290 = vld [vmem:[%s52 + $0x3a8] sm:%s42]
      %291 = vst [vmem:[%s53 + $0x3b0] sm:%s42] %v290
      %v292 = vld [vmem:[%s52 + $0x3ac] sm:%s42]
      %293 = vst [vmem:[%s53 + $0x3b8] sm:%s42] %v292
      %v294 = vld [vmem:[%s52 + $0x3c0] sm:%s42]
      %295 = vst [vmem:[%s53 + $0x3c0] sm:%s42] %v294
      %v296 = vld [vmem:[%s52 + $0x3c4] sm:%s42]
      %297 = vst [vmem:[%s53 + $0x3c8] sm:%s42] %v296
      %v298 = vld [vmem:[%s52 + $0x3c8] sm:%s42]
      %299 = vst [vmem:[%s53 + $0x3d0] sm:%s42] %v298
      %v300 = vld [vmem:[%s52 + $0x3cc] sm:%s42]
      %301 = vst [vmem:[%s53 + $0x3d8] sm:%s42] %v300
      %v302 = vld [vmem:[%s52 + $0x3e0] sm:%s42]
      %303 = vst [vmem:[%s53 + $0x3e0] sm:%s42] %v302
      %v304 = vld [vmem:[%s52 + $0x3e4] sm:%s42]
      %305 = vst [vmem:[%s53 + $0x3e8] sm:%s42] %v304
      %v306 = vld [vmem:[%s52 + $0x3e8] sm:%s42]
      %307 = vst [vmem:[%s53 + $0x3f0] sm:%s42] %v306
      %v308 = vld [vmem:[%s52 + $0x3ec] sm:%s42]
      %309 = vst [vmem:[%s53 + $0x3f8] sm:%s42] %v308
      %v310 = vld [vmem:[%s52 + $0x400] sm:%s42]
      %311 = vst [vmem:[%s53 + $0x400] sm:%s42] %v310
      %v312 = vld [vmem:[%s52 + $0x404] sm:%s42]
      %313 = vst [vmem:[%s53 + $0x408] sm:%s42] %v312
      %v314 = vld [vmem:[%s52 + $0x408] sm:%s42]
      %315 = vst [vmem:[%s53 + $0x410] sm:%s42] %v314
      %v316 = vld [vmem:[%s52 + $0x40c] sm:%s42]
      %317 = vst [vmem:[%s53 + $0x418] sm:%s42] %v316
      %v318 = vld [vmem:[%s52 + $0x420] sm:%s42]
      %319 = vst [vmem:[%s53 + $0x420] sm:%s42] %v318
      %v320 = vld [vmem:[%s52 + $0x424] sm:%s42]
      %321 = vst [vmem:[%s53 + $0x428] sm:%s42] %v320
      %v322 = vld [vmem:[%s52 + $0x428] sm:%s42]
      %323 = vst [vmem:[%s53 + $0x430] sm:%s42] %v322
      %v324 = vld [vmem:[%s52 + $0x42c] sm:%s42]
      %325 = vst [vmem:[%s53 + $0x438] sm:%s42] %v324
      %v326 = vld [vmem:[%s52 + $0x440] sm:%s42]
      %327 = vst [vmem:[%s53 + $0x440] sm:%s42] %v326
      %v328 = vld [vmem:[%s52 + $0x444] sm:%s42]
      %329 = vst [vmem:[%s53 + $0x448] sm:%s42] %v328
      %v330 = vld [vmem:[%s52 + $0x448] sm:%s42]
      %331 = vst [vmem:[%s53 + $0x450] sm:%s42] %v330
      %v332 = vld [vmem:[%s52 + $0x44c] sm:%s42]
      %333 = vst [vmem:[%s53 + $0x458] sm:%s42] %v332
      %v334 = vld [vmem:[%s52 + $0x460] sm:%s42]
      %335 = vst [vmem:[%s53 + $0x460] sm:%s42] %v334
      %v336 = vld [vmem:[%s52 + $0x464] sm:%s42]
      %337 = vst [vmem:[%s53 + $0x468] sm:%s42] %v336
      %v338 = vld [vmem:[%s52 + $0x468] sm:%s42]
      %339 = vst [vmem:[%s53 + $0x470] sm:%s42] %v338
      %v340 = vld [vmem:[%s52 + $0x46c] sm:%s42]
      %341 = vst [vmem:[%s53 + $0x478] sm:%s42] %v340
      %v342 = vld [vmem:[%s52 + $0x480] sm:%s42]
      %343 = vst [vmem:[%s53 + $0x480] sm:%s42] %v342
      %v344 = vld [vmem:[%s52 + $0x484] sm:%s42]
      %345 = vst [vmem:[%s53 + $0x488] sm:%s42] %v344
      %v346 = vld [vmem:[%s52 + $0x488] sm:%s42]
      %347 = vst [vmem:[%s53 + $0x490] sm:%s42] %v346
      %v348 = vld [vmem:[%s52 + $0x48c] sm:%s42]
      %349 = vst [vmem:[%s53 + $0x498] sm:%s42] %v348
      %v350 = vld [vmem:[%s52 + $0x4a0] sm:%s42]
      %351 = vst [vmem:[%s53 + $0x4a0] sm:%s42] %v350
      %v352 = vld [vmem:[%s52 + $0x4a4] sm:%s42]
      %353 = vst [vmem:[%s53 + $0x4a8] sm:%s42] %v352
      %v354 = vld [vmem:[%s52 + $0x4a8] sm:%s42]
      %355 = vst [vmem:[%s53 + $0x4b0] sm:%s42] %v354
      %v356 = vld [vmem:[%s52 + $0x4ac] sm:%s42]
      %357 = vst [vmem:[%s53 + $0x4b8] sm:%s42] %v356
      %v358 = vld [vmem:[%s52 + $0x4c0] sm:%s42]
      %359 = vst [vmem:[%s53 + $0x4c0] sm:%s42] %v358
      %v360 = vld [vmem:[%s52 + $0x4c4] sm:%s42]
      %361 = vst [vmem:[%s53 + $0x4c8] sm:%s42] %v360
      %v362 = vld [vmem:[%s52 + $0x4c8] sm:%s42]
      %363 = vst [vmem:[%s53 + $0x4d0] sm:%s42] %v362
      %v364 = vld [vmem:[%s52 + $0x4cc] sm:%s42]
      %365 = vst [vmem:[%s53 + $0x4d8] sm:%s42] %v364
      %v366 = vld [vmem:[%s52 + $0x4e0] sm:%s42]
      %367 = vst [vmem:[%s53 + $0x4e0] sm:%s42] %v366
      %v368 = vld [vmem:[%s52 + $0x4e4] sm:%s42]
      %369 = vst [vmem:[%s53 + $0x4e8] sm:%s42] %v368
      %v370 = vld [vmem:[%s52 + $0x4e8] sm:%s42]
      %371 = vst [vmem:[%s53 + $0x4f0] sm:%s42] %v370
      %v372 = vld [vmem:[%s52 + $0x4ec] sm:%s42]
      %373 = vst [vmem:[%s53 + $0x4f8] sm:%s42] %v372
      %v374 = vld [vmem:[%s52 + $0x500] sm:%s42]
      %375 = vst [vmem:[%s53 + $0x500] sm:%s42] %v374
      %v376 = vld [vmem:[%s52 + $0x504] sm:%s42]
      %377 = vst [vmem:[%s53 + $0x508] sm:%s42] %v376
      %v378 = vld [vmem:[%s52 + $0x508] sm:%s42]
      %379 = vst [vmem:[%s53 + $0x510] sm:%s42] %v378
      %v380 = vld [vmem:[%s52 + $0x50c] sm:%s42]
      %381 = vst [vmem:[%s53 + $0x518] sm:%s42] %v380
      %v382 = vld [vmem:[%s52 + $0x520] sm:%s42]
      %383 = vst [vmem:[%s53 + $0x520] sm:%s42] %v382
      %v384 = vld [vmem:[%s52 + $0x524] sm:%s42]
      %385 = vst [vmem:[%s53 + $0x528] sm:%s42] %v384
      %v386 = vld [vmem:[%s52 + $0x528] sm:%s42]
      %387 = vst [vmem:[%s53 + $0x530] sm:%s42] %v386
      %v388 = vld [vmem:[%s52 + $0x52c] sm:%s42]
      %389 = vst [vmem:[%s53 + $0x538] sm:%s42] %v388
      %v390 = vld [vmem:[%s52 + $0x540] sm:%s42]
      %391 = vst [vmem:[%s53 + $0x540] sm:%s42] %v390
      %v392 = vld [vmem:[%s52 + $0x544] sm:%s42]
      %393 = vst [vmem:[%s53 + $0x548] sm:%s42] %v392
      %v394 = vld [vmem:[%s52 + $0x548] sm:%s42]
      %395 = vst [vmem:[%s53 + $0x550] sm:%s42] %v394
      %v396 = vld [vmem:[%s52 + $0x54c] sm:%s42]
      %397 = vst [vmem:[%s53 + $0x558] sm:%s42] %v396
      %v398 = vld [vmem:[%s52 + $0x560] sm:%s42]
      %399 = vst [vmem:[%s53 + $0x560] sm:%s42] %v398
      %v400 = vld [vmem:[%s52 + $0x564] sm:%s42]
      %401 = vst [vmem:[%s53 + $0x568] sm:%s42] %v400
      %v402 = vld [vmem:[%s52 + $0x568] sm:%s42]
      %403 = vst [vmem:[%s53 + $0x570] sm:%s42] %v402
      %v404 = vld [vmem:[%s52 + $0x56c] sm:%s42]
      %405 = vst [vmem:[%s53 + $0x578] sm:%s42] %v404
      %v406 = vld [vmem:[%s52 + $0x580] sm:%s42]
      %407 = vst [vmem:[%s53 + $0x580] sm:%s42] %v406
      %v408 = vld [vmem:[%s52 + $0x584] sm:%s42]
      %409 = vst [vmem:[%s53 + $0x588] sm:%s42] %v408
      %v410 = vld [vmem:[%s52 + $0x588] sm:%s42]
      %411 = vst [vmem:[%s53 + $0x590] sm:%s42] %v410
      %v412 = vld [vmem:[%s52 + $0x58c] sm:%s42]
      %413 = vst [vmem:[%s53 + $0x598] sm:%s42] %v412
      %v414 = vld [vmem:[%s52 + $0x5a0] sm:%s42]
      %415 = vst [vmem:[%s53 + $0x5a0] sm:%s42] %v414
      %v416 = vld [vmem:[%s52 + $0x5a4] sm:%s42]
      %417 = vst [vmem:[%s53 + $0x5a8] sm:%s42] %v416
      %v418 = vld [vmem:[%s52 + $0x5a8] sm:%s42]
      %419 = vst [vmem:[%s53 + $0x5b0] sm:%s42] %v418
      %v420 = vld [vmem:[%s52 + $0x5ac] sm:%s42]
      %421 = vst [vmem:[%s53 + $0x5b8] sm:%s42] %v420
      %v422 = vld [vmem:[%s52 + $0x5c0] sm:%s42]
      %423 = vst [vmem:[%s53 + $0x5c0] sm:%s42] %v422
      %v424 = vld [vmem:[%s52 + $0x5c4] sm:%s42]
      %425 = vst [vmem:[%s53 + $0x5c8] sm:%s42] %v424
      %v426 = vld [vmem:[%s52 + $0x5c8] sm:%s42]
      %427 = vst [vmem:[%s53 + $0x5d0] sm:%s42] %v426
      %v428 = vld [vmem:[%s52 + $0x5cc] sm:%s42]
      %429 = vst [vmem:[%s53 + $0x5d8] sm:%s42] %v428
      %v430 = vld [vmem:[%s52 + $0x5e0] sm:%s42]
      %431 = vst [vmem:[%s53 + $0x5e0] sm:%s42] %v430
      %v432 = vld [vmem:[%s52 + $0x5e4] sm:%s42]
      %433 = vst [vmem:[%s53 + $0x5e8] sm:%s42] %v432
      %v434 = vld [vmem:[%s52 + $0x5e8] sm:%s42]
      %435 = vst [vmem:[%s53 + $0x5f0] sm:%s42] %v434
      %v436 = vld [vmem:[%s52 + $0x5ec] sm:%s42]
      %437 = vst [vmem:[%s53 + $0x5f8] sm:%s42] %v436
      %v438 = vld [vmem:[%s52 + $0x600] sm:%s42]
      %439 = vst [vmem:[%s53 + $0x600] sm:%s42] %v438
      %v440 = vld [vmem:[%s52 + $0x604] sm:%s42]
      %441 = vst [vmem:[%s53 + $0x608] sm:%s42] %v440
      %v442 = vld [vmem:[%s52 + $0x608] sm:%s42]
      %443 = vst [vmem:[%s53 + $0x610] sm:%s42] %v442
      %v444 = vld [vmem:[%s52 + $0x60c] sm:%s42]
      %445 = vst [vmem:[%s53 + $0x618] sm:%s42] %v444
      %v446 = vld [vmem:[%s52 + $0x620] sm:%s42]
      %447 = vst [vmem:[%s53 + $0x620] sm:%s42] %v446
      %v448 = vld [vmem:[%s52 + $0x624] sm:%s42]
      %449 = vst [vmem:[%s53 + $0x628] sm:%s42] %v448
      %v450 = vld [vmem:[%s52 + $0x628] sm:%s42]
      %451 = vst [vmem:[%s53 + $0x630] sm:%s42] %v450
      %v452 = vld [vmem:[%s52 + $0x62c] sm:%s42]
      %453 = vst [vmem:[%s53 + $0x638] sm:%s42] %v452
      %v454 = vld [vmem:[%s52 + $0x640] sm:%s42]
      %455 = vst [vmem:[%s53 + $0x640] sm:%s42] %v454
      %v456 = vld [vmem:[%s52 + $0x644] sm:%s42]
      %457 = vst [vmem:[%s53 + $0x648] sm:%s42] %v456
      %v458 = vld [vmem:[%s52 + $0x648] sm:%s42]
      %459 = vst [vmem:[%s53 + $0x650] sm:%s42] %v458
      %v460 = vld [vmem:[%s52 + $0x64c] sm:%s42]
      %461 = vst [vmem:[%s53 + $0x658] sm:%s42] %v460
      %v462 = vld [vmem:[%s52 + $0x660] sm:%s42]
      %463 = vst [vmem:[%s53 + $0x660] sm:%s42] %v462
      %v464 = vld [vmem:[%s52 + $0x664] sm:%s42]
      %465 = vst [vmem:[%s53 + $0x668] sm:%s42] %v464
      %v466 = vld [vmem:[%s52 + $0x668] sm:%s42]
      %467 = vst [vmem:[%s53 + $0x670] sm:%s42] %v466
      %v468 = vld [vmem:[%s52 + $0x66c] sm:%s42]
      %469 = vst [vmem:[%s53 + $0x678] sm:%s42] %v468
      %v470 = vld [vmem:[%s52 + $0x680] sm:%s42]
      %471 = vst [vmem:[%s53 + $0x680] sm:%s42] %v470
      %v472 = vld [vmem:[%s52 + $0x684] sm:%s42]
      %473 = vst [vmem:[%s53 + $0x688] sm:%s42] %v472
      %v474 = vld [vmem:[%s52 + $0x688] sm:%s42]
      %475 = vst [vmem:[%s53 + $0x690] sm:%s42] %v474
      %v476 = vld [vmem:[%s52 + $0x68c] sm:%s42]
      %477 = vst [vmem:[%s53 + $0x698] sm:%s42] %v476
      %v478 = vld [vmem:[%s52 + $0x6a0] sm:%s42]
      %479 = vst [vmem:[%s53 + $0x6a0] sm:%s42] %v478
      %v480 = vld [vmem:[%s52 + $0x6a4] sm:%s42]
      %481 = vst [vmem:[%s53 + $0x6a8] sm:%s42] %v480
      %v482 = vld [vmem:[%s52 + $0x6a8] sm:%s42]
      %483 = vst [vmem:[%s53 + $0x6b0] sm:%s42] %v482
      %v484 = vld [vmem:[%s52 + $0x6ac] sm:%s42]
      %485 = vst [vmem:[%s53 + $0x6b8] sm:%s42] %v484
      %v486 = vld [vmem:[%s52 + $0x6c0] sm:%s42]
      %487 = vst [vmem:[%s53 + $0x6c0] sm:%s42] %v486
      %v488 = vld [vmem:[%s52 + $0x6c4] sm:%s42]
      %489 = vst [vmem:[%s53 + $0x6c8] sm:%s42] %v488
      %v490 = vld [vmem:[%s52 + $0x6c8] sm:%s42]
      %491 = vst [vmem:[%s53 + $0x6d0] sm:%s42] %v490
      %v492 = vld [vmem:[%s52 + $0x6cc] sm:%s42]
      %493 = vst [vmem:[%s53 + $0x6d8] sm:%s42] %v492
      %v494 = vld [vmem:[%s52 + $0x6e0] sm:%s42]
      %495 = vst [vmem:[%s53 + $0x6e0] sm:%s42] %v494
      %v496 = vld [vmem:[%s52 + $0x6e4] sm:%s42]
      %497 = vst [vmem:[%s53 + $0x6e8] sm:%s42] %v496
      %v498 = vld [vmem:[%s52 + $0x6e8] sm:%s42]
      %499 = vst [vmem:[%s53 + $0x6f0] sm:%s42] %v498
      %v500 = vld [vmem:[%s52 + $0x6ec] sm:%s42]
      %501 = vst [vmem:[%s53 + $0x6f8] sm:%s42] %v500
      %v502 = vld [vmem:[%s52 + $0x700] sm:%s42]
      %503 = vst [vmem:[%s53 + $0x700] sm:%s42] %v502
      %v504 = vld [vmem:[%s52 + $0x704] sm:%s42]
      %505 = vst [vmem:[%s53 + $0x708] sm:%s42] %v504
      %v506 = vld [vmem:[%s52 + $0x708] sm:%s42]
      %507 = vst [vmem:[%s53 + $0x710] sm:%s42] %v506
      %v508 = vld [vmem:[%s52 + $0x70c] sm:%s42]
      %509 = vst [vmem:[%s53 + $0x718] sm:%s42] %v508
      %v510 = vld [vmem:[%s52 + $0x720] sm:%s42]
      %511 = vst [vmem:[%s53 + $0x720] sm:%s42] %v510
      %v512 = vld [vmem:[%s52 + $0x724] sm:%s42]
      %513 = vst [vmem:[%s53 + $0x728] sm:%s42] %v512
      %v514 = vld [vmem:[%s52 + $0x728] sm:%s42]
      %515 = vst [vmem:[%s53 + $0x730] sm:%s42] %v514
      %v516 = vld [vmem:[%s52 + $0x72c] sm:%s42]
      %517 = vst [vmem:[%s53 + $0x738] sm:%s42] %v516
      %v518 = vld [vmem:[%s52 + $0x740] sm:%s42]
      %519 = vst [vmem:[%s53 + $0x740] sm:%s42] %v518
      %v520 = vld [vmem:[%s52 + $0x744] sm:%s42]
      %521 = vst [vmem:[%s53 + $0x748] sm:%s42] %v520
      %v522 = vld [vmem:[%s52 + $0x748] sm:%s42]
      %523 = vst [vmem:[%s53 + $0x750] sm:%s42] %v522
      %v524 = vld [vmem:[%s52 + $0x74c] sm:%s42]
      %525 = vst [vmem:[%s53 + $0x758] sm:%s42] %v524
      %v526 = vld [vmem:[%s52 + $0x760] sm:%s42]
      %527 = vst [vmem:[%s53 + $0x760] sm:%s42] %v526
      %v528 = vld [vmem:[%s52 + $0x764] sm:%s42]
      %529 = vst [vmem:[%s53 + $0x768] sm:%s42] %v528
      %v530 = vld [vmem:[%s52 + $0x768] sm:%s42]
      %531 = vst [vmem:[%s53 + $0x770] sm:%s42] %v530
      %v532 = vld [vmem:[%s52 + $0x76c] sm:%s42]
      %533 = vst [vmem:[%s53 + $0x778] sm:%s42] %v532
      %v534 = vld [vmem:[%s52 + $0x780] sm:%s42]
      %535 = vst [vmem:[%s53 + $0x780] sm:%s42] %v534
      %v536 = vld [vmem:[%s52 + $0x784] sm:%s42]
      %537 = vst [vmem:[%s53 + $0x788] sm:%s42] %v536
      %v538 = vld [vmem:[%s52 + $0x788] sm:%s42]
      %539 = vst [vmem:[%s53 + $0x790] sm:%s42] %v538
      %v540 = vld [vmem:[%s52 + $0x78c] sm:%s42]
      %541 = vst [vmem:[%s53 + $0x798] sm:%s42] %v540
      %v542 = vld [vmem:[%s52 + $0x7a0] sm:%s42]
      %543 = vst [vmem:[%s53 + $0x7a0] sm:%s42] %v542
      %v544 = vld [vmem:[%s52 + $0x7a4] sm:%s42]
      %545 = vst [vmem:[%s53 + $0x7a8] sm:%s42] %v544
      %v546 = vld [vmem:[%s52 + $0x7a8] sm:%s42]
      %547 = vst [vmem:[%s53 + $0x7b0] sm:%s42] %v546
      %v548 = vld [vmem:[%s52 + $0x7ac] sm:%s42]
      %549 = vst [vmem:[%s53 + $0x7b8] sm:%s42] %v548
      %v550 = vld [vmem:[%s52 + $0x7c0] sm:%s42]
      %551 = vst [vmem:[%s53 + $0x7c0] sm:%s42] %v550
      %v552 = vld [vmem:[%s52 + $0x7c4] sm:%s42]
      %553 = vst [vmem:[%s53 + $0x7c8] sm:%s42] %v552
      %v554 = vld [vmem:[%s52 + $0x7c8] sm:%s42]
      %555 = vst [vmem:[%s53 + $0x7d0] sm:%s42] %v554
      %v556 = vld [vmem:[%s52 + $0x7cc] sm:%s42]
      %557 = vst [vmem:[%s53 + $0x7d8] sm:%s42] %v556
      %v558 = vld [vmem:[%s52 + $0x7e0] sm:%s42]
      %559 = vst [vmem:[%s53 + $0x7e0] sm:%s42] %v558
      %v560 = vld [vmem:[%s52 + $0x7e4] sm:%s42]
      %561 = vst [vmem:[%s53 + $0x7e8] sm:%s42] %v560
      %v562 = vld [vmem:[%s52 + $0x7e8] sm:%s42]
      %563 = vst [vmem:[%s53 + $0x7f0] sm:%s42] %v562
      %v564 = vld [vmem:[%s52 + $0x7ec] sm:%s42]
      %565 = vst [vmem:[%s53 + $0x7f8] sm:%s42] %v564
      %v566 = vld [vmem:[%s52 + $0x800] sm:%s42]
      %567 = vst [vmem:[%s53 + $0x800] sm:%s42] %v566
      %v568 = vld [vmem:[%s52 + $0x804] sm:%s42]
      %569 = vst [vmem:[%s53 + $0x808] sm:%s42] %v568
      %v570 = vld [vmem:[%s52 + $0x808] sm:%s42]
      %571 = vst [vmem:[%s53 + $0x810] sm:%s42] %v570
      %v572 = vld [vmem:[%s52 + $0x80c] sm:%s42]
      %573 = vst [vmem:[%s53 + $0x818] sm:%s42] %v572
      %v574 = vld [vmem:[%s52 + $0x820] sm:%s42]
      %575 = vst [vmem:[%s53 + $0x820] sm:%s42] %v574
      %v576 = vld [vmem:[%s52 + $0x824] sm:%s42]
      %577 = vst [vmem:[%s53 + $0x828] sm:%s42] %v576
      %v578 = vld [vmem:[%s52 + $0x828] sm:%s42]
      %579 = vst [vmem:[%s53 + $0x830] sm:%s42] %v578
      %v580 = vld [vmem:[%s52 + $0x82c] sm:%s42]
      %581 = vst [vmem:[%s53 + $0x838] sm:%s42] %v580
      %v582 = vld [vmem:[%s52 + $0x840] sm:%s42]
      %583 = vst [vmem:[%s53 + $0x840] sm:%s42] %v582
      %v584 = vld [vmem:[%s52 + $0x844] sm:%s42]
      %585 = vst [vmem:[%s53 + $0x848] sm:%s42] %v584
      %v586 = vld [vmem:[%s52 + $0x848] sm:%s42]
      %587 = vst [vmem:[%s53 + $0x850] sm:%s42] %v586
      %v588 = vld [vmem:[%s52 + $0x84c] sm:%s42]
      %589 = vst [vmem:[%s53 + $0x858] sm:%s42] %v588
      %v590 = vld [vmem:[%s52 + $0x860] sm:%s42]
      %591 = vst [vmem:[%s53 + $0x860] sm:%s42] %v590
      %v592 = vld [vmem:[%s52 + $0x864] sm:%s42]
      %593 = vst [vmem:[%s53 + $0x868] sm:%s42] %v592
      %v594 = vld [vmem:[%s52 + $0x868] sm:%s42]
      %595 = vst [vmem:[%s53 + $0x870] sm:%s42] %v594
      %v596 = vld [vmem:[%s52 + $0x86c] sm:%s42]
      %597 = vst [vmem:[%s53 + $0x878] sm:%s42] %v596
      %v598 = vld [vmem:[%s52 + $0x880] sm:%s42]
      %599 = vst [vmem:[%s53 + $0x880] sm:%s42] %v598
      %v600 = vld [vmem:[%s52 + $0x884] sm:%s42]
      %601 = vst [vmem:[%s53 + $0x888] sm:%s42] %v600
      %v602 = vld [vmem:[%s52 + $0x888] sm:%s42]
      %603 = vst [vmem:[%s53 + $0x890] sm:%s42] %v602
      %v604 = vld [vmem:[%s52 + $0x88c] sm:%s42]
      %605 = vst [vmem:[%s53 + $0x898] sm:%s42] %v604
      %v606 = vld [vmem:[%s52 + $0x8a0] sm:%s42]
      %607 = vst [vmem:[%s53 + $0x8a0] sm:%s42] %v606
      %v608 = vld [vmem:[%s52 + $0x8a4] sm:%s42]
      %609 = vst [vmem:[%s53 + $0x8a8] sm:%s42] %v608
      %v610 = vld [vmem:[%s52 + $0x8a8] sm:%s42]
      %611 = vst [vmem:[%s53 + $0x8b0] sm:%s42] %v610
      %v612 = vld [vmem:[%s52 + $0x8ac] sm:%s42]
      %613 = vst [vmem:[%s53 + $0x8b8] sm:%s42] %v612
      %v614 = vld [vmem:[%s52 + $0x8c0] sm:%s42]
      %615 = vst [vmem:[%s53 + $0x8c0] sm:%s42] %v614
      %v616 = vld [vmem:[%s52 + $0x8c4] sm:%s42]
      %617 = vst [vmem:[%s53 + $0x8c8] sm:%s42] %v616
      %v618 = vld [vmem:[%s52 + $0x8c8] sm:%s42]
      %619 = vst [vmem:[%s53 + $0x8d0] sm:%s42] %v618
      %v620 = vld [vmem:[%s52 + $0x8cc] sm:%s42]
      %621 = vst [vmem:[%s53 + $0x8d8] sm:%s42] %v620
      %v622 = vld [vmem:[%s52 + $0x8e0] sm:%s42]
      %623 = vst [vmem:[%s53 + $0x8e0] sm:%s42] %v622
      %v624 = vld [vmem:[%s52 + $0x8e4] sm:%s42]
      %625 = vst [vmem:[%s53 + $0x8e8] sm:%s42] %v624
      %v626 = vld [vmem:[%s52 + $0x8e8] sm:%s42]
      %627 = vst [vmem:[%s53 + $0x8f0] sm:%s42] %v626
      %v628 = vld [vmem:[%s52 + $0x8ec] sm:%s42]
      %629 = vst [vmem:[%s53 + $0x8f8] sm:%s42] %v628
      %v630 = vld [vmem:[%s52 + $0x900] sm:%s42]
      %631 = vst [vmem:[%s53 + $0x900] sm:%s42] %v630
      %v632 = vld [vmem:[%s52 + $0x904] sm:%s42]
      %633 = vst [vmem:[%s53 + $0x908] sm:%s42] %v632
      %v634 = vld [vmem:[%s52 + $0x908] sm:%s42]
      %635 = vst [vmem:[%s53 + $0x910] sm:%s42] %v634
      %v636 = vld [vmem:[%s52 + $0x90c] sm:%s42]
      %637 = vst [vmem:[%s53 + $0x918] sm:%s42] %v636
      %v638 = vld [vmem:[%s52 + $0x920] sm:%s42]
      %639 = vst [vmem:[%s53 + $0x920] sm:%s42] %v638
      %v640 = vld [vmem:[%s52 + $0x924] sm:%s42]
      %641 = vst [vmem:[%s53 + $0x928] sm:%s42] %v640
      %v642 = vld [vmem:[%s52 + $0x928] sm:%s42]
      %643 = vst [vmem:[%s53 + $0x930] sm:%s42] %v642
      %v644 = vld [vmem:[%s52 + $0x92c] sm:%s42]
      %645 = vst [vmem:[%s53 + $0x938] sm:%s42] %v644
      %v646 = vld [vmem:[%s52 + $0x940] sm:%s42]
      %647 = vst [vmem:[%s53 + $0x940] sm:%s42] %v646
      %v648 = vld [vmem:[%s52 + $0x944] sm:%s42]
      %649 = vst [vmem:[%s53 + $0x948] sm:%s42] %v648
      %v650 = vld [vmem:[%s52 + $0x948] sm:%s42]
      %651 = vst [vmem:[%s53 + $0x950] sm:%s42] %v650
      %v652 = vld [vmem:[%s52 + $0x94c] sm:%s42]
      %653 = vst [vmem:[%s53 + $0x958] sm:%s42] %v652
      %v654 = vld [vmem:[%s52 + $0x960] sm:%s42]
      %655 = vst [vmem:[%s53 + $0x960] sm:%s42] %v654
      %v656 = vld [vmem:[%s52 + $0x964] sm:%s42]
      %657 = vst [vmem:[%s53 + $0x968] sm:%s42] %v656
      %v658 = vld [vmem:[%s52 + $0x968] sm:%s42]
      %659 = vst [vmem:[%s53 + $0x970] sm:%s42] %v658
      %v660 = vld [vmem:[%s52 + $0x96c] sm:%s42]
      %661 = vst [vmem:[%s53 + $0x978] sm:%s42] %v660
      %v662 = vld [vmem:[%s52 + $0x980] sm:%s42]
      %663 = vst [vmem:[%s53 + $0x980] sm:%s42] %v662
      %v664 = vld [vmem:[%s52 + $0x984] sm:%s42]
      %665 = vst [vmem:[%s53 + $0x988] sm:%s42] %v664
      %v666 = vld [vmem:[%s52 + $0x988] sm:%s42]
      %667 = vst [vmem:[%s53 + $0x990] sm:%s42] %v666
      %v668 = vld [vmem:[%s52 + $0x98c] sm:%s42]
      %669 = vst [vmem:[%s53 + $0x998] sm:%s42] %v668
      %v670 = vld [vmem:[%s52 + $0x9a0] sm:%s42]
      %671 = vst [vmem:[%s53 + $0x9a0] sm:%s42] %v670
      %v672 = vld [vmem:[%s52 + $0x9a4] sm:%s42]
      %673 = vst [vmem:[%s53 + $0x9a8] sm:%s42] %v672
      %v674 = vld [vmem:[%s52 + $0x9a8] sm:%s42]
      %675 = vst [vmem:[%s53 + $0x9b0] sm:%s42] %v674
      %v676 = vld [vmem:[%s52 + $0x9ac] sm:%s42]
      %677 = vst [vmem:[%s53 + $0x9b8] sm:%s42] %v676
      %v678 = vld [vmem:[%s52 + $0x9c0] sm:%s42]
      %679 = vst [vmem:[%s53 + $0x9c0] sm:%s42] %v678
      %v680 = vld [vmem:[%s52 + $0x9c4] sm:%s42]
      %681 = vst [vmem:[%s53 + $0x9c8] sm:%s42] %v680
      %v682 = vld [vmem:[%s52 + $0x9c8] sm:%s42]
      %683 = vst [vmem:[%s53 + $0x9d0] sm:%s42] %v682
      %v684 = vld [vmem:[%s52 + $0x9cc] sm:%s42]
      %685 = vst [vmem:[%s53 + $0x9d8] sm:%s42] %v684
      %v686 = vld [vmem:[%s52 + $0x9e0] sm:%s42]
      %687 = vst [vmem:[%s53 + $0x9e0] sm:%s42] %v686
      %v688 = vld [vmem:[%s52 + $0x9e4] sm:%s42]
      %689 = vst [vmem:[%s53 + $0x9e8] sm:%s42] %v688
      %v690 = vld [vmem:[%s52 + $0x9e8] sm:%s42]
      %691 = vst [vmem:[%s53 + $0x9f0] sm:%s42] %v690
      %v692 = vld [vmem:[%s52 + $0x9ec] sm:%s42]
      %693 = vst [vmem:[%s53 + $0x9f8] sm:%s42] %v692
      %v694 = vld [vmem:[%s52 + $0xa00] sm:%s42]
      %695 = vst [vmem:[%s53 + $0xa00] sm:%s42] %v694
      %v696 = vld [vmem:[%s52 + $0xa04] sm:%s42]
      %697 = vst [vmem:[%s53 + $0xa08] sm:%s42] %v696
      %v698 = vld [vmem:[%s52 + $0xa08] sm:%s42]
      %699 = vst [vmem:[%s53 + $0xa10] sm:%s42] %v698
      %v700 = vld [vmem:[%s52 + $0xa0c] sm:%s42]
      %701 = vst [vmem:[%s53 + $0xa18] sm:%s42] %v700
      %v702 = vld [vmem:[%s52 + $0xa20] sm:%s42]
      %703 = vst [vmem:[%s53 + $0xa20] sm:%s42] %v702
      %v704 = vld [vmem:[%s52 + $0xa24] sm:%s42]
      %705 = vst [vmem:[%s53 + $0xa28] sm:%s42] %v704
      %v706 = vld [vmem:[%s52 + $0xa28] sm:%s42]
      %707 = vst [vmem:[%s53 + $0xa30] sm:%s42] %v706
      %v708 = vld [vmem:[%s52 + $0xa2c] sm:%s42]
      %709 = vst [vmem:[%s53 + $0xa38] sm:%s42] %v708
      %v710 = vld [vmem:[%s52 + $0xa40] sm:%s42]
      %711 = vst [vmem:[%s53 + $0xa40] sm:%s42] %v710
      %v712 = vld [vmem:[%s52 + $0xa44] sm:%s42]
      %713 = vst [vmem:[%s53 + $0xa48] sm:%s42] %v712
      %v714 = vld [vmem:[%s52 + $0xa48] sm:%s42]
      %715 = vst [vmem:[%s53 + $0xa50] sm:%s42] %v714
      %v716 = vld [vmem:[%s52 + $0xa4c] sm:%s42]
      %717 = vst [vmem:[%s53 + $0xa58] sm:%s42] %v716
      %v718 = vld [vmem:[%s52 + $0xa60] sm:%s42]
      %719 = vst [vmem:[%s53 + $0xa60] sm:%s42] %v718
      %v720 = vld [vmem:[%s52 + $0xa64] sm:%s42]
      %721 = vst [vmem:[%s53 + $0xa68] sm:%s42] %v720
      %v722 = vld [vmem:[%s52 + $0xa68] sm:%s42]
      %723 = vst [vmem:[%s53 + $0xa70] sm:%s42] %v722
      %v724 = vld [vmem:[%s52 + $0xa6c] sm:%s42]
      %725 = vst [vmem:[%s53 + $0xa78] sm:%s42] %v724
      %v726 = vld [vmem:[%s52 + $0xa80] sm:%s42]
      %727 = vst [vmem:[%s53 + $0xa80] sm:%s42] %v726
      %v728 = vld [vmem:[%s52 + $0xa84] sm:%s42]
      %729 = vst [vmem:[%s53 + $0xa88] sm:%s42] %v728
      %v730 = vld [vmem:[%s52 + $0xa88] sm:%s42]
      %731 = vst [vmem:[%s53 + $0xa90] sm:%s42] %v730
      %v732 = vld [vmem:[%s52 + $0xa8c] sm:%s42]
      %733 = vst [vmem:[%s53 + $0xa98] sm:%s42] %v732
      %v734 = vld [vmem:[%s52 + $0xaa0] sm:%s42]
      %735 = vst [vmem:[%s53 + $0xaa0] sm:%s42] %v734
      %v736 = vld [vmem:[%s52 + $0xaa4] sm:%s42]
      %737 = vst [vmem:[%s53 + $0xaa8] sm:%s42] %v736
      %v738 = vld [vmem:[%s52 + $0xaa8] sm:%s42]
      %739 = vst [vmem:[%s53 + $0xab0] sm:%s42] %v738
      %v740 = vld [vmem:[%s52 + $0xaac] sm:%s42]
      %741 = vst [vmem:[%s53 + $0xab8] sm:%s42] %v740
      %v742 = vld [vmem:[%s52 + $0xac0] sm:%s42]
      %743 = vst [vmem:[%s53 + $0xac0] sm:%s42] %v742
      %v744 = vld [vmem:[%s52 + $0xac4] sm:%s42]
      %745 = vst [vmem:[%s53 + $0xac8] sm:%s42] %v744
      %v746 = vld [vmem:[%s52 + $0xac8] sm:%s42]
      %747 = vst [vmem:[%s53 + $0xad0] sm:%s42] %v746
      %v748 = vld [vmem:[%s52 + $0xacc] sm:%s42]
      %749 = vst [vmem:[%s53 + $0xad8] sm:%s42] %v748
      %v750 = vld [vmem:[%s52 + $0xae0] sm:%s42]
      %751 = vst [vmem:[%s53 + $0xae0] sm:%s42] %v750
      %v752 = vld [vmem:[%s52 + $0xae4] sm:%s42]
      %753 = vst [vmem:[%s53 + $0xae8] sm:%s42] %v752
      %v754 = vld [vmem:[%s52 + $0xae8] sm:%s42]
      %755 = vst [vmem:[%s53 + $0xaf0] sm:%s42] %v754
      %v756 = vld [vmem:[%s52 + $0xaec] sm:%s42]
      %757 = vst [vmem:[%s53 + $0xaf8] sm:%s42] %v756
      %v758 = vld [vmem:[%s52 + $0xb00] sm:%s42]
      %759 = vst [vmem:[%s53 + $0xb00] sm:%s42] %v758
      %v760 = vld [vmem:[%s52 + $0xb04] sm:%s42]
      %761 = vst [vmem:[%s53 + $0xb08] sm:%s42] %v760
      %v762 = vld [vmem:[%s52 + $0xb08] sm:%s42]
      %763 = vst [vmem:[%s53 + $0xb10] sm:%s42] %v762
      %v764 = vld [vmem:[%s52 + $0xb0c] sm:%s42]
      %765 = vst [vmem:[%s53 + $0xb18] sm:%s42] %v764
      %v766 = vld [vmem:[%s52 + $0xb20] sm:%s42]
      %767 = vst [vmem:[%s53 + $0xb20] sm:%s42] %v766
      %v768 = vld [vmem:[%s52 + $0xb24] sm:%s42]
      %769 = vst [vmem:[%s53 + $0xb28] sm:%s42] %v768
      %v770 = vld [vmem:[%s52 + $0xb28] sm:%s42]
      %771 = vst [vmem:[%s53 + $0xb30] sm:%s42] %v770
      %v772 = vld [vmem:[%s52 + $0xb2c] sm:%s42]
      %773 = vst [vmem:[%s53 + $0xb38] sm:%s42] %v772
      %v774 = vld [vmem:[%s52 + $0xb40] sm:%s42]
      %775 = vst [vmem:[%s53 + $0xb40] sm:%s42] %v774
      %v776 = vld [vmem:[%s52 + $0xb44] sm:%s42]
      %777 = vst [vmem:[%s53 + $0xb48] sm:%s42] %v776
      %v778 = vld [vmem:[%s52 + $0xb48] sm:%s42]
      %779 = vst [vmem:[%s53 + $0xb50] sm:%s42] %v778
      %v780 = vld [vmem:[%s52 + $0xb4c] sm:%s42]
      %781 = vst [vmem:[%s53 + $0xb58] sm:%s42] %v780
      %v782 = vld [vmem:[%s52 + $0xb60] sm:%s42]
      %783 = vst [vmem:[%s53 + $0xb60] sm:%s42] %v782
      %v784 = vld [vmem:[%s52 + $0xb64] sm:%s42]
      %785 = vst [vmem:[%s53 + $0xb68] sm:%s42] %v784
      %v786 = vld [vmem:[%s52 + $0xb68] sm:%s42]
      %787 = vst [vmem:[%s53 + $0xb70] sm:%s42] %v786
      %v788 = vld [vmem:[%s52 + $0xb6c] sm:%s42]
      %789 = vst [vmem:[%s53 + $0xb78] sm:%s42] %v788
      %v790 = vld [vmem:[%s52 + $0xb80] sm:%s42]
      %791 = vst [vmem:[%s53 + $0xb80] sm:%s42] %v790
      %v792 = vld [vmem:[%s52 + $0xb84] sm:%s42]
      %793 = vst [vmem:[%s53 + $0xb88] sm:%s42] %v792
      %v794 = vld [vmem:[%s52 + $0xb88] sm:%s42]
      %795 = vst [vmem:[%s53 + $0xb90] sm:%s42] %v794
      %v796 = vld [vmem:[%s52 + $0xb8c] sm:%s42]
      %797 = vst [vmem:[%s53 + $0xb98] sm:%s42] %v796
      %v798 = vld [vmem:[%s52 + $0xba0] sm:%s42]
      %799 = vst [vmem:[%s53 + $0xba0] sm:%s42] %v798
      %v800 = vld [vmem:[%s52 + $0xba4] sm:%s42]
      %801 = vst [vmem:[%s53 + $0xba8] sm:%s42] %v800
      %v802 = vld [vmem:[%s52 + $0xba8] sm:%s42]
      %803 = vst [vmem:[%s53 + $0xbb0] sm:%s42] %v802
      %v804 = vld [vmem:[%s52 + $0xbac] sm:%s42]
      %805 = vst [vmem:[%s53 + $0xbb8] sm:%s42] %v804
      %v806 = vld [vmem:[%s52 + $0xbc0] sm:%s42]
      %807 = vst [vmem:[%s53 + $0xbc0] sm:%s42] %v806
      %v808 = vld [vmem:[%s52 + $0xbc4] sm:%s42]
      %809 = vst [vmem:[%s53 + $0xbc8] sm:%s42] %v808
      %v810 = vld [vmem:[%s52 + $0xbc8] sm:%s42]
      %811 = vst [vmem:[%s53 + $0xbd0] sm:%s42] %v810
      %v812 = vld [vmem:[%s52 + $0xbcc] sm:%s42]
      %813 = vst [vmem:[%s53 + $0xbd8] sm:%s42] %v812
      %v814 = vld [vmem:[%s52 + $0xbe0] sm:%s42]
      %815 = vst [vmem:[%s53 + $0xbe0] sm:%s42] %v814
      %v816 = vld [vmem:[%s52 + $0xbe4] sm:%s42]
      %817 = vst [vmem:[%s53 + $0xbe8] sm:%s42] %v816
      %v818 = vld [vmem:[%s52 + $0xbe8] sm:%s42]
      %819 = vst [vmem:[%s53 + $0xbf0] sm:%s42] %v818
      %v820 = vld [vmem:[%s52 + $0xbec] sm:%s42]
      %821 = vst [vmem:[%s53 + $0xbf8] sm:%s42] %v820
      %v822 = vld [vmem:[%s52 + $0xc00] sm:%s42]
      %823 = vst [vmem:[%s53 + $0xc00] sm:%s42] %v822
      %v824 = vld [vmem:[%s52 + $0xc04] sm:%s42]
      %825 = vst [vmem:[%s53 + $0xc08] sm:%s42] %v824
      %v826 = vld [vmem:[%s52 + $0xc08] sm:%s42]
      %827 = vst [vmem:[%s53 + $0xc10] sm:%s42] %v826
      %v828 = vld [vmem:[%s52 + $0xc0c] sm:%s42]
      %829 = vst [vmem:[%s53 + $0xc18] sm:%s42] %v828
      %v830 = vld [vmem:[%s52 + $0xc20] sm:%s42]
      %831 = vst [vmem:[%s53 + $0xc20] sm:%s42] %v830
      %v832 = vld [vmem:[%s52 + $0xc24] sm:%s42]
      %833 = vst [vmem:[%s53 + $0xc28] sm:%s42] %v832
      %v834 = vld [vmem:[%s52 + $0xc28] sm:%s42]
      %835 = vst [vmem:[%s53 + $0xc30] sm:%s42] %v834
      %v836 = vld [vmem:[%s52 + $0xc2c] sm:%s42]
      %837 = vst [vmem:[%s53 + $0xc38] sm:%s42] %v836
      %v838 = vld [vmem:[%s52 + $0xc40] sm:%s42]
      %839 = vst [vmem:[%s53 + $0xc40] sm:%s42] %v838
      %v840 = vld [vmem:[%s52 + $0xc44] sm:%s42]
      %841 = vst [vmem:[%s53 + $0xc48] sm:%s42] %v840
      %v842 = vld [vmem:[%s52 + $0xc48] sm:%s42]
      %843 = vst [vmem:[%s53 + $0xc50] sm:%s42] %v842
      %v844 = vld [vmem:[%s52 + $0xc4c] sm:%s42]
      %845 = vst [vmem:[%s53 + $0xc58] sm:%s42] %v844
      %v846 = vld [vmem:[%s52 + $0xc60] sm:%s42]
      %847 = vst [vmem:[%s53 + $0xc60] sm:%s42] %v846
      %v848 = vld [vmem:[%s52 + $0xc64] sm:%s42]
      %849 = vst [vmem:[%s53 + $0xc68] sm:%s42] %v848
      %v850 = vld [vmem:[%s52 + $0xc68] sm:%s42]
      %851 = vst [vmem:[%s53 + $0xc70] sm:%s42] %v850
      %v852 = vld [vmem:[%s52 + $0xc6c] sm:%s42]
      %853 = vst [vmem:[%s53 + $0xc78] sm:%s42] %v852
      %v854 = vld [vmem:[%s52 + $0xc80] sm:%s42]
      %855 = vst [vmem:[%s53 + $0xc80] sm:%s42] %v854
      %v856 = vld [vmem:[%s52 + $0xc84] sm:%s42]
      %857 = vst [vmem:[%s53 + $0xc88] sm:%s42] %v856
      %v858 = vld [vmem:[%s52 + $0xc88] sm:%s42]
      %859 = vst [vmem:[%s53 + $0xc90] sm:%s42] %v858
      %v860 = vld [vmem:[%s52 + $0xc8c] sm:%s42]
      %861 = vst [vmem:[%s53 + $0xc98] sm:%s42] %v860
      %v862 = vld [vmem:[%s52 + $0xca0] sm:%s42]
      %863 = vst [vmem:[%s53 + $0xca0] sm:%s42] %v862
      %v864 = vld [vmem:[%s52 + $0xca4] sm:%s42]
      %865 = vst [vmem:[%s53 + $0xca8] sm:%s42] %v864
      %v866 = vld [vmem:[%s52 + $0xca8] sm:%s42]
      %867 = vst [vmem:[%s53 + $0xcb0] sm:%s42] %v866
      %v868 = vld [vmem:[%s52 + $0xcac] sm:%s42]
      %869 = vst [vmem:[%s53 + $0xcb8] sm:%s42] %v868
      %v870 = vld [vmem:[%s52 + $0xcc0] sm:%s42]
      %871 = vst [vmem:[%s53 + $0xcc0] sm:%s42] %v870
      %v872 = vld [vmem:[%s52 + $0xcc4] sm:%s42]
      %873 = vst [vmem:[%s53 + $0xcc8] sm:%s42] %v872
      %v874 = vld [vmem:[%s52 + $0xcc8] sm:%s42]
      %875 = vst [vmem:[%s53 + $0xcd0] sm:%s42] %v874
      %v876 = vld [vmem:[%s52 + $0xccc] sm:%s42]
      %877 = vst [vmem:[%s53 + $0xcd8] sm:%s42] %v876
      %v878 = vld [vmem:[%s52 + $0xce0] sm:%s42]
      %879 = vst [vmem:[%s53 + $0xce0] sm:%s42] %v878
      %v880 = vld [vmem:[%s52 + $0xce4] sm:%s42]
      %881 = vst [vmem:[%s53 + $0xce8] sm:%s42] %v880
      %v882 = vld [vmem:[%s52 + $0xce8] sm:%s42]
      %883 = vst [vmem:[%s53 + $0xcf0] sm:%s42] %v882
      %v884 = vld [vmem:[%s52 + $0xcec] sm:%s42]
      %885 = vst [vmem:[%s53 + $0xcf8] sm:%s42] %v884
      %v886 = vld [vmem:[%s52 + $0xd00] sm:%s42]
      %887 = vst [vmem:[%s53 + $0xd00] sm:%s42] %v886
      %v888 = vld [vmem:[%s52 + $0xd04] sm:%s42]
      %889 = vst [vmem:[%s53 + $0xd08] sm:%s42] %v888
      %v890 = vld [vmem:[%s52 + $0xd08] sm:%s42]
      %891 = vst [vmem:[%s53 + $0xd10] sm:%s42] %v890
      %v892 = vld [vmem:[%s52 + $0xd0c] sm:%s42]
      %893 = vst [vmem:[%s53 + $0xd18] sm:%s42] %v892
      %v894 = vld [vmem:[%s52 + $0xd20] sm:%s42]
      %895 = vst [vmem:[%s53 + $0xd20] sm:%s42] %v894
      %v896 = vld [vmem:[%s52 + $0xd24] sm:%s42]
      %897 = vst [vmem:[%s53 + $0xd28] sm:%s42] %v896
      %v898 = vld [vmem:[%s52 + $0xd28] sm:%s42]
      %899 = vst [vmem:[%s53 + $0xd30] sm:%s42] %v898
      %v900 = vld [vmem:[%s52 + $0xd2c] sm:%s42]
      %901 = vst [vmem:[%s53 + $0xd38] sm:%s42] %v900
      %v902 = vld [vmem:[%s52 + $0xd40] sm:%s42]
      %903 = vst [vmem:[%s53 + $0xd40] sm:%s42] %v902
      %v904 = vld [vmem:[%s52 + $0xd44] sm:%s42]
      %905 = vst [vmem:[%s53 + $0xd48] sm:%s42] %v904
      %v906 = vld [vmem:[%s52 + $0xd48] sm:%s42]
      %907 = vst [vmem:[%s53 + $0xd50] sm:%s42] %v906
      %v908 = vld [vmem:[%s52 + $0xd4c] sm:%s42]
      %909 = vst [vmem:[%s53 + $0xd58] sm:%s42] %v908
      %v910 = vld [vmem:[%s52 + $0xd60] sm:%s42]
      %911 = vst [vmem:[%s53 + $0xd60] sm:%s42] %v910
      %v912 = vld [vmem:[%s52 + $0xd64] sm:%s42]
      %913 = vst [vmem:[%s53 + $0xd68] sm:%s42] %v912
      %v914 = vld [vmem:[%s52 + $0xd68] sm:%s42]
      %915 = vst [vmem:[%s53 + $0xd70] sm:%s42] %v914
      %v916 = vld [vmem:[%s52 + $0xd6c] sm:%s42]
      %917 = vst [vmem:[%s53 + $0xd78] sm:%s42] %v916
      %v918 = vld [vmem:[%s52 + $0xd80] sm:%s42]
      %919 = vst [vmem:[%s53 + $0xd80] sm:%s42] %v918
      %v920 = vld [vmem:[%s52 + $0xd84] sm:%s42]
      %921 = vst [vmem:[%s53 + $0xd88] sm:%s42] %v920
      %v922 = vld [vmem:[%s52 + $0xd88] sm:%s42]
      %923 = vst [vmem:[%s53 + $0xd90] sm:%s42] %v922
      %v924 = vld [vmem:[%s52 + $0xd8c] sm:%s42]
      %925 = vst [vmem:[%s53 + $0xd98] sm:%s42] %v924
      %v926 = vld [vmem:[%s52 + $0xda0] sm:%s42]
      %927 = vst [vmem:[%s53 + $0xda0] sm:%s42] %v926
      %v928 = vld [vmem:[%s52 + $0xda4] sm:%s42]
      %929 = vst [vmem:[%s53 + $0xda8] sm:%s42] %v928
      %v930 = vld [vmem:[%s52 + $0xda8] sm:%s42]
      %931 = vst [vmem:[%s53 + $0xdb0] sm:%s42] %v930
      %v932 = vld [vmem:[%s52 + $0xdac] sm:%s42]
      %933 = vst [vmem:[%s53 + $0xdb8] sm:%s42] %v932
      %v934 = vld [vmem:[%s52 + $0xdc0] sm:%s42]
      %935 = vst [vmem:[%s53 + $0xdc0] sm:%s42] %v934
      %v936 = vld [vmem:[%s52 + $0xdc4] sm:%s42]
      %937 = vst [vmem:[%s53 + $0xdc8] sm:%s42] %v936
      %v938 = vld [vmem:[%s52 + $0xdc8] sm:%s42]
      %939 = vst [vmem:[%s53 + $0xdd0] sm:%s42] %v938
      %v940 = vld [vmem:[%s52 + $0xdcc] sm:%s42]
      %941 = vst [vmem:[%s53 + $0xdd8] sm:%s42] %v940
      %v942 = vld [vmem:[%s52 + $0xde0] sm:%s42]
      %943 = vst [vmem:[%s53 + $0xde0] sm:%s42] %v942
      %v944 = vld [vmem:[%s52 + $0xde4] sm:%s42]
      %945 = vst [vmem:[%s53 + $0xde8] sm:%s42] %v944
      %v946 = vld [vmem:[%s52 + $0xde8] sm:%s42]
      %947 = vst [vmem:[%s53 + $0xdf0] sm:%s42] %v946
      %v948 = vld [vmem:[%s52 + $0xdec] sm:%s42]
      %949 = vst [vmem:[%s53 + $0xdf8] sm:%s42] %v948
      %v950 = vld [vmem:[%s52 + $0xe00] sm:%s42]
      %951 = vst [vmem:[%s53 + $0xe00] sm:%s42] %v950
      %v952 = vld [vmem:[%s52 + $0xe04] sm:%s42]
      %953 = vst [vmem:[%s53 + $0xe08] sm:%s42] %v952
      %v954 = vld [vmem:[%s52 + $0xe08] sm:%s42]
      %955 = vst [vmem:[%s53 + $0xe10] sm:%s42] %v954
      %v956 = vld [vmem:[%s52 + $0xe0c] sm:%s42]
      %957 = vst [vmem:[%s53 + $0xe18] sm:%s42] %v956
      %v958 = vld [vmem:[%s52 + $0xe20] sm:%s42]
      %959 = vst [vmem:[%s53 + $0xe20] sm:%s42] %v958
      %v960 = vld [vmem:[%s52 + $0xe24] sm:%s42]
      %961 = vst [vmem:[%s53 + $0xe28] sm:%s42] %v960
      %v962 = vld [vmem:[%s52 + $0xe28] sm:%s42]
      %963 = vst [vmem:[%s53 + $0xe30] sm:%s42] %v962
      %v964 = vld [vmem:[%s52 + $0xe2c] sm:%s42]
      %965 = vst [vmem:[%s53 + $0xe38] sm:%s42] %v964
      %v966 = vld [vmem:[%s52 + $0xe40] sm:%s42]
      %967 = vst [vmem:[%s53 + $0xe40] sm:%s42] %v966
      %v968 = vld [vmem:[%s52 + $0xe44] sm:%s42]
      %969 = vst [vmem:[%s53 + $0xe48] sm:%s42] %v968
      %v970 = vld [vmem:[%s52 + $0xe48] sm:%s42]
      %971 = vst [vmem:[%s53 + $0xe50] sm:%s42] %v970
      %v972 = vld [vmem:[%s52 + $0xe4c] sm:%s42]
      %973 = vst [vmem:[%s53 + $0xe58] sm:%s42] %v972
      %v974 = vld [vmem:[%s52 + $0xe60] sm:%s42]
      %975 = vst [vmem:[%s53 + $0xe60] sm:%s42] %v974
      %v976 = vld [vmem:[%s52 + $0xe64] sm:%s42]
      %977 = vst [vmem:[%s53 + $0xe68] sm:%s42] %v976
      %v978 = vld [vmem:[%s52 + $0xe68] sm:%s42]
      %979 = vst [vmem:[%s53 + $0xe70] sm:%s42] %v978
      %v980 = vld [vmem:[%s52 + $0xe6c] sm:%s42]
      %981 = vst [vmem:[%s53 + $0xe78] sm:%s42] %v980
      %v982 = vld [vmem:[%s52 + $0xe80] sm:%s42]
      %983 = vst [vmem:[%s53 + $0xe80] sm:%s42] %v982
      %v984 = vld [vmem:[%s52 + $0xe84] sm:%s42]
      %985 = vst [vmem:[%s53 + $0xe88] sm:%s42] %v984
      %v986 = vld [vmem:[%s52 + $0xe88] sm:%s42]
      %987 = vst [vmem:[%s53 + $0xe90] sm:%s42] %v986
      %v988 = vld [vmem:[%s52 + $0xe8c] sm:%s42]
      %989 = vst [vmem:[%s53 + $0xe98] sm:%s42] %v988
      %v990 = vld [vmem:[%s52 + $0xea0] sm:%s42]
      %991 = vst [vmem:[%s53 + $0xea0] sm:%s42] %v990
      %v992 = vld [vmem:[%s52 + $0xea4] sm:%s42]
      %993 = vst [vmem:[%s53 + $0xea8] sm:%s42] %v992
      %v994 = vld [vmem:[%s52 + $0xea8] sm:%s42]
      %995 = vst [vmem:[%s53 + $0xeb0] sm:%s42] %v994
      %v996 = vld [vmem:[%s52 + $0xeac] sm:%s42]
      %997 = vst [vmem:[%s53 + $0xeb8] sm:%s42] %v996
      %v998 = vld [vmem:[%s52 + $0xec0] sm:%s42]
      %999 = vst [vmem:[%s53 + $0xec0] sm:%s42] %v998
      %v1000 = vld [vmem:[%s52 + $0xec4] sm:%s42]
      %1001 = vst [vmem:[%s53 + $0xec8] sm:%s42] %v1000
      %v1002 = vld [vmem:[%s52 + $0xec8] sm:%s42]
      %1003 = vst [vmem:[%s53 + $0xed0] sm:%s42] %v1002
      %v1004 = vld [vmem:[%s52 + $0xecc] sm:%s42]
      %1005 = vst [vmem:[%s53 + $0xed8] sm:%s42] %v1004
      %v1006 = vld [vmem:[%s52 + $0xee0] sm:%s42]
      %1007 = vst [vmem:[%s53 + $0xee0] sm:%s42] %v1006
      %v1008 = vld [vmem:[%s52 + $0xee4] sm:%s42]
      %1009 = vst [vmem:[%s53 + $0xee8] sm:%s42] %v1008
      %v1010 = vld [vmem:[%s52 + $0xee8] sm:%s42]
      %1011 = vst [vmem:[%s53 + $0xef0] sm:%s42] %v1010
      %v1012 = vld [vmem:[%s52 + $0xeec] sm:%s42]
      %1013 = vst [vmem:[%s53 + $0xef8] sm:%s42] %v1012
      %v1014 = vld [vmem:[%s52 + $0xf00] sm:%s42]
      %1015 = vst [vmem:[%s53 + $0xf00] sm:%s42] %v1014
      %v1016 = vld [vmem:[%s52 + $0xf04] sm:%s42]
      %1017 = vst [vmem:[%s53 + $0xf08] sm:%s42] %v1016
      %v1018 = vld [vmem:[%s52 + $0xf08] sm:%s42]
      %1019 = vst [vmem:[%s53 + $0xf10] sm:%s42] %v1018
      %v1020 = vld [vmem:[%s52 + $0xf0c] sm:%s42]
      %1021 = vst [vmem:[%s53 + $0xf18] sm:%s42] %v1020
      %v1022 = vld [vmem:[%s52 + $0xf20] sm:%s42]
      %1023 = vst [vmem:[%s53 + $0xf20] sm:%s42] %v1022
      %v1024 = vld [vmem:[%s52 + $0xf24] sm:%s42]
      %1025 = vst [vmem:[%s53 + $0xf28] sm:%s42] %v1024
      %v1026 = vld [vmem:[%s52 + $0xf28] sm:%s42]
      %1027 = vst [vmem:[%s53 + $0xf30] sm:%s42] %v1026
      %v1028 = vld [vmem:[%s52 + $0xf2c] sm:%s42]
      %1029 = vst [vmem:[%s53 + $0xf38] sm:%s42] %v1028
      %v1030 = vld [vmem:[%s52 + $0xf40] sm:%s42]
      %1031 = vst [vmem:[%s53 + $0xf40] sm:%s42] %v1030
      %v1032 = vld [vmem:[%s52 + $0xf44] sm:%s42]
      %1033 = vst [vmem:[%s53 + $0xf48] sm:%s42] %v1032
      %v1034 = vld [vmem:[%s52 + $0xf48] sm:%s42]
      %1035 = vst [vmem:[%s53 + $0xf50] sm:%s42] %v1034
      %v1036 = vld [vmem:[%s52 + $0xf4c] sm:%s42]
      %1037 = vst [vmem:[%s53 + $0xf58] sm:%s42] %v1036
      %v1038 = vld [vmem:[%s52 + $0xf60] sm:%s42]
      %1039 = vst [vmem:[%s53 + $0xf60] sm:%s42] %v1038
      %v1040 = vld [vmem:[%s52 + $0xf64] sm:%s42]
      %1041 = vst [vmem:[%s53 + $0xf68] sm:%s42] %v1040
      %v1042 = vld [vmem:[%s52 + $0xf68] sm:%s42]
      %1043 = vst [vmem:[%s53 + $0xf70] sm:%s42] %v1042
      %v1044 = vld [vmem:[%s52 + $0xf6c] sm:%s42]
      %1045 = vst [vmem:[%s53 + $0xf78] sm:%s42] %v1044
      %v1046 = vld [vmem:[%s52 + $0xf80] sm:%s42]
      %1047 = vst [vmem:[%s53 + $0xf80] sm:%s42] %v1046
      %v1048 = vld [vmem:[%s52 + $0xf84] sm:%s42]
      %1049 = vst [vmem:[%s53 + $0xf88] sm:%s42] %v1048
      %v1050 = vld [vmem:[%s52 + $0xf88] sm:%s42]
      %1051 = vst [vmem:[%s53 + $0xf90] sm:%s42] %v1050
      %v1052 = vld [vmem:[%s52 + $0xf8c] sm:%s42]
      %1053 = vst [vmem:[%s53 + $0xf98] sm:%s42] %v1052
      %v1054 = vld [vmem:[%s52 + $0xfa0] sm:%s42]
      %1055 = vst [vmem:[%s53 + $0xfa0] sm:%s42] %v1054
      %v1056 = vld [vmem:[%s52 + $0xfa4] sm:%s42]
      %1057 = vst [vmem:[%s53 + $0xfa8] sm:%s42] %v1056
      %v1058 = vld [vmem:[%s52 + $0xfa8] sm:%s42]
      %1059 = vst [vmem:[%s53 + $0xfb0] sm:%s42] %v1058
      %v1060 = vld [vmem:[%s52 + $0xfac] sm:%s42]
      %1061 = vst [vmem:[%s53 + $0xfb8] sm:%s42] %v1060
      %v1062 = vld [vmem:[%s52 + $0xfc0] sm:%s42]
      %1063 = vst [vmem:[%s53 + $0xfc0] sm:%s42] %v1062
      %v1064 = vld [vmem:[%s52 + $0xfc4] sm:%s42]
      %1065 = vst [vmem:[%s53 + $0xfc8] sm:%s42] %v1064
      %v1066 = vld [vmem:[%s52 + $0xfc8] sm:%s42]
      %1067 = vst [vmem:[%s53 + $0xfd0] sm:%s42] %v1066
      %v1068 = vld [vmem:[%s52 + $0xfcc] sm:%s42]
      %1069 = vst [vmem:[%s53 + $0xfd8] sm:%s42] %v1068
      %v1070 = vld [vmem:[%s52 + $0xfe0] sm:%s42]
      %1071 = vst [vmem:[%s53 + $0xfe0] sm:%s42] %v1070
      %v1072 = vld [vmem:[%s52 + $0xfe4] sm:%s42]
      %1073 = vst [vmem:[%s53 + $0xfe8] sm:%s42] %v1072
      %v1074 = vld [vmem:[%s52 + $0xfe8] sm:%s42]
      %1075 = vst [vmem:[%s53 + $0xff0] sm:%s42] %v1074
      %v1076 = vld [vmem:[%s52 + $0xfec] sm:%s42]
      %1077 = vst [vmem:[%s53 + $0xff8] sm:%s42] %v1076
      %s1078 = sadd.s32 1, %s51
      %p1079 = scmp.ge.s32.totalorder %s1078, 2
      %s1080 = scalar_select %p1079, 0, %s1078
      %s1081 = smul.u32 %s1080, 16
      %s1082 = smul.u32 %s1080, 4
      %s1083 = scalar_lea.vmem %s4, %s1081
      %s1084 = scalar_lea.vmem [#allocation2], %s1082
    $region50: #{_lambda_.1} parent=44 // loop_footer
      %s50 = sadd.s32 1, %s46
    $region51: #{_lambda_.1} parent=44 // loop_footer_branch
      %45 = sbr.rel target = $region47
    $region52: #{_lambda_.1} parent=44 // loop_exit
      _
  $region45: #{_lambda_.1} parent=0 // pred_fallthru
    _
  // Predicated region
  $region82: #{_lambda_.1} parent=0 // pred_check
    _
  $region83: #{_lambda_.1} parent=0 // pred_check_branch
    %4253 = sbr.rel (0) target = $region85
  $region84: #{_lambda_.1} parent=0 // pred_region
    %4254 = vsyncadd [#allocation3], 65536
  $region85: #{_lambda_.1} parent=0 // pred_fallthru
    _
  %v4255 = vld [vmem:[%s0] sm:$0xf]
  %v4256 = vld [vmem:[%s0 + $0x4] sm:$0xf]
  %v4257 = vld [vmem:[%s0 + $0x8] sm:$0xf]
  %v4258 = vld [vmem:[%s0 + $0xc] sm:$0xf]
  %v4259 = vld [vmem:[%s0 + $0x10] sm:$0xf]
  %v4260 = vld [vmem:[%s0 + $0x14] sm:$0xf]
  %v4261 = vld [vmem:[%s0 + $0x18] sm:$0xf]
  %v4262 = vld [vmem:[%s0 + $0x1c] sm:$0xf]
  %v4263 = vld [vmem:[%s0 + $0x20] sm:$0xf]
  %v4264 = vld [vmem:[%s0 + $0x24] sm:$0xf]
  %v4265 = vld [vmem:[%s0 + $0x28] sm:$0xf]
  %v4266 = vld [vmem:[%s0 + $0x2c] sm:$0xf]
  %v4267 = vld [vmem:[%s0 + $0x30] sm:$0xf]
  %v4268 = vld [vmem:[%s0 + $0x34] sm:$0xf]
  %v4269 = vld [vmem:[%s0 + $0x38] sm:$0xf]
  %v4270 = vld [vmem:[%s0 + $0x3c] sm:$0xf]
  %v4271 = vld [vmem:[%s0 + $0x40] sm:$0xf]
  %v4272 = vld [vmem:[%s0 + $0x44] sm:$0xf]
  %v4273 = vld [vmem:[%s0 + $0x48] sm:$0xf]
  %v4274 = vld [vmem:[%s0 + $0x4c] sm:$0xf]
  %v4275 = vld [vmem:[%s0 + $0x50] sm:$0xf]
  %v4276 = vld [vmem:[%s0 + $0x54] sm:$0xf]
  %v4277 = vld [vmem:[%s0 + $0x58] sm:$0xf]
  %v4278 = vld [vmem:[%s0 + $0x5c] sm:$0xf]
  %v4279 = vld [vmem:[%s0 + $0x60] sm:$0xf]
  %v4280 = vld [vmem:[%s0 + $0x64] sm:$0xf]
  %v4281 = vld [vmem:[%s0 + $0x68] sm:$0xf]
  %v4282 = vld [vmem:[%s0 + $0x6c] sm:$0xf]
  %v4283 = vld [vmem:[%s0 + $0x70] sm:$0xf]
  %v4284 = vld [vmem:[%s0 + $0x74] sm:$0xf]
  %v4285 = vld [vmem:[%s0 + $0x78] sm:$0xf]
  %v4286 = vld [vmem:[%s0 + $0x7c] sm:$0xf]
  %v4287 = vld [vmem:[%s0 + $0x80] sm:$0xf]
  %v4288 = vld [vmem:[%s0 + $0x84] sm:$0xf]
  %v4289 = vld [vmem:[%s0 + $0x88] sm:$0xf]
  %v4290 = vld [vmem:[%s0 + $0x8c] sm:$0xf]
  %v4291 = vld [vmem:[%s0 + $0x90] sm:$0xf]
  %v4292 = vld [vmem:[%s0 + $0x94] sm:$0xf]
  %v4293 = vld [vmem:[%s0 + $0x98] sm:$0xf]
  %v4294 = vld [vmem:[%s0 + $0x9c] sm:$0xf]
  %v4295 = vld [vmem:[%s0 + $0xa0] sm:$0xf]
  %v4296 = vld [vmem:[%s0 + $0xa4] sm:$0xf]
  %v4297 = vld [vmem:[%s0 + $0xa8] sm:$0xf]
  %v4298 = vld [vmem:[%s0 + $0xac] sm:$0xf]
  %v4299 = vld [vmem:[%s0 + $0xb0] sm:$0xf]
  %v4300 = vld [vmem:[%s0 + $0xb4] sm:$0xf]
  %v4301 = vld [vmem:[%s0 + $0xb8] sm:$0xf]
  %v4302 = vld [vmem:[%s0 + $0xbc] sm:$0xf]
  %v4303 = vld [vmem:[%s0 + $0xc0] sm:$0xf]
  %v4304 = vld [vmem:[%s0 + $0xc4] sm:$0xf]
  %v4305 = vld [vmem:[%s1] sm:$0xf]
  %v4306 = vld [vmem:[%s1 + $0x4] sm:$0xf]
  %v4307 = vld [vmem:[%s1 + $0x8] sm:$0xf]
  %v4308 = vld [vmem:[%s1 + $0xc] sm:$0xf]
  %v4309 = vld [vmem:[%s2] sm:$0x1]
  %v4311 = vlaneseq
  %v4312 = vshrl.u32 %v4311, 7
  %v4313 = vsub.s32 0, %v4312
  %v4314 = vrot.slane %v4309, %v4313
  %v4366 = vunpack.c.l.b16 %v4255
  %v4367 = vunpack.c.l.b16 %v4256
  %v4368 = vunpack.c.l.b16 %v4257
  %v4369 = vunpack.c.l.b16 %v4258
  %v4370 = vunpack.c.l.b16 %v4259
  %v4371 = vunpack.c.l.b16 %v4260
  %v4372 = vunpack.c.l.b16 %v4261
  %v4373 = vunpack.c.l.b16 %v4262
  %v4374 = vunpack.c.l.b16 %v4263
  %v4375 = vunpack.c.l.b16 %v4264
  %v4376 = vunpack.c.l.b16 %v4265
  %v4377 = vunpack.c.l.b16 %v4266
  %v4378 = vunpack.c.l.b16 %v4267
  %v4379 = vunpack.c.l.b16 %v4268
  %v4380 = vunpack.c.l.b16 %v4269
  %v4381 = vunpack.c.l.b16 %v4270
  %v4382 = vunpack.c.l.b16 %v4271
  %v4383 = vunpack.c.l.b16 %v4272
  %v4384 = vunpack.c.l.b16 %v4273
  %v4385 = vunpack.c.l.b16 %v4274
  %v4386 = vunpack.c.l.b16 %v4275
  %v4387 = vunpack.c.l.b16 %v4276
  %v4388 = vunpack.c.l.b16 %v4277
  %v4389 = vunpack.c.l.b16 %v4278
  %v4390 = vunpack.c.l.b16 %v4279
  %v4391 = vunpack.c.l.b16 %v4280
  %v4392 = vunpack.c.l.b16 %v4281
  %v4393 = vunpack.c.l.b16 %v4282
  %v4394 = vunpack.c.l.b16 %v4283
  %v4395 = vunpack.c.l.b16 %v4284
  %v4396 = vunpack.c.l.b16 %v4285
  %v4397 = vunpack.c.l.b16 %v4286
  %v4398 = vunpack.c.l.b16 %v4287
  %v4399 = vunpack.c.l.b16 %v4288
  %v4400 = vunpack.c.l.b16 %v4289
  %v4401 = vunpack.c.l.b16 %v4290
  %v4402 = vunpack.c.l.b16 %v4291
  %v4403 = vunpack.c.l.b16 %v4292
  %v4404 = vunpack.c.l.b16 %v4293
  %v4405 = vunpack.c.l.b16 %v4294
  %v4406 = vunpack.c.l.b16 %v4295
  %v4407 = vunpack.c.l.b16 %v4296
  %v4408 = vunpack.c.l.b16 %v4297
  %v4409 = vunpack.c.l.b16 %v4298
  %v4410 = vunpack.c.l.b16 %v4299
  %v4411 = vunpack.c.l.b16 %v4300
  %v4412 = vunpack.c.l.b16 %v4301
  %v4413 = vunpack.c.l.b16 %v4302
  %v4414 = vunpack.c.l.b16 %v4303
  %v4415 = vunpack.c.l.b16 %v4304
  %v4416 = vpack.c.b16 %v4367, %v4366
  %v4417 = vpack.c.b16 %v4369, %v4368
  %v4418 = vpack.c.b16 %v4371, %v4370
  %v4419 = vpack.c.b16 %v4373, %v4372
  %v4420 = vpack.c.b16 %v4375, %v4374
  %v4421 = vpack.c.b16 %v4377, %v4376
  %v4422 = vpack.c.b16 %v4379, %v4378
  %v4423 = vpack.c.b16 %v4381, %v4380
  %v4424 = vpack.c.b16 %v4383, %v4382
  %v4425 = vpack.c.b16 %v4385, %v4384
  %v4426 = vpack.c.b16 %v4387, %v4386
  %v4427 = vpack.c.b16 %v4389, %v4388
  %v4428 = vpack.c.b16 %v4391, %v4390
  %v4429 = vpack.c.b16 %v4393, %v4392
  %v4430 = vpack.c.b16 %v4395, %v4394
  %v4431 = vpack.c.b16 %v4397, %v4396
  %v4432 = vpack.c.b16 %v4399, %v4398
  %v4433 = vpack.c.b16 %v4401, %v4400
  %v4434 = vpack.c.b16 %v4403, %v4402
  %v4435 = vpack.c.b16 %v4405, %v4404
  %v4436 = vpack.c.b16 %v4407, %v4406
  %v4437 = vpack.c.b16 %v4409, %v4408
  %v4438 = vpack.c.b16 %v4411, %v4410
  %v4439 = vpack.c.b16 %v4413, %v4412
  %v4440 = vpack.c.b16 %v4415, %v4414
  %v4445 = vunpack.c.l.b16 %v4305
  %v4446 = vunpack.c.l.b16 %v4306
  %v4447 = vunpack.c.l.b16 %v4307
  %v4448 = vunpack.c.l.b16 %v4308
  %v4449 = vpack.c.b16 %v4446, %v4445
  %v4450 = vpack.c.b16 %v4448, %v4447
  %vm4453 = vcmask 261120
  %v4455 = vsel %vm4453, %v4416, 0
  %v4458 = vsel %vm4453, %v4417, 0
  %v4461 = vsel %vm4453, %v4418, 0
  %v4464 = vsel %vm4453, %v4419, 0
  %v4467 = vsel %vm4453, %v4420, 0
  %v4470 = vsel %vm4453, %v4421, 0
  %v4473 = vsel %vm4453, %v4422, 0
  %v4476 = vsel %vm4453, %v4423, 0
  %v4479 = vsel %vm4453, %v4424, 0
  %v4482 = vsel %vm4453, %v4425, 0
  %v4485 = vsel %vm4453, %v4426, 0
  %v4488 = vsel %vm4453, %v4427, 0
  %v4491 = vsel %vm4453, %v4428, 0
  %v4494 = vsel %vm4453, %v4429, 0
  %v4497 = vsel %vm4453, %v4430, 0
  %v4500 = vsel %vm4453, %v4431, 0
  %v4503 = vsel %vm4453, %v4432, 0
  %v4506 = vsel %vm4453, %v4433, 0
  %v4509 = vsel %vm4453, %v4434, 0
  %v4512 = vsel %vm4453, %v4435, 0
  %v4515 = vsel %vm4453, %v4436, 0
  %v4518 = vsel %vm4453, %v4437, 0
  %v4521 = vsel %vm4453, %v4438, 0
  %v4524 = vsel %vm4453, %v4439, 0
  %v4527 = vsel %vm4453, %v4440, 0
  %4529 = vmatprep.subr.bf16.mxu0 0
  %4530 = vmatpush1.bf16.msra.mxu0 %v4449
  %4531 = vmatprep.subr.bf16.mxu0 0
  %4532 = vmatpush1.bf16.msra.mxu0 %v4450
  %4533 = vmatprep.subr.bf16.mxu0 0
  %4534 = vmatpush1.bf16.msra.mxu0 0
  %4535 = vmatprep.subr.bf16.mxu0 0
  %4536 = vmatpush1.bf16.msra.mxu0 0
  %4537 = vmatprep.subr.bf16.mxu0 0
  %4538 = vmatpush1.bf16.msra.mxu0 0
  %4539 = vmatprep.subr.bf16.mxu0 0
  %4540 = vmatpush1.bf16.msra.mxu0 0
  %4541 = vmatprep.subr.bf16.mxu0 0
  %4542 = vmatpush1.bf16.msra.mxu0 0
  %4543 = vmatprep.subr.bf16.mxu0 0
  %4544 = vmatpush1.bf16.msra.mxu0 0
  %4545 = vmatprep.subr.bf16.mxu0 0
  %4546 = vmatpush1.bf16.msra.mxu0 0
  %4547 = vmatprep.subr.bf16.mxu0 0
  %4548 = vmatpush1.bf16.msra.mxu0 0
  %4549 = vmatprep.subr.bf16.mxu0 0
  %4550 = vmatpush1.bf16.msra.mxu0 0
  %4551 = vmatprep.subr.bf16.mxu0 0
  %4552 = vmatpush1.bf16.msra.mxu0 0
  %4553 = vmatprep.subr.bf16.mxu0 0
  %4554 = vmatpush1.bf16.msra.mxu0 0
  %4555 = vmatprep.subr.bf16.mxu0 0
  %4556 = vmatpush1.bf16.msra.mxu0 0
  %4557 = vmatprep.subr.bf16.mxu0 0
  %4558 = vmatpush1.bf16.msra.mxu0 0
  %4559 = vmatprep.subr.bf16.mxu0 0
  %4560 = vmatpush1.bf16.msra.mxu0 0
  %4561 = vmatprep.mubr.bf16.mxu0 0
  %4562 = vmatmul.mubr.bf16.gmra.mrb[0].mxu0 %v4455
  %v4563 = vpop.f32.mrb[0].mxu0
  %v4564 = vadd.f32 %v4314, %v4563
  %v4565 = vpop.f32.mrb[0].mxu0
  %v4566 = vpop.f32.mrb[0].mxu0
  %v4567 = vadd.f32 %v4314, %v4566
  %v4568 = vpop.f32.mrb[0].mxu0
  %4569 = vmatprep.mubr.bf16.mxu0 0
  %4570 = vmatmul.mubr.bf16.gmra.mrb[0].mxu0 %v4458
  %v4571 = vpop.f32.mrb[0].mxu0
  %v4572 = vadd.f32 %v4314, %v4571
  %v4573 = vpop.f32.mrb[0].mxu0
  %v4574 = vpop.f32.mrb[0].mxu0
  %v4575 = vadd.f32 %v4314, %v4574
  %v4576 = vpop.f32.mrb[0].mxu0
  %4577 = vmatprep.mubr.bf16.mxu0 0
  %4578 = vmatmul.mubr.bf16.gmra.mrb[0].mxu0 %v4461
  %v4579 = vpop.f32.mrb[0].mxu0
  %v4580 = vadd.f32 %v4314, %v4579
  %v4581 = vpop.f32.mrb[0].mxu0
  %v4582 = vpop.f32.mrb[0].mxu0
  %v4583 = vadd.f32 %v4314, %v4582
  %v4584 = vpop.f32.mrb[0].mxu0
  %4585 = vmatprep.mubr.bf16.mxu0 0
  %4586 = vmatmul.mubr.bf16.gmra.mrb[0].mxu0 %v4464
  %v4587 = vpop.f32.mrb[0].mxu0
  %v4588 = vadd.f32 %v4314, %v4587
  %v4589 = vpop.f32.mrb[0].mxu0
  %v4590 = vpop.f32.mrb[0].mxu0
  %v4591 = vadd.f32 %v4314, %v4590
  %v4592 = vpop.f32.mrb[0].mxu0
  %4593 = vmatprep.mubr.bf16.mxu0 0
  %4594 = vmatmul.mubr.bf16.gmra.mrb[0].mxu0 %v4467
  %v4595 = vpop.f32.mrb[0].mxu0
  %v4596 = vadd.f32 %v4314, %v4595
  %v4597 = vpop.f32.mrb[0].mxu0
  %v4598 = vpop.f32.mrb[0].mxu0
  %v4599 = vadd.f32 %v4314, %v4598
  %v4600 = vpop.f32.mrb[0].mxu0
  %4601 = vmatprep.mubr.bf16.mxu0 0
  %4602 = vmatmul.mubr.bf16.gmra.mrb[0].mxu0 %v4470
  %v4603 = vpop.f32.mrb[0].mxu0
  %v4604 = vadd.f32 %v4314, %v4603
  %v4605 = vpop.f32.mrb[0].mxu0
  %v4606 = vpop.f32.mrb[0].mxu0
  %v4607 = vadd.f32 %v4314, %v4606
  %v4608 = vpop.f32.mrb[0].mxu0
  %4609 = vmatprep.mubr.bf16.mxu0 0
  %4610 = vmatmul.mubr.bf16.gmra.mrb[0].mxu0 %v4473
  %v4611 = vpop.f32.mrb[0].mxu0
  %v4612 = vadd.f32 %v4314, %v4611
  %v4613 = vpop.f32.mrb[0].mxu0
  %v4614 = vpop.f32.mrb[0].mxu0
  %v4615 = vadd.f32 %v4314, %v4614
  %v4616 = vpop.f32.mrb[0].mxu0
  %4617 = vmatprep.mubr.bf16.mxu0 0
  %4618 = vmatmul.mubr.bf16.gmra.mrb[0].mxu0 %v4476
  %v4619 = vpop.f32.mrb[0].mxu0
  %v4620 = vadd.f32 %v4314, %v4619
  %v4621 = vpop.f32.mrb[0].mxu0
  %v4622 = vpop.f32.mrb[0].mxu0
  %v4623 = vadd.f32 %v4314, %v4622
  %v4624 = vpop.f32.mrb[0].mxu0
  %4625 = vmatprep.mubr.bf16.mxu0 0
  %4626 = vmatmul.mubr.bf16.gmra.mrb[0].mxu0 %v4479
  %v4627 = vpop.f32.mrb[0].mxu0
  %v4628 = vadd.f32 %v4314, %v4627
  %v4629 = vpop.f32.mrb[0].mxu0
  %v4630 = vpop.f32.mrb[0].mxu0
  %v4631 = vadd.f32 %v4314, %v4630
  %v4632 = vpop.f32.mrb[0].mxu0
  %4633 = vmatprep.mubr.bf16.mxu0 0
  %4634 = vmatmul.mubr.bf16.gmra.mrb[0].mxu0 %v4482
  %v4635 = vpop.f32.mrb[0].mxu0
  %v4636 = vadd.f32 %v4314, %v4635
  %v4637 = vpop.f32.mrb[0].mxu0
  %v4638 = vpop.f32.mrb[0].mxu0
  %v4639 = vadd.f32 %v4314, %v4638
  %v4640 = vpop.f32.mrb[0].mxu0
  %4641 = vmatprep.mubr.bf16.mxu0 0
  %4642 = vmatmul.mubr.bf16.gmra.mrb[0].mxu0 %v4485
  %v4643 = vpop.f32.mrb[0].mxu0
  %v4644 = vadd.f32 %v4314, %v4643
  %v4645 = vpop.f32.mrb[0].mxu0
  %v4646 = vpop.f32.mrb[0].mxu0
  %v4647 = vadd.f32 %v4314, %v4646
  %v4648 = vpop.f32.mrb[0].mxu0
  %4649 = vmatprep.mubr.bf16.mxu0 0
  %4650 = vmatmul.mubr.bf16.gmra.mrb[0].mxu0 %v4488
  %v4651 = vpop.f32.mrb[0].mxu0
  %v4652 = vadd.f32 %v4314, %v4651
  %v4653 = vpop.f32.mrb[0].mxu0
  %v4654 = vpop.f32.mrb[0].mxu0
  %v4655 = vadd.f32 %v4314, %v4654
  %v4656 = vpop.f32.mrb[0].mxu0
  %4657 = vmatprep.mubr.bf16.mxu0 0
  %4658 = vmatmul.mubr.bf16.gmra.mrb[0].mxu0 %v4491
  %v4659 = vpop.f32.mrb[0].mxu0
  %v4660 = vadd.f32 %v4314, %v4659
  %v4661 = vpop.f32.mrb[0].mxu0
  %v4662 = vpop.f32.mrb[0].mxu0
  %v4663 = vadd.f32 %v4314, %v4662
  %v4664 = vpop.f32.mrb[0].mxu0
  %4665 = vmatprep.mubr.bf16.mxu0 0
  %4666 = vmatmul.mubr.bf16.gmra.mrb[0].mxu0 %v4494
  %v4667 = vpop.f32.mrb[0].mxu0
  %v4668 = vadd.f32 %v4314, %v4667
  %v4669 = vpop.f32.mrb[0].mxu0
  %v4670 = vpop.f32.mrb[0].mxu0
  %v4671 = vadd.f32 %v4314, %v4670
  %v4672 = vpop.f32.mrb[0].mxu0
  %4673 = vmatprep.mubr.bf16.mxu0 0
  %4674 = vmatmul.mubr.bf16.gmra.mrb[0].mxu0 %v4497
  %v4675 = vpop.f32.mrb[0].mxu0
  %v4676 = vadd.f32 %v4314, %v4675
  %v4677 = vpop.f32.mrb[0].mxu0
  %v4678 = vpop.f32.mrb[0].mxu0
  %v4679 = vadd.f32 %v4314, %v4678
  %v4680 = vpop.f32.mrb[0].mxu0
  %4681 = vmatprep.mubr.bf16.mxu0 0
  %4682 = vmatmul.mubr.bf16.gmra.mrb[0].mxu0 %v4500
  %v4683 = vpop.f32.mrb[0].mxu0
  %v4684 = vadd.f32 %v4314, %v4683
  %v4685 = vpop.f32.mrb[0].mxu0
  %v4686 = vpop.f32.mrb[0].mxu0
  %v4687 = vadd.f32 %v4314, %v4686
  %v4688 = vpop.f32.mrb[0].mxu0
  %4689 = vmatprep.mubr.bf16.mxu0 0
  %4690 = vmatmul.mubr.bf16.gmra.mrb[0].mxu0 %v4503
  %v4691 = vpop.f32.mrb[0].mxu0
  %v4692 = vadd.f32 %v4314, %v4691
  %v4693 = vpop.f32.mrb[0].mxu0
  %v4694 = vpop.f32.mrb[0].mxu0
  %v4695 = vadd.f32 %v4314, %v4694
  %v4696 = vpop.f32.mrb[0].mxu0
  %4697 = vmatprep.mubr.bf16.mxu0 0
  %4698 = vmatmul.mubr.bf16.gmra.mrb[0].mxu0 %v4506
  %v4699 = vpop.f32.mrb[0].mxu0
  %v4700 = vadd.f32 %v4314, %v4699
  %v4701 = vpop.f32.mrb[0].mxu0
  %v4702 = vpop.f32.mrb[0].mxu0
  %v4703 = vadd.f32 %v4314, %v4702
  %v4704 = vpop.f32.mrb[0].mxu0
  %4705 = vmatprep.mubr.bf16.mxu0 0
  %4706 = vmatmul.mubr.bf16.gmra.mrb[0].mxu0 %v4509
  %v4707 = vpop.f32.mrb[0].mxu0
  %v4708 = vadd.f32 %v4314, %v4707
  %v4709 = vpop.f32.mrb[0].mxu0
  %v4710 = vpop.f32.mrb[0].mxu0
  %v4711 = vadd.f32 %v4314, %v4710
  %v4712 = vpop.f32.mrb[0].mxu0
  %4713 = vmatprep.mubr.bf16.mxu0 0
  %4714 = vmatmul.mubr.bf16.gmra.mrb[0].mxu0 %v4512
  %v4715 = vpop.f32.mrb[0].mxu0
  %v4716 = vadd.f32 %v4314, %v4715
  %v4717 = vpop.f32.mrb[0].mxu0
  %v4718 = vpop.f32.mrb[0].mxu0
  %v4719 = vadd.f32 %v4314, %v4718
  %v4720 = vpop.f32.mrb[0].mxu0
  %4721 = vmatprep.mubr.bf16.mxu0 0
  %4722 = vmatmul.mubr.bf16.gmra.mrb[0].mxu0 %v4515
  %v4723 = vpop.f32.mrb[0].mxu0
  %v4724 = vadd.f32 %v4314, %v4723
  %v4725 = vpop.f32.mrb[0].mxu0
  %v4726 = vpop.f32.mrb[0].mxu0
  %v4727 = vadd.f32 %v4314, %v4726
  %v4728 = vpop.f32.mrb[0].mxu0
  %4729 = vmatprep.mubr.bf16.mxu0 0
  %4730 = vmatmul.mubr.bf16.gmra.mrb[0].mxu0 %v4518
  %v4731 = vpop.f32.mrb[0].mxu0
  %v4732 = vadd.f32 %v4314, %v4731
  %v4733 = vpop.f32.mrb[0].mxu0
  %v4734 = vpop.f32.mrb[0].mxu0
  %v4735 = vadd.f32 %v4314, %v4734
  %v4736 = vpop.f32.mrb[0].mxu0
  %4737 = vmatprep.mubr.bf16.mxu0 0
  %4738 = vmatmul.mubr.bf16.gmra.mrb[0].mxu0 %v4521
  %v4739 = vpop.f32.mrb[0].mxu0
  %v4740 = vadd.f32 %v4314, %v4739
  %v4741 = vpop.f32.mrb[0].mxu0
  %v4742 = vpop.f32.mrb[0].mxu0
  %v4743 = vadd.f32 %v4314, %v4742
  %v4744 = vpop.f32.mrb[0].mxu0
  %4745 = vmatprep.mubr.bf16.mxu0 0
  %4746 = vmatmul.mubr.bf16.gmra.mrb[0].mxu0 %v4524
  %v4747 = vpop.f32.mrb[0].mxu0
  %v4748 = vadd.f32 %v4314, %v4747
  %v4749 = vpop.f32.mrb[0].mxu0
  %v4750 = vpop.f32.mrb[0].mxu0
  %v4751 = vadd.f32 %v4314, %v4750
  %v4752 = vpop.f32.mrb[0].mxu0
  %4753 = vmatprep.mubr.bf16.mxu0 0
  %4754 = vmatmul.mubr.bf16.gmra.mrb[0].mxu0 %v4527
  %v4755 = vpop.f32.mrb[0].mxu0
  %v4756 = vadd.f32 %v4314, %v4755
  %v4757 = vpop.f32.mrb[0].mxu0
  %v4758 = vpop.f32.mrb[0].mxu0
  %v4759 = vadd.f32 %v4314, %v4758
  %v4760 = vpop.f32.mrb[0].mxu0
  %4761 = vdwg.mxu0
  %v4762 = vmax.f32 %v4564, 0.0
  %v4763 = vmax.f32 %v4567, 0.0
  %v4764 = vmax.f32 %v4572, 0.0
  %v4765 = vmax.f32 %v4575, 0.0
  %v4766 = vmax.f32 %v4580, 0.0
  %v4767 = vmax.f32 %v4583, 0.0
  %v4768 = vmax.f32 %v4588, 0.0
  %v4769 = vmax.f32 %v4591, 0.0
  %v4770 = vmax.f32 %v4596, 0.0
  %v4771 = vmax.f32 %v4599, 0.0
  %v4772 = vmax.f32 %v4604, 0.0
  %v4773 = vmax.f32 %v4607, 0.0
  %v4774 = vmax.f32 %v4612, 0.0
  %v4775 = vmax.f32 %v4615, 0.0
  %v4776 = vmax.f32 %v4620, 0.0
  %v4777 = vmax.f32 %v4623, 0.0
  %v4778 = vmax.f32 %v4628, 0.0
  %v4779 = vmax.f32 %v4631, 0.0
  %v4780 = vmax.f32 %v4636, 0.0
  %v4781 = vmax.f32 %v4639, 0.0
  %v4782 = vmax.f32 %v4644, 0.0
  %v4783 = vmax.f32 %v4647, 0.0
  %v4784 = vmax.f32 %v4652, 0.0
  %v4785 = vmax.f32 %v4655, 0.0
  %v4786 = vmax.f32 %v4660, 0.0
  %v4787 = vmax.f32 %v4663, 0.0
  %v4788 = vmax.f32 %v4668, 0.0
  %v4789 = vmax.f32 %v4671, 0.0
  %v4790 = vmax.f32 %v4676, 0.0
  %v4791 = vmax.f32 %v4679, 0.0
  %v4792 = vmax.f32 %v4684, 0.0
  %v4793 = vmax.f32 %v4687, 0.0
  %v4794 = vmax.f32 %v4692, 0.0
  %v4795 = vmax.f32 %v4695, 0.0
  %v4796 = vmax.f32 %v4700, 0.0
  %v4797 = vmax.f32 %v4703, 0.0
  %v4798 = vmax.f32 %v4708, 0.0
  %v4799 = vmax.f32 %v4711, 0.0
  %v4800 = vmax.f32 %v4716, 0.0
  %v4801 = vmax.f32 %v4719, 0.0
  %v4802 = vmax.f32 %v4724, 0.0
  %v4803 = vmax.f32 %v4727, 0.0
  %v4804 = vmax.f32 %v4732, 0.0
  %v4805 = vmax.f32 %v4735, 0.0
  %v4806 = vmax.f32 %v4740, 0.0
  %v4807 = vmax.f32 %v4743, 0.0
  %v4808 = vmax.f32 %v4748, 0.0
  %v4809 = vmax.f32 %v4751, 0.0
  %v4810 = vmax.f32 %v4756, 0.0
  %v4811 = vmax.f32 %v4759, 0.0
  %v4812 = vmul.f32 %v4762, %v4762
  %v4813 = vmul.f32 %v4763, %v4763
  %v4814 = vmul.f32 %v4764, %v4764
  %v4815 = vmul.f32 %v4765, %v4765
  %v4816 = vmul.f32 %v4766, %v4766
  %v4817 = vmul.f32 %v4767, %v4767
  %v4818 = vmul.f32 %v4768, %v4768
  %v4819 = vmul.f32 %v4769, %v4769
  %v4820 = vmul.f32 %v4770, %v4770
  %v4821 = vmul.f32 %v4771, %v4771
  %v4822 = vmul.f32 %v4772, %v4772
  %v4823 = vmul.f32 %v4773, %v4773
  %v4824 = vmul.f32 %v4774, %v4774
  %v4825 = vmul.f32 %v4775, %v4775
  %v4826 = vmul.f32 %v4776, %v4776
  %v4827 = vmul.f32 %v4777, %v4777
  %v4828 = vmul.f32 %v4778, %v4778
  %v4829 = vmul.f32 %v4779, %v4779
  %v4830 = vmul.f32 %v4780, %v4780
  %v4831 = vmul.f32 %v4781, %v4781
  %v4832 = vmul.f32 %v4782, %v4782
  %v4833 = vmul.f32 %v4783, %v4783
  %v4834 = vmul.f32 %v4784, %v4784
  %v4835 = vmul.f32 %v4785, %v4785
  %v4836 = vmul.f32 %v4786, %v4786
  %v4837 = vmul.f32 %v4787, %v4787
  %v4838 = vmul.f32 %v4788, %v4788
  %v4839 = vmul.f32 %v4789, %v4789
  %v4840 = vmul.f32 %v4790, %v4790
  %v4841 = vmul.f32 %v4791, %v4791
  %v4842 = vmul.f32 %v4792, %v4792
  %v4843 = vmul.f32 %v4793, %v4793
  %v4844 = vmul.f32 %v4794, %v4794
  %v4845 = vmul.f32 %v4795, %v4795
  %v4846 = vmul.f32 %v4796, %v4796
  %v4847 = vmul.f32 %v4797, %v4797
  %v4848 = vmul.f32 %v4798, %v4798
  %v4849 = vmul.f32 %v4799, %v4799
  %v4850 = vmul.f32 %v4800, %v4800
  %v4851 = vmul.f32 %v4801, %v4801
  %v4852 = vmul.f32 %v4802, %v4802
  %v4853 = vmul.f32 %v4803, %v4803
  %v4854 = vmul.f32 %v4804, %v4804
  %v4855 = vmul.f32 %v4805, %v4805
  %v4856 = vmul.f32 %v4806, %v4806
  %v4857 = vmul.f32 %v4807, %v4807
  %v4858 = vmul.f32 %v4808, %v4808
  %v4859 = vmul.f32 %v4809, %v4809
  %v4860 = vmul.f32 %v4810, %v4810
  %v4861 = vmul.f32 %v4811, %v4811
  %v4862 = vpack.c.bf16 %v4813, %v4812
  %v4863 = vpack.c.bf16 %v4815, %v4814
  %v4864 = vpack.c.bf16 %v4817, %v4816
  %v4865 = vpack.c.bf16 %v4819, %v4818
  %v4866 = vpack.c.bf16 %v4821, %v4820
  %v4867 = vpack.c.bf16 %v4823, %v4822
  %v4868 = vpack.c.bf16 %v4825, %v4824
  %v4869 = vpack.c.bf16 %v4827, %v4826
  %v4870 = vpack.c.bf16 %v4829, %v4828
  %v4871 = vpack.c.bf16 %v4831, %v4830
  %v4872 = vpack.c.bf16 %v4833, %v4832
  %v4873 = vpack.c.bf16 %v4835, %v4834
  %v4874 = vpack.c.bf16 %v4837, %v4836
  %v4875 = vpack.c.bf16 %v4839, %v4838
  %v4876 = vpack.c.bf16 %v4841, %v4840
  %v4877 = vpack.c.bf16 %v4843, %v4842
  %v4878 = vpack.c.bf16 %v4845, %v4844
  %v4879 = vpack.c.bf16 %v4847, %v4846
  %v4880 = vpack.c.bf16 %v4849, %v4848
  %v4881 = vpack.c.bf16 %v4851, %v4850
  %v4882 = vpack.c.bf16 %v4853, %v4852
  %v4883 = vpack.c.bf16 %v4855, %v4854
  %v4884 = vpack.c.bf16 %v4857, %v4856
  %v4885 = vpack.c.bf16 %v4859, %v4858
  %v4886 = vpack.c.bf16 %v4861, %v4860
  %v4887 = vld [vmem:[%s3] sm:$0xf]
  %v4888 = vld [vmem:[%s3 + $0x4] sm:$0xf]
  %v4889 = vld [vmem:[%s3 + $0x8] sm:$0xf]
  %v4890 = vld [vmem:[%s3 + $0xc] sm:$0xf]
  %v4891 = vld [vmem:[%s3 + $0x10] sm:$0xf]
  %v4892 = vld [vmem:[%s3 + $0x14] sm:$0xf]
  %v4893 = vld [vmem:[%s3 + $0x18] sm:$0xf]
  %v4894 = vld [vmem:[%s3 + $0x1c] sm:$0xf]
  %v4895 = vld [vmem:[%s3 + $0x20] sm:$0xf]
  %v4896 = vld [vmem:[%s3 + $0x24] sm:$0xf]
  %v4897 = vld [vmem:[%s3 + $0x28] sm:$0xf]
  %v4898 = vld [vmem:[%s3 + $0x2c] sm:$0xf]
  %v4899 = vld [vmem:[%s3 + $0x30] sm:$0xf]
  %v4900 = vld [vmem:[%s3 + $0x34] sm:$0xf]
  %v4901 = vld [vmem:[%s3 + $0x38] sm:$0xf]
  %v4902 = vld [vmem:[%s3 + $0x3c] sm:$0xf]
  %v4919 = vunpack.c.l.b16 %v4887
  %v4920 = vunpack.c.l.b16 %v4888
  %v4921 = vunpack.c.l.b16 %v4889
  %v4922 = vunpack.c.l.b16 %v4890
  %v4923 = vunpack.c.l.b16 %v4891
  %v4924 = vunpack.c.l.b16 %v4892
  %v4925 = vunpack.c.l.b16 %v4893
  %v4926 = vunpack.c.l.b16 %v4894
  %v4927 = vunpack.c.l.b16 %v4895
  %v4928 = vunpack.c.l.b16 %v4896
  %v4929 = vunpack.c.l.b16 %v4897
  %v4930 = vunpack.c.l.b16 %v4898
  %v4931 = vunpack.c.l.b16 %v4899
  %v4932 = vunpack.c.l.b16 %v4900
  %v4933 = vunpack.c.l.b16 %v4901
  %v4934 = vunpack.c.l.b16 %v4902
  %v4935 = vpack.c.b16 %v4920, %v4919
  %v4936 = vpack.c.b16 %v4922, %v4921
  %v4937 = vpack.c.b16 %v4924, %v4923
  %v4938 = vpack.c.b16 %v4926, %v4925
  %v4939 = vpack.c.b16 %v4928, %v4927
  %v4940 = vpack.c.b16 %v4930, %v4929
  %v4941 = vpack.c.b16 %v4932, %v4931
  %v4942 = vpack.c.b16 %v4934, %v4933
  %4951 = vmatprep.subr.bf16.mxu0 0
  %4952 = vmatpush1.bf16.msra.mxu0 %v4935
  %4953 = vmatprep.subr.bf16.mxu0 0
  %4954 = vmatpush1.bf16.msra.mxu0 %v4936
  %4955 = vmatprep.subr.bf16.mxu0 0
  %4956 = vmatpush1.bf16.msra.mxu0 %v4937
  %4957 = vmatprep.subr.bf16.mxu0 0
  %4958 = vmatpush1.bf16.msra.mxu0 %v4938
  %4959 = vmatprep.subr.bf16.mxu0 0
  %4960 = vmatpush1.bf16.msra.mxu0 %v4939
  %4961 = vmatprep.subr.bf16.mxu0 0
  %4962 = vmatpush1.bf16.msra.mxu0 %v4940
  %4963 = vmatprep.subr.bf16.mxu0 0
  %4964 = vmatpush1.bf16.msra.mxu0 %v4941
  %4965 = vmatprep.subr.bf16.mxu0 0
  %4966 = vmatpush1.bf16.msra.mxu0 %v4942
  %4967 = vmatprep.subr.bf16.mxu0 0
  %4968 = vmatpush1.bf16.msra.mxu0 0
  %4969 = vmatprep.subr.bf16.mxu0 0
  %4970 = vmatpush1.bf16.msra.mxu0 0
  %4971 = vmatprep.subr.bf16.mxu0 0
  %4972 = vmatpush1.bf16.msra.mxu0 0
  %4973 = vmatprep.subr.bf16.mxu0 0
  %4974 = vmatpush1.bf16.msra.mxu0 0
  %4975 = vmatprep.subr.bf16.mxu0 0
  %4976 = vmatpush1.bf16.msra.mxu0 0
  %4977 = vmatprep.subr.bf16.mxu0 0
  %4978 = vmatpush1.bf16.msra.mxu0 0
  %4979 = vmatprep.subr.bf16.mxu0 0
  %4980 = vmatpush1.bf16.msra.mxu0 0
  %4981 = vmatprep.subr.bf16.mxu0 0
  %4982 = vmatpush1.bf16.msra.mxu0 0
  %4983 = vmatprep.mubr.bf16.mxu0 0
  %4984 = vmatmul.mubr.bf16.gmra.mrb[0].mxu0 %v4862
  %v4985 = vpop.f32.mrb[0].mxu0
  %v4986 = vadd.f32 0.0, %v4985
  %v4987 = vpop.f32.mrb[0].mxu0
  %v4988 = vpop.f32.mrb[0].mxu0
  %v4989 = vadd.f32 0.0, %v4988
  %v4990 = vpop.f32.mrb[0].mxu0
  %4991 = vmatprep.mubr.bf16.mxu0 0
  %4992 = vmatmul.mubr.bf16.gmra.mrb[0].mxu0 %v4863
  %v4993 = vpop.f32.mrb[0].mxu0
  %v4994 = vadd.f32 0.0, %v4993
  %v4995 = vpop.f32.mrb[0].mxu0
  %v4996 = vpop.f32.mrb[0].mxu0
  %v4997 = vadd.f32 0.0, %v4996
  %v4998 = vpop.f32.mrb[0].mxu0
  %4999 = vmatprep.mubr.bf16.mxu0 0
  %5000 = vmatmul.mubr.bf16.gmra.mrb[0].mxu0 %v4864
  %v5001 = vpop.f32.mrb[0].mxu0
  %v5002 = vadd.f32 0.0, %v5001
  %v5003 = vpop.f32.mrb[0].mxu0
  %v5004 = vpop.f32.mrb[0].mxu0
  %v5005 = vadd.f32 0.0, %v5004
  %v5006 = vpop.f32.mrb[0].mxu0
  %5007 = vmatprep.mubr.bf16.mxu0 0
  %5008 = vmatmul.mubr.bf16.gmra.mrb[0].mxu0 %v4865
  %v5009 = vpop.f32.mrb[0].mxu0
  %v5010 = vadd.f32 0.0, %v5009
  %v5011 = vpop.f32.mrb[0].mxu0
  %v5012 = vpop.f32.mrb[0].mxu0
  %v5013 = vadd.f32 0.0, %v5012
  %v5014 = vpop.f32.mrb[0].mxu0
  %5015 = vmatprep.mubr.bf16.mxu0 0
  %5016 = vmatmul.mubr.bf16.gmra.mrb[0].mxu0 %v4866
  %v5017 = vpop.f32.mrb[0].mxu0
  %v5018 = vadd.f32 0.0, %v5017
  %v5019 = vpop.f32.mrb[0].mxu0
  %v5020 = vpop.f32.mrb[0].mxu0
  %v5021 = vadd.f32 0.0, %v5020
  %v5022 = vpop.f32.mrb[0].mxu0
  %5023 = vmatprep.mubr.bf16.mxu0 0
  %5024 = vmatmul.mubr.bf16.gmra.mrb[0].mxu0 %v4867
  %v5025 = vpop.f32.mrb[0].mxu0
  %v5026 = vadd.f32 0.0, %v5025
  %v5027 = vpop.f32.mrb[0].mxu0
  %v5028 = vpop.f32.mrb[0].mxu0
  %v5029 = vadd.f32 0.0, %v5028
  %v5030 = vpop.f32.mrb[0].mxu0
  %5031 = vmatprep.mubr.bf16.mxu0 0
  %5032 = vmatmul.mubr.bf16.gmra.mrb[0].mxu0 %v4868
  %v5033 = vpop.f32.mrb[0].mxu0
  %v5034 = vadd.f32 0.0, %v5033
  %v5035 = vpop.f32.mrb[0].mxu0
  %v5036 = vpop.f32.mrb[0].mxu0
  %v5037 = vadd.f32 0.0, %v5036
  %v5038 = vpop.f32.mrb[0].mxu0
  %5039 = vmatprep.mubr.bf16.mxu0 0
  %5040 = vmatmul.mubr.bf16.gmra.mrb[0].mxu0 %v4869
  %v5041 = vpop.f32.mrb[0].mxu0
  %v5042 = vadd.f32 0.0, %v5041
  %v5043 = vpop.f32.mrb[0].mxu0
  %v5044 = vpop.f32.mrb[0].mxu0
  %v5045 = vadd.f32 0.0, %v5044
  %v5046 = vpop.f32.mrb[0].mxu0
  %5047 = vmatprep.mubr.bf16.mxu0 0
  %5048 = vmatmul.mubr.bf16.gmra.mrb[0].mxu0 %v4870
  %v5049 = vpop.f32.mrb[0].mxu0
  %v5050 = vadd.f32 0.0, %v5049
  %v5051 = vpop.f32.mrb[0].mxu0
  %v5052 = vpop.f32.mrb[0].mxu0
  %v5053 = vadd.f32 0.0, %v5052
  %v5054 = vpop.f32.mrb[0].mxu0
  %5055 = vmatprep.mubr.bf16.mxu0 0
  %5056 = vmatmul.mubr.bf16.gmra.mrb[0].mxu0 %v4871
  %v5057 = vpop.f32.mrb[0].mxu0
  %v5058 = vadd.f32 0.0, %v5057
  %v5059 = vpop.f32.mrb[0].mxu0
  %v5060 = vpop.f32.mrb[0].mxu0
  %v5061 = vadd.f32 0.0, %v5060
  %v5062 = vpop.f32.mrb[0].mxu0
  %5063 = vmatprep.mubr.bf16.mxu0 0
  %5064 = vmatmul.mubr.bf16.gmra.mrb[0].mxu0 %v4872
  %v5065 = vpop.f32.mrb[0].mxu0
  %v5066 = vadd.f32 0.0, %v5065
  %v5067 = vpop.f32.mrb[0].mxu0
  %v5068 = vpop.f32.mrb[0].mxu0
  %v5069 = vadd.f32 0.0, %v5068
  %v5070 = vpop.f32.mrb[0].mxu0
  %5071 = vmatprep.mubr.bf16.mxu0 0
  %5072 = vmatmul.mubr.bf16.gmra.mrb[0].mxu0 %v4873
  %v5073 = vpop.f32.mrb[0].mxu0
  %v5074 = vadd.f32 0.0, %v5073
  %v5075 = vpop.f32.mrb[0].mxu0
  %v5076 = vpop.f32.mrb[0].mxu0
  %v5077 = vadd.f32 0.0, %v5076
  %v5078 = vpop.f32.mrb[0].mxu0
  %5079 = vmatprep.mubr.bf16.mxu0 0
  %5080 = vmatmul.mubr.bf16.gmra.mrb[0].mxu0 %v4874
  %v5081 = vpop.f32.mrb[0].mxu0
  %v5082 = vadd.f32 0.0, %v5081
  %v5083 = vpop.f32.mrb[0].mxu0
  %v5084 = vpop.f32.mrb[0].mxu0
  %v5085 = vadd.f32 0.0, %v5084
  %v5086 = vpop.f32.mrb[0].mxu0
  %5087 = vmatprep.mubr.bf16.mxu0 0
  %5088 = vmatmul.mubr.bf16.gmra.mrb[0].mxu0 %v4875
  %v5089 = vpop.f32.mrb[0].mxu0
  %v5090 = vadd.f32 0.0, %v5089
  %v5091 = vpop.f32.mrb[0].mxu0
  %v5092 = vpop.f32.mrb[0].mxu0
  %v5093 = vadd.f32 0.0, %v5092
  %v5094 = vpop.f32.mrb[0].mxu0
  %5095 = vmatprep.mubr.bf16.mxu0 0
  %5096 = vmatmul.mubr.bf16.gmra.mrb[0].mxu0 %v4876
  %v5097 = vpop.f32.mrb[0].mxu0
  %v5098 = vadd.f32 0.0, %v5097
  %v5099 = vpop.f32.mrb[0].mxu0
  %v5100 = vpop.f32.mrb[0].mxu0
  %v5101 = vadd.f32 0.0, %v5100
  %v5102 = vpop.f32.mrb[0].mxu0
  %5103 = vmatprep.mubr.bf16.mxu0 0
  %5104 = vmatmul.mubr.bf16.gmra.mrb[0].mxu0 %v4877
  %v5105 = vpop.f32.mrb[0].mxu0
  %v5106 = vadd.f32 0.0, %v5105
  %v5107 = vpop.f32.mrb[0].mxu0
  %v5108 = vpop.f32.mrb[0].mxu0
  %v5109 = vadd.f32 0.0, %v5108
  %v5110 = vpop.f32.mrb[0].mxu0
  %5111 = vmatprep.mubr.bf16.mxu0 0
  %5112 = vmatmul.mubr.bf16.gmra.mrb[0].mxu0 %v4878
  %v5113 = vpop.f32.mrb[0].mxu0
  %v5114 = vadd.f32 0.0, %v5113
  %v5115 = vpop.f32.mrb[0].mxu0
  %v5116 = vpop.f32.mrb[0].mxu0
  %v5117 = vadd.f32 0.0, %v5116
  %v5118 = vpop.f32.mrb[0].mxu0
  %5119 = vmatprep.mubr.bf16.mxu0 0
  %5120 = vmatmul.mubr.bf16.gmra.mrb[0].mxu0 %v4879
  %v5121 = vpop.f32.mrb[0].mxu0
  %v5122 = vadd.f32 0.0, %v5121
  %v5123 = vpop.f32.mrb[0].mxu0
  %v5124 = vpop.f32.mrb[0].mxu0
  %v5125 = vadd.f32 0.0, %v5124
  %v5126 = vpop.f32.mrb[0].mxu0
  %5127 = vmatprep.mubr.bf16.mxu0 0
  %5128 = vmatmul.mubr.bf16.gmra.mrb[0].mxu0 %v4880
  %v5129 = vpop.f32.mrb[0].mxu0
  %v5130 = vadd.f32 0.0, %v5129
  %v5131 = vpop.f32.mrb[0].mxu0
  %v5132 = vpop.f32.mrb[0].mxu0
  %v5133 = vadd.f32 0.0, %v5132
  %v5134 = vpop.f32.mrb[0].mxu0
  %5135 = vmatprep.mubr.bf16.mxu0 0
  %5136 = vmatmul.mubr.bf16.gmra.mrb[0].mxu0 %v4881
  %v5137 = vpop.f32.mrb[0].mxu0
  %v5138 = vadd.f32 0.0, %v5137
  %v5139 = vpop.f32.mrb[0].mxu0
  %v5140 = vpop.f32.mrb[0].mxu0
  %v5141 = vadd.f32 0.0, %v5140
  %v5142 = vpop.f32.mrb[0].mxu0
  %5143 = vmatprep.mubr.bf16.mxu0 0
  %5144 = vmatmul.mubr.bf16.gmra.mrb[0].mxu0 %v4882
  %v5145 = vpop.f32.mrb[0].mxu0
  %v5146 = vadd.f32 0.0, %v5145
  %v5147 = vpop.f32.mrb[0].mxu0
  %v5148 = vpop.f32.mrb[0].mxu0
  %v5149 = vadd.f32 0.0, %v5148
  %v5150 = vpop.f32.mrb[0].mxu0
  %5151 = vmatprep.mubr.bf16.mxu0 0
  %5152 = vmatmul.mubr.bf16.gmra.mrb[0].mxu0 %v4883
  %v5153 = vpop.f32.mrb[0].mxu0
  %v5154 = vadd.f32 0.0, %v5153
  %v5155 = vpop.f32.mrb[0].mxu0
  %v5156 = vpop.f32.mrb[0].mxu0
  %v5157 = vadd.f32 0.0, %v5156
  %v5158 = vpop.f32.mrb[0].mxu0
  %5159 = vmatprep.mubr.bf16.mxu0 0
  %5160 = vmatmul.mubr.bf16.gmra.mrb[0].mxu0 %v4884
  %v5161 = vpop.f32.mrb[0].mxu0
  %v5162 = vadd.f32 0.0, %v5161
  %v5163 = vpop.f32.mrb[0].mxu0
  %v5164 = vpop.f32.mrb[0].mxu0
  %v5165 = vpop.f32.mrb[0].mxu0
  %5166 = vmatprep.mubr.bf16.mxu0 0
  %5167 = vmatmul.mubr.bf16.gmra.mrb[0].mxu0 %v4885
  %v5168 = vpop.f32.mrb[0].mxu0
  %v5169 = vpop.f32.mrb[0].mxu0
  %v5170 = vpop.f32.mrb[0].mxu0
  %v5171 = vpop.f32.mrb[0].mxu0
  %5172 = vmatprep.mubr.bf16.mxu0 0
  %5173 = vmatmul.mubr.bf16.gmra.mrb[0].mxu0 %v4886
  %v5174 = vpop.f32.mrb[0].mxu0
  %v5175 = vpop.f32.mrb[0].mxu0
  %v5176 = vpop.f32.mrb[0].mxu0
  %v5177 = vpop.f32.mrb[0].mxu0
  %5178 = vdwg.mxu0
  %v5179 = vmul.f32 %v4986, 0.0002
  %v5180 = vmul.f32 %v4989, 0.0002
  %v5181 = vmul.f32 %v4994, 0.0002
  %v5182 = vmul.f32 %v4997, 0.0002
  %v5183 = vmul.f32 %v5002, 0.0002
  %v5184 = vmul.f32 %v5005, 0.0002
  %v5185 = vmul.f32 %v5010, 0.0002
  %v5186 = vmul.f32 %v5013, 0.0002
  %v5187 = vmul.f32 %v5018, 0.0002
  %v5188 = vmul.f32 %v5021, 0.0002
  %v5189 = vmul.f32 %v5026, 0.0002
  %v5190 = vmul.f32 %v5029, 0.0002
  %v5191 = vmul.f32 %v5034, 0.0002
  %v5192 = vmul.f32 %v5037, 0.0002
  %v5193 = vmul.f32 %v5042, 0.0002
  %v5194 = vmul.f32 %v5045, 0.0002
  %v5195 = vmul.f32 %v5050, 0.0002
  %v5196 = vmul.f32 %v5053, 0.0002
  %v5197 = vmul.f32 %v5058, 0.0002
  %v5198 = vmul.f32 %v5061, 0.0002
  %v5199 = vmul.f32 %v5066, 0.0002
  %v5200 = vmul.f32 %v5069, 0.0002
  %v5201 = vmul.f32 %v5074, 0.0002
  %v5202 = vmul.f32 %v5077, 0.0002
  %v5203 = vmul.f32 %v5082, 0.0002
  %v5204 = vmul.f32 %v5085, 0.0002
  %v5205 = vmul.f32 %v5090, 0.0002
  %v5206 = vmul.f32 %v5093, 0.0002
  %v5207 = vmul.f32 %v5098, 0.0002
  %v5208 = vmul.f32 %v5101, 0.0002
  %v5209 = vmul.f32 %v5106, 0.0002
  %v5210 = vmul.f32 %v5109, 0.0002
  %v5211 = vmul.f32 %v5114, 0.0002
  %v5212 = vmul.f32 %v5117, 0.0002
  %v5213 = vmul.f32 %v5122, 0.0002
  %v5214 = vmul.f32 %v5125, 0.0002
  %v5215 = vmul.f32 %v5130, 0.0002
  %v5216 = vmul.f32 %v5133, 0.0002
  %v5217 = vmul.f32 %v5138, 0.0002
  %v5218 = vmul.f32 %v5141, 0.0002
  %v5219 = vmul.f32 %v5146, 0.0002
  %v5220 = vmul.f32 %v5149, 0.0002
  %v5221 = vmul.f32 %v5154, 0.0002
  %v5222 = vmul.f32 %v5157, 0.0002
  %v5223 = vmul.f32 %v5162, 0.0002
  %v5224 = vadd.f32 %v5179, 2.0
  %v5225 = vadd.f32 %v5180, 2.0
  %v5226 = vadd.f32 %v5181, 2.0
  %v5227 = vadd.f32 %v5182, 2.0
  %v5228 = vadd.f32 %v5183, 2.0
  %v5229 = vadd.f32 %v5184, 2.0
  %v5230 = vadd.f32 %v5185, 2.0
  %v5231 = vadd.f32 %v5186, 2.0
  %v5232 = vadd.f32 %v5187, 2.0
  %v5233 = vadd.f32 %v5188, 2.0
  %v5234 = vadd.f32 %v5189, 2.0
  %v5235 = vadd.f32 %v5190, 2.0
  %v5236 = vadd.f32 %v5191, 2.0
  %v5237 = vadd.f32 %v5192, 2.0
  %v5238 = vadd.f32 %v5193, 2.0
  %v5239 = vadd.f32 %v5194, 2.0
  %v5240 = vadd.f32 %v5195, 2.0
  %v5241 = vadd.f32 %v5196, 2.0
  %v5242 = vadd.f32 %v5197, 2.0
  %v5243 = vadd.f32 %v5198, 2.0
  %v5244 = vadd.f32 %v5199, 2.0
  %v5245 = vadd.f32 %v5200, 2.0
  %v5246 = vadd.f32 %v5201, 2.0
  %v5247 = vadd.f32 %v5202, 2.0
  %v5248 = vadd.f32 %v5203, 2.0
  %v5249 = vadd.f32 %v5204, 2.0
  %v5250 = vadd.f32 %v5205, 2.0
  %v5251 = vadd.f32 %v5206, 2.0
  %v5252 = vadd.f32 %v5207, 2.0
  %v5253 = vadd.f32 %v5208, 2.0
  %v5254 = vadd.f32 %v5209, 2.0
  %v5255 = vadd.f32 %v5210, 2.0
  %v5256 = vadd.f32 %v5211, 2.0
  %v5257 = vadd.f32 %v5212, 2.0
  %v5258 = vadd.f32 %v5213, 2.0
  %v5259 = vadd.f32 %v5214, 2.0
  %v5260 = vadd.f32 %v5215, 2.0
  %v5261 = vadd.f32 %v5216, 2.0
  %v5262 = vadd.f32 %v5217, 2.0
  %v5263 = vadd.f32 %v5218, 2.0
  %v5264 = vadd.f32 %v5219, 2.0
  %v5265 = vadd.f32 %v5220, 2.0
  %v5266 = vadd.f32 %v5221, 2.0
  %v5267 = vadd.f32 %v5222, 2.0
  %v5268 = vadd.f32 %v5223, 2.0
  %v5269 = vrsqrt.pop %v5224
  %v5270 = vrsqrt.pop %v5225
  %v5271 = vrsqrt.pop %v5226
  %v5272 = vrsqrt.pop %v5227
  %v5273 = vrsqrt.pop %v5228
  %v5274 = vrsqrt.pop %v5229
  %v5275 = vrsqrt.pop %v5230
  %v5276 = vrsqrt.pop %v5231
  %v5277 = vrsqrt.pop %v5232
  %v5278 = vrsqrt.pop %v5233
  %v5279 = vrsqrt.pop %v5234
  %v5280 = vrsqrt.pop %v5235
  %v5281 = vrsqrt.pop %v5236
  %v5282 = vrsqrt.pop %v5237
  %v5283 = vrsqrt.pop %v5238
  %v5284 = vrsqrt.pop %v5239
  %v5285 = vrsqrt.pop %v5240
  %v5286 = vrsqrt.pop %v5241
  %v5287 = vrsqrt.pop %v5242
  %v5288 = vrsqrt.pop %v5243
  %v5289 = vrsqrt.pop %v5244
  %v5290 = vrsqrt.pop %v5245
  %v5291 = vrsqrt.pop %v5246
  %v5292 = vrsqrt.pop %v5247
  %v5293 = vrsqrt.pop %v5248
  %v5294 = vrsqrt.pop %v5249
  %v5295 = vrsqrt.pop %v5250
  %v5296 = vrsqrt.pop %v5251
  %v5297 = vrsqrt.pop %v5252
  %v5298 = vrsqrt.pop %v5253
  %v5299 = vrsqrt.pop %v5254
  %v5300 = vrsqrt.pop %v5255
  %v5301 = vrsqrt.pop %v5256
  %v5302 = vrsqrt.pop %v5257
  %v5303 = vrsqrt.pop %v5258
  %v5304 = vrsqrt.pop %v5259
  %v5305 = vrsqrt.pop %v5260
  %v5306 = vrsqrt.pop %v5261
  %v5307 = vrsqrt.pop %v5262
  %v5308 = vrsqrt.pop %v5263
  %v5309 = vrsqrt.pop %v5264
  %v5310 = vrsqrt.pop %v5265
  %v5311 = vrsqrt.pop %v5266
  %v5312 = vrsqrt.pop %v5267
  %v5313 = vrsqrt.pop %v5268
  %v5314 = vrsqrt.pop %v5269
  %v5315 = vmul.f32 %v5269, %v5314
  %vm5316 = vcmp.eq.f32.partialorder %v5269, inf
  %v5317 = vsel %vm5316, %v5269, %v5315
  %vm5318 = vcmp.eq.f32.partialorder %v5269, 0.0
  %v5319 = vand.u32 %v5269, 2147483648
  %v5320 = vsel %vm5318, %v5319, %v5317
  %v5321 = vrsqrt.pop %v5270
  %v5322 = vmul.f32 %v5270, %v5321
  %vm5323 = vcmp.eq.f32.partialorder %v5270, inf
  %v5324 = vsel %vm5323, %v5270, %v5322
  %vm5325 = vcmp.eq.f32.partialorder %v5270, 0.0
  %v5326 = vand.u32 %v5270, 2147483648
  %v5327 = vsel %vm5325, %v5326, %v5324
  %v5328 = vrsqrt.pop %v5271
  %v5329 = vmul.f32 %v5271, %v5328
  %vm5330 = vcmp.eq.f32.partialorder %v5271, inf
  %v5331 = vsel %vm5330, %v5271, %v5329
  %vm5332 = vcmp.eq.f32.partialorder %v5271, 0.0
  %v5333 = vand.u32 %v5271, 2147483648
  %v5334 = vsel %vm5332, %v5333, %v5331
  %v5335 = vrsqrt.pop %v5272
  %v5336 = vmul.f32 %v5272, %v5335
  %vm5337 = vcmp.eq.f32.partialorder %v5272, inf
  %v5338 = vsel %vm5337, %v5272, %v5336
  %vm5339 = vcmp.eq.f32.partialorder %v5272, 0.0
  %v5340 = vand.u32 %v5272, 2147483648
  %v5341 = vsel %vm5339, %v5340, %v5338
  %v5342 = vrsqrt.pop %v5273
  %v5343 = vmul.f32 %v5273, %v5342
  %vm5344 = vcmp.eq.f32.partialorder %v5273, inf
  %v5345 = vsel %vm5344, %v5273, %v5343
  %vm5346 = vcmp.eq.f32.partialorder %v5273, 0.0
  %v5347 = vand.u32 %v5273, 2147483648
  %v5348 = vsel %vm5346, %v5347, %v5345
  %v5349 = vrsqrt.pop %v5274
  %v5350 = vmul.f32 %v5274, %v5349
  %vm5351 = vcmp.eq.f32.partialorder %v5274, inf
  %v5352 = vsel %vm5351, %v5274, %v5350
  %vm5353 = vcmp.eq.f32.partialorder %v5274, 0.0
  %v5354 = vand.u32 %v5274, 2147483648
  %v5355 = vsel %vm5353, %v5354, %v5352
  %v5356 = vrsqrt.pop %v5275
  %v5357 = vmul.f32 %v5275, %v5356
  %vm5358 = vcmp.eq.f32.partialorder %v5275, inf
  %v5359 = vsel %vm5358, %v5275, %v5357
  %vm5360 = vcmp.eq.f32.partialorder %v5275, 0.0
  %v5361 = vand.u32 %v5275, 2147483648
  %v5362 = vsel %vm5360, %v5361, %v5359
  %v5363 = vrsqrt.pop %v5276
  %v5364 = vmul.f32 %v5276, %v5363
  %vm5365 = vcmp.eq.f32.partialorder %v5276, inf
  %v5366 = vsel %vm5365, %v5276, %v5364
  %vm5367 = vcmp.eq.f32.partialorder %v5276, 0.0
  %v5368 = vand.u32 %v5276, 2147483648
  %v5369 = vsel %vm5367, %v5368, %v5366
  %v5370 = vrsqrt.pop %v5277
  %v5371 = vmul.f32 %v5277, %v5370
  %vm5372 = vcmp.eq.f32.partialorder %v5277, inf
  %v5373 = vsel %vm5372, %v5277, %v5371
  %vm5374 = vcmp.eq.f32.partialorder %v5277, 0.0
  %v5375 = vand.u32 %v5277, 2147483648
  %v5376 = vsel %vm5374, %v5375, %v5373
  %v5377 = vrsqrt.pop %v5278
  %v5378 = vmul.f32 %v5278, %v5377
  %vm5379 = vcmp.eq.f32.partialorder %v5278, inf
  %v5380 = vsel %vm5379, %v5278, %v5378
  %vm5381 = vcmp.eq.f32.partialorder %v5278, 0.0
  %v5382 = vand.u32 %v5278, 2147483648
  %v5383 = vsel %vm5381, %v5382, %v5380
  %v5384 = vrsqrt.pop %v5279
  %v5385 = vmul.f32 %v5279, %v5384
  %vm5386 = vcmp.eq.f32.partialorder %v5279, inf
  %v5387 = vsel %vm5386, %v5279, %v5385
  %vm5388 = vcmp.eq.f32.partialorder %v5279, 0.0
  %v5389 = vand.u32 %v5279, 2147483648
  %v5390 = vsel %vm5388, %v5389, %v5387
  %v5391 = vrsqrt.pop %v5280
  %v5392 = vmul.f32 %v5280, %v5391
  %vm5393 = vcmp.eq.f32.partialorder %v5280, inf
  %v5394 = vsel %vm5393, %v5280, %v5392
  %vm5395 = vcmp.eq.f32.partialorder %v5280, 0.0
  %v5396 = vand.u32 %v5280, 2147483648
  %v5397 = vsel %vm5395, %v5396, %v5394
  %v5398 = vrsqrt.pop %v5281
  %v5399 = vmul.f32 %v5281, %v5398
  %vm5400 = vcmp.eq.f32.partialorder %v5281, inf
  %v5401 = vsel %vm5400, %v5281, %v5399
  %vm5402 = vcmp.eq.f32.partialorder %v5281, 0.0
  %v5403 = vand.u32 %v5281, 2147483648
  %v5404 = vsel %vm5402, %v5403, %v5401
  %v5405 = vrsqrt.pop %v5282
  %v5406 = vmul.f32 %v5282, %v5405
  %vm5407 = vcmp.eq.f32.partialorder %v5282, inf
  %v5408 = vsel %vm5407, %v5282, %v5406
  %vm5409 = vcmp.eq.f32.partialorder %v5282, 0.0
  %v5410 = vand.u32 %v5282, 2147483648
  %v5411 = vsel %vm5409, %v5410, %v5408
  %v5412 = vrsqrt.pop %v5283
  %v5413 = vmul.f32 %v5283, %v5412
  %vm5414 = vcmp.eq.f32.partialorder %v5283, inf
  %v5415 = vsel %vm5414, %v5283, %v5413
  %vm5416 = vcmp.eq.f32.partialorder %v5283, 0.0
  %v5417 = vand.u32 %v5283, 2147483648
  %v5418 = vsel %vm5416, %v5417, %v5415
  %v5419 = vrsqrt.pop %v5284
  %v5420 = vmul.f32 %v5284, %v5419
  %vm5421 = vcmp.eq.f32.partialorder %v5284, inf
  %v5422 = vsel %vm5421, %v5284, %v5420
  %vm5423 = vcmp.eq.f32.partialorder %v5284, 0.0
  %v5424 = vand.u32 %v5284, 2147483648
  %v5425 = vsel %vm5423, %v5424, %v5422
  %v5426 = vrsqrt.pop %v5285
  %v5427 = vmul.f32 %v5285, %v5426
  %vm5428 = vcmp.eq.f32.partialorder %v5285, inf
  %v5429 = vsel %vm5428, %v5285, %v5427
  %vm5430 = vcmp.eq.f32.partialorder %v5285, 0.0
  %v5431 = vand.u32 %v5285, 2147483648
  %v5432 = vsel %vm5430, %v5431, %v5429
  %v5433 = vrsqrt.pop %v5286
  %v5434 = vmul.f32 %v5286, %v5433
  %vm5435 = vcmp.eq.f32.partialorder %v5286, inf
  %v5436 = vsel %vm5435, %v5286, %v5434
  %vm5437 = vcmp.eq.f32.partialorder %v5286, 0.0
  %v5438 = vand.u32 %v5286, 2147483648
  %v5439 = vsel %vm5437, %v5438, %v5436
  %v5440 = vrsqrt.pop %v5287
  %v5441 = vmul.f32 %v5287, %v5440
  %vm5442 = vcmp.eq.f32.partialorder %v5287, inf
  %v5443 = vsel %vm5442, %v5287, %v5441
  %vm5444 = vcmp.eq.f32.partialorder %v5287, 0.0
  %v5445 = vand.u32 %v5287, 2147483648
  %v5446 = vsel %vm5444, %v5445, %v5443
  %v5447 = vrsqrt.pop %v5288
  %v5448 = vmul.f32 %v5288, %v5447
  %vm5449 = vcmp.eq.f32.partialorder %v5288, inf
  %v5450 = vsel %vm5449, %v5288, %v5448
  %vm5451 = vcmp.eq.f32.partialorder %v5288, 0.0
  %v5452 = vand.u32 %v5288, 2147483648
  %v5453 = vsel %vm5451, %v5452, %v5450
  %v5454 = vrsqrt.pop %v5289
  %v5455 = vmul.f32 %v5289, %v5454
  %vm5456 = vcmp.eq.f32.partialorder %v5289, inf
  %v5457 = vsel %vm5456, %v5289, %v5455
  %vm5458 = vcmp.eq.f32.partialorder %v5289, 0.0
  %v5459 = vand.u32 %v5289, 2147483648
  %v5460 = vsel %vm5458, %v5459, %v5457
  %v5461 = vrsqrt.pop %v5290
  %v5462 = vmul.f32 %v5290, %v5461
  %vm5463 = vcmp.eq.f32.partialorder %v5290, inf
  %v5464 = vsel %vm5463, %v5290, %v5462
  %vm5465 = vcmp.eq.f32.partialorder %v5290, 0.0
  %v5466 = vand.u32 %v5290, 2147483648
  %v5467 = vsel %vm5465, %v5466, %v5464
  %v5468 = vrsqrt.pop %v5291
  %v5469 = vmul.f32 %v5291, %v5468
  %vm5470 = vcmp.eq.f32.partialorder %v5291, inf
  %v5471 = vsel %vm5470, %v5291, %v5469
  %vm5472 = vcmp.eq.f32.partialorder %v5291, 0.0
  %v5473 = vand.u32 %v5291, 2147483648
  %v5474 = vsel %vm5472, %v5473, %v5471
  %v5475 = vrsqrt.pop %v5292
  %v5476 = vmul.f32 %v5292, %v5475
  %vm5477 = vcmp.eq.f32.partialorder %v5292, inf
  %v5478 = vsel %vm5477, %v5292, %v5476
  %vm5479 = vcmp.eq.f32.partialorder %v5292, 0.0
  %v5480 = vand.u32 %v5292, 2147483648
  %v5481 = vsel %vm5479, %v5480, %v5478
  %v5482 = vrsqrt.pop %v5293
  %v5483 = vmul.f32 %v5293, %v5482
  %vm5484 = vcmp.eq.f32.partialorder %v5293, inf
  %v5485 = vsel %vm5484, %v5293, %v5483
  %vm5486 = vcmp.eq.f32.partialorder %v5293, 0.0
  %v5487 = vand.u32 %v5293, 2147483648
  %v5488 = vsel %vm5486, %v5487, %v5485
  %v5489 = vrsqrt.pop %v5294
  %v5490 = vmul.f32 %v5294, %v5489
  %vm5491 = vcmp.eq.f32.partialorder %v5294, inf
  %v5492 = vsel %vm5491, %v5294, %v5490
  %vm5493 = vcmp.eq.f32.partialorder %v5294, 0.0
  %v5494 = vand.u32 %v5294, 2147483648
  %v5495 = vsel %vm5493, %v5494, %v5492
  %v5496 = vrsqrt.pop %v5295
  %v5497 = vmul.f32 %v5295, %v5496
  %vm5498 = vcmp.eq.f32.partialorder %v5295, inf
  %v5499 = vsel %vm5498, %v5295, %v5497
  %vm5500 = vcmp.eq.f32.partialorder %v5295, 0.0
  %v5501 = vand.u32 %v5295, 2147483648
  %v5502 = vsel %vm5500, %v5501, %v5499
  %v5503 = vrsqrt.pop %v5296
  %v5504 = vmul.f32 %v5296, %v5503
  %vm5505 = vcmp.eq.f32.partialorder %v5296, inf
  %v5506 = vsel %vm5505, %v5296, %v5504
  %vm5507 = vcmp.eq.f32.partialorder %v5296, 0.0
  %v5508 = vand.u32 %v5296, 2147483648
  %v5509 = vsel %vm5507, %v5508, %v5506
  %v5510 = vrsqrt.pop %v5297
  %v5511 = vmul.f32 %v5297, %v5510
  %vm5512 = vcmp.eq.f32.partialorder %v5297, inf
  %v5513 = vsel %vm5512, %v5297, %v5511
  %vm5514 = vcmp.eq.f32.partialorder %v5297, 0.0
  %v5515 = vand.u32 %v5297, 2147483648
  %v5516 = vsel %vm5514, %v5515, %v5513
  %v5517 = vrsqrt.pop %v5298
  %v5518 = vmul.f32 %v5298, %v5517
  %vm5519 = vcmp.eq.f32.partialorder %v5298, inf
  %v5520 = vsel %vm5519, %v5298, %v5518
  %vm5521 = vcmp.eq.f32.partialorder %v5298, 0.0
  %v5522 = vand.u32 %v5298, 2147483648
  %v5523 = vsel %vm5521, %v5522, %v5520
  %v5524 = vrsqrt.pop %v5299
  %v5525 = vmul.f32 %v5299, %v5524
  %vm5526 = vcmp.eq.f32.partialorder %v5299, inf
  %v5527 = vsel %vm5526, %v5299, %v5525
  %vm5528 = vcmp.eq.f32.partialorder %v5299, 0.0
  %v5529 = vand.u32 %v5299, 2147483648
  %v5530 = vsel %vm5528, %v5529, %v5527
  %v5531 = vrsqrt.pop %v5300
  %v5532 = vmul.f32 %v5300, %v5531
  %vm5533 = vcmp.eq.f32.partialorder %v5300, inf
  %v5534 = vsel %vm5533, %v5300, %v5532
  %vm5535 = vcmp.eq.f32.partialorder %v5300, 0.0
  %v5536 = vand.u32 %v5300, 2147483648
  %v5537 = vsel %vm5535, %v5536, %v5534
  %v5538 = vrsqrt.pop %v5301
  %v5539 = vmul.f32 %v5301, %v5538
  %vm5540 = vcmp.eq.f32.partialorder %v5301, inf
  %v5541 = vsel %vm5540, %v5301, %v5539
  %vm5542 = vcmp.eq.f32.partialorder %v5301, 0.0
  %v5543 = vand.u32 %v5301, 2147483648
  %v5544 = vsel %vm5542, %v5543, %v5541
  %v5545 = vrsqrt.pop %v5302
  %v5546 = vmul.f32 %v5302, %v5545
  %vm5547 = vcmp.eq.f32.partialorder %v5302, inf
  %v5548 = vsel %vm5547, %v5302, %v5546
  %vm5549 = vcmp.eq.f32.partialorder %v5302, 0.0
  %v5550 = vand.u32 %v5302, 2147483648
  %v5551 = vsel %vm5549, %v5550, %v5548
  %v5552 = vrsqrt.pop %v5303
  %v5553 = vmul.f32 %v5303, %v5552
  %vm5554 = vcmp.eq.f32.partialorder %v5303, inf
  %v5555 = vsel %vm5554, %v5303, %v5553
  %vm5556 = vcmp.eq.f32.partialorder %v5303, 0.0
  %v5557 = vand.u32 %v5303, 2147483648
  %v5558 = vsel %vm5556, %v5557, %v5555
  %v5559 = vrsqrt.pop %v5304
  %v5560 = vmul.f32 %v5304, %v5559
  %vm5561 = vcmp.eq.f32.partialorder %v5304, inf
  %v5562 = vsel %vm5561, %v5304, %v5560
  %vm5563 = vcmp.eq.f32.partialorder %v5304, 0.0
  %v5564 = vand.u32 %v5304, 2147483648
  %v5565 = vsel %vm5563, %v5564, %v5562
  %v5566 = vrsqrt.pop %v5305
  %v5567 = vmul.f32 %v5305, %v5566
  %vm5568 = vcmp.eq.f32.partialorder %v5305, inf
  %v5569 = vsel %vm5568, %v5305, %v5567
  %vm5570 = vcmp.eq.f32.partialorder %v5305, 0.0
  %v5571 = vand.u32 %v5305, 2147483648
  %v5572 = vsel %vm5570, %v5571, %v5569
  %v5573 = vrsqrt.pop %v5306
  %v5574 = vmul.f32 %v5306, %v5573
  %vm5575 = vcmp.eq.f32.partialorder %v5306, inf
  %v5576 = vsel %vm5575, %v5306, %v5574
  %vm5577 = vcmp.eq.f32.partialorder %v5306, 0.0
  %v5578 = vand.u32 %v5306, 2147483648
  %v5579 = vsel %vm5577, %v5578, %v5576
  %v5580 = vrsqrt.pop %v5307
  %v5581 = vmul.f32 %v5307, %v5580
  %vm5582 = vcmp.eq.f32.partialorder %v5307, inf
  %v5583 = vsel %vm5582, %v5307, %v5581
  %vm5584 = vcmp.eq.f32.partialorder %v5307, 0.0
  %v5585 = vand.u32 %v5307, 2147483648
  %v5586 = vsel %vm5584, %v5585, %v5583
  %v5587 = vrsqrt.pop %v5308
  %v5588 = vmul.f32 %v5308, %v5587
  %vm5589 = vcmp.eq.f32.partialorder %v5308, inf
  %v5590 = vsel %vm5589, %v5308, %v5588
  %vm5591 = vcmp.eq.f32.partialorder %v5308, 0.0
  %v5592 = vand.u32 %v5308, 2147483648
  %v5593 = vsel %vm5591, %v5592, %v5590
  %v5594 = vrsqrt.pop %v5309
  %v5595 = vmul.f32 %v5309, %v5594
  %vm5596 = vcmp.eq.f32.partialorder %v5309, inf
  %v5597 = vsel %vm5596, %v5309, %v5595
  %vm5598 = vcmp.eq.f32.partialorder %v5309, 0.0
  %v5599 = vand.u32 %v5309, 2147483648
  %v5600 = vsel %vm5598, %v5599, %v5597
  %v5601 = vrsqrt.pop %v5310
  %v5602 = vmul.f32 %v5310, %v5601
  %vm5603 = vcmp.eq.f32.partialorder %v5310, inf
  %v5604 = vsel %vm5603, %v5310, %v5602
  %vm5605 = vcmp.eq.f32.partialorder %v5310, 0.0
  %v5606 = vand.u32 %v5310, 2147483648
  %v5607 = vsel %vm5605, %v5606, %v5604
  %v5608 = vrsqrt.pop %v5311
  %v5609 = vmul.f32 %v5311, %v5608
  %vm5610 = vcmp.eq.f32.partialorder %v5311, inf
  %v5611 = vsel %vm5610, %v5311, %v5609
  %vm5612 = vcmp.eq.f32.partialorder %v5311, 0.0
  %v5613 = vand.u32 %v5311, 2147483648
  %v5614 = vsel %vm5612, %v5613, %v5611
  %v5615 = vrsqrt.pop %v5312
  %v5616 = vmul.f32 %v5312, %v5615
  %vm5617 = vcmp.eq.f32.partialorder %v5312, inf
  %v5618 = vsel %vm5617, %v5312, %v5616
  %vm5619 = vcmp.eq.f32.partialorder %v5312, 0.0
  %v5620 = vand.u32 %v5312, 2147483648
  %v5621 = vsel %vm5619, %v5620, %v5618
  %v5622 = vrsqrt.pop %v5313
  %v5623 = vmul.f32 %v5313, %v5622
  %vm5624 = vcmp.eq.f32.partialorder %v5313, inf
  %v5625 = vsel %vm5624, %v5313, %v5623
  %vm5626 = vcmp.eq.f32.partialorder %v5313, 0.0
  %v5627 = vand.u32 %v5313, 2147483648
  %v5628 = vsel %vm5626, %v5627, %v5625
  %v5629 = vmul.f32 %v5269, %v5320
  %v5630 = vmul.f32 %v5270, %v5327
  %v5631 = vmul.f32 %v5271, %v5334
  %v5632 = vmul.f32 %v5272, %v5341
  %v5633 = vmul.f32 %v5273, %v5348
  %v5634 = vmul.f32 %v5274, %v5355
  %v5635 = vmul.f32 %v5275, %v5362
  %v5636 = vmul.f32 %v5276, %v5369
  %v5637 = vmul.f32 %v5277, %v5376
  %v5638 = vmul.f32 %v5278, %v5383
  %v5639 = vmul.f32 %v5279, %v5390
  %v5640 = vmul.f32 %v5280, %v5397
  %v5641 = vmul.f32 %v5281, %v5404
  %v5642 = vmul.f32 %v5282, %v5411
  %v5643 = vmul.f32 %v5283, %v5418
  %v5644 = vmul.f32 %v5284, %v5425
  %v5645 = vmul.f32 %v5285, %v5432
  %v5646 = vmul.f32 %v5286, %v5439
  %v5647 = vmul.f32 %v5287, %v5446
  %v5648 = vmul.f32 %v5288, %v5453
  %v5649 = vmul.f32 %v5289, %v5460
  %v5650 = vmul.f32 %v5290, %v5467
  %v5651 = vmul.f32 %v5291, %v5474
  %v5652 = vmul.f32 %v5292, %v5481
  %v5653 = vmul.f32 %v5293, %v5488
  %v5654 = vmul.f32 %v5294, %v5495
  %v5655 = vmul.f32 %v5295, %v5502
  %v5656 = vmul.f32 %v5296, %v5509
  %v5657 = vmul.f32 %v5297, %v5516
  %v5658 = vmul.f32 %v5298, %v5523
  %v5659 = vmul.f32 %v5299, %v5530
  %v5660 = vmul.f32 %v5300, %v5537
  %v5661 = vmul.f32 %v5301, %v5544
  %v5662 = vmul.f32 %v5302, %v5551
  %v5663 = vmul.f32 %v5303, %v5558
  %v5664 = vmul.f32 %v5304, %v5565
  %v5665 = vmul.f32 %v5305, %v5572
  %v5666 = vmul.f32 %v5306, %v5579
  %v5667 = vmul.f32 %v5307, %v5586
  %v5668 = vmul.f32 %v5308, %v5593
  %v5669 = vmul.f32 %v5309, %v5600
  %v5670 = vmul.f32 %v5310, %v5607
  %v5671 = vmul.f32 %v5311, %v5614
  %v5672 = vmul.f32 %v5312, %v5621
  %v5673 = vmul.f32 %v5313, %v5628
  %v5674 = vmul.f32 %v4762, %v5629
  %v5675 = vmul.f32 %v4763, %v5630
  %v5676 = vmul.f32 %v4764, %v5631
  %v5677 = vmul.f32 %v4765, %v5632
  %v5678 = vmul.f32 %v4766, %v5633
  %v5679 = vmul.f32 %v4767, %v5634
  %v5680 = vmul.f32 %v4768, %v5635
  %v5681 = vmul.f32 %v4769, %v5636
  %v5682 = vmul.f32 %v4770, %v5637
  %v5683 = vmul.f32 %v4771, %v5638
  %v5684 = vmul.f32 %v4772, %v5639
  %v5685 = vmul.f32 %v4773, %v5640
  %v5686 = vmul.f32 %v4774, %v5641
  %v5687 = vmul.f32 %v4775, %v5642
  %v5688 = vmul.f32 %v4776, %v5643
  %v5689 = vmul.f32 %v4777, %v5644
  %v5690 = vmul.f32 %v4778, %v5645
  %v5691 = vmul.f32 %v4779, %v5646
  %v5692 = vmul.f32 %v4780, %v5647
  %v5693 = vmul.f32 %v4781, %v5648
  %v5694 = vmul.f32 %v4782, %v5649
  %v5695 = vmul.f32 %v4783, %v5650
  %v5696 = vmul.f32 %v4784, %v5651
  %v5697 = vmul.f32 %v4785, %v5652
  %v5698 = vmul.f32 %v4786, %v5653
  %v5699 = vmul.f32 %v4787, %v5654
  %v5700 = vmul.f32 %v4788, %v5655
  %v5701 = vmul.f32 %v4789, %v5656
  %v5702 = vmul.f32 %v4790, %v5657
  %v5703 = vmul.f32 %v4791, %v5658
  %v5704 = vmul.f32 %v4792, %v5659
  %v5705 = vmul.f32 %v4793, %v5660
  %v5706 = vmul.f32 %v4794, %v5661
  %v5707 = vmul.f32 %v4795, %v5662
  %v5708 = vmul.f32 %v4796, %v5663
  %v5709 = vmul.f32 %v4797, %v5664
  %v5710 = vmul.f32 %v4798, %v5665
  %v5711 = vmul.f32 %v4799, %v5666
  %v5712 = vmul.f32 %v4800, %v5667
  %v5713 = vmul.f32 %v4801, %v5668
  %v5714 = vmul.f32 %v4802, %v5669
  %v5715 = vmul.f32 %v4803, %v5670
  %v5716 = vmul.f32 %v4804, %v5671
  %v5717 = vmul.f32 %v4805, %v5672
  %v5718 = vmul.f32 %v4806, %v5673
  %v5719 = vmax.f32 %v5674, %v5679
  %v5720 = vmax.f32 %v5675, %v5680
  %v5721 = vmax.f32 %v5676, %v5681
  %v5722 = vmax.f32 %v5677, %v5682
  %v5723 = vmax.f32 %v5678, %v5683
  %v5724 = vmax.f32 %v5684, %v5689
  %v5725 = vmax.f32 %v5685, %v5690
  %v5726 = vmax.f32 %v5686, %v5691
  %v5727 = vmax.f32 %v5687, %v5692
  %v5728 = vmax.f32 %v5688, %v5693
  %v5729 = vmax.f32 %v5694, %v5699
  %v5730 = vmax.f32 %v5695, %v5700
  %v5731 = vmax.f32 %v5696, %v5701
  %v5732 = vmax.f32 %v5697, %v5702
  %v5733 = vmax.f32 %v5698, %v5703
  %v5734 = vmax.f32 %v5704, %v5709
  %v5735 = vmax.f32 %v5705, %v5710
  %v5736 = vmax.f32 %v5706, %v5711
  %v5737 = vmax.f32 %v5707, %v5712
  %v5738 = vmax.f32 %v5708, %v5713
  %v5739 = vmax.f32 %v5719, %v5684
  %v5740 = vmax.f32 %v5720, %v5685
  %v5741 = vmax.f32 %v5721, %v5686
  %v5742 = vmax.f32 %v5722, %v5687
  %v5743 = vmax.f32 %v5723, %v5688
  %v5744 = vmax.f32 %v5724, %v5694
  %v5745 = vmax.f32 %v5725, %v5695
  %v5746 = vmax.f32 %v5726, %v5696
  %v5747 = vmax.f32 %v5727, %v5697
  %v5748 = vmax.f32 %v5728, %v5698
  %v5749 = vmax.f32 %v5729, %v5704
  %v5750 = vmax.f32 %v5730, %v5705
  %v5751 = vmax.f32 %v5731, %v5706
  %v5752 = vmax.f32 %v5732, %v5707
  %v5753 = vmax.f32 %v5733, %v5708
  %v5754 = vmax.f32 %v5734, %v5714
  %v5755 = vmax.f32 %v5735, %v5715
  %v5756 = vmax.f32 %v5736, %v5716
  %v5757 = vmax.f32 %v5737, %v5717
  %v5758 = vmax.f32 %v5738, %v5718
  %vm5779 = vcmask 1043456
  %v5780 = vrot.slane %v5739, 4
  %v5781 = vrot.slane %v5740, 4
  %v5782 = vsel %vm5779, %v5780, %v5781
  %v5783 = vrot.slane %v5741, 4
  %v5784 = vsel %vm5779, %v5781, %v5783
  %v5785 = vrot.slane %v5742, 4
  %v5786 = vsel %vm5779, %v5783, %v5785
  %v5787 = vrot.slane %v5743, 4
  %v5788 = vsel %vm5779, %v5785, %v5787
  %v5789 = vrot.slane %v5744, 4
  %v5790 = vrot.slane %v5745, 4
  %v5791 = vsel %vm5779, %v5789, %v5790
  %v5792 = vrot.slane %v5746, 4
  %v5793 = vsel %vm5779, %v5790, %v5792
  %v5794 = vrot.slane %v5747, 4
  %v5795 = vsel %vm5779, %v5792, %v5794
  %v5796 = vrot.slane %v5748, 4
  %v5797 = vsel %vm5779, %v5794, %v5796
  %v5798 = vrot.slane %v5749, 4
  %v5799 = vrot.slane %v5750, 4
  %v5800 = vsel %vm5779, %v5798, %v5799
  %v5801 = vrot.slane %v5751, 4
  %v5802 = vsel %vm5779, %v5799, %v5801
  %v5803 = vrot.slane %v5752, 4
  %v5804 = vsel %vm5779, %v5801, %v5803
  %v5805 = vrot.slane %v5753, 4
  %v5806 = vsel %vm5779, %v5803, %v5805
  %v5807 = vrot.slane %v5754, 4
  %v5808 = vrot.slane %v5755, 4
  %v5809 = vsel %vm5779, %v5807, %v5808
  %v5810 = vrot.slane %v5756, 4
  %v5811 = vsel %vm5779, %v5808, %v5810
  %v5812 = vrot.slane %v5757, 4
  %v5813 = vsel %vm5779, %v5810, %v5812
  %v5814 = vrot.slane %v5758, 4
  %v5815 = vsel %vm5779, %v5812, %v5814
  %v5832 = vmax.f32 %v5739, %v5782
  %v5833 = vmax.f32 %v5740, %v5784
  %v5834 = vmax.f32 %v5741, %v5786
  %v5835 = vmax.f32 %v5742, %v5788
  %v5836 = vmax.f32 %v5744, %v5791
  %v5837 = vmax.f32 %v5745, %v5793
  %v5838 = vmax.f32 %v5746, %v5795
  %v5839 = vmax.f32 %v5747, %v5797
  %v5840 = vmax.f32 %v5749, %v5800
  %v5841 = vmax.f32 %v5750, %v5802
  %v5842 = vmax.f32 %v5751, %v5804
  %v5843 = vmax.f32 %v5752, %v5806
  %v5844 = vmax.f32 %v5754, %v5809
  %v5845 = vmax.f32 %v5755, %v5811
  %v5846 = vmax.f32 %v5756, %v5813
  %v5847 = vmax.f32 %v5757, %v5815
  %v5848 = vmax.f32 %v5832, %v5740
  %v5849 = vmax.f32 %v5833, %v5741
  %v5850 = vmax.f32 %v5834, %v5742
  %v5851 = vmax.f32 %v5835, %v5743
  %v5852 = vmax.f32 %v5836, %v5745
  %v5853 = vmax.f32 %v5837, %v5746
  %v5854 = vmax.f32 %v5838, %v5747
  %v5855 = vmax.f32 %v5839, %v5748
  %v5856 = vmax.f32 %v5840, %v5750
  %v5857 = vmax.f32 %v5841, %v5751
  %v5858 = vmax.f32 %v5842, %v5752
  %v5859 = vmax.f32 %v5843, %v5753
  %v5860 = vmax.f32 %v5844, %v5755
  %v5861 = vmax.f32 %v5845, %v5756
  %v5862 = vmax.f32 %v5846, %v5757
  %v5863 = vmax.f32 %v5847, %v5758
  %v5864 = vpack.c.bf16 %v5848, %v5848
  %v5865 = vpack.c.bf16 %v5849, %v5849
  %v5866 = vpack.c.bf16 %v5850, %v5850
  %v5867 = vpack.c.bf16 %v5851, %v5851
  %v5868 = vpack.c.bf16 %v5852, %v5852
  %v5869 = vpack.c.bf16 %v5853, %v5853
  %v5870 = vpack.c.bf16 %v5854, %v5854
  %v5871 = vpack.c.bf16 %v5855, %v5855
  %v5872 = vpack.c.bf16 %v5856, %v5856
  %v5873 = vpack.c.bf16 %v5857, %v5857
  %v5874 = vpack.c.bf16 %v5858, %v5858
  %v5875 = vpack.c.bf16 %v5859, %v5859
  %v5876 = vpack.c.bf16 %v5860, %v5860
  %v5877 = vpack.c.bf16 %v5861, %v5861
  %v5878 = vpack.c.bf16 %v5862, %v5862
  %v5879 = vpack.c.bf16 %v5863, %v5863
  %s5880 = smul.u32 4, 256
  %s5881 = smul.u32 %s5880, 4
  %s5882 = sshll.u32 %s5881, 4
  %5883 = dma.done [#allocation3], %s5882
  %v5884 = vld [vmem:[#allocation2] sm:$0xff]
  %v5885 = vld [vmem:[#allocation2 + $0x8] sm:$0xff]
  %v5886 = vld [vmem:[#allocation2 + $0x10] sm:$0xff]
  %v5887 = vld [vmem:[#allocation2 + $0x18] sm:$0xff]
  %v5888 = vld [vmem:[#allocation2 + $0x20] sm:$0xff]
  %v5889 = vld [vmem:[#allocation2 + $0x28] sm:$0xff]
  %v5890 = vld [vmem:[#allocation2 + $0x30] sm:$0xff]
  %v5891 = vld [vmem:[#allocation2 + $0x38] sm:$0xff]
  %v5892 = vld [vmem:[#allocation2 + $0x40] sm:$0xff]
  %v5893 = vld [vmem:[#allocation2 + $0x48] sm:$0xff]
  %v5894 = vld [vmem:[#allocation2 + $0x50] sm:$0xff]
  %v5895 = vld [vmem:[#allocation2 + $0x58] sm:$0xff]
  %v5896 = vld [vmem:[#allocation2 + $0x60] sm:$0xff]
  %v5897 = vld [vmem:[#allocation2 + $0x68] sm:$0xff]
  %v5898 = vld [vmem:[#allocation2 + $0x70] sm:$0xff]
  %v5899 = vld [vmem:[#allocation2 + $0x78] sm:$0xff]
  %v5900 = vld [vmem:[#allocation2 + $0x80] sm:$0xff]
  %v5901 = vld [vmem:[#allocation2 + $0x88] sm:$0xff]
  %v5902 = vld [vmem:[#allocation2 + $0x90] sm:$0xff]
  %v5903 = vld [vmem:[#allocation2 + $0x98] sm:$0xff]
  %v5904 = vld [vmem:[#allocation2 + $0xa0] sm:$0xff]
  %v5905 = vld [vmem:[#allocation2 + $0xa8] sm:$0xff]
  %v5906 = vld [vmem:[#allocation2 + $0xb0] sm:$0xff]
  %v5907 = vld [vmem:[#allocation2 + $0xb8] sm:$0xff]
  %v5908 = vld [vmem:[#allocation2 + $0xc0] sm:$0xff]
  %v5909 = vld [vmem:[#allocation2 + $0xc8] sm:$0xff]
  %v5910 = vld [vmem:[#allocation2 + $0xd0] sm:$0xff]
  %v5911 = vld [vmem:[#allocation2 + $0xd8] sm:$0xff]
  %v5912 = vld [vmem:[#allocation2 + $0xe0] sm:$0xff]
  %v5913 = vld [vmem:[#allocation2 + $0xe8] sm:$0xff]
  %v5914 = vld [vmem:[#allocation2 + $0xf0] sm:$0xff]
  %v5915 = vld [vmem:[#allocation2 + $0xf8] sm:$0xff]
  %v5916 = vld [vmem:[#allocation2 + $0x100] sm:$0xff]
  %v5917 = vld [vmem:[#allocation2 + $0x108] sm:$0xff]
  %v5918 = vld [vmem:[#allocation2 + $0x110] sm:$0xff]
  %v5919 = vld [vmem:[#allocation2 + $0x118] sm:$0xff]
  %v5920 = vld [vmem:[#allocation2 + $0x120] sm:$0xff]
  %v5921 = vld [vmem:[#allocation2 + $0x128] sm:$0xff]
  %v5922 = vld [vmem:[#allocation2 + $0x130] sm:$0xff]
  %v5923 = vld [vmem:[#allocation2 + $0x138] sm:$0xff]
  %v5924 = vld [vmem:[#allocation2 + $0x140] sm:$0xff]
  %v5925 = vld [vmem:[#allocation2 + $0x148] sm:$0xff]
  %v5926 = vld [vmem:[#allocation2 + $0x150] sm:$0xff]
  %v5927 = vld [vmem:[#allocation2 + $0x158] sm:$0xff]
  %v5928 = vld [vmem:[#allocation2 + $0x160] sm:$0xff]
  %v5929 = vld [vmem:[#allocation2 + $0x168] sm:$0xff]
  %v5930 = vld [vmem:[#allocation2 + $0x170] sm:$0xff]
  %v5931 = vld [vmem:[#allocation2 + $0x178] sm:$0xff]
  %v5932 = vld [vmem:[#allocation2 + $0x180] sm:$0xff]
  %v5933 = vld [vmem:[#allocation2 + $0x188] sm:$0xff]
  %v5934 = vld [vmem:[#allocation2 + $0x190] sm:$0xff]
  %v5935 = vld [vmem:[#allocation2 + $0x198] sm:$0xff]
  %v5936 = vld [vmem:[#allocation2 + $0x1a0] sm:$0xff]
  %v5937 = vld [vmem:[#allocation2 + $0x1a8] sm:$0xff]
  %v5938 = vld [vmem:[#allocation2 + $0x1b0] sm:$0xff]
  %v5939 = vld [vmem:[#allocation2 + $0x1b8] sm:$0xff]
  %v5940 = vld [vmem:[#allocation2 + $0x1c0] sm:$0xff]
  %v5941 = vld [vmem:[#allocation2 + $0x1c8] sm:$0xff]
  %v5942 = vld [vmem:[#allocation2 + $0x1d0] sm:$0xff]
  %v5943 = vld [vmem:[#allocation2 + $0x1d8] sm:$0xff]
  %v5944 = vld [vmem:[#allocation2 + $0x1e0] sm:$0xff]
  %v5945 = vld [vmem:[#allocation2 + $0x1e8] sm:$0xff]
  %v5946 = vld [vmem:[#allocation2 + $0x1f0] sm:$0xff]
  %v5947 = vld [vmem:[#allocation2 + $0x1f8] sm:$0xff]
  %v5948 = vld [vmem:[#allocation2 + $0x200] sm:$0xff]
  %v5949 = vld [vmem:[#allocation2 + $0x208] sm:$0xff]
  %v5950 = vld [vmem:[#allocation2 + $0x210] sm:$0xff]
  %v5951 = vld [vmem:[#allocation2 + $0x218] sm:$0xff]
  %v5952 = vld [vmem:[#allocation2 + $0x220] sm:$0xff]
  %v5953 = vld [vmem:[#allocation2 + $0x228] sm:$0xff]
  %v5954 = vld [vmem:[#allocation2 + $0x230] sm:$0xff]
  %v5955 = vld [vmem:[#allocation2 + $0x238] sm:$0xff]
  %v5956 = vld [vmem:[#allocation2 + $0x240] sm:$0xff]
  %v5957 = vld [vmem:[#allocation2 + $0x248] sm:$0xff]
  %v5958 = vld [vmem:[#allocation2 + $0x250] sm:$0xff]
  %v5959 = vld [vmem:[#allocation2 + $0x258] sm:$0xff]
  %v5960 = vld [vmem:[#allocation2 + $0x260] sm:$0xff]
  %v5961 = vld [vmem:[#allocation2 + $0x268] sm:$0xff]
  %v5962 = vld [vmem:[#allocation2 + $0x270] sm:$0xff]
  %v5963 = vld [vmem:[#allocation2 + $0x278] sm:$0xff]
  %v5964 = vld [vmem:[#allocation2 + $0x280] sm:$0xff]
  %v5965 = vld [vmem:[#allocation2 + $0x288] sm:$0xff]
  %v5966 = vld [vmem:[#allocation2 + $0x290] sm:$0xff]
  %v5967 = vld [vmem:[#allocation2 + $0x298] sm:$0xff]
  %v5968 = vld [vmem:[#allocation2 + $0x2a0] sm:$0xff]
  %v5969 = vld [vmem:[#allocation2 + $0x2a8] sm:$0xff]
  %v5970 = vld [vmem:[#allocation2 + $0x2b0] sm:$0xff]
  %v5971 = vld [vmem:[#allocation2 + $0x2b8] sm:$0xff]
  %v5972 = vld [vmem:[#allocation2 + $0x2c0] sm:$0xff]
  %v5973 = vld [vmem:[#allocation2 + $0x2c8] sm:$0xff]
  %v5974 = vld [vmem:[#allocation2 + $0x2d0] sm:$0xff]
  %v5975 = vld [vmem:[#allocation2 + $0x2d8] sm:$0xff]
  %v5976 = vld [vmem:[#allocation2 + $0x2e0] sm:$0xff]
  %v5977 = vld [vmem:[#allocation2 + $0x2e8] sm:$0xff]
  %v5978 = vld [vmem:[#allocation2 + $0x2f0] sm:$0xff]
  %v5979 = vld [vmem:[#allocation2 + $0x2f8] sm:$0xff]
  %v5980 = vld [vmem:[#allocation2 + $0x300] sm:$0xff]
  %v5981 = vld [vmem:[#allocation2 + $0x308] sm:$0xff]
  %v5982 = vld [vmem:[#allocation2 + $0x310] sm:$0xff]
  %v5983 = vld [vmem:[#allocation2 + $0x318] sm:$0xff]
  %v5984 = vld [vmem:[#allocation2 + $0x320] sm:$0xff]
  %v5985 = vld [vmem:[#allocation2 + $0x328] sm:$0xff]
  %v5986 = vld [vmem:[#allocation2 + $0x330] sm:$0xff]
  %v5987 = vld [vmem:[#allocation2 + $0x338] sm:$0xff]
  %v5988 = vld [vmem:[#allocation2 + $0x340] sm:$0xff]
  %v5989 = vld [vmem:[#allocation2 + $0x348] sm:$0xff]
  %v5990 = vld [vmem:[#allocation2 + $0x350] sm:$0xff]
  %v5991 = vld [vmem:[#allocation2 + $0x358] sm:$0xff]
  %v5992 = vld [vmem:[#allocation2 + $0x360] sm:$0xff]
  %v5993 = vld [vmem:[#allocation2 + $0x368] sm:$0xff]
  %v5994 = vld [vmem:[#allocation2 + $0x370] sm:$0xff]
  %v5995 = vld [vmem:[#allocation2 + $0x378] sm:$0xff]
  %v5996 = vld [vmem:[#allocation2 + $0x380] sm:$0xff]
  %v5997 = vld [vmem:[#allocation2 + $0x388] sm:$0xff]
  %v5998 = vld [vmem:[#allocation2 + $0x390] sm:$0xff]
  %v5999 = vld [vmem:[#allocation2 + $0x398] sm:$0xff]
  %v6000 = vld [vmem:[#allocation2 + $0x3a0] sm:$0xff]
  %v6001 = vld [vmem:[#allocation2 + $0x3a8] sm:$0xff]
  %v6002 = vld [vmem:[#allocation2 + $0x3b0] sm:$0xff]
  %v6003 = vld [vmem:[#allocation2 + $0x3b8] sm:$0xff]
  %v6004 = vld [vmem:[#allocation2 + $0x3c0] sm:$0xff]
  %v6005 = vld [vmem:[#allocation2 + $0x3c8] sm:$0xff]
  %v6006 = vld [vmem:[#allocation2 + $0x3d0] sm:$0xff]
  %v6007 = vld [vmem:[#allocation2 + $0x3d8] sm:$0xff]
  %v6008 = vld [vmem:[#allocation2 + $0x3e0] sm:$0xff]
  %v6009 = vld [vmem:[#allocation2 + $0x3e8] sm:$0xff]
  %v6010 = vld [vmem:[#allocation2 + $0x3f0] sm:$0xff]
  %v6011 = vld [vmem:[#allocation2 + $0x3f8] sm:$0xff]
  %v6012 = vld [vmem:[#allocation2 + $0x400] sm:$0xff]
  %v6013 = vld [vmem:[#allocation2 + $0x408] sm:$0xff]
  %v6014 = vld [vmem:[#allocation2 + $0x410] sm:$0xff]
  %v6015 = vld [vmem:[#allocation2 + $0x418] sm:$0xff]
  %v6016 = vld [vmem:[#allocation2 + $0x420] sm:$0xff]
  %v6017 = vld [vmem:[#allocation2 + $0x428] sm:$0xff]
  %v6018 = vld [vmem:[#allocation2 + $0x430] sm:$0xff]
  %v6019 = vld [vmem:[#allocation2 + $0x438] sm:$0xff]
  %v6020 = vld [vmem:[#allocation2 + $0x440] sm:$0xff]
  %v6021 = vld [vmem:[#allocation2 + $0x448] sm:$0xff]
  %v6022 = vld [vmem:[#allocation2 + $0x450] sm:$0xff]
  %v6023 = vld [vmem:[#allocation2 + $0x458] sm:$0xff]
  %v6024 = vld [vmem:[#allocation2 + $0x460] sm:$0xff]
  %v6025 = vld [vmem:[#allocation2 + $0x468] sm:$0xff]
  %v6026 = vld [vmem:[#allocation2 + $0x470] sm:$0xff]
  %v6027 = vld [vmem:[#allocation2 + $0x478] sm:$0xff]
  %v6028 = vld [vmem:[#allocation2 + $0x480] sm:$0xff]
  %v6029 = vld [vmem:[#allocation2 + $0x488] sm:$0xff]
  %v6030 = vld [vmem:[#allocation2 + $0x490] sm:$0xff]
  %v6031 = vld [vmem:[#allocation2 + $0x498] sm:$0xff]
  %v6032 = vld [vmem:[#allocation2 + $0x4a0] sm:$0xff]
  %v6033 = vld [vmem:[#allocation2 + $0x4a8] sm:$0xff]
  %v6034 = vld [vmem:[#allocation2 + $0x4b0] sm:$0xff]
  %v6035 = vld [vmem:[#allocation2 + $0x4b8] sm:$0xff]
  %v6036 = vld [vmem:[#allocation2 + $0x4c0] sm:$0xff]
  %v6037 = vld [vmem:[#allocation2 + $0x4c8] sm:$0xff]
  %v6038 = vld [vmem:[#allocation2 + $0x4d0] sm:$0xff]
  %v6039 = vld [vmem:[#allocation2 + $0x4d8] sm:$0xff]
  %v6040 = vld [vmem:[#allocation2 + $0x4e0] sm:$0xff]
  %v6041 = vld [vmem:[#allocation2 + $0x4e8] sm:$0xff]
  %v6042 = vld [vmem:[#allocation2 + $0x4f0] sm:$0xff]
  %v6043 = vld [vmem:[#allocation2 + $0x4f8] sm:$0xff]
  %v6044 = vld [vmem:[#allocation2 + $0x500] sm:$0xff]
  %v6045 = vld [vmem:[#allocation2 + $0x508] sm:$0xff]
  %v6046 = vld [vmem:[#allocation2 + $0x510] sm:$0xff]
  %v6047 = vld [vmem:[#allocation2 + $0x518] sm:$0xff]
  %v6048 = vld [vmem:[#allocation2 + $0x520] sm:$0xff]
  %v6049 = vld [vmem:[#allocation2 + $0x528] sm:$0xff]
  %v6050 = vld [vmem:[#allocation2 + $0x530] sm:$0xff]
  %v6051 = vld [vmem:[#allocation2 + $0x538] sm:$0xff]
  %v6052 = vld [vmem:[#allocation2 + $0x540] sm:$0xff]
  %v6053 = vld [vmem:[#allocation2 + $0x548] sm:$0xff]
  %v6054 = vld [vmem:[#allocation2 + $0x550] sm:$0xff]
  %v6055 = vld [vmem:[#allocation2 + $0x558] sm:$0xff]
  %v6056 = vld [vmem:[#allocation2 + $0x560] sm:$0xff]
  %v6057 = vld [vmem:[#allocation2 + $0x568] sm:$0xff]
  %v6058 = vld [vmem:[#allocation2 + $0x570] sm:$0xff]
  %v6059 = vld [vmem:[#allocation2 + $0x578] sm:$0xff]
  %v6060 = vld [vmem:[#allocation2 + $0x580] sm:$0xff]
  %v6061 = vld [vmem:[#allocation2 + $0x588] sm:$0xff]
  %v6062 = vld [vmem:[#allocation2 + $0x590] sm:$0xff]
  %v6063 = vld [vmem:[#allocation2 + $0x598] sm:$0xff]
  %v6064 = vld [vmem:[#allocation2 + $0x5a0] sm:$0xff]
  %v6065 = vld [vmem:[#allocation2 + $0x5a8] sm:$0xff]
  %v6066 = vld [vmem:[#allocation2 + $0x5b0] sm:$0xff]
  %v6067 = vld [vmem:[#allocation2 + $0x5b8] sm:$0xff]
  %v6068 = vld [vmem:[#allocation2 + $0x5c0] sm:$0xff]
  %v6069 = vld [vmem:[#allocation2 + $0x5c8] sm:$0xff]
  %v6070 = vld [vmem:[#allocation2 + $0x5d0] sm:$0xff]
  %v6071 = vld [vmem:[#allocation2 + $0x5d8] sm:$0xff]
  %v6072 = vld [vmem:[#allocation2 + $0x5e0] sm:$0xff]
  %v6073 = vld [vmem:[#allocation2 + $0x5e8] sm:$0xff]
  %v6074 = vld [vmem:[#allocation2 + $0x5f0] sm:$0xff]
  %v6075 = vld [vmem:[#allocation2 + $0x5f8] sm:$0xff]
  %v6076 = vld [vmem:[#allocation2 + $0x600] sm:$0xff]
  %v6077 = vld [vmem:[#allocation2 + $0x608] sm:$0xff]
  %v6078 = vld [vmem:[#allocation2 + $0x610] sm:$0xff]
  %v6079 = vld [vmem:[#allocation2 + $0x618] sm:$0xff]
  %v6080 = vld [vmem:[#allocation2 + $0x620] sm:$0xff]
  %v6081 = vld [vmem:[#allocation2 + $0x628] sm:$0xff]
  %v6082 = vld [vmem:[#allocation2 + $0x630] sm:$0xff]
  %v6083 = vld [vmem:[#allocation2 + $0x638] sm:$0xff]
  %v6084 = vld [vmem:[#allocation2 + $0x640] sm:$0xff]
  %v6085 = vld [vmem:[#allocation2 + $0x648] sm:$0xff]
  %v6086 = vld [vmem:[#allocation2 + $0x650] sm:$0xff]
  %v6087 = vld [vmem:[#allocation2 + $0x658] sm:$0xff]
  %v6088 = vld [vmem:[#allocation2 + $0x660] sm:$0xff]
  %v6089 = vld [vmem:[#allocation2 + $0x668] sm:$0xff]
  %v6090 = vld [vmem:[#allocation2 + $0x670] sm:$0xff]
  %v6091 = vld [vmem:[#allocation2 + $0x678] sm:$0xff]
  %v6092 = vld [vmem:[#allocation2 + $0x680] sm:$0xff]
  %v6093 = vld [vmem:[#allocation2 + $0x688] sm:$0xff]
  %v6094 = vld [vmem:[#allocation2 + $0x690] sm:$0xff]
  %v6095 = vld [vmem:[#allocation2 + $0x698] sm:$0xff]
  %v6096 = vld [vmem:[#allocation2 + $0x6a0] sm:$0xff]
  %v6097 = vld [vmem:[#allocation2 + $0x6a8] sm:$0xff]
  %v6098 = vld [vmem:[#allocation2 + $0x6b0] sm:$0xff]
  %v6099 = vld [vmem:[#allocation2 + $0x6b8] sm:$0xff]
  %v6100 = vld [vmem:[#allocation2 + $0x6c0] sm:$0xff]
  %v6101 = vld [vmem:[#allocation2 + $0x6c8] sm:$0xff]
  %v6102 = vld [vmem:[#allocation2 + $0x6d0] sm:$0xff]
  %v6103 = vld [vmem:[#allocation2 + $0x6d8] sm:$0xff]
  %v6104 = vld [vmem:[#allocation2 + $0x6e0] sm:$0xff]
  %v6105 = vld [vmem:[#allocation2 + $0x6e8] sm:$0xff]
  %v6106 = vld [vmem:[#allocation2 + $0x6f0] sm:$0xff]
  %v6107 = vld [vmem:[#allocation2 + $0x6f8] sm:$0xff]
  %v6108 = vld [vmem:[#allocation2 + $0x700] sm:$0xff]
  %v6109 = vld [vmem:[#allocation2 + $0x708] sm:$0xff]
  %v6110 = vld [vmem:[#allocation2 + $0x710] sm:$0xff]
  %v6111 = vld [vmem:[#allocation2 + $0x718] sm:$0xff]
  %v6112 = vld [vmem:[#allocation2 + $0x720] sm:$0xff]
  %v6113 = vld [vmem:[#allocation2 + $0x728] sm:$0xff]
  %v6114 = vld [vmem:[#allocation2 + $0x730] sm:$0xff]
  %v6115 = vld [vmem:[#allocation2 + $0x738] sm:$0xff]
  %v6116 = vld [vmem:[#allocation2 + $0x740] sm:$0xff]
  %v6117 = vld [vmem:[#allocation2 + $0x748] sm:$0xff]
  %v6118 = vld [vmem:[#allocation2 + $0x750] sm:$0xff]
  %v6119 = vld [vmem:[#allocation2 + $0x758] sm:$0xff]
  %v6120 = vld [vmem:[#allocation2 + $0x760] sm:$0xff]
  %v6121 = vld [vmem:[#allocation2 + $0x768] sm:$0xff]
  %v6122 = vld [vmem:[#allocation2 + $0x770] sm:$0xff]
  %v6123 = vld [vmem:[#allocation2 + $0x778] sm:$0xff]
  %v6124 = vld [vmem:[#allocation2 + $0x780] sm:$0xff]
  %v6125 = vld [vmem:[#allocation2 + $0x788] sm:$0xff]
  %v6126 = vld [vmem:[#allocation2 + $0x790] sm:$0xff]
  %v6127 = vld [vmem:[#allocation2 + $0x798] sm:$0xff]
  %v6128 = vld [vmem:[#allocation2 + $0x7a0] sm:$0xff]
  %v6129 = vld [vmem:[#allocation2 + $0x7a8] sm:$0xff]
  %v6130 = vld [vmem:[#allocation2 + $0x7b0] sm:$0xff]
  %v6131 = vld [vmem:[#allocation2 + $0x7b8] sm:$0xff]
  %v6132 = vld [vmem:[#allocation2 + $0x7c0] sm:$0xff]
  %v6133 = vld [vmem:[#allocation2 + $0x7c8] sm:$0xff]
  %v6134 = vld [vmem:[#allocation2 + $0x7d0] sm:$0xff]
  %v6135 = vld [vmem:[#allocation2 + $0x7d8] sm:$0xff]
  %v6136 = vld [vmem:[#allocation2 + $0x7e0] sm:$0xff]
  %v6137 = vld [vmem:[#allocation2 + $0x7e8] sm:$0xff]
  %v6138 = vld [vmem:[#allocation2 + $0x7f0] sm:$0xff]
  %v6139 = vld [vmem:[#allocation2 + $0x7f8] sm:$0xff]
  %v6140 = vld [vmem:[#allocation2 + $0x800] sm:$0xff]
  %v6141 = vld [vmem:[#allocation2 + $0x808] sm:$0xff]
  %v6142 = vld [vmem:[#allocation2 + $0x810] sm:$0xff]
  %v6143 = vld [vmem:[#allocation2 + $0x818] sm:$0xff]
  %v6144 = vld [vmem:[#allocation2 + $0x820] sm:$0xff]
  %v6145 = vld [vmem:[#allocation2 + $0x828] sm:$0xff]
  %v6146 = vld [vmem:[#allocation2 + $0x830] sm:$0xff]
  %v6147 = vld [vmem:[#allocation2 + $0x838] sm:$0xff]
  %v6148 = vld [vmem:[#allocation2 + $0x840] sm:$0xff]
  %v6149 = vld [vmem:[#allocation2 + $0x848] sm:$0xff]
  %v6150 = vld [vmem:[#allocation2 + $0x850] sm:$0xff]
  %v6151 = vld [vmem:[#allocation2 + $0x858] sm:$0xff]
  %v6152 = vld [vmem:[#allocation2 + $0x860] sm:$0xff]
  %v6153 = vld [vmem:[#allocation2 + $0x868] sm:$0xff]
  %v6154 = vld [vmem:[#allocation2 + $0x870] sm:$0xff]
  %v6155 = vld [vmem:[#allocation2 + $0x878] sm:$0xff]
  %v6156 = vld [vmem:[#allocation2 + $0x880] sm:$0xff]
  %v6157 = vld [vmem:[#allocation2 + $0x888] sm:$0xff]
  %v6158 = vld [vmem:[#allocation2 + $0x890] sm:$0xff]
  %v6159 = vld [vmem:[#allocation2 + $0x898] sm:$0xff]
  %v6160 = vld [vmem:[#allocation2 + $0x8a0] sm:$0xff]
  %v6161 = vld [vmem:[#allocation2 + $0x8a8] sm:$0xff]
  %v6162 = vld [vmem:[#allocation2 + $0x8b0] sm:$0xff]
  %v6163 = vld [vmem:[#allocation2 + $0x8b8] sm:$0xff]
  %v6164 = vld [vmem:[#allocation2 + $0x8c0] sm:$0xff]
  %v6165 = vld [vmem:[#allocation2 + $0x8c8] sm:$0xff]
  %v6166 = vld [vmem:[#allocation2 + $0x8d0] sm:$0xff]
  %v6167 = vld [vmem:[#allocation2 + $0x8d8] sm:$0xff]
  %v6168 = vld [vmem:[#allocation2 + $0x8e0] sm:$0xff]
  %v6169 = vld [vmem:[#allocation2 + $0x8e8] sm:$0xff]
  %v6170 = vld [vmem:[#allocation2 + $0x8f0] sm:$0xff]
  %v6171 = vld [vmem:[#allocation2 + $0x8f8] sm:$0xff]
  %v6172 = vld [vmem:[#allocation2 + $0x900] sm:$0xff]
  %v6173 = vld [vmem:[#allocation2 + $0x908] sm:$0xff]
  %v6174 = vld [vmem:[#allocation2 + $0x910] sm:$0xff]
  %v6175 = vld [vmem:[#allocation2 + $0x918] sm:$0xff]
  %v6176 = vld [vmem:[#allocation2 + $0x920] sm:$0xff]
  %v6177 = vld [vmem:[#allocation2 + $0x928] sm:$0xff]
  %v6178 = vld [vmem:[#allocation2 + $0x930] sm:$0xff]
  %v6179 = vld [vmem:[#allocation2 + $0x938] sm:$0xff]
  %v6180 = vld [vmem:[#allocation2 + $0x940] sm:$0xff]
  %v6181 = vld [vmem:[#allocation2 + $0x948] sm:$0xff]
  %v6182 = vld [vmem:[#allocation2 + $0x950] sm:$0xff]
  %v6183 = vld [vmem:[#allocation2 + $0x958] sm:$0xff]
  %v6184 = vld [vmem:[#allocation2 + $0x960] sm:$0xff]
  %v6185 = vld [vmem:[#allocation2 + $0x968] sm:$0xff]
  %v6186 = vld [vmem:[#allocation2 + $0x970] sm:$0xff]
  %v6187 = vld [vmem:[#allocation2 + $0x978] sm:$0xff]
  %v6188 = vld [vmem:[#allocation2 + $0x980] sm:$0xff]
  %v6189 = vld [vmem:[#allocation2 + $0x988] sm:$0xff]
  %v6190 = vld [vmem:[#allocation2 + $0x990] sm:$0xff]
  %v6191 = vld [vmem:[#allocation2 + $0x998] sm:$0xff]
  %v6192 = vld [vmem:[#allocation2 + $0x9a0] sm:$0xff]
  %v6193 = vld [vmem:[#allocation2 + $0x9a8] sm:$0xff]
  %v6194 = vld [vmem:[#allocation2 + $0x9b0] sm:$0xff]
  %v6195 = vld [vmem:[#allocation2 + $0x9b8] sm:$0xff]
  %v6196 = vld [vmem:[#allocation2 + $0x9c0] sm:$0xff]
  %v6197 = vld [vmem:[#allocation2 + $0x9c8] sm:$0xff]
  %v6198 = vld [vmem:[#allocation2 + $0x9d0] sm:$0xff]
  %v6199 = vld [vmem:[#allocation2 + $0x9d8] sm:$0xff]
  %v6200 = vld [vmem:[#allocation2 + $0x9e0] sm:$0xff]
  %v6201 = vld [vmem:[#allocation2 + $0x9e8] sm:$0xff]
  %v6202 = vld [vmem:[#allocation2 + $0x9f0] sm:$0xff]
  %v6203 = vld [vmem:[#allocation2 + $0x9f8] sm:$0xff]
  %v6204 = vld [vmem:[#allocation2 + $0xa00] sm:$0xff]
  %v6205 = vld [vmem:[#allocation2 + $0xa08] sm:$0xff]
  %v6206 = vld [vmem:[#allocation2 + $0xa10] sm:$0xff]
  %v6207 = vld [vmem:[#allocation2 + $0xa18] sm:$0xff]
  %v6208 = vld [vmem:[#allocation2 + $0xa20] sm:$0xff]
  %v6209 = vld [vmem:[#allocation2 + $0xa28] sm:$0xff]
  %v6210 = vld [vmem:[#allocation2 + $0xa30] sm:$0xff]
  %v6211 = vld [vmem:[#allocation2 + $0xa38] sm:$0xff]
  %v6212 = vld [vmem:[#allocation2 + $0xa40] sm:$0xff]
  %v6213 = vld [vmem:[#allocation2 + $0xa48] sm:$0xff]
  %v6214 = vld [vmem:[#allocation2 + $0xa50] sm:$0xff]
  %v6215 = vld [vmem:[#allocation2 + $0xa58] sm:$0xff]
  %v6216 = vld [vmem:[#allocation2 + $0xa60] sm:$0xff]
  %v6217 = vld [vmem:[#allocation2 + $0xa68] sm:$0xff]
  %v6218 = vld [vmem:[#allocation2 + $0xa70] sm:$0xff]
  %v6219 = vld [vmem:[#allocation2 + $0xa78] sm:$0xff]
  %v6220 = vld [vmem:[#allocation2 + $0xa80] sm:$0xff]
  %v6221 = vld [vmem:[#allocation2 + $0xa88] sm:$0xff]
  %v6222 = vld [vmem:[#allocation2 + $0xa90] sm:$0xff]
  %v6223 = vld [vmem:[#allocation2 + $0xa98] sm:$0xff]
  %v6224 = vld [vmem:[#allocation2 + $0xaa0] sm:$0xff]
  %v6225 = vld [vmem:[#allocation2 + $0xaa8] sm:$0xff]
  %v6226 = vld [vmem:[#allocation2 + $0xab0] sm:$0xff]
  %v6227 = vld [vmem:[#allocation2 + $0xab8] sm:$0xff]
  %v6228 = vld [vmem:[#allocation2 + $0xac0] sm:$0xff]
  %v6229 = vld [vmem:[#allocation2 + $0xac8] sm:$0xff]
  %v6230 = vld [vmem:[#allocation2 + $0xad0] sm:$0xff]
  %v6231 = vld [vmem:[#allocation2 + $0xad8] sm:$0xff]
  %v6232 = vld [vmem:[#allocation2 + $0xae0] sm:$0xff]
  %v6233 = vld [vmem:[#allocation2 + $0xae8] sm:$0xff]
  %v6234 = vld [vmem:[#allocation2 + $0xaf0] sm:$0xff]
  %v6235 = vld [vmem:[#allocation2 + $0xaf8] sm:$0xff]
  %v6236 = vld [vmem:[#allocation2 + $0xb00] sm:$0xff]
  %v6237 = vld [vmem:[#allocation2 + $0xb08] sm:$0xff]
  %v6238 = vld [vmem:[#allocation2 + $0xb10] sm:$0xff]
  %v6239 = vld [vmem:[#allocation2 + $0xb18] sm:$0xff]
  %v6240 = vld [vmem:[#allocation2 + $0xb20] sm:$0xff]
  %v6241 = vld [vmem:[#allocation2 + $0xb28] sm:$0xff]
  %v6242 = vld [vmem:[#allocation2 + $0xb30] sm:$0xff]
  %v6243 = vld [vmem:[#allocation2 + $0xb38] sm:$0xff]
  %v6244 = vld [vmem:[#allocation2 + $0xb40] sm:$0xff]
  %v6245 = vld [vmem:[#allocation2 + $0xb48] sm:$0xff]
  %v6246 = vld [vmem:[#allocation2 + $0xb50] sm:$0xff]
  %v6247 = vld [vmem:[#allocation2 + $0xb58] sm:$0xff]
  %v6248 = vld [vmem:[#allocation2 + $0xb60] sm:$0xff]
  %v6249 = vld [vmem:[#allocation2 + $0xb68] sm:$0xff]
  %v6250 = vld [vmem:[#allocation2 + $0xb70] sm:$0xff]
  %v6251 = vld [vmem:[#allocation2 + $0xb78] sm:$0xff]
  %v6252 = vld [vmem:[#allocation2 + $0xb80] sm:$0xff]
  %v6253 = vld [vmem:[#allocation2 + $0xb88] sm:$0xff]
  %v6254 = vld [vmem:[#allocation2 + $0xb90] sm:$0xff]
  %v6255 = vld [vmem:[#allocation2 + $0xb98] sm:$0xff]
  %v6256 = vld [vmem:[#allocation2 + $0xba0] sm:$0xff]
  %v6257 = vld [vmem:[#allocation2 + $0xba8] sm:$0xff]
  %v6258 = vld [vmem:[#allocation2 + $0xbb0] sm:$0xff]
  %v6259 = vld [vmem:[#allocation2 + $0xbb8] sm:$0xff]
  %v6260 = vld [vmem:[#allocation2 + $0xbc0] sm:$0xff]
  %v6261 = vld [vmem:[#allocation2 + $0xbc8] sm:$0xff]
  %v6262 = vld [vmem:[#allocation2 + $0xbd0] sm:$0xff]
  %v6263 = vld [vmem:[#allocation2 + $0xbd8] sm:$0xff]
  %v6264 = vld [vmem:[#allocation2 + $0xbe0] sm:$0xff]
  %v6265 = vld [vmem:[#allocation2 + $0xbe8] sm:$0xff]
  %v6266 = vld [vmem:[#allocation2 + $0xbf0] sm:$0xff]
  %v6267 = vld [vmem:[#allocation2 + $0xbf8] sm:$0xff]
  %v6268 = vld [vmem:[#allocation2 + $0xc00] sm:$0xff]
  %v6269 = vld [vmem:[#allocation2 + $0xc08] sm:$0xff]
  %v6270 = vld [vmem:[#allocation2 + $0xc10] sm:$0xff]
  %v6271 = vld [vmem:[#allocation2 + $0xc18] sm:$0xff]
  %v6272 = vld [vmem:[#allocation2 + $0xc20] sm:$0xff]
  %v6273 = vld [vmem:[#allocation2 + $0xc28] sm:$0xff]
  %v6274 = vld [vmem:[#allocation2 + $0xc30] sm:$0xff]
  %v6275 = vld [vmem:[#allocation2 + $0xc38] sm:$0xff]
  %v6276 = vld [vmem:[#allocation2 + $0xc40] sm:$0xff]
  %v6277 = vld [vmem:[#allocation2 + $0xc48] sm:$0xff]
  %v6278 = vld [vmem:[#allocation2 + $0xc50] sm:$0xff]
  %v6279 = vld [vmem:[#allocation2 + $0xc58] sm:$0xff]
  %v6280 = vld [vmem:[#allocation2 + $0xc60] sm:$0xff]
  %v6281 = vld [vmem:[#allocation2 + $0xc68] sm:$0xff]
  %v6282 = vld [vmem:[#allocation2 + $0xc70] sm:$0xff]
  %v6283 = vld [vmem:[#allocation2 + $0xc78] sm:$0xff]
  %v6284 = vld [vmem:[#allocation2 + $0xc80] sm:$0xff]
  %v6285 = vld [vmem:[#allocation2 + $0xc88] sm:$0xff]
  %v6286 = vld [vmem:[#allocation2 + $0xc90] sm:$0xff]
  %v6287 = vld [vmem:[#allocation2 + $0xc98] sm:$0xff]
  %v6288 = vld [vmem:[#allocation2 + $0xca0] sm:$0xff]
  %v6289 = vld [vmem:[#allocation2 + $0xca8] sm:$0xff]
  %v6290 = vld [vmem:[#allocation2 + $0xcb0] sm:$0xff]
  %v6291 = vld [vmem:[#allocation2 + $0xcb8] sm:$0xff]
  %v6292 = vld [vmem:[#allocation2 + $0xcc0] sm:$0xff]
  %v6293 = vld [vmem:[#allocation2 + $0xcc8] sm:$0xff]
  %v6294 = vld [vmem:[#allocation2 + $0xcd0] sm:$0xff]
  %v6295 = vld [vmem:[#allocation2 + $0xcd8] sm:$0xff]
  %v6296 = vld [vmem:[#allocation2 + $0xce0] sm:$0xff]
  %v6297 = vld [vmem:[#allocation2 + $0xce8] sm:$0xff]
  %v6298 = vld [vmem:[#allocation2 + $0xcf0] sm:$0xff]
  %v6299 = vld [vmem:[#allocation2 + $0xcf8] sm:$0xff]
  %v6300 = vld [vmem:[#allocation2 + $0xd00] sm:$0xff]
  %v6301 = vld [vmem:[#allocation2 + $0xd08] sm:$0xff]
  %v6302 = vld [vmem:[#allocation2 + $0xd10] sm:$0xff]
  %v6303 = vld [vmem:[#allocation2 + $0xd18] sm:$0xff]
  %v6304 = vld [vmem:[#allocation2 + $0xd20] sm:$0xff]
  %v6305 = vld [vmem:[#allocation2 + $0xd28] sm:$0xff]
  %v6306 = vld [vmem:[#allocation2 + $0xd30] sm:$0xff]
  %v6307 = vld [vmem:[#allocation2 + $0xd38] sm:$0xff]
  %v6308 = vld [vmem:[#allocation2 + $0xd40] sm:$0xff]
  %v6309 = vld [vmem:[#allocation2 + $0xd48] sm:$0xff]
  %v6310 = vld [vmem:[#allocation2 + $0xd50] sm:$0xff]
  %v6311 = vld [vmem:[#allocation2 + $0xd58] sm:$0xff]
  %v6312 = vld [vmem:[#allocation2 + $0xd60] sm:$0xff]
  %v6313 = vld [vmem:[#allocation2 + $0xd68] sm:$0xff]
  %v6314 = vld [vmem:[#allocation2 + $0xd70] sm:$0xff]
  %v6315 = vld [vmem:[#allocation2 + $0xd78] sm:$0xff]
  %v6316 = vld [vmem:[#allocation2 + $0xd80] sm:$0xff]
  %v6317 = vld [vmem:[#allocation2 + $0xd88] sm:$0xff]
  %v6318 = vld [vmem:[#allocation2 + $0xd90] sm:$0xff]
  %v6319 = vld [vmem:[#allocation2 + $0xd98] sm:$0xff]
  %v6320 = vld [vmem:[#allocation2 + $0xda0] sm:$0xff]
  %v6321 = vld [vmem:[#allocation2 + $0xda8] sm:$0xff]
  %v6322 = vld [vmem:[#allocation2 + $0xdb0] sm:$0xff]
  %v6323 = vld [vmem:[#allocation2 + $0xdb8] sm:$0xff]
  %v6324 = vld [vmem:[#allocation2 + $0xdc0] sm:$0xff]
  %v6325 = vld [vmem:[#allocation2 + $0xdc8] sm:$0xff]
  %v6326 = vld [vmem:[#allocation2 + $0xdd0] sm:$0xff]
  %v6327 = vld [vmem:[#allocation2 + $0xdd8] sm:$0xff]
  %v6328 = vld [vmem:[#allocation2 + $0xde0] sm:$0xff]
  %v6329 = vld [vmem:[#allocation2 + $0xde8] sm:$0xff]
  %v6330 = vld [vmem:[#allocation2 + $0xdf0] sm:$0xff]
  %v6331 = vld [vmem:[#allocation2 + $0xdf8] sm:$0xff]
  %v6332 = vld [vmem:[#allocation2 + $0xe00] sm:$0xff]
  %v6333 = vld [vmem:[#allocation2 + $0xe08] sm:$0xff]
  %v6334 = vld [vmem:[#allocation2 + $0xe10] sm:$0xff]
  %v6335 = vld [vmem:[#allocation2 + $0xe18] sm:$0xff]
  %v6336 = vld [vmem:[#allocation2 + $0xe20] sm:$0xff]
  %v6337 = vld [vmem:[#allocation2 + $0xe28] sm:$0xff]
  %v6338 = vld [vmem:[#allocation2 + $0xe30] sm:$0xff]
  %v6339 = vld [vmem:[#allocation2 + $0xe38] sm:$0xff]
  %v6340 = vld [vmem:[#allocation2 + $0xe40] sm:$0xff]
  %v6341 = vld [vmem:[#allocation2 + $0xe48] sm:$0xff]
  %v6342 = vld [vmem:[#allocation2 + $0xe50] sm:$0xff]
  %v6343 = vld [vmem:[#allocation2 + $0xe58] sm:$0xff]
  %v6344 = vld [vmem:[#allocation2 + $0xe60] sm:$0xff]
  %v6345 = vld [vmem:[#allocation2 + $0xe68] sm:$0xff]
  %v6346 = vld [vmem:[#allocation2 + $0xe70] sm:$0xff]
  %v6347 = vld [vmem:[#allocation2 + $0xe78] sm:$0xff]
  %v6348 = vld [vmem:[#allocation2 + $0xe80] sm:$0xff]
  %v6349 = vld [vmem:[#allocation2 + $0xe88] sm:$0xff]
  %v6350 = vld [vmem:[#allocation2 + $0xe90] sm:$0xff]
  %v6351 = vld [vmem:[#allocation2 + $0xe98] sm:$0xff]
  %v6352 = vld [vmem:[#allocation2 + $0xea0] sm:$0xff]
  %v6353 = vld [vmem:[#allocation2 + $0xea8] sm:$0xff]
  %v6354 = vld [vmem:[#allocation2 + $0xeb0] sm:$0xff]
  %v6355 = vld [vmem:[#allocation2 + $0xeb8] sm:$0xff]
  %v6356 = vld [vmem:[#allocation2 + $0xec0] sm:$0xff]
  %v6357 = vld [vmem:[#allocation2 + $0xec8] sm:$0xff]
  %v6358 = vld [vmem:[#allocation2 + $0xed0] sm:$0xff]
  %v6359 = vld [vmem:[#allocation2 + $0xed8] sm:$0xff]
  %v6360 = vld [vmem:[#allocation2 + $0xee0] sm:$0xff]
  %v6361 = vld [vmem:[#allocation2 + $0xee8] sm:$0xff]
  %v6362 = vld [vmem:[#allocation2 + $0xef0] sm:$0xff]
  %v6363 = vld [vmem:[#allocation2 + $0xef8] sm:$0xff]
  %v6364 = vld [vmem:[#allocation2 + $0xf00] sm:$0xff]
  %v6365 = vld [vmem:[#allocation2 + $0xf08] sm:$0xff]
  %v6366 = vld [vmem:[#allocation2 + $0xf10] sm:$0xff]
  %v6367 = vld [vmem:[#allocation2 + $0xf18] sm:$0xff]
  %v6368 = vld [vmem:[#allocation2 + $0xf20] sm:$0xff]
  %v6369 = vld [vmem:[#allocation2 + $0xf28] sm:$0xff]
  %v6370 = vld [vmem:[#allocation2 + $0xf30] sm:$0xff]
  %v6371 = vld [vmem:[#allocation2 + $0xf38] sm:$0xff]
  %v6372 = vld [vmem:[#allocation2 + $0xf40] sm:$0xff]
  %v6373 = vld [vmem:[#allocation2 + $0xf48] sm:$0xff]
  %v6374 = vld [vmem:[#allocation2 + $0xf50] sm:$0xff]
  %v6375 = vld [vmem:[#allocation2 + $0xf58] sm:$0xff]
  %v6376 = vld [vmem:[#allocation2 + $0xf60] sm:$0xff]
  %v6377 = vld [vmem:[#allocation2 + $0xf68] sm:$0xff]
  %v6378 = vld [vmem:[#allocation2 + $0xf70] sm:$0xff]
  %v6379 = vld [vmem:[#allocation2 + $0xf78] sm:$0xff]
  %v6380 = vld [vmem:[#allocation2 + $0xf80] sm:$0xff]
  %v6381 = vld [vmem:[#allocation2 + $0xf88] sm:$0xff]
  %v6382 = vld [vmem:[#allocation2 + $0xf90] sm:$0xff]
  %v6383 = vld [vmem:[#allocation2 + $0xf98] sm:$0xff]
  %v6384 = vld [vmem:[#allocation2 + $0xfa0] sm:$0xff]
  %v6385 = vld [vmem:[#allocation2 + $0xfa8] sm:$0xff]
  %v6386 = vld [vmem:[#allocation2 + $0xfb0] sm:$0xff]
  %v6387 = vld [vmem:[#allocation2 + $0xfb8] sm:$0xff]
  %v6388 = vld [vmem:[#allocation2 + $0xfc0] sm:$0xff]
  %v6389 = vld [vmem:[#allocation2 + $0xfc8] sm:$0xff]
  %v6390 = vld [vmem:[#allocation2 + $0xfd0] sm:$0xff]
  %v6391 = vld [vmem:[#allocation2 + $0xfd8] sm:$0xff]
  %v6392 = vld [vmem:[#allocation2 + $0xfe0] sm:$0xff]
  %v6393 = vld [vmem:[#allocation2 + $0xfe8] sm:$0xff]
  %v6394 = vld [vmem:[#allocation2 + $0xff0] sm:$0xff]
  %v6395 = vld [vmem:[#allocation2 + $0xff8] sm:$0xff]
  %v6396 = vld [vmem:[%s5] sm:$0xf]
  %v6398 = vlaneseq
  %v6399 = vshrl.u32 %v6398, 7
  %v6400 = vsub.s32 0, %v6399
  %v6401 = vrot.slane %v6396, %v6400
  %v6402 = vlaneseq
  %v6403 = vshrl.u32 %v6402, 7
  %v6404 = vsub.s32 1, %v6403
  %v6405 = vrot.slane %v6396, %v6404
  %v6406 = vlaneseq
  %v6407 = vshrl.u32 %v6406, 7
  %v6408 = vsub.s32 2, %v6407
  %v6409 = vrot.slane %v6396, %v6408
  %v6410 = vlaneseq
  %v6411 = vshrl.u32 %v6410, 7
  %v6412 = vsub.s32 3, %v6411
  %v6413 = vrot.slane %v6396, %v6412
  %6418 = vmatprep.subr.bf16.mxu0 %v5885
  %6419 = vmatpush1.bf16.msra.mxu0 %v5884
  %6420 = vmatprep.subr.bf16.mxu0 %v5889
  %6421 = vmatpush1.bf16.msra.mxu0 %v5888
  %6422 = vmatprep.subr.bf16.mxu0 %v5893
  %6423 = vmatpush1.bf16.msra.mxu0 %v5892
  %6424 = vmatprep.subr.bf16.mxu0 %v5897
  %6425 = vmatpush1.bf16.msra.mxu0 %v5896
  %6426 = vmatprep.subr.bf16.mxu0 %v5901
  %6427 = vmatpush1.bf16.msra.mxu0 %v5900
  %6428 = vmatprep.subr.bf16.mxu0 %v5905
  %6429 = vmatpush1.bf16.msra.mxu0 %v5904
  %6430 = vmatprep.subr.bf16.mxu0 %v5909
  %6431 = vmatpush1.bf16.msra.mxu0 %v5908
  %6432 = vmatprep.subr.bf16.mxu0 %v5913
  %6433 = vmatpush1.bf16.msra.mxu0 %v5912
  %6434 = vmatprep.subr.bf16.mxu0 %v5917
  %6435 = vmatpush1.bf16.msra.mxu0 %v5916
  %6436 = vmatprep.subr.bf16.mxu0 %v5921
  %6437 = vmatpush1.bf16.msra.mxu0 %v5920
  %6438 = vmatprep.subr.bf16.mxu0 %v5925
  %6439 = vmatpush1.bf16.msra.mxu0 %v5924
  %6440 = vmatprep.subr.bf16.mxu0 %v5929
  %6441 = vmatpush1.bf16.msra.mxu0 %v5928
  %6442 = vmatprep.subr.bf16.mxu0 %v5933
  %6443 = vmatpush1.bf16.msra.mxu0 %v5932
  %6444 = vmatprep.subr.bf16.mxu0 %v5937
  %6445 = vmatpush1.bf16.msra.mxu0 %v5936
  %6446 = vmatprep.subr.bf16.mxu0 %v5941
  %6447 = vmatpush1.bf16.msra.mxu0 %v5940
  %6448 = vmatprep.subr.bf16.mxu0 %v5945
  %6449 = vmatpush1.bf16.msra.mxu0 %v5944
  %6450 = vmatprep.mubr.bf16.mxu0 %v5865
  %6451 = vmatmul.mubr.bf16.gmra.mrb[0].mxu0 %v5864
  %v6452 = vpop.f32.mrb[0].mxu0
  %v6453 = vadd.f32 %v6401, %v6452
  %v6454 = vpop.f32.mrb[0].mxu0
  %v6455 = vadd.f32 %v6405, %v6454
  %v6456 = vpop.f32.mrb[0].mxu0
  %v6457 = vpop.f32.mrb[0].mxu0
  %6458 = vdwg.mxu0
  %6459 = vmatprep.subr.bf16.mxu0 %v5949
  %6460 = vmatpush1.bf16.msra.mxu0 %v5948
  %6461 = vmatprep.subr.bf16.mxu0 %v5953
  %6462 = vmatpush1.bf16.msra.mxu0 %v5952
  %6463 = vmatprep.subr.bf16.mxu0 %v5957
  %6464 = vmatpush1.bf16.msra.mxu0 %v5956
  %6465 = vmatprep.subr.bf16.mxu0 %v5961
  %6466 = vmatpush1.bf16.msra.mxu0 %v5960
  %6467 = vmatprep.subr.bf16.mxu0 %v5965
  %6468 = vmatpush1.bf16.msra.mxu0 %v5964
  %6469 = vmatprep.subr.bf16.mxu0 %v5969
  %6470 = vmatpush1.bf16.msra.mxu0 %v5968
  %6471 = vmatprep.subr.bf16.mxu0 %v5973
  %6472 = vmatpush1.bf16.msra.mxu0 %v5972
  %6473 = vmatprep.subr.bf16.mxu0 %v5977
  %6474 = vmatpush1.bf16.msra.mxu0 %v5976
  %6475 = vmatprep.subr.bf16.mxu0 %v5981
  %6476 = vmatpush1.bf16.msra.mxu0 %v5980
  %6477 = vmatprep.subr.bf16.mxu0 %v5985
  %6478 = vmatpush1.bf16.msra.mxu0 %v5984
  %6479 = vmatprep.subr.bf16.mxu0 %v5989
  %6480 = vmatpush1.bf16.msra.mxu0 %v5988
  %6481 = vmatprep.subr.bf16.mxu0 %v5993
  %6482 = vmatpush1.bf16.msra.mxu0 %v5992
  %6483 = vmatprep.subr.bf16.mxu0 %v5997
  %6484 = vmatpush1.bf16.msra.mxu0 %v5996
  %6485 = vmatprep.subr.bf16.mxu0 %v6001
  %6486 = vmatpush1.bf16.msra.mxu0 %v6000
  %6487 = vmatprep.subr.bf16.mxu0 %v6005
  %6488 = vmatpush1.bf16.msra.mxu0 %v6004
  %6489 = vmatprep.subr.bf16.mxu0 %v6009
  %6490 = vmatpush1.bf16.msra.mxu0 %v6008
  %6491 = vmatprep.mubr.bf16.mxu0 %v5867
  %6492 = vmatmul.mubr.bf16.gmra.mrb[0].mxu0 %v5866
  %v6493 = vpop.f32.mrb[0].mxu0
  %v6494 = vadd.f32 %v6453, %v6493
  %v6495 = vpop.f32.mrb[0].mxu0
  %v6496 = vadd.f32 %v6455, %v6495
  %v6497 = vpop.f32.mrb[0].mxu0
  %v6498 = vpop.f32.mrb[0].mxu0
  %6499 = vdwg.mxu0
  %6500 = vmatprep.subr.bf16.mxu0 %v6013
  %6501 = vmatpush1.bf16.msra.mxu0 %v6012
  %6502 = vmatprep.subr.bf16.mxu0 %v6017
  %6503 = vmatpush1.bf16.msra.mxu0 %v6016
  %6504 = vmatprep.subr.bf16.mxu0 %v6021
  %6505 = vmatpush1.bf16.msra.mxu0 %v6020
  %6506 = vmatprep.subr.bf16.mxu0 %v6025
  %6507 = vmatpush1.bf16.msra.mxu0 %v6024
  %6508 = vmatprep.subr.bf16.mxu0 %v6029
  %6509 = vmatpush1.bf16.msra.mxu0 %v6028
  %6510 = vmatprep.subr.bf16.mxu0 %v6033
  %6511 = vmatpush1.bf16.msra.mxu0 %v6032
  %6512 = vmatprep.subr.bf16.mxu0 %v6037
  %6513 = vmatpush1.bf16.msra.mxu0 %v6036
  %6514 = vmatprep.subr.bf16.mxu0 %v6041
  %6515 = vmatpush1.bf16.msra.mxu0 %v6040
  %6516 = vmatprep.subr.bf16.mxu0 %v6045
  %6517 = vmatpush1.bf16.msra.mxu0 %v6044
  %6518 = vmatprep.subr.bf16.mxu0 %v6049
  %6519 = vmatpush1.bf16.msra.mxu0 %v6048
  %6520 = vmatprep.subr.bf16.mxu0 %v6053
  %6521 = vmatpush1.bf16.msra.mxu0 %v6052
  %6522 = vmatprep.subr.bf16.mxu0 %v6057
  %6523 = vmatpush1.bf16.msra.mxu0 %v6056
  %6524 = vmatprep.subr.bf16.mxu0 %v6061
  %6525 = vmatpush1.bf16.msra.mxu0 %v6060
  %6526 = vmatprep.subr.bf16.mxu0 %v6065
  %6527 = vmatpush1.bf16.msra.mxu0 %v6064
  %6528 = vmatprep.subr.bf16.mxu0 %v6069
  %6529 = vmatpush1.bf16.msra.mxu0 %v6068
  %6530 = vmatprep.subr.bf16.mxu0 %v6073
  %6531 = vmatpush1.bf16.msra.mxu0 %v6072
  %6532 = vmatprep.mubr.bf16.mxu0 %v5869
  %6533 = vmatmul.mubr.bf16.gmra.mrb[0].mxu0 %v5868
  %v6534 = vpop.f32.mrb[0].mxu0
  %v6535 = vadd.f32 %v6494, %v6534
  %v6536 = vpop.f32.mrb[0].mxu0
  %v6537 = vadd.f32 %v6496, %v6536
  %v6538 = vpop.f32.mrb[0].mxu0
  %v6539 = vpop.f32.mrb[0].mxu0
  %6540 = vdwg.mxu0
  %6541 = vmatprep.subr.bf16.mxu0 %v6077
  %6542 = vmatpush1.bf16.msra.mxu0 %v6076
  %6543 = vmatprep.subr.bf16.mxu0 %v6081
  %6544 = vmatpush1.bf16.msra.mxu0 %v6080
  %6545 = vmatprep.subr.bf16.mxu0 %v6085
  %6546 = vmatpush1.bf16.msra.mxu0 %v6084
  %6547 = vmatprep.subr.bf16.mxu0 %v6089
  %6548 = vmatpush1.bf16.msra.mxu0 %v6088
  %6549 = vmatprep.subr.bf16.mxu0 %v6093
  %6550 = vmatpush1.bf16.msra.mxu0 %v6092
  %6551 = vmatprep.subr.bf16.mxu0 %v6097
  %6552 = vmatpush1.bf16.msra.mxu0 %v6096
  %6553 = vmatprep.subr.bf16.mxu0 %v6101
  %6554 = vmatpush1.bf16.msra.mxu0 %v6100
  %6555 = vmatprep.subr.bf16.mxu0 %v6105
  %6556 = vmatpush1.bf16.msra.mxu0 %v6104
  %6557 = vmatprep.subr.bf16.mxu0 %v6109
  %6558 = vmatpush1.bf16.msra.mxu0 %v6108
  %6559 = vmatprep.subr.bf16.mxu0 %v6113
  %6560 = vmatpush1.bf16.msra.mxu0 %v6112
  %6561 = vmatprep.subr.bf16.mxu0 %v6117
  %6562 = vmatpush1.bf16.msra.mxu0 %v6116
  %6563 = vmatprep.subr.bf16.mxu0 %v6121
  %6564 = vmatpush1.bf16.msra.mxu0 %v6120
  %6565 = vmatprep.subr.bf16.mxu0 %v6125
  %6566 = vmatpush1.bf16.msra.mxu0 %v6124
  %6567 = vmatprep.subr.bf16.mxu0 %v6129
  %6568 = vmatpush1.bf16.msra.mxu0 %v6128
  %6569 = vmatprep.subr.bf16.mxu0 %v6133
  %6570 = vmatpush1.bf16.msra.mxu0 %v6132
  %6571 = vmatprep.subr.bf16.mxu0 %v6137
  %6572 = vmatpush1.bf16.msra.mxu0 %v6136
  %6573 = vmatprep.mubr.bf16.mxu0 %v5871
  %6574 = vmatmul.mubr.bf16.gmra.mrb[0].mxu0 %v5870
  %v6575 = vpop.f32.mrb[0].mxu0
  %v6576 = vadd.f32 %v6535, %v6575
  %v6577 = vpop.f32.mrb[0].mxu0
  %v6578 = vadd.f32 %v6537, %v6577
  %v6579 = vpop.f32.mrb[0].mxu0
  %v6580 = vpop.f32.mrb[0].mxu0
  %6581 = vdwg.mxu0
  %6582 = vmatprep.subr.bf16.mxu0 %v6141
  %6583 = vmatpush1.bf16.msra.mxu0 %v6140
  %6584 = vmatprep.subr.bf16.mxu0 %v6145
  %6585 = vmatpush1.bf16.msra.mxu0 %v6144
  %6586 = vmatprep.subr.bf16.mxu0 %v6149
  %6587 = vmatpush1.bf16.msra.mxu0 %v6148
  %6588 = vmatprep.subr.bf16.mxu0 %v6153
  %6589 = vmatpush1.bf16.msra.mxu0 %v6152
  %6590 = vmatprep.subr.bf16.mxu0 %v6157
  %6591 = vmatpush1.bf16.msra.mxu0 %v6156
  %6592 = vmatprep.subr.bf16.mxu0 %v6161
  %6593 = vmatpush1.bf16.msra.mxu0 %v6160
  %6594 = vmatprep.subr.bf16.mxu0 %v6165
  %6595 = vmatpush1.bf16.msra.mxu0 %v6164
  %6596 = vmatprep.subr.bf16.mxu0 %v6169
  %6597 = vmatpush1.bf16.msra.mxu0 %v6168
  %6598 = vmatprep.subr.bf16.mxu0 %v6173
  %6599 = vmatpush1.bf16.msra.mxu0 %v6172
  %6600 = vmatprep.subr.bf16.mxu0 %v6177
  %6601 = vmatpush1.bf16.msra.mxu0 %v6176
  %6602 = vmatprep.subr.bf16.mxu0 %v6181
  %6603 = vmatpush1.bf16.msra.mxu0 %v6180
  %6604 = vmatprep.subr.bf16.mxu0 %v6185
  %6605 = vmatpush1.bf16.msra.mxu0 %v6184
  %6606 = vmatprep.subr.bf16.mxu0 %v6189
  %6607 = vmatpush1.bf16.msra.mxu0 %v6188
  %6608 = vmatprep.subr.bf16.mxu0 %v6193
  %6609 = vmatpush1.bf16.msra.mxu0 %v6192
  %6610 = vmatprep.subr.bf16.mxu0 %v6197
  %6611 = vmatpush1.bf16.msra.mxu0 %v6196
  %6612 = vmatprep.subr.bf16.mxu0 %v6201
  %6613 = vmatpush1.bf16.msra.mxu0 %v6200
  %6614 = vmatprep.mubr.bf16.mxu0 %v5873
  %6615 = vmatmul.mubr.bf16.gmra.mrb[0].mxu0 %v5872
  %v6616 = vpop.f32.mrb[0].mxu0
  %v6617 = vadd.f32 %v6576, %v6616
  %v6618 = vpop.f32.mrb[0].mxu0
  %v6619 = vadd.f32 %v6578, %v6618
  %v6620 = vpop.f32.mrb[0].mxu0
  %v6621 = vpop.f32.mrb[0].mxu0
  %6622 = vdwg.mxu0
  %6623 = vmatprep.subr.bf16.mxu0 %v6205
  %6624 = vmatpush1.bf16.msra.mxu0 %v6204
  %6625 = vmatprep.subr.bf16.mxu0 %v6209
  %6626 = vmatpush1.bf16.msra.mxu0 %v6208
  %6627 = vmatprep.subr.bf16.mxu0 %v6213
  %6628 = vmatpush1.bf16.msra.mxu0 %v6212
  %6629 = vmatprep.subr.bf16.mxu0 %v6217
  %6630 = vmatpush1.bf16.msra.mxu0 %v6216
  %6631 = vmatprep.subr.bf16.mxu0 %v6221
  %6632 = vmatpush1.bf16.msra.mxu0 %v6220
  %6633 = vmatprep.subr.bf16.mxu0 %v6225
  %6634 = vmatpush1.bf16.msra.mxu0 %v6224
  %6635 = vmatprep.subr.bf16.mxu0 %v6229
  %6636 = vmatpush1.bf16.msra.mxu0 %v6228
  %6637 = vmatprep.subr.bf16.mxu0 %v6233
  %6638 = vmatpush1.bf16.msra.mxu0 %v6232
  %6639 = vmatprep.subr.bf16.mxu0 %v6237
  %6640 = vmatpush1.bf16.msra.mxu0 %v6236
  %6641 = vmatprep.subr.bf16.mxu0 %v6241
  %6642 = vmatpush1.bf16.msra.mxu0 %v6240
  %6643 = vmatprep.subr.bf16.mxu0 %v6245
  %6644 = vmatpush1.bf16.msra.mxu0 %v6244
  %6645 = vmatprep.subr.bf16.mxu0 %v6249
  %6646 = vmatpush1.bf16.msra.mxu0 %v6248
  %6647 = vmatprep.subr.bf16.mxu0 %v6253
  %6648 = vmatpush1.bf16.msra.mxu0 %v6252
  %6649 = vmatprep.subr.bf16.mxu0 %v6257
  %6650 = vmatpush1.bf16.msra.mxu0 %v6256
  %6651 = vmatprep.subr.bf16.mxu0 %v6261
  %6652 = vmatpush1.bf16.msra.mxu0 %v6260
  %6653 = vmatprep.subr.bf16.mxu0 %v6265
  %6654 = vmatpush1.bf16.msra.mxu0 %v6264
  %6655 = vmatprep.mubr.bf16.mxu0 %v5875
  %6656 = vmatmul.mubr.bf16.gmra.mrb[0].mxu0 %v5874
  %v6657 = vpop.f32.mrb[0].mxu0
  %v6658 = vadd.f32 %v6617, %v6657
  %v6659 = vpop.f32.mrb[0].mxu0
  %v6660 = vadd.f32 %v6619, %v6659
  %v6661 = vpop.f32.mrb[0].mxu0
  %v6662 = vpop.f32.mrb[0].mxu0
  %6663 = vdwg.mxu0
  %6664 = vmatprep.subr.bf16.mxu0 %v6269
  %6665 = vmatpush1.bf16.msra.mxu0 %v6268
  %6666 = vmatprep.subr.bf16.mxu0 %v6273
  %6667 = vmatpush1.bf16.msra.mxu0 %v6272
  %6668 = vmatprep.subr.bf16.mxu0 %v6277
  %6669 = vmatpush1.bf16.msra.mxu0 %v6276
  %6670 = vmatprep.subr.bf16.mxu0 %v6281
  %6671 = vmatpush1.bf16.msra.mxu0 %v6280
  %6672 = vmatprep.subr.bf16.mxu0 %v6285
  %6673 = vmatpush1.bf16.msra.mxu0 %v6284
  %6674 = vmatprep.subr.bf16.mxu0 %v6289
  %6675 = vmatpush1.bf16.msra.mxu0 %v6288
  %6676 = vmatprep.subr.bf16.mxu0 %v6293
  %6677 = vmatpush1.bf16.msra.mxu0 %v6292
  %6678 = vmatprep.subr.bf16.mxu0 %v6297
  %6679 = vmatpush1.bf16.msra.mxu0 %v6296
  %6680 = vmatprep.subr.bf16.mxu0 %v6301
  %6681 = vmatpush1.bf16.msra.mxu0 %v6300
  %6682 = vmatprep.subr.bf16.mxu0 %v6305
  %6683 = vmatpush1.bf16.msra.mxu0 %v6304
  %6684 = vmatprep.subr.bf16.mxu0 %v6309
  %6685 = vmatpush1.bf16.msra.mxu0 %v6308
  %6686 = vmatprep.subr.bf16.mxu0 %v6313
  %6687 = vmatpush1.bf16.msra.mxu0 %v6312
  %6688 = vmatprep.subr.bf16.mxu0 %v6317
  %6689 = vmatpush1.bf16.msra.mxu0 %v6316
  %6690 = vmatprep.subr.bf16.mxu0 %v6321
  %6691 = vmatpush1.bf16.msra.mxu0 %v6320
  %6692 = vmatprep.subr.bf16.mxu0 %v6325
  %6693 = vmatpush1.bf16.msra.mxu0 %v6324
  %6694 = vmatprep.subr.bf16.mxu0 %v6329
  %6695 = vmatpush1.bf16.msra.mxu0 %v6328
  %6696 = vmatprep.mubr.bf16.mxu0 %v5877
  %6697 = vmatmul.mubr.bf16.gmra.mrb[0].mxu0 %v5876
  %v6698 = vpop.f32.mrb[0].mxu0
  %v6699 = vadd.f32 %v6658, %v6698
  %v6700 = vpop.f32.mrb[0].mxu0
  %v6701 = vadd.f32 %v6660, %v6700
  %v6702 = vpop.f32.mrb[0].mxu0
  %v6703 = vpop.f32.mrb[0].mxu0
  %6704 = vdwg.mxu0
  %6705 = vmatprep.subr.bf16.mxu0 %v6333
  %6706 = vmatpush1.bf16.msra.mxu0 %v6332
  %6707 = vmatprep.subr.bf16.mxu0 %v6337
  %6708 = vmatpush1.bf16.msra.mxu0 %v6336
  %6709 = vmatprep.subr.bf16.mxu0 %v6341
  %6710 = vmatpush1.bf16.msra.mxu0 %v6340
  %6711 = vmatprep.subr.bf16.mxu0 %v6345
  %6712 = vmatpush1.bf16.msra.mxu0 %v6344
  %6713 = vmatprep.subr.bf16.mxu0 %v6349
  %6714 = vmatpush1.bf16.msra.mxu0 %v6348
  %6715 = vmatprep.subr.bf16.mxu0 %v6353
  %6716 = vmatpush1.bf16.msra.mxu0 %v6352
  %6717 = vmatprep.subr.bf16.mxu0 %v6357
  %6718 = vmatpush1.bf16.msra.mxu0 %v6356
  %6719 = vmatprep.subr.bf16.mxu0 %v6361
  %6720 = vmatpush1.bf16.msra.mxu0 %v6360
  %6721 = vmatprep.subr.bf16.mxu0 %v6365
  %6722 = vmatpush1.bf16.msra.mxu0 %v6364
  %6723 = vmatprep.subr.bf16.mxu0 %v6369
  %6724 = vmatpush1.bf16.msra.mxu0 %v6368
  %6725 = vmatprep.subr.bf16.mxu0 %v6373
  %6726 = vmatpush1.bf16.msra.mxu0 %v6372
  %6727 = vmatprep.subr.bf16.mxu0 %v6377
  %6728 = vmatpush1.bf16.msra.mxu0 %v6376
  %6729 = vmatprep.subr.bf16.mxu0 %v6381
  %6730 = vmatpush1.bf16.msra.mxu0 %v6380
  %6731 = vmatprep.subr.bf16.mxu0 %v6385
  %6732 = vmatpush1.bf16.msra.mxu0 %v6384
  %6733 = vmatprep.subr.bf16.mxu0 %v6389
  %6734 = vmatpush1.bf16.msra.mxu0 %v6388
  %6735 = vmatprep.subr.bf16.mxu0 %v6393
  %6736 = vmatpush1.bf16.msra.mxu0 %v6392
  %6737 = vmatprep.mubr.bf16.mxu0 %v5879
  %6738 = vmatmul.mubr.bf16.gmra.mrb[0].mxu0 %v5878
  %v6739 = vpop.f32.mrb[0].mxu0
  %v6740 = vadd.f32 %v6699, %v6739
  %v6741 = vpop.f32.mrb[0].mxu0
  %v6742 = vadd.f32 %v6701, %v6741
  %v6743 = vpop.f32.mrb[0].mxu0
  %v6744 = vpop.f32.mrb[0].mxu0
  %6745 = vdwg.mxu0
  %6746 = vmatprep.subr.bf16.mxu0 %v5887
  %6747 = vmatpush1.bf16.msra.mxu0 %v5886
  %6748 = vmatprep.subr.bf16.mxu0 %v5891
  %6749 = vmatpush1.bf16.msra.mxu0 %v5890
  %6750 = vmatprep.subr.bf16.mxu0 %v5895
  %6751 = vmatpush1.bf16.msra.mxu0 %v5894
  %6752 = vmatprep.subr.bf16.mxu0 %v5899
  %6753 = vmatpush1.bf16.msra.mxu0 %v5898
  %6754 = vmatprep.subr.bf16.mxu0 %v5903
  %6755 = vmatpush1.bf16.msra.mxu0 %v5902
  %6756 = vmatprep.subr.bf16.mxu0 %v5907
  %6757 = vmatpush1.bf16.msra.mxu0 %v5906
  %6758 = vmatprep.subr.bf16.mxu0 %v5911
  %6759 = vmatpush1.bf16.msra.mxu0 %v5910
  %6760 = vmatprep.subr.bf16.mxu0 %v5915
  %6761 = vmatpush1.bf16.msra.mxu0 %v5914
  %6762 = vmatprep.subr.bf16.mxu0 %v5919
  %6763 = vmatpush1.bf16.msra.mxu0 %v5918
  %6764 = vmatprep.subr.bf16.mxu0 %v5923
  %6765 = vmatpush1.bf16.msra.mxu0 %v5922
  %6766 = vmatprep.subr.bf16.mxu0 %v5927
  %6767 = vmatpush1.bf16.msra.mxu0 %v5926
  %6768 = vmatprep.subr.bf16.mxu0 %v5931
  %6769 = vmatpush1.bf16.msra.mxu0 %v5930
  %6770 = vmatprep.subr.bf16.mxu0 %v5935
  %6771 = vmatpush1.bf16.msra.mxu0 %v5934
  %6772 = vmatprep.subr.bf16.mxu0 %v5939
  %6773 = vmatpush1.bf16.msra.mxu0 %v5938
  %6774 = vmatprep.subr.bf16.mxu0 %v5943
  %6775 = vmatpush1.bf16.msra.mxu0 %v5942
  %6776 = vmatprep.subr.bf16.mxu0 %v5947
  %6777 = vmatpush1.bf16.msra.mxu0 %v5946
  %6778 = vmatprep.mubr.bf16.mxu0 %v5865
  %6779 = vmatmul.mubr.bf16.gmra.mrb[0].mxu0 %v5864
  %v6780 = vpop.f32.mrb[0].mxu0
  %v6781 = vadd.f32 %v6409, %v6780
  %v6782 = vpop.f32.mrb[0].mxu0
  %v6783 = vadd.f32 %v6413, %v6782
  %v6784 = vpop.f32.mrb[0].mxu0
  %v6785 = vpop.f32.mrb[0].mxu0
  %6786 = vdwg.mxu0
  %6787 = vmatprep.subr.bf16.mxu0 %v5951
  %6788 = vmatpush1.bf16.msra.mxu0 %v5950
  %6789 = vmatprep.subr.bf16.mxu0 %v5955
  %6790 = vmatpush1.bf16.msra.mxu0 %v5954
  %6791 = vmatprep.subr.bf16.mxu0 %v5959
  %6792 = vmatpush1.bf16.msra.mxu0 %v5958
  %6793 = vmatprep.subr.bf16.mxu0 %v5963
  %6794 = vmatpush1.bf16.msra.mxu0 %v5962
  %6795 = vmatprep.subr.bf16.mxu0 %v5967
  %6796 = vmatpush1.bf16.msra.mxu0 %v5966
  %6797 = vmatprep.subr.bf16.mxu0 %v5971
  %6798 = vmatpush1.bf16.msra.mxu0 %v5970
  %6799 = vmatprep.subr.bf16.mxu0 %v5975
  %6800 = vmatpush1.bf16.msra.mxu0 %v5974
  %6801 = vmatprep.subr.bf16.mxu0 %v5979
  %6802 = vmatpush1.bf16.msra.mxu0 %v5978
  %6803 = vmatprep.subr.bf16.mxu0 %v5983
  %6804 = vmatpush1.bf16.msra.mxu0 %v5982
  %6805 = vmatprep.subr.bf16.mxu0 %v5987
  %6806 = vmatpush1.bf16.msra.mxu0 %v5986
  %6807 = vmatprep.subr.bf16.mxu0 %v5991
  %6808 = vmatpush1.bf16.msra.mxu0 %v5990
  %6809 = vmatprep.subr.bf16.mxu0 %v5995
  %6810 = vmatpush1.bf16.msra.mxu0 %v5994
  %6811 = vmatprep.subr.bf16.mxu0 %v5999
  %6812 = vmatpush1.bf16.msra.mxu0 %v5998
  %6813 = vmatprep.subr.bf16.mxu0 %v6003
  %6814 = vmatpush1.bf16.msra.mxu0 %v6002
  %6815 = vmatprep.subr.bf16.mxu0 %v6007
  %6816 = vmatpush1.bf16.msra.mxu0 %v6006
  %6817 = vmatprep.subr.bf16.mxu0 %v6011
  %6818 = vmatpush1.bf16.msra.mxu0 %v6010
  %6819 = vmatprep.mubr.bf16.mxu0 %v5867
  %6820 = vmatmul.mubr.bf16.gmra.mrb[0].mxu0 %v5866
  %v6821 = vpop.f32.mrb[0].mxu0
  %v6822 = vadd.f32 %v6781, %v6821
  %v6823 = vpop.f32.mrb[0].mxu0
  %v6824 = vadd.f32 %v6783, %v6823
  %v6825 = vpop.f32.mrb[0].mxu0
  %v6826 = vpop.f32.mrb[0].mxu0
  %6827 = vdwg.mxu0
  %6828 = vmatprep.subr.bf16.mxu0 %v6015
  %6829 = vmatpush1.bf16.msra.mxu0 %v6014
  %6830 = vmatprep.subr.bf16.mxu0 %v6019
  %6831 = vmatpush1.bf16.msra.mxu0 %v6018
  %6832 = vmatprep.subr.bf16.mxu0 %v6023
  %6833 = vmatpush1.bf16.msra.mxu0 %v6022
  %6834 = vmatprep.subr.bf16.mxu0 %v6027
  %6835 = vmatpush1.bf16.msra.mxu0 %v6026
  %6836 = vmatprep.subr.bf16.mxu0 %v6031
  %6837 = vmatpush1.bf16.msra.mxu0 %v6030
  %6838 = vmatprep.subr.bf16.mxu0 %v6035
  %6839 = vmatpush1.bf16.msra.mxu0 %v6034
  %6840 = vmatprep.subr.bf16.mxu0 %v6039
  %6841 = vmatpush1.bf16.msra.mxu0 %v6038
  %6842 = vmatprep.subr.bf16.mxu0 %v6043
  %6843 = vmatpush1.bf16.msra.mxu0 %v6042
  %6844 = vmatprep.subr.bf16.mxu0 %v6047
  %6845 = vmatpush1.bf16.msra.mxu0 %v6046
  %6846 = vmatprep.subr.bf16.mxu0 %v6051
  %6847 = vmatpush1.bf16.msra.mxu0 %v6050
  %6848 = vmatprep.subr.bf16.mxu0 %v6055
  %6849 = vmatpush1.bf16.msra.mxu0 %v6054
  %6850 = vmatprep.subr.bf16.mxu0 %v6059
  %6851 = vmatpush1.bf16.msra.mxu0 %v6058
  %6852 = vmatprep.subr.bf16.mxu0 %v6063
  %6853 = vmatpush1.bf16.msra.mxu0 %v6062
  %6854 = vmatprep.subr.bf16.mxu0 %v6067
  %6855 = vmatpush1.bf16.msra.mxu0 %v6066
  %6856 = vmatprep.subr.bf16.mxu0 %v6071
  %6857 = vmatpush1.bf16.msra.mxu0 %v6070
  %6858 = vmatprep.subr.bf16.mxu0 %v6075
  %6859 = vmatpush1.bf16.msra.mxu0 %v6074
  %6860 = vmatprep.mubr.bf16.mxu0 %v5869
  %6861 = vmatmul.mubr.bf16.gmra.mrb[0].mxu0 %v5868
  %v6862 = vpop.f32.mrb[0].mxu0
  %v6863 = vadd.f32 %v6822, %v6862
  %v6864 = vpop.f32.mrb[0].mxu0
  %v6865 = vadd.f32 %v6824, %v6864
  %v6866 = vpop.f32.mrb[0].mxu0
  %v6867 = vpop.f32.mrb[0].mxu0
  %6868 = vdwg.mxu0
  %6869 = vmatprep.subr.bf16.mxu0 %v6079
  %6870 = vmatpush1.bf16.msra.mxu0 %v6078
  %6871 = vmatprep.subr.bf16.mxu0 %v6083
  %6872 = vmatpush1.bf16.msra.mxu0 %v6082
  %6873 = vmatprep.subr.bf16.mxu0 %v6087
  %6874 = vmatpush1.bf16.msra.mxu0 %v6086
  %6875 = vmatprep.subr.bf16.mxu0 %v6091
  %6876 = vmatpush1.bf16.msra.mxu0 %v6090
  %6877 = vmatprep.subr.bf16.mxu0 %v6095
  %6878 = vmatpush1.bf16.msra.mxu0 %v6094
  %6879 = vmatprep.subr.bf16.mxu0 %v6099
  %6880 = vmatpush1.bf16.msra.mxu0 %v6098
  %6881 = vmatprep.subr.bf16.mxu0 %v6103
  %6882 = vmatpush1.bf16.msra.mxu0 %v6102
  %6883 = vmatprep.subr.bf16.mxu0 %v6107
  %6884 = vmatpush1.bf16.msra.mxu0 %v6106
  %6885 = vmatprep.subr.bf16.mxu0 %v6111
  %6886 = vmatpush1.bf16.msra.mxu0 %v6110
  %6887 = vmatprep.subr.bf16.mxu0 %v6115
  %6888 = vmatpush1.bf16.msra.mxu0 %v6114
  %6889 = vmatprep.subr.bf16.mxu0 %v6119
  %6890 = vmatpush1.bf16.msra.mxu0 %v6118
  %6891 = vmatprep.subr.bf16.mxu0 %v6123
  %6892 = vmatpush1.bf16.msra.mxu0 %v6122
  %6893 = vmatprep.subr.bf16.mxu0 %v6127
  %6894 = vmatpush1.bf16.msra.mxu0 %v6126
  %6895 = vmatprep.subr.bf16.mxu0 %v6131
  %6896 = vmatpush1.bf16.msra.mxu0 %v6130
  %6897 = vmatprep.subr.bf16.mxu0 %v6135
  %6898 = vmatpush1.bf16.msra.mxu0 %v6134
  %6899 = vmatprep.subr.bf16.mxu0 %v6139
  %6900 = vmatpush1.bf16.msra.mxu0 %v6138
  %6901 = vmatprep.mubr.bf16.mxu0 %v5871
  %6902 = vmatmul.mubr.bf16.gmra.mrb[0].mxu0 %v5870
  %v6903 = vpop.f32.mrb[0].mxu0
  %v6904 = vadd.f32 %v6863, %v6903
  %v6905 = vpop.f32.mrb[0].mxu0
  %v6906 = vadd.f32 %v6865, %v6905
  %v6907 = vpop.f32.mrb[0].mxu0
  %v6908 = vpop.f32.mrb[0].mxu0
  %6909 = vdwg.mxu0
  %6910 = vmatprep.subr.bf16.mxu0 %v6143
  %6911 = vmatpush1.bf16.msra.mxu0 %v6142
  %6912 = vmatprep.subr.bf16.mxu0 %v6147
  %6913 = vmatpush1.bf16.msra.mxu0 %v6146
  %6914 = vmatprep.subr.bf16.mxu0 %v6151
  %6915 = vmatpush1.bf16.msra.mxu0 %v6150
  %6916 = vmatprep.subr.bf16.mxu0 %v6155
  %6917 = vmatpush1.bf16.msra.mxu0 %v6154
  %6918 = vmatprep.subr.bf16.mxu0 %v6159
  %6919 = vmatpush1.bf16.msra.mxu0 %v6158
  %6920 = vmatprep.subr.bf16.mxu0 %v6163
  %6921 = vmatpush1.bf16.msra.mxu0 %v6162
  %6922 = vmatprep.subr.bf16.mxu0 %v6167
  %6923 = vmatpush1.bf16.msra.mxu0 %v6166
  %6924 = vmatprep.subr.bf16.mxu0 %v6171
  %6925 = vmatpush1.bf16.msra.mxu0 %v6170
  %6926 = vmatprep.subr.bf16.mxu0 %v6175
  %6927 = vmatpush1.bf16.msra.mxu0 %v6174
  %6928 = vmatprep.subr.bf16.mxu0 %v6179
  %6929 = vmatpush1.bf16.msra.mxu0 %v6178
  %6930 = vmatprep.subr.bf16.mxu0 %v6183
  %6931 = vmatpush1.bf16.msra.mxu0 %v6182
  %6932 = vmatprep.subr.bf16.mxu0 %v6187
  %6933 = vmatpush1.bf16.msra.mxu0 %v6186
  %6934 = vmatprep.subr.bf16.mxu0 %v6191
  %6935 = vmatpush1.bf16.msra.mxu0 %v6190
  %6936 = vmatprep.subr.bf16.mxu0 %v6195
  %6937 = vmatpush1.bf16.msra.mxu0 %v6194
  %6938 = vmatprep.subr.bf16.mxu0 %v6199
  %6939 = vmatpush1.bf16.msra.mxu0 %v6198
  %6940 = vmatprep.subr.bf16.mxu0 %v6203
  %6941 = vmatpush1.bf16.msra.mxu0 %v6202
  %6942 = vmatprep.mubr.bf16.mxu0 %v5873
  %6943 = vmatmul.mubr.bf16.gmra.mrb[0].mxu0 %v5872
  %v6944 = vpop.f32.mrb[0].mxu0
  %v6945 = vadd.f32 %v6904, %v6944
  %v6946 = vpop.f32.mrb[0].mxu0
  %v6947 = vadd.f32 %v6906, %v6946
  %v6948 = vpop.f32.mrb[0].mxu0
  %v6949 = vpop.f32.mrb[0].mxu0
  %6950 = vdwg.mxu0
  %6951 = vmatprep.subr.bf16.mxu0 %v6207
  %6952 = vmatpush1.bf16.msra.mxu0 %v6206
  %6953 = vmatprep.subr.bf16.mxu0 %v6211
  %6954 = vmatpush1.bf16.msra.mxu0 %v6210
  %6955 = vmatprep.subr.bf16.mxu0 %v6215
  %6956 = vmatpush1.bf16.msra.mxu0 %v6214
  %6957 = vmatprep.subr.bf16.mxu0 %v6219
  %6958 = vmatpush1.bf16.msra.mxu0 %v6218
  %6959 = vmatprep.subr.bf16.mxu0 %v6223
  %6960 = vmatpush1.bf16.msra.mxu0 %v6222
  %6961 = vmatprep.subr.bf16.mxu0 %v6227
  %6962 = vmatpush1.bf16.msra.mxu0 %v6226
  %6963 = vmatprep.subr.bf16.mxu0 %v6231
  %6964 = vmatpush1.bf16.msra.mxu0 %v6230
  %6965 = vmatprep.subr.bf16.mxu0 %v6235
  %6966 = vmatpush1.bf16.msra.mxu0 %v6234
  %6967 = vmatprep.subr.bf16.mxu0 %v6239
  %6968 = vmatpush1.bf16.msra.mxu0 %v6238
  %6969 = vmatprep.subr.bf16.mxu0 %v6243
  %6970 = vmatpush1.bf16.msra.mxu0 %v6242
  %6971 = vmatprep.subr.bf16.mxu0 %v6247
  %6972 = vmatpush1.bf16.msra.mxu0 %v6246
  %6973 = vmatprep.subr.bf16.mxu0 %v6251
  %6974 = vmatpush1.bf16.msra.mxu0 %v6250
  %6975 = vmatprep.subr.bf16.mxu0 %v6255
  %6976 = vmatpush1.bf16.msra.mxu0 %v6254
  %6977 = vmatprep.subr.bf16.mxu0 %v6259
  %6978 = vmatpush1.bf16.msra.mxu0 %v6258
  %6979 = vmatprep.subr.bf16.mxu0 %v6263
  %6980 = vmatpush1.bf16.msra.mxu0 %v6262
  %6981 = vmatprep.subr.bf16.mxu0 %v6267
  %6982 = vmatpush1.bf16.msra.mxu0 %v6266
  %6983 = vmatprep.mubr.bf16.mxu0 %v5875
  %6984 = vmatmul.mubr.bf16.gmra.mrb[0].mxu0 %v5874
  %v6985 = vpop.f32.mrb[0].mxu0
  %v6986 = vadd.f32 %v6945, %v6985
  %v6987 = vpop.f32.mrb[0].mxu0
  %v6988 = vadd.f32 %v6947, %v6987
  %v6989 = vpop.f32.mrb[0].mxu0
  %v6990 = vpop.f32.mrb[0].mxu0
  %6991 = vdwg.mxu0
  %6992 = vmatprep.subr.bf16.mxu0 %v6271
  %6993 = vmatpush1.bf16.msra.mxu0 %v6270
  %6994 = vmatprep.subr.bf16.mxu0 %v6275
  %6995 = vmatpush1.bf16.msra.mxu0 %v6274
  %6996 = vmatprep.subr.bf16.mxu0 %v6279
  %6997 = vmatpush1.bf16.msra.mxu0 %v6278
  %6998 = vmatprep.subr.bf16.mxu0 %v6283
  %6999 = vmatpush1.bf16.msra.mxu0 %v6282
  %7000 = vmatprep.subr.bf16.mxu0 %v6287
  %7001 = vmatpush1.bf16.msra.mxu0 %v6286
  %7002 = vmatprep.subr.bf16.mxu0 %v6291
  %7003 = vmatpush1.bf16.msra.mxu0 %v6290
  %7004 = vmatprep.subr.bf16.mxu0 %v6295
  %7005 = vmatpush1.bf16.msra.mxu0 %v6294
  %7006 = vmatprep.subr.bf16.mxu0 %v6299
  %7007 = vmatpush1.bf16.msra.mxu0 %v6298
  %7008 = vmatprep.subr.bf16.mxu0 %v6303
  %7009 = vmatpush1.bf16.msra.mxu0 %v6302
  %7010 = vmatprep.subr.bf16.mxu0 %v6307
  %7011 = vmatpush1.bf16.msra.mxu0 %v6306
  %7012 = vmatprep.subr.bf16.mxu0 %v6311
  %7013 = vmatpush1.bf16.msra.mxu0 %v6310
  %7014 = vmatprep.subr.bf16.mxu0 %v6315
  %7015 = vmatpush1.bf16.msra.mxu0 %v6314
  %7016 = vmatprep.subr.bf16.mxu0 %v6319
  %7017 = vmatpush1.bf16.msra.mxu0 %v6318
  %7018 = vmatprep.subr.bf16.mxu0 %v6323
  %7019 = vmatpush1.bf16.msra.mxu0 %v6322
  %7020 = vmatprep.subr.bf16.mxu0 %v6327
  %7021 = vmatpush1.bf16.msra.mxu0 %v6326
  %7022 = vmatprep.subr.bf16.mxu0 %v6331
  %7023 = vmatpush1.bf16.msra.mxu0 %v6330
  %7024 = vmatprep.mubr.bf16.mxu0 %v5877
  %7025 = vmatmul.mubr.bf16.gmra.mrb[0].mxu0 %v5876
  %v7026 = vpop.f32.mrb[0].mxu0
  %v7027 = vadd.f32 %v6986, %v7026
  %v7028 = vpop.f32.mrb[0].mxu0
  %v7029 = vadd.f32 %v6988, %v7028
  %v7030 = vpop.f32.mrb[0].mxu0
  %v7031 = vpop.f32.mrb[0].mxu0
  %7032 = vdwg.mxu0
  %7033 = vmatprep.subr.bf16.mxu0 %v6335
  %7034 = vmatpush1.bf16.msra.mxu0 %v6334
  %7035 = vmatprep.subr.bf16.mxu0 %v6339
  %7036 = vmatpush1.bf16.msra.mxu0 %v6338
  %7037 = vmatprep.subr.bf16.mxu0 %v6343
  %7038 = vmatpush1.bf16.msra.mxu0 %v6342
  %7039 = vmatprep.subr.bf16.mxu0 %v6347
  %7040 = vmatpush1.bf16.msra.mxu0 %v6346
  %7041 = vmatprep.subr.bf16.mxu0 %v6351
  %7042 = vmatpush1.bf16.msra.mxu0 %v6350
  %7043 = vmatprep.subr.bf16.mxu0 %v6355
  %7044 = vmatpush1.bf16.msra.mxu0 %v6354
  %7045 = vmatprep.subr.bf16.mxu0 %v6359
  %7046 = vmatpush1.bf16.msra.mxu0 %v6358
  %7047 = vmatprep.subr.bf16.mxu0 %v6363
  %7048 = vmatpush1.bf16.msra.mxu0 %v6362
  %7049 = vmatprep.subr.bf16.mxu0 %v6367
  %7050 = vmatpush1.bf16.msra.mxu0 %v6366
  %7051 = vmatprep.subr.bf16.mxu0 %v6371
  %7052 = vmatpush1.bf16.msra.mxu0 %v6370
  %7053 = vmatprep.subr.bf16.mxu0 %v6375
  %7054 = vmatpush1.bf16.msra.mxu0 %v6374
  %7055 = vmatprep.subr.bf16.mxu0 %v6379
  %7056 = vmatpush1.bf16.msra.mxu0 %v6378
  %7057 = vmatprep.subr.bf16.mxu0 %v6383
  %7058 = vmatpush1.bf16.msra.mxu0 %v6382
  %7059 = vmatprep.subr.bf16.mxu0 %v6387
  %7060 = vmatpush1.bf16.msra.mxu0 %v6386
  %7061 = vmatprep.subr.bf16.mxu0 %v6391
  %7062 = vmatpush1.bf16.msra.mxu0 %v6390
  %7063 = vmatprep.subr.bf16.mxu0 %v6395
  %7064 = vmatpush1.bf16.msra.mxu0 %v6394
  %7065 = vmatprep.mubr.bf16.mxu0 %v5879
  %7066 = vmatmul.mubr.bf16.gmra.mrb[0].mxu0 %v5878
  %v7067 = vpop.f32.mrb[0].mxu0
  %v7068 = vadd.f32 %v7027, %v7067
  %v7069 = vpop.f32.mrb[0].mxu0
  %v7070 = vadd.f32 %v7029, %v7069
  %v7071 = vpop.f32.mrb[0].mxu0
  %v7072 = vpop.f32.mrb[0].mxu0
  %7073 = vdwg.mxu0
  %v7074 = vmax.f32 %v6740, 0.0
  %v7075 = vmax.f32 %v6742, 0.0
  %v7076 = vmax.f32 %v7068, 0.0
  %v7077 = vmax.f32 %v7070, 0.0
  %v7078 = vpack.c.bf16 %v7074, %v7074
  %v7079 = vpack.c.bf16 %v7075, %v7075
  %v7080 = vpack.c.bf16 %v7076, %v7076
  %v7081 = vpack.c.bf16 %v7077, %v7077
  %v7082 = vld [vmem:[%s6] sm:$0xf]
  %v7083 = vld [vmem:[%s6 + $0x4] sm:$0xf]
  %v7084 = vld [vmem:[%s6 + $0x8] sm:$0xf]
  %v7085 = vld [vmem:[%s6 + $0xc] sm:$0xf]
  %v7086 = vld [vmem:[%s6 + $0x10] sm:$0xf]
  %v7087 = vld [vmem:[%s6 + $0x14] sm:$0xf]
  %v7088 = vld [vmem:[%s6 + $0x18] sm:$0xf]
  %v7089 = vld [vmem:[%s6 + $0x1c] sm:$0xf]
  %v7090 = vld [vmem:[%s6 + $0x20] sm:$0xf]
  %v7091 = vld [vmem:[%s6 + $0x24] sm:$0xf]
  %v7092 = vld [vmem:[%s6 + $0x28] sm:$0xf]
  %v7093 = vld [vmem:[%s6 + $0x2c] sm:$0xf]
  %v7094 = vld [vmem:[%s6 + $0x30] sm:$0xf]
  %v7095 = vld [vmem:[%s6 + $0x34] sm:$0xf]
  %v7096 = vld [vmem:[%s6 + $0x38] sm:$0xf]
  %v7097 = vld [vmem:[%s6 + $0x3c] sm:$0xf]
  %v7098 = vld [vmem:[%s6 + $0x40] sm:$0xf]
  %v7099 = vld [vmem:[%s6 + $0x44] sm:$0xf]
  %v7100 = vld [vmem:[%s6 + $0x48] sm:$0xf]
  %v7101 = vld [vmem:[%s6 + $0x4c] sm:$0xf]
  %v7102 = vld [vmem:[%s6 + $0x50] sm:$0xf]
  %v7103 = vld [vmem:[%s6 + $0x54] sm:$0xf]
  %v7104 = vld [vmem:[%s6 + $0x58] sm:$0xf]
  %v7105 = vld [vmem:[%s6 + $0x5c] sm:$0xf]
  %v7106 = vld [vmem:[%s6 + $0x60] sm:$0xf]
  %v7107 = vld [vmem:[%s6 + $0x64] sm:$0xf]
  %v7108 = vld [vmem:[%s6 + $0x68] sm:$0xf]
  %v7109 = vld [vmem:[%s6 + $0x6c] sm:$0xf]
  %v7110 = vld [vmem:[%s6 + $0x70] sm:$0xf]
  %v7111 = vld [vmem:[%s6 + $0x74] sm:$0xf]
  %v7112 = vld [vmem:[%s6 + $0x78] sm:$0xf]
  %v7113 = vld [vmem:[%s6 + $0x7c] sm:$0xf]
  %v7114 = vld [vmem:[%s6 + $0x80] sm:$0xf]
  %v7115 = vld [vmem:[%s6 + $0x84] sm:$0xf]
  %v7116 = vld [vmem:[%s6 + $0x88] sm:$0xf]
  %v7117 = vld [vmem:[%s6 + $0x8c] sm:$0xf]
  %v7118 = vld [vmem:[%s6 + $0x90] sm:$0xf]
  %v7119 = vld [vmem:[%s6 + $0x94] sm:$0xf]
  %v7120 = vld [vmem:[%s6 + $0x98] sm:$0xf]
  %v7121 = vld [vmem:[%s6 + $0x9c] sm:$0xf]
  %v7122 = vld [vmem:[%s6 + $0xa0] sm:$0xf]
  %v7123 = vld [vmem:[%s6 + $0xa4] sm:$0xf]
  %v7124 = vld [vmem:[%s6 + $0xa8] sm:$0xf]
  %v7125 = vld [vmem:[%s6 + $0xac] sm:$0xf]
  %v7126 = vld [vmem:[%s6 + $0xb0] sm:$0xf]
  %v7127 = vld [vmem:[%s6 + $0xb4] sm:$0xf]
  %v7128 = vld [vmem:[%s6 + $0xb8] sm:$0xf]
  %v7129 = vld [vmem:[%s6 + $0xbc] sm:$0xf]
  %v7130 = vld [vmem:[%s6 + $0xc0] sm:$0xf]
  %v7131 = vld [vmem:[%s6 + $0xc4] sm:$0xf]
  %v7132 = vld [vmem:[%s6 + $0xc8] sm:$0xf]
  %v7133 = vld [vmem:[%s6 + $0xcc] sm:$0xf]
  %v7134 = vld [vmem:[%s6 + $0xd0] sm:$0xf]
  %v7135 = vld [vmem:[%s6 + $0xd4] sm:$0xf]
  %v7136 = vld [vmem:[%s6 + $0xd8] sm:$0xf]
  %v7137 = vld [vmem:[%s6 + $0xdc] sm:$0xf]
  %v7138 = vld [vmem:[%s6 + $0xe0] sm:$0xf]
  %v7139 = vld [vmem:[%s6 + $0xe4] sm:$0xf]
  %v7140 = vld [vmem:[%s6 + $0xe8] sm:$0xf]
  %v7141 = vld [vmem:[%s6 + $0xec] sm:$0xf]
  %v7142 = vld [vmem:[%s6 + $0xf0] sm:$0xf]
  %v7143 = vld [vmem:[%s6 + $0xf4] sm:$0xf]
  %v7144 = vld [vmem:[%s6 + $0xf8] sm:$0xf]
  %v7145 = vld [vmem:[%s6 + $0xfc] sm:$0xf]
  %v7146 = vld [vmem:[%s7] sm:$0x1]
  %v7148 = vlaneseq
  %v7149 = vshrl.u32 %v7148, 7
  %v7150 = vsub.s32 0, %v7149
  %v7151 = vrot.slane %v7146, %v7150
  %v7217 = vunpack.c.l.b16 %v7082
  %v7218 = vunpack.c.l.b16 %v7083
  %v7219 = vunpack.c.l.b16 %v7084
  %v7220 = vunpack.c.l.b16 %v7085
  %v7221 = vunpack.c.l.b16 %v7086
  %v7222 = vunpack.c.l.b16 %v7087
  %v7223 = vunpack.c.l.b16 %v7088
  %v7224 = vunpack.c.l.b16 %v7089
  %v7225 = vunpack.c.l.b16 %v7090
  %v7226 = vunpack.c.l.b16 %v7091
  %v7227 = vunpack.c.l.b16 %v7092
  %v7228 = vunpack.c.l.b16 %v7093
  %v7229 = vunpack.c.l.b16 %v7094
  %v7230 = vunpack.c.l.b16 %v7095
  %v7231 = vunpack.c.l.b16 %v7096
  %v7232 = vunpack.c.l.b16 %v7097
  %v7233 = vunpack.c.l.b16 %v7098
  %v7234 = vunpack.c.l.b16 %v7099
  %v7235 = vunpack.c.l.b16 %v7100
  %v7236 = vunpack.c.l.b16 %v7101
  %v7237 = vunpack.c.l.b16 %v7102
  %v7238 = vunpack.c.l.b16 %v7103
  %v7239 = vunpack.c.l.b16 %v7104
  %v7240 = vunpack.c.l.b16 %v7105
  %v7241 = vunpack.c.l.b16 %v7106
  %v7242 = vunpack.c.l.b16 %v7107
  %v7243 = vunpack.c.l.b16 %v7108
  %v7244 = vunpack.c.l.b16 %v7109
  %v7245 = vunpack.c.l.b16 %v7110
  %v7246 = vunpack.c.l.b16 %v7111
  %v7247 = vunpack.c.l.b16 %v7112
  %v7248 = vunpack.c.l.b16 %v7113
  %v7249 = vunpack.c.l.b16 %v7114
  %v7250 = vunpack.c.l.b16 %v7115
  %v7251 = vunpack.c.l.b16 %v7116
  %v7252 = vunpack.c.l.b16 %v7117
  %v7253 = vunpack.c.l.b16 %v7118
  %v7254 = vunpack.c.l.b16 %v7119
  %v7255 = vunpack.c.l.b16 %v7120
  %v7256 = vunpack.c.l.b16 %v7121
  %v7257 = vunpack.c.l.b16 %v7122
  %v7258 = vunpack.c.l.b16 %v7123
  %v7259 = vunpack.c.l.b16 %v7124
  %v7260 = vunpack.c.l.b16 %v7125
  %v7261 = vunpack.c.l.b16 %v7126
  %v7262 = vunpack.c.l.b16 %v7127
  %v7263 = vunpack.c.l.b16 %v7128
  %v7264 = vunpack.c.l.b16 %v7129
  %v7265 = vunpack.c.l.b16 %v7130
  %v7266 = vunpack.c.l.b16 %v7131
  %v7267 = vunpack.c.l.b16 %v7132
  %v7268 = vunpack.c.l.b16 %v7133
  %v7269 = vunpack.c.l.b16 %v7134
  %v7270 = vunpack.c.l.b16 %v7135
  %v7271 = vunpack.c.l.b16 %v7136
  %v7272 = vunpack.c.l.b16 %v7137
  %v7273 = vunpack.c.l.b16 %v7138
  %v7274 = vunpack.c.l.b16 %v7139
  %v7275 = vunpack.c.l.b16 %v7140
  %v7276 = vunpack.c.l.b16 %v7141
  %v7277 = vunpack.c.l.b16 %v7142
  %v7278 = vunpack.c.l.b16 %v7143
  %v7279 = vunpack.c.l.b16 %v7144
  %v7280 = vunpack.c.l.b16 %v7145
  %v7281 = vpack.c.b16 %v7218, %v7217
  %v7282 = vpack.c.b16 %v7220, %v7219
  %v7283 = vpack.c.b16 %v7222, %v7221
  %v7284 = vpack.c.b16 %v7224, %v7223
  %v7285 = vpack.c.b16 %v7226, %v7225
  %v7286 = vpack.c.b16 %v7228, %v7227
  %v7287 = vpack.c.b16 %v7230, %v7229
  %v7288 = vpack.c.b16 %v7232, %v7231
  %v7289 = vpack.c.b16 %v7234, %v7233
  %v7290 = vpack.c.b16 %v7236, %v7235
  %v7291 = vpack.c.b16 %v7238, %v7237
  %v7292 = vpack.c.b16 %v7240, %v7239
  %v7293 = vpack.c.b16 %v7242, %v7241
  %v7294 = vpack.c.b16 %v7244, %v7243
  %v7295 = vpack.c.b16 %v7246, %v7245
  %v7296 = vpack.c.b16 %v7248, %v7247
  %v7297 = vpack.c.b16 %v7250, %v7249
  %v7298 = vpack.c.b16 %v7252, %v7251
  %v7299 = vpack.c.b16 %v7254, %v7253
  %v7300 = vpack.c.b16 %v7256, %v7255
  %v7301 = vpack.c.b16 %v7258, %v7257
  %v7302 = vpack.c.b16 %v7260, %v7259
  %v7303 = vpack.c.b16 %v7262, %v7261
  %v7304 = vpack.c.b16 %v7264, %v7263
  %v7305 = vpack.c.b16 %v7266, %v7265
  %v7306 = vpack.c.b16 %v7268, %v7267
  %v7307 = vpack.c.b16 %v7270, %v7269
  %v7308 = vpack.c.b16 %v7272, %v7271
  %v7309 = vpack.c.b16 %v7274, %v7273
  %v7310 = vpack.c.b16 %v7276, %v7275
  %v7311 = vpack.c.b16 %v7278, %v7277
  %v7312 = vpack.c.b16 %v7280, %v7279
  %7345 = vmatprep.subr.bf16.mxu0 0
  %7346 = vmatpush1.bf16.msra.mxu0 %v7281
  %7347 = vmatprep.subr.bf16.mxu0 0
  %7348 = vmatpush1.bf16.msra.mxu0 %v7282
  %7349 = vmatprep.subr.bf16.mxu0 0
  %7350 = vmatpush1.bf16.msra.mxu0 %v7283
  %7351 = vmatprep.subr.bf16.mxu0 0
  %7352 = vmatpush1.bf16.msra.mxu0 %v7284
  %7353 = vmatprep.subr.bf16.mxu0 0
  %7354 = vmatpush1.bf16.msra.mxu0 %v7285
  %7355 = vmatprep.subr.bf16.mxu0 0
  %7356 = vmatpush1.bf16.msra.mxu0 %v7286
  %7357 = vmatprep.subr.bf16.mxu0 0
  %7358 = vmatpush1.bf16.msra.mxu0 %v7287
  %7359 = vmatprep.subr.bf16.mxu0 0
  %7360 = vmatpush1.bf16.msra.mxu0 %v7288
  %7361 = vmatprep.subr.bf16.mxu0 0
  %7362 = vmatpush1.bf16.msra.mxu0 %v7289
  %7363 = vmatprep.subr.bf16.mxu0 0
  %7364 = vmatpush1.bf16.msra.mxu0 %v7290
  %7365 = vmatprep.subr.bf16.mxu0 0
  %7366 = vmatpush1.bf16.msra.mxu0 %v7291
  %7367 = vmatprep.subr.bf16.mxu0 0
  %7368 = vmatpush1.bf16.msra.mxu0 %v7292
  %7369 = vmatprep.subr.bf16.mxu0 0
  %7370 = vmatpush1.bf16.msra.mxu0 %v7293
  %7371 = vmatprep.subr.bf16.mxu0 0
  %7372 = vmatpush1.bf16.msra.mxu0 %v7294
  %7373 = vmatprep.subr.bf16.mxu0 0
  %7374 = vmatpush1.bf16.msra.mxu0 %v7295
  %7375 = vmatprep.subr.bf16.mxu0 0
  %7376 = vmatpush1.bf16.msra.mxu0 %v7296
  %7377 = vmatprep.mubr.bf16.mxu0 %v7079
  %7378 = vmatmul.mubr.bf16.gmra.mrb[0].mxu0 %v7078
  %v7379 = vpop.f32.mrb[0].mxu0
  %v7380 = vadd.f32 %v7151, %v7379
  %v7381 = vpop.f32.mrb[0].mxu0
  %v7382 = vpop.f32.mrb[0].mxu0
  %v7383 = vpop.f32.mrb[0].mxu0
  %7384 = vdwg.mxu0
  %7385 = vmatprep.subr.bf16.mxu0 0
  %7386 = vmatpush1.bf16.msra.mxu0 %v7297
  %7387 = vmatprep.subr.bf16.mxu0 0
  %7388 = vmatpush1.bf16.msra.mxu0 %v7298
  %7389 = vmatprep.subr.bf16.mxu0 0
  %7390 = vmatpush1.bf16.msra.mxu0 %v7299
  %7391 = vmatprep.subr.bf16.mxu0 0
  %7392 = vmatpush1.bf16.msra.mxu0 %v7300
  %7393 = vmatprep.subr.bf16.mxu0 0
  %7394 = vmatpush1.bf16.msra.mxu0 %v7301
  %7395 = vmatprep.subr.bf16.mxu0 0
  %7396 = vmatpush1.bf16.msra.mxu0 %v7302
  %7397 = vmatprep.subr.bf16.mxu0 0
  %7398 = vmatpush1.bf16.msra.mxu0 %v7303
  %7399 = vmatprep.subr.bf16.mxu0 0
  %7400 = vmatpush1.bf16.msra.mxu0 %v7304
  %7401 = vmatprep.subr.bf16.mxu0 0
  %7402 = vmatpush1.bf16.msra.mxu0 %v7305
  %7403 = vmatprep.subr.bf16.mxu0 0
  %7404 = vmatpush1.bf16.msra.mxu0 %v7306
  %7405 = vmatprep.subr.bf16.mxu0 0
  %7406 = vmatpush1.bf16.msra.mxu0 %v7307
  %7407 = vmatprep.subr.bf16.mxu0 0
  %7408 = vmatpush1.bf16.msra.mxu0 %v7308
  %7409 = vmatprep.subr.bf16.mxu0 0
  %7410 = vmatpush1.bf16.msra.mxu0 %v7309
  %7411 = vmatprep.subr.bf16.mxu0 0
  %7412 = vmatpush1.bf16.msra.mxu0 %v7310
  %7413 = vmatprep.subr.bf16.mxu0 0
  %7414 = vmatpush1.bf16.msra.mxu0 %v7311
  %7415 = vmatprep.subr.bf16.mxu0 0
  %7416 = vmatpush1.bf16.msra.mxu0 %v7312
  %7417 = vmatprep.mubr.bf16.mxu0 %v7081
  %7418 = vmatmul.mubr.bf16.gmra.mrb[0].mxu0 %v7080
  %v7419 = vpop.f32.mrb[0].mxu0
  %v7420 = vadd.f32 %v7380, %v7419
  %v7421 = vpop.f32.mrb[0].mxu0
  %v7422 = vpop.f32.mrb[0].mxu0
  %v7423 = vpop.f32.mrb[0].mxu0
  %7424 = vdwg.mxu0
  %v7425 = vmax.f32 %v7420, 0.0
  %v7426 = vpack.c.bf16 %v7425, %v7425
  %v7427 = vld [vmem:[%s8] sm:$0xf]
  %v7428 = vld [vmem:[%s8 + $0x4] sm:$0xf]
  %v7429 = vld [vmem:[%s8 + $0x8] sm:$0xf]
  %v7430 = vld [vmem:[%s8 + $0xc] sm:$0xf]
  %v7431 = vld [vmem:[%s8 + $0x10] sm:$0xf]
  %v7432 = vld [vmem:[%s8 + $0x14] sm:$0xf]
  %v7433 = vld [vmem:[%s8 + $0x18] sm:$0xf]
  %v7434 = vld [vmem:[%s8 + $0x1c] sm:$0xf]
  %v7435 = vld [vmem:[%s8 + $0x20] sm:$0xf]
  %v7436 = vld [vmem:[%s8 + $0x24] sm:$0xf]
  %v7437 = vld [vmem:[%s8 + $0x28] sm:$0xf]
  %v7438 = vld [vmem:[%s8 + $0x2c] sm:$0xf]
  %v7439 = vld [vmem:[%s8 + $0x30] sm:$0xf]
  %v7440 = vld [vmem:[%s8 + $0x34] sm:$0xf]
  %v7441 = vld [vmem:[%s8 + $0x38] sm:$0xf]
  %v7442 = vld [vmem:[%s8 + $0x3c] sm:$0xf]
  %v7443 = vld [vmem:[%s9] sm:$0x1]
  %v7445 = vlaneseq
  %v7446 = vshrl.u32 %v7445, 7
  %v7447 = vsub.s32 0, %v7446
  %v7448 = vrot.slane %v7443, %v7447
  %v7466 = vunpack.c.l.b16 %v7427
  %v7467 = vunpack.c.l.b16 %v7428
  %v7468 = vunpack.c.l.b16 %v7429
  %v7469 = vunpack.c.l.b16 %v7430
  %v7470 = vunpack.c.l.b16 %v7431
  %v7471 = vunpack.c.l.b16 %v7432
  %v7472 = vunpack.c.l.b16 %v7433
  %v7473 = vunpack.c.l.b16 %v7434
  %v7474 = vunpack.c.l.b16 %v7435
  %v7475 = vunpack.c.l.b16 %v7436
  %v7476 = vunpack.c.l.b16 %v7437
  %v7477 = vunpack.c.l.b16 %v7438
  %v7478 = vunpack.c.l.b16 %v7439
  %v7479 = vunpack.c.l.b16 %v7440
  %v7480 = vunpack.c.l.b16 %v7441
  %v7481 = vunpack.c.l.b16 %v7442
  %v7482 = vpack.c.b16 %v7467, %v7466
  %v7483 = vpack.c.b16 %v7469, %v7468
  %v7484 = vpack.c.b16 %v7471, %v7470
  %v7485 = vpack.c.b16 %v7473, %v7472
  %v7486 = vpack.c.b16 %v7475, %v7474
  %v7487 = vpack.c.b16 %v7477, %v7476
  %v7488 = vpack.c.b16 %v7479, %v7478
  %v7489 = vpack.c.b16 %v7481, %v7480
  %7498 = vmatprep.subr.bf16.mxu0 0
  %7499 = vmatpush1.bf16.msra.mxu0 %v7482
  %7500 = vmatprep.subr.bf16.mxu0 0
  %7501 = vmatpush1.bf16.msra.mxu0 %v7483
  %7502 = vmatprep.subr.bf16.mxu0 0
  %7503 = vmatpush1.bf16.msra.mxu0 %v7484
  %7504 = vmatprep.subr.bf16.mxu0 0
  %7505 = vmatpush1.bf16.msra.mxu0 %v7485
  %7506 = vmatprep.subr.bf16.mxu0 0
  %7507 = vmatpush1.bf16.msra.mxu0 %v7486
  %7508 = vmatprep.subr.bf16.mxu0 0
  %7509 = vmatpush1.bf16.msra.mxu0 %v7487
  %7510 = vmatprep.subr.bf16.mxu0 0
  %7511 = vmatpush1.bf16.msra.mxu0 %v7488
  %7512 = vmatprep.subr.bf16.mxu0 0
  %7513 = vmatpush1.bf16.msra.mxu0 %v7489
  %7514 = vmatprep.subr.bf16.mxu0 0
  %7515 = vmatpush1.bf16.msra.mxu0 0
  %7516 = vmatprep.subr.bf16.mxu0 0
  %7517 = vmatpush1.bf16.msra.mxu0 0
  %7518 = vmatprep.subr.bf16.mxu0 0
  %7519 = vmatpush1.bf16.msra.mxu0 0
  %7520 = vmatprep.subr.bf16.mxu0 0
  %7521 = vmatpush1.bf16.msra.mxu0 0
  %7522 = vmatprep.subr.bf16.mxu0 0
  %7523 = vmatpush1.bf16.msra.mxu0 0
  %7524 = vmatprep.subr.bf16.mxu0 0
  %7525 = vmatpush1.bf16.msra.mxu0 0
  %7526 = vmatprep.subr.bf16.mxu0 0
  %7527 = vmatpush1.bf16.msra.mxu0 0
  %7528 = vmatprep.subr.bf16.mxu0 0
  %7529 = vmatpush1.bf16.msra.mxu0 0
  %7530 = vmatprep.mubr.bf16.mxu0 0
  %7531 = vmatmul.mubr.bf16.gmra.mrb[0].mxu0 %v7426
  %v7532 = vpop.f32.mrb[0].mxu0
  %v7533 = vadd.f32 %v7448, %v7532
  %v7534 = vpop.f32.mrb[0].mxu0
  %v7535 = vpop.f32.mrb[0].mxu0
  %v7536 = vpop.f32.mrb[0].mxu0
  %7537 = vdwg.mxu0
  %7538 = vst [vmem:[%s10] sm:$0xf] %v7533
  // Predicated region
  $region86: #{_lambda_.1} parent=0 // pred_check
    _
  $region87: #{_lambda_.1} parent=0 // pred_check_branch
    %7540 = sbr.rel (0) target = $region89
  $region88: #{_lambda_.1} parent=0 // pred_region
    _
  $region89: #{_lambda_.1} parent=0 // pred_fallthru
    _
  // Predicated region
  $region90: #{_lambda_.1} parent=0 // pred_check
    _
  $region91: #{_lambda_.1} parent=0 // pred_check_branch
    %7542 = sbr.rel (0) target = $region93
  $region92: #{_lambda_.1} parent=0 // pred_region
    _
  $region93: #{_lambda_.1} parent=0 // pred_fallthru
    _
  %7543 = vsyncmov [#allocation3]
  %s7544 = vpop.sfrf %7543
  %p7545 = scmp.eq.s32.totalorder %s7544, 0
  %p7546 = pneg %p7545
  %7548 = shalt.err (%p7546)

</llo_original>
